<compile_context>
chip_gen: v7x
topology: tpu7x:2x2x1
jax: 0.10.0
libtpu: 0.0.40
codegen_flags: <defaults>
</compile_context>

<pallas_src>
import functools
import numpy as np
import jax
import jax.numpy as jnp
from jax.experimental import pallas as pl
from jax.experimental.pallas import tpu as pltpu


# ----------------------------- static numpy structure matrices -----------------------------

def _ru8(n):
    return (n + 7) // 8 * 8


def _strip_mask_stack(ws, num_heads):
    """Additive (0 / -1e30) masks restricting attention to same-column / same-row strips,
    stacked per head: first num_heads//2 heads -> column strips, rest -> row strips."""
    N = ws * ws
    hh = np.arange(N) // ws
    ww = np.arange(N) % ws
    col = np.where(ww[:, None] == ww[None, :], 0.0, -1e30).astype(np.float32)
    row = np.where(hh[:, None] == hh[None, :], 0.0, -1e30).astype(np.float32)
    nhh = num_heads // 2
    return np.concatenate([col] * nhh + [row] * nhh, axis=0)          # (num_heads*N, N)


def _lepe_shift_mats(ws, shift):
    """0/1 token-shift matrices for the LePE 3-tap depthwise conv, stacked (4N, N).

    Tokens are flattened as t = h*ws + w.  `shift` is the cyclic window shift of the
    block (torch.roll by (-shift, -shift)); the conv's zero padding sits at the *rolled*
    strip boundary while neighbours are cyclic in the original coordinates.
    Row-block order: [up (h-1), down (h+1), left (w-1), right (w+1)].
    """
    N = ws * ws
    mats = np.zeros((4, N, N), np.float32)
    for h in range(ws):
        for w in range(ws):
            t = h * ws + w
            hp = (h - shift) % ws           # position inside the rolled column strip
            wp = (w - shift) % ws           # position inside the rolled row strip
            if hp != 0:
                mats[0, t, ((h - 1) % ws) * ws + w] = 1.0
            if hp != ws - 1:
                mats[1, t, ((h + 1) % ws) * ws + w] = 1.0
            if wp != 0:
                mats[2, t, h * ws + (w - 1) % ws] = 1.0
            if wp != ws - 1:
                mats[3, t, h * ws + (w + 1) % ws] = 1.0
    return mats.reshape(4 * N, N)


def _conv3_shift_mats(ws):
    """0/1 token-shift matrices for the 3x3 same-padded conv; k = (dy+1)*3 + (dx+1)."""
    N = ws * ws
    mats = np.zeros((9, N, N), np.float32)
    taps = [(dy, dx) for dy in (-1, 0, 1) for dx in (-1, 0, 1)]
    for k, (dy, dx) in enumerate(taps):
        for h in range(ws):
            for w in range(ws):
                hs, wsr = h + dy, w + dx
                if 0 <= hs < ws and 0 <= wsr < ws:
                    mats[k, h * ws + w, hs * ws + wsr] = 1.0
    return mats


# ----------------------------- in-kernel math helpers -----------------------------

def _mm(a, w):
    """(M,K)@(K,N): cast LHS to the (bf16) weight dtype, accumulate in f32 on the MXU."""
    return jax.lax.dot_general(a.astype(w.dtype), w, (((1,), (0,)), ((), ())),
                               preferred_element_type=jnp.float32)


def _dot_nt(a, b):
    """Contract the last dim of both operands: (M,K)x(P,K) -> (M,P)."""
    return jax.lax.dot_general(a, b, (((1,), (1,)), ((), ())),
                               preferred_element_type=jnp.float32)


def _dot_tn(a, b):
    """Contract the first dim of both operands: (K,M)x(K,P) -> (M,P)."""
    return jax.lax.dot_general(a, b, (((0,), (0,)), ((), ())),
                               preferred_element_type=jnp.float32)


def _colsum(x):
    """Sum over the token (sublane) axis via a (1,N) MXU dot (avoids a cross-sublane reduce)."""
    ones = jnp.ones((1, x.shape[0]), jnp.float32)
    return jax.lax.dot_general(ones, x, (((1,), (0,)), ((), ())),
                               preferred_element_type=jnp.float32)


def _layernorm_modulate(x, gamma, beta, shift, scale, eps=1e-5):
    mu = jnp.mean(x, axis=-1, keepdims=True)
    xc = x - mu
    var = jnp.mean(xc * xc, axis=-1, keepdims=True)
    xn = xc * jax.lax.rsqrt(var + eps)
    return (xn * gamma + beta) * (1.0 + scale) + shift


def _gelu(x):
    # tanh-form GELU: transcendental work lands on the (otherwise idle) EUP slot.
    # |delta| vs exact erf-GELU <~ 1e-3, within the bf16-matmul tolerance regime.
    c = 0.7978845608028654  # sqrt(2/pi)
    return 0.5 * x * (1.0 + jnp.tanh(c * (x + 0.044715 * x * x * x)))


def _softmax_rows(s):
    s = s - jnp.max(s, axis=-1, keepdims=True)
    p = jnp.exp(s)
    # approx reciprocal on the EUP: small documented deviation vs exact division.
    return p * pl.reciprocal(jnp.sum(p, axis=-1, keepdims=True), approx=True)


# ----------------------------- fused RTBlock kernel -----------------------------

def _rtblock_kernel(x_ref, t_ref, mask_ref, lepe_ref, convS_ref, convW_ref, misc_ref,
                    wslab_ref, vslab_ref, o_ref, *, depth, num_heads, C, N, hidden,
                    off_spec, off_hm):
    f32, bf16 = jnp.float32, jnp.bfloat16
    hd = C // num_heads
    q_scale = float(hd) ** -0.5
    HN = num_heads * N

    # weight-slab row offsets (per block)
    R_ADA, R_SPQKV, R_SPPROJ = 0, C, 2 * C
    R_SPECQKV, R_SPECPROJ, R_FC1, R_FC2 = 3 * C, 4 * C, 5 * C, 6 * C
    # vector-slab row indices (per block)
    (V_ADAB, V_N1W, V_N1B, V_N2W, V_N2B, V_QKVB, V_PROJB, V_FC1B, V_FC2B,
     V_TUP, V_TDN, V_TLF, V_TRT, V_TMID, V_LEPEB, V_SSCALE) = range(16)

    x = x_ref[0].astype(f32)                          # (N, C) tokens of this batch element
    t = t_ref[0].astype(f32)                          # (1, C)
    shortcut_rt = x
    t_silu = t * (1.0 / (1.0 + jnp.exp(-t)))          # SiLU

    # TODO(synk): if depth grows beyond a few blocks, move this loop onto an "arbitrary"
    # grid axis with per-block slab indexing instead of fully unrolling.
    for bi in range(depth):
        def w_(r0, nr, nc, _bi=bi):                   # load bf16 weights at point of use
            return wslab_ref[_bi, r0:r0 + nr, 0:nc]

        def v_(r, nc, _bi=bi):                        # load f32 row-vectors at point of use
            return vslab_ref[_bi, r:r + 1, 0:nc]

        # adaLN modulation of the timestep embedding: (1, 6C)
        mod = _mm(t_silu, w_(R_ADA, C, 6 * C)) + v_(V_ADAB, 6 * C)
        sh_msa, sc_msa, g_msa = mod[:, 0:C], mod[:, C:2 * C], mod[:, 2 * C:3 * C]
        sh_mlp, sc_mlp, g_mlp = mod[:, 3 * C:4 * C], mod[:, 4 * C:5 * C], mod[:, 5 * C:6 * C]

        shortcut = x
        xm = _layernorm_modulate(x, v_(V_N1W, C), v_(V_N1B, C), sh_msa, sc_msa)

        # ---------------- spatial CSWin window attention (with LePE) ----------------
        qkv = _mm(xm, w_(R_SPQKV, C, 3 * C)) + v_(V_QKVB, 3 * C)      # (N, 3C) f32
        q = qkv[:, 0:C] * q_scale
        k16 = qkv[:, C:2 * C].astype(bf16)
        v = qkv[:, 2 * C:3 * C]
        v16 = v.astype(bf16)

        # LePE depthwise 3-tap conv: ONE stacked (4N,N)x(N,C) shift matmul + tap vectors.
        vsh = _mm(lepe_ref[bi % 2], v16)                              # (4N, C) f32
        lepe = (vsh[0 * N:1 * N] * v_(V_TUP, C) + vsh[1 * N:2 * N] * v_(V_TDN, C)
                + vsh[2 * N:3 * N] * v_(V_TLF, C) + vsh[3 * N:4 * N] * v_(V_TRT, C)
                + v * v_(V_TMID, C) + v_(V_LEPEB, C))

        # All heads in ONE score matmul: head h only sees its channel lanes of Q (k lanes of
        # other heads multiply exact zeros), strip grouping via the additive mask stack.
        hm = misc_ref[off_hm:off_hm + HN, :]                          # (HN, C) 0/1 head masks
        qstack = (jnp.concatenate([q] * num_heads, axis=0) * hm).astype(bf16)   # (HN, C)
        s = _dot_nt(qstack, k16) + mask_ref[...]                      # (HN, N)
        p = _softmax_rows(s)
        pv = _mm(p.astype(bf16), v16) * hm                            # (HN, C), head-masked
        y = lepe
        for h in range(num_heads):
            y = y + pv[h * N:(h + 1) * N]
        xa = _mm(y, w_(R_SPPROJ, C, C)) + v_(V_PROJB, C)              # 'b n (g d)->(d g)' folded

        # ---------------- residual spectral (channel) attention ----------------
        qkv2 = _mm(xa, w_(R_SPECQKV, C, 3 * C))                       # bias-free
        q2, k2, v2 = qkv2[:, 0:C], qkv2[:, C:2 * C], qkv2[:, 2 * C:3 * C]
        qn = q2 * jax.lax.rsqrt(jnp.maximum(_colsum(q2 * q2), 1e-24)) * v_(V_SSCALE, C)
        kn = k2 * jax.lax.rsqrt(jnp.maximum(_colsum(k2 * k2), 1e-24))
        a = _dot_tn(qn.astype(bf16), kn.astype(bf16))                 # (C, C) gram, all heads
        a = a + misc_ref[off_spec:off_spec + C, :]                    # block-diag head mask
        p2 = _softmax_rows(a)
        o2 = _dot_nt(v2.astype(bf16), p2.astype(bf16))                # (N, C)
        xr = _mm(o2, w_(R_SPECPROJ, C, C)) + xa                       # RSA residual

        x = shortcut + g_msa * xr

        # ---------------- MLP ----------------
        xm2 = _layernorm_modulate(x, v_(V_N2W, C), v_(V_N2B, C), sh_mlp, sc_mlp)
        h1 = _gelu(_mm(xm2, w_(R_FC1, C, hidden)) + v_(V_FC1B, hidden))
        h2 = _mm(h1, w_(R_FC2, hidden, C)) + v_(V_FC2B, C)
        x = x + g_mlp * h2

    # ---------------- final 3x3 conv + RTBlock residual: TWO matmuls ----------------
    xw = _mm(x.astype(jnp.bfloat16), convW_ref[...])                  # (N, 9C): x @ W_k per tap
    stacked = jnp.concatenate(
        [xw[:, k * C:(k + 1) * C].astype(jnp.bfloat16) for k in range(9)], axis=0)  # (9N, C)
    conv_out = _mm(convS_ref[...], stacked)                           # (N, C)
    o_ref[0] = (shortcut_rt + conv_out + misc_ref[0:1, :]).astype(o_ref.dtype)


# ----------------------------- wrapper -----------------------------

def _const_spec(shape):
    zeros = (0,) * len(shape)
    return pl.BlockSpec(tuple(int(s) for s in shape), lambda b, _z=zeros: _z)


def rtblock_forward(x, t, params, cfg):
    B, C, H, W = x.shape
    ws = cfg['window_size']
    num_heads = cfg['num_heads']
    depth = len(params['blocks'])
    # TODO(synk): general H,W > window_size would need window tiling on the grid; the module
    # is configured with input_resolution == window_size, which is what we specialize to.
    assert H == ws and W == ws, "fused kernel specialized to H == W == window_size"
    assert C % num_heads == 0 and C % 4 == 0 and num_heads % 2 == 0
    N = H * W
    hd = C // num_heads
    half = C // 2
    hidden = params['blocks'][0]['fc1_w'].shape[1]
    slab_w = max(6 * C, hidden)

    # ---- static structure matrices (numpy; 0/1 matrices are exact in bf16) ----
    mask_stack = jnp.asarray(_strip_mask_stack(ws, num_heads))                       # (H*N, N)
    lepe_stack = jnp.asarray(np.stack([_lepe_shift_mats(ws, 0),
                                       _lepe_shift_mats(ws, ws // 2)])).astype(jnp.bfloat16)
    conv_sbig = jnp.asarray(np.transpose(_conv3_shift_mats(ws), (1, 0, 2))
                            .reshape(N, 9 * N)).astype(jnp.bfloat16)                 # (N, 9N)

    # ---- misc f32 slab: [conv bias | spectral block-diag head mask | per-head lane masks] ----
    off_spec = 8
    off_hm = off_spec + _ru8(C)
    headmask_np = np.zeros((num_heads * N, C), np.float32)
    for h in range(num_heads):
        headmask_np[h * N:(h + 1) * N, h * hd:(h + 1) * hd] = 1.0
    headc = np.arange(C) // hd
    specmask_np = np.where(headc[:, None] == headc[None, :], 0.0, -1e30).astype(np.float32)
    misc = jnp.zeros((off_hm + num_heads * N, C), jnp.float32)
    misc = misc.at[0, :].set(params['conv_b'].astype(jnp.float32))
    misc = misc.at[off_spec:off_spec + C, :].set(jnp.asarray(specmask_np))
    misc = misc.at[off_hm:off_hm + num_heads * N, :].set(jnp.asarray(headmask_np))

    # final conv weights: HWIO (3,3,C,C) -> (C, 9C) with column block k = W_k
    conv_wcat = jnp.transpose(params['conv_w'].reshape(9, C, C), (1, 0, 2)
                              ).reshape(C, 9 * C).astype(jnp.bfloat16)

    # ---- per-block parameter slabs (one bf16 weight slab + one f32 row slab per block) ----
    g = 4
    d = C // g
    src = np.array([gi * d + di for di in range(d) for gi in range(g)])
    inv = np.argsort(src)            # fold 'b n (g d) -> b n (d g)' shuffle into proj rows

    def pad_w(w):
        return jnp.pad(w.astype(jnp.float32), ((0, 0), (0, slab_w - w.shape[1])))

    def rowvec(v):
        v = v.reshape(1, -1).astype(jnp.float32)
        return jnp.pad(v, ((0, 0), (0, slab_w - v.shape[1])))

    def block_wslab(bp):
        return jnp.concatenate([
            pad_w(bp['ada_w']),
            pad_w(bp['spatial']['qkv_w']),
            pad_w(bp['spatial']['proj_w'][inv, :]),
            pad_w(bp['spectral']['qkv_w']),
            pad_w(bp['spectral']['proj_w']),
            pad_w(bp['fc1_w']),
            pad_w(bp['fc2_w']),
        ], axis=0).astype(jnp.bfloat16)                                # (6C+hidden, slab_w)

    def block_vslab(bp):
        z = jnp.zeros((half,), jnp.float32)
        w0 = bp['spatial']['attn0']['get_v_w'][:, 0, :, 1]             # vertical strip taps (kh)
        w1 = bp['spatial']['attn1']['get_v_w'][:, 0, 1, :]             # horizontal strip taps (kw)
        rows = [
            bp['ada_b'], bp['norm1_w'], bp['norm1_b'], bp['norm2_w'], bp['norm2_b'],
            bp['spatial']['qkv_b'], bp['spatial']['proj_b'], bp['fc1_b'], bp['fc2_b'],
            jnp.concatenate([w0[:, 0], z]),                            # tau_up
            jnp.concatenate([w0[:, 2], z]),                            # tau_down
            jnp.concatenate([z, w1[:, 0]]),                            # tau_left
            jnp.concatenate([z, w1[:, 2]]),                            # tau_right
            jnp.concatenate([w0[:, 1], w1[:, 1]]),                     # tau_mid (centre tap)
            jnp.concatenate([bp['spatial']['attn0']['get_v_b'],
                             bp['spatial']['attn1']['get_v_b']]),      # lepe bias
            jnp.repeat(bp['spectral']['scale'].reshape(-1), hd),       # per-channel RSA scale
        ]
        return jnp.concatenate([rowvec(r) for r in rows], axis=0)      # (16, slab_w)

    wslab = jnp.stack([block_wslab(bp) for bp in params['blocks']])    # (depth, 6C+hidden, slab_w)
    vslab = jnp.stack([block_vslab(bp) for bp in params['blocks']])    # (depth, 16, slab_w)

    # token-major (N, C) layout in-kernel
    # TODO(synk): fold these transposes into the kernel (or keep the surrounding model
    # token-major) to drop two small XLA transpose kernels around the fused call.
    x_tok = jnp.transpose(x.reshape(B, C, N), (0, 2, 1)).astype(jnp.float32)
    t3 = t.reshape(B, 1, C).astype(jnp.float32)

    kernel = functools.partial(_rtblock_kernel, depth=depth, num_heads=num_heads, C=C, N=N,
                               hidden=hidden, off_spec=off_spec, off_hm=off_hm)

    out_tok = pl.pallas_call(
        kernel,
        out_shape=jax.ShapeDtypeStruct((B, N, C), jnp.float32),
        grid=(B,),
        in_specs=[pl.BlockSpec((1, N, C), lambda b: (b, 0, 0)),
                  pl.BlockSpec((1, 1, C), lambda b: (b, 0, 0)),
                  _const_spec(mask_stack.shape),
                  _const_spec(lepe_stack.shape),
                  _const_spec(conv_sbig.shape),
                  _const_spec(conv_wcat.shape),
                  _const_spec(misc.shape),
                  _const_spec(wslab.shape),
                  _const_spec(vslab.shape)],
        out_specs=pl.BlockSpec((1, N, C), lambda b: (b, 0, 0)),
        # "parallel" batch grid feeds both v7x TensorCores one batch element each.
        # TODO(synk): on single-TC chips (v5e/v6e) merging the batch into one M=B*N step
        # with batch-block-diagonal masks would halve the fixed per-step overheads.
        compiler_params=pltpu.CompilerParams(dimension_semantics=("parallel",)),
    )(x_tok, t3, mask_stack, lepe_stack, conv_sbig, conv_wcat, misc, wslab, vslab)

    return jnp.transpose(out_tok, (0, 2, 1)).reshape(B, C, H, W)


# ----------------------------- deterministic parameter init -----------------------------

def init_params(key, dim, num_heads, mlp_ratio, depth):
    kit = iter(jax.random.split(key, 1024))

    def nrm(shape, s=0.05):
        return jax.random.normal(next(kit), shape, jnp.float32) * s

    hidden = int(dim * mlp_ratio)
    half = dim // 2
    blocks = []
    for _ in range(depth):
        def lepe_p():
            return {'get_v_w': nrm((half, 1, 3, 3)), 'get_v_b': nrm((half,))}
        blocks.append({
            # NOTE: PyTorch inits adaLN weights/bias to zero (which would make each S2TLA
            # an identity); small random values are used so the whole path is exercised.
            'ada_w': nrm((dim, 6 * dim)),
            'ada_b': nrm((6 * dim,)),
            'norm1_w': jnp.ones((dim,), jnp.float32), 'norm1_b': jnp.zeros((dim,), jnp.float32),
            'norm2_w': jnp.ones((dim,), jnp.float32), 'norm2_b': jnp.zeros((dim,), jnp.float32),
            'spatial': {
                'qkv_w': nrm((dim, 3 * dim)), 'qkv_b': nrm((3 * dim,)),
                'proj_w': nrm((dim, dim)), 'proj_b': nrm((dim,)),
                'attn0': lepe_p(), 'attn1': lepe_p(),
            },
            'spectral': {
                'qkv_w': nrm((dim, 3 * dim)),               # 1x1 conv, bias=False
                'proj_w': nrm((dim, dim)),                  # 1x1 conv, bias=False
                'scale': jnp.ones((num_heads, 1, 1), jnp.float32),
            },
            'fc1_w': nrm((dim, hidden)), 'fc1_b': nrm((hidden,)),
            'fc2_w': nrm((hidden, dim)), 'fc2_b': nrm((dim,)),
        })
    return {
        'blocks': blocks,
        'conv_w': nrm((3, 3, dim, dim)),                    # HWIO
        'conv_b': nrm((dim,)),
    }


# ----------------------------- main -----------------------------

if __name__ == "__main__":
    B, C, H, W = 2, 24, 8, 8                   # dim=24, window=8, heads=4, depth=2
    cfg = dict(window_size=8, num_heads=4, mlp_ratio=2, depth=2)

    key = jax.random.PRNGKey(0)
    kx, kt, kp = jax.random.split(key, 3)
    x = jax.random.normal(kx, (B, C, H, W), jnp.float32)
    t = jax.random.normal(kt, (B, C), jnp.float32)
    params = init_params(kp, C, cfg['num_heads'], cfg['mlp_ratio'], cfg['depth'])

    fwd = jax.jit(functools.partial(rtblock_forward, cfg=cfg))
    out = fwd(x, t, params)
    out = jax.block_until_ready(out)

    assert out.shape == (B, C, H, W), out.shape
    assert bool(jnp.all(jnp.isfinite(out)))
    print("KERNEL_OK")
</pallas_src>

<mosaic_0001>
module attributes {stable_mosaic.version = 11 : i64} {
  func.func @_rtblock_kernel(%arg0: i32, %arg1: memref<1x64x24xf32, #tpu.memory_space<vmem>>, %arg2: memref<1x1x24xf32, #tpu.memory_space<vmem>>, %arg3: memref<256x64xf32, #tpu.memory_space<vmem>>, %arg4: memref<2x256x64xbf16, #tpu.memory_space<vmem>>, %arg5: memref<64x576xbf16, #tpu.memory_space<vmem>>, %arg6: memref<24x216xbf16, #tpu.memory_space<vmem>>, %arg7: memref<288x24xf32, #tpu.memory_space<vmem>>, %arg8: memref<2x192x144xbf16, #tpu.memory_space<vmem>>, %arg9: memref<2x16x144xf32, #tpu.memory_space<vmem>>, %arg10: memref<1x64x24xf32, #tpu.memory_space<vmem>>) attributes {dimension_semantics = [#tpu.dimension_semantics<parallel>], iteration_bounds = array<i64: 2>, scalar_prefetch = 0 : i64, scratch_operands = 0 : i64, tpu.core_type = #tpu.core_type<tc>, window_params = [{transform_indices = @transform_0, window_bounds = array<i64: 1, 64, 24>}, {transform_indices = @transform_1, window_bounds = array<i64: 1, 1, 24>}, {pipeline_mode = #tpu.pipeline_mode<synchronous>, transform_indices = @transform_2, window_bounds = array<i64: 256, 64>}, {pipeline_mode = #tpu.pipeline_mode<synchronous>, transform_indices = @transform_3, window_bounds = array<i64: 2, 256, 64>}, {pipeline_mode = #tpu.pipeline_mode<synchronous>, transform_indices = @transform_4, window_bounds = array<i64: 64, 576>}, {pipeline_mode = #tpu.pipeline_mode<synchronous>, transform_indices = @transform_5, window_bounds = array<i64: 24, 216>}, {pipeline_mode = #tpu.pipeline_mode<synchronous>, transform_indices = @transform_6, window_bounds = array<i64: 288, 24>}, {pipeline_mode = #tpu.pipeline_mode<synchronous>, transform_indices = @transform_7, window_bounds = array<i64: 2, 192, 144>}, {pipeline_mode = #tpu.pipeline_mode<synchronous>, transform_indices = @transform_8, window_bounds = array<i64: 2, 16, 144>}, {transform_indices = @transform_9, window_bounds = array<i64: 1, 64, 24>}]} {
    %c0 = arith.constant 0 : index
    %c0_0 = arith.constant 0 : index
    %c0_1 = arith.constant 0 : index
    %0 = vector.load %arg1[%c0, %c0_0, %c0_1] : memref<1x64x24xf32, #tpu.memory_space<vmem>>, vector<1x64x24xf32>
    %1 = vector.shape_cast %0 : vector<1x64x24xf32> to vector<64x24xf32>
    %c0_2 = arith.constant 0 : index
    %c0_3 = arith.constant 0 : index
    %c0_4 = arith.constant 0 : index
    %2 = vector.load %arg2[%c0_2, %c0_3, %c0_4] : memref<1x1x24xf32, #tpu.memory_space<vmem>>, vector<1x1x24xf32>
    %3 = vector.shape_cast %2 : vector<1x1x24xf32> to vector<1x24xf32>
    %cst = arith.constant 0.000000e+00 : f32
    %4 = vector.broadcast %cst : f32 to vector<1x24xf32>
    %5 = arith.subf %4, %3 : vector<1x24xf32>
    %6 = math.exp %5 : vector<1x24xf32>
    %cst_5 = arith.constant 1.000000e+00 : f32
    %7 = vector.broadcast %cst_5 : f32 to vector<1x24xf32>
    %8 = arith.addf %7, %6 : vector<1x24xf32>
    %cst_6 = arith.constant 1.000000e+00 : f32
    %9 = vector.broadcast %cst_6 : f32 to vector<1x24xf32>
    %10 = arith.divf %9, %8 : vector<1x24xf32>
    %11 = arith.mulf %3, %10 : vector<1x24xf32>
    %c0_7 = arith.constant 0 : index
    %c0_8 = arith.constant 0 : index
    %c0_9 = arith.constant 0 : index
    %12 = vector.load %arg8[%c0_7, %c0_8, %c0_9] : memref<2x192x144xbf16, #tpu.memory_space<vmem>>, vector<1x24x144xbf16>
    %13 = vector.shape_cast %12 : vector<1x24x144xbf16> to vector<24x144xbf16>
    %14 = arith.truncf %11 : vector<1x24xf32> to vector<1x24xbf16>
    %cst_10 = arith.constant dense<0.000000e+00> : vector<1x144xf32>
    %15 = tpu.matmul %14, %13, %cst_10 {dimension_numbers = #tpu.dot_dimension_numbers<[1], [0], [0], [1], [0, 0, 1, 1], [], []>} : vector<1x24xbf16>, vector<24x144xbf16>, vector<1x144xf32> -> vector<1x144xf32>
    %c0_11 = arith.constant 0 : index
    %c0_12 = arith.constant 0 : index
    %c0_13 = arith.constant 0 : index
    %16 = vector.load %arg9[%c0_11, %c0_12, %c0_13] : memref<2x16x144xf32, #tpu.memory_space<vmem>>, vector<1x1x144xf32>
    %17 = vector.shape_cast %16 : vector<1x1x144xf32> to vector<1x144xf32>
    %18 = arith.addf %15, %17 : vector<1x144xf32>
    %19 = vector.extract_strided_slice %18 {offsets = [0, 0], sizes = [1, 24], strides = [1, 1]} : vector<1x144xf32> to vector<1x24xf32>
    %20 = vector.extract_strided_slice %18 {offsets = [0, 24], sizes = [1, 24], strides = [1, 1]} : vector<1x144xf32> to vector<1x24xf32>
    %21 = vector.extract_strided_slice %18 {offsets = [0, 48], sizes = [1, 24], strides = [1, 1]} : vector<1x144xf32> to vector<1x24xf32>
    %22 = vector.extract_strided_slice %18 {offsets = [0, 72], sizes = [1, 24], strides = [1, 1]} : vector<1x144xf32> to vector<1x24xf32>
    %23 = vector.extract_strided_slice %18 {offsets = [0, 96], sizes = [1, 24], strides = [1, 1]} : vector<1x144xf32> to vector<1x24xf32>
    %24 = vector.extract_strided_slice %18 {offsets = [0, 120], sizes = [1, 24], strides = [1, 1]} : vector<1x144xf32> to vector<1x24xf32>
    %c0_14 = arith.constant 0 : index
    %c1 = arith.constant 1 : index
    %c0_15 = arith.constant 0 : index
    %25 = vector.load %arg9[%c0_14, %c1, %c0_15] : memref<2x16x144xf32, #tpu.memory_space<vmem>>, vector<1x1x24xf32>
    %26 = vector.shape_cast %25 : vector<1x1x24xf32> to vector<1x24xf32>
    %c0_16 = arith.constant 0 : index
    %c2 = arith.constant 2 : index
    %c0_17 = arith.constant 0 : index
    %27 = vector.load %arg9[%c0_16, %c2, %c0_17] : memref<2x16x144xf32, #tpu.memory_space<vmem>>, vector<1x1x24xf32>
    %28 = vector.shape_cast %27 : vector<1x1x24xf32> to vector<1x24xf32>
    %cst_18 = arith.constant dense<0.000000e+00> : vector<64xf32>
    %29 = vector.multi_reduction <add>, %1, %cst_18 [1] : vector<64x24xf32> to vector<64xf32>
    %30 = vector.shape_cast %29 : vector<64xf32> to vector<64x1xf32>
    %cst_19 = arith.constant 2.400000e+01 : f32
    %31 = vector.broadcast %cst_19 : f32 to vector<64x1xf32>
    %32 = arith.divf %30, %31 : vector<64x1xf32>
    %33 = vector.broadcast %32 : vector<64x1xf32> to vector<64x24xf32>
    %34 = arith.subf %1, %33 : vector<64x24xf32>
    %35 = arith.mulf %34, %34 : vector<64x24xf32>
    %cst_20 = arith.constant dense<0.000000e+00> : vector<64xf32>
    %36 = vector.multi_reduction <add>, %35, %cst_20 [1] : vector<64x24xf32> to vector<64xf32>
    %37 = vector.shape_cast %36 : vector<64xf32> to vector<64x1xf32>
    %cst_21 = arith.constant 2.400000e+01 : f32
    %38 = vector.broadcast %cst_21 : f32 to vector<64x1xf32>
    %39 = arith.divf %37, %38 : vector<64x1xf32>
    %cst_22 = arith.constant 9.99999974E-6 : f32
    %40 = vector.broadcast %cst_22 : f32 to vector<64x1xf32>
    %41 = arith.addf %39, %40 : vector<64x1xf32>
    %42 = math.rsqrt %41 : vector<64x1xf32>
    %43 = vector.broadcast %42 : vector<64x1xf32> to vector<64x24xf32>
    %44 = arith.mulf %34, %43 : vector<64x24xf32>
    %45 = vector.broadcast %26 : vector<1x24xf32> to vector<64x24xf32>
    %46 = arith.mulf %44, %45 : vector<64x24xf32>
    %47 = vector.broadcast %28 : vector<1x24xf32> to vector<64x24xf32>
    %48 = arith.addf %46, %47 : vector<64x24xf32>
    %cst_23 = arith.constant 1.000000e+00 : f32
    %49 = vector.broadcast %cst_23 : f32 to vector<1x24xf32>
    %50 = arith.addf %49, %20 : vector<1x24xf32>
    %51 = vector.broadcast %50 : vector<1x24xf32> to vector<64x24xf32>
    %52 = arith.mulf %48, %51 : vector<64x24xf32>
    %53 = vector.broadcast %19 : vector<1x24xf32> to vector<64x24xf32>
    %54 = arith.addf %52, %53 : vector<64x24xf32>
    %c0_24 = arith.constant 0 : index
    %c24 = arith.constant 24 : index
    %c0_25 = arith.constant 0 : index
    %55 = vector.load %arg8[%c0_24, %c24, %c0_25] : memref<2x192x144xbf16, #tpu.memory_space<vmem>>, vector<1x24x72xbf16>
    %56 = vector.shape_cast %55 : vector<1x24x72xbf16> to vector<24x72xbf16>
    %57 = arith.truncf %54 : vector<64x24xf32> to vector<64x24xbf16>
    %cst_26 = arith.constant dense<0.000000e+00> : vector<64x72xf32>
    %58 = tpu.matmul %57, %56, %cst_26 {dimension_numbers = #tpu.dot_dimension_numbers<[1], [0], [0], [1], [0, 0, 1, 1], [], []>} : vector<64x24xbf16>, vector<24x72xbf16>, vector<64x72xf32> -> vector<64x72xf32>
    %c0_27 = arith.constant 0 : index
    %c5 = arith.constant 5 : index
    %c0_28 = arith.constant 0 : index
    %59 = vector.load %arg9[%c0_27, %c5, %c0_28] : memref<2x16x144xf32, #tpu.memory_space<vmem>>, vector<1x1x72xf32>
    %60 = vector.shape_cast %59 : vector<1x1x72xf32> to vector<1x72xf32>
    %61 = vector.broadcast %60 : vector<1x72xf32> to vector<64x72xf32>
    %62 = arith.addf %58, %61 : vector<64x72xf32>
    %63 = vector.extract_strided_slice %62 {offsets = [0, 0], sizes = [64, 24], strides = [1, 1]} : vector<64x72xf32> to vector<64x24xf32>
    %cst_29 = arith.constant 0.408248305 : f32
    %64 = vector.broadcast %cst_29 : f32 to vector<64x24xf32>
    %65 = arith.mulf %63, %64 : vector<64x24xf32>
    %66 = vector.extract_strided_slice %62 {offsets = [0, 24], sizes = [64, 24], strides = [1, 1]} : vector<64x72xf32> to vector<64x24xf32>
    %67 = arith.truncf %66 : vector<64x24xf32> to vector<64x24xbf16>
    %68 = vector.extract_strided_slice %62 {offsets = [0, 48], sizes = [64, 24], strides = [1, 1]} : vector<64x72xf32> to vector<64x24xf32>
    %69 = arith.truncf %68 : vector<64x24xf32> to vector<64x24xbf16>
    %c0_30 = arith.constant 0 : index
    %c0_31 = arith.constant 0 : index
    %c0_32 = arith.constant 0 : index
    %70 = vector.load %arg4[%c0_30, %c0_31, %c0_32] : memref<2x256x64xbf16, #tpu.memory_space<vmem>>, vector<1x256x64xbf16>
    %71 = vector.shape_cast %70 : vector<1x256x64xbf16> to vector<256x64xbf16>
    %cst_33 = arith.constant dense<0.000000e+00> : vector<256x24xf32>
    %72 = tpu.matmul %71, %69, %cst_33 {dimension_numbers = #tpu.dot_dimension_numbers<[1], [0], [0], [1], [0, 0, 1, 1], [], []>} : vector<256x64xbf16>, vector<64x24xbf16>, vector<256x24xf32> -> vector<256x24xf32>
    %73 = vector.extract_strided_slice %72 {offsets = [0, 0], sizes = [64, 24], strides = [1, 1]} : vector<256x24xf32> to vector<64x24xf32>
    %c0_34 = arith.constant 0 : index
    %c9 = arith.constant 9 : index
    %c0_35 = arith.constant 0 : index
    %74 = vector.load %arg9[%c0_34, %c9, %c0_35] : memref<2x16x144xf32, #tpu.memory_space<vmem>>, vector<1x1x24xf32>
    %75 = vector.shape_cast %74 : vector<1x1x24xf32> to vector<1x24xf32>
    %76 = vector.broadcast %75 : vector<1x24xf32> to vector<64x24xf32>
    %77 = arith.mulf %73, %76 : vector<64x24xf32>
    %78 = vector.extract_strided_slice %72 {offsets = [64, 0], sizes = [64, 24], strides = [1, 1]} : vector<256x24xf32> to vector<64x24xf32>
    %c0_36 = arith.constant 0 : index
    %c10 = arith.constant 10 : index
    %c0_37 = arith.constant 0 : index
    %79 = vector.load %arg9[%c0_36, %c10, %c0_37] : memref<2x16x144xf32, #tpu.memory_space<vmem>>, vector<1x1x24xf32>
    %80 = vector.shape_cast %79 : vector<1x1x24xf32> to vector<1x24xf32>
    %81 = vector.broadcast %80 : vector<1x24xf32> to vector<64x24xf32>
    %82 = arith.mulf %78, %81 : vector<64x24xf32>
    %83 = arith.addf %77, %82 : vector<64x24xf32>
    %84 = vector.extract_strided_slice %72 {offsets = [128, 0], sizes = [64, 24], strides = [1, 1]} : vector<256x24xf32> to vector<64x24xf32>
    %c0_38 = arith.constant 0 : index
    %c11 = arith.constant 11 : index
    %c0_39 = arith.constant 0 : index
    %85 = vector.load %arg9[%c0_38, %c11, %c0_39] : memref<2x16x144xf32, #tpu.memory_space<vmem>>, vector<1x1x24xf32>
    %86 = vector.shape_cast %85 : vector<1x1x24xf32> to vector<1x24xf32>
    %87 = vector.broadcast %86 : vector<1x24xf32> to vector<64x24xf32>
    %88 = arith.mulf %84, %87 : vector<64x24xf32>
    %89 = arith.addf %83, %88 : vector<64x24xf32>
    %90 = vector.extract_strided_slice %72 {offsets = [192, 0], sizes = [64, 24], strides = [1, 1]} : vector<256x24xf32> to vector<64x24xf32>
    %c0_40 = arith.constant 0 : index
    %c12 = arith.constant 12 : index
    %c0_41 = arith.constant 0 : index
    %91 = vector.load %arg9[%c0_40, %c12, %c0_41] : memref<2x16x144xf32, #tpu.memory_space<vmem>>, vector<1x1x24xf32>
    %92 = vector.shape_cast %91 : vector<1x1x24xf32> to vector<1x24xf32>
    %93 = vector.broadcast %92 : vector<1x24xf32> to vector<64x24xf32>
    %94 = arith.mulf %90, %93 : vector<64x24xf32>
    %95 = arith.addf %89, %94 : vector<64x24xf32>
    %c0_42 = arith.constant 0 : index
    %c13 = arith.constant 13 : index
    %c0_43 = arith.constant 0 : index
    %96 = vector.load %arg9[%c0_42, %c13, %c0_43] : memref<2x16x144xf32, #tpu.memory_space<vmem>>, vector<1x1x24xf32>
    %97 = vector.shape_cast %96 : vector<1x1x24xf32> to vector<1x24xf32>
    %98 = vector.broadcast %97 : vector<1x24xf32> to vector<64x24xf32>
    %99 = arith.mulf %68, %98 : vector<64x24xf32>
    %100 = arith.addf %95, %99 : vector<64x24xf32>
    %c0_44 = arith.constant 0 : index
    %c14 = arith.constant 14 : index
    %c0_45 = arith.constant 0 : index
    %101 = vector.load %arg9[%c0_44, %c14, %c0_45] : memref<2x16x144xf32, #tpu.memory_space<vmem>>, vector<1x1x24xf32>
    %102 = vector.shape_cast %101 : vector<1x1x24xf32> to vector<1x24xf32>
    %103 = vector.broadcast %102 : vector<1x24xf32> to vector<64x24xf32>
    %104 = arith.addf %100, %103 : vector<64x24xf32>
    %c32 = arith.constant 32 : index
    %c0_46 = arith.constant 0 : index
    %105 = vector.load %arg7[%c32, %c0_46] : memref<288x24xf32, #tpu.memory_space<vmem>>, vector<256x24xf32>
    %106 = tpu.concatenate %65, %65, %65, %65 in 0 : vector<64x24xf32>, vector<64x24xf32>, vector<64x24xf32>, vector<64x24xf32> -> vector<256x24xf32>
    %107 = arith.mulf %106, %105 : vector<256x24xf32>
    %108 = arith.truncf %107 : vector<256x24xf32> to vector<256x24xbf16>
    %cst_47 = arith.constant dense<0.000000e+00> : vector<256x64xf32>
    %109 = tpu.matmul %108, %67, %cst_47 {dimension_numbers = #tpu.dot_dimension_numbers<[1], [1], [0], [0], [0, 0, 1, 0], [], []>} : vector<256x24xbf16>, vector<64x24xbf16>, vector<256x64xf32> -> vector<256x64xf32>
    %c0_48 = arith.constant 0 : index
    %c0_49 = arith.constant 0 : index
    %110 = vector.load %arg3[%c0_48, %c0_49] : memref<256x64xf32, #tpu.memory_space<vmem>>, vector<256x64xf32>
    %111 = arith.addf %109, %110 : vector<256x64xf32>
    %cst_50 = arith.constant dense<0xFF800000> : vector<256xf32>
    %112 = vector.multi_reduction <maximumf>, %111, %cst_50 [1] : vector<256x64xf32> to vector<256xf32>
    %113 = vector.shape_cast %112 : vector<256xf32> to vector<256x1xf32>
    %114 = vector.broadcast %113 : vector<256x1xf32> to vector<256x64xf32>
    %115 = arith.subf %111, %114 : vector<256x64xf32>
    %116 = math.exp %115 : vector<256x64xf32>
    %cst_51 = arith.constant dense<0.000000e+00> : vector<256xf32>
    %117 = vector.multi_reduction <add>, %116, %cst_51 [1] : vector<256x64xf32> to vector<256xf32>
    %118 = vector.shape_cast %117 : vector<256xf32> to vector<256x1xf32>
    %119 = tpu.reciprocal %118 {approx = true} : vector<256x1xf32> -> vector<256x1xf32>
    %120 = vector.broadcast %119 : vector<256x1xf32> to vector<256x64xf32>
    %121 = arith.mulf %116, %120 : vector<256x64xf32>
    %122 = arith.truncf %121 : vector<256x64xf32> to vector<256x64xbf16>
    %cst_52 = arith.constant dense<0.000000e+00> : vector<256x24xf32>
    %123 = tpu.matmul %122, %69, %cst_52 {dimension_numbers = #tpu.dot_dimension_numbers<[1], [0], [0], [1], [0, 0, 1, 1], [], []>} : vector<256x64xbf16>, vector<64x24xbf16>, vector<256x24xf32> -> vector<256x24xf32>
    %124 = arith.mulf %123, %105 : vector<256x24xf32>
    %125 = vector.extract_strided_slice %124 {offsets = [0, 0], sizes = [64, 24], strides = [1, 1]} : vector<256x24xf32> to vector<64x24xf32>
    %126 = arith.addf %104, %125 : vector<64x24xf32>
    %127 = vector.extract_strided_slice %124 {offsets = [64, 0], sizes = [64, 24], strides = [1, 1]} : vector<256x24xf32> to vector<64x24xf32>
    %128 = arith.addf %126, %127 : vector<64x24xf32>
    %129 = vector.extract_strided_slice %124 {offsets = [128, 0], sizes = [64, 24], strides = [1, 1]} : vector<256x24xf32> to vector<64x24xf32>
    %130 = arith.addf %128, %129 : vector<64x24xf32>
    %131 = vector.extract_strided_slice %124 {offsets = [192, 0], sizes = [64, 24], strides = [1, 1]} : vector<256x24xf32> to vector<64x24xf32>
    %132 = arith.addf %130, %131 : vector<64x24xf32>
    %c0_53 = arith.constant 0 : index
    %c48 = arith.constant 48 : index
    %c0_54 = arith.constant 0 : index
    %133 = vector.load %arg8[%c0_53, %c48, %c0_54] : memref<2x192x144xbf16, #tpu.memory_space<vmem>>, vector<1x24x24xbf16>
    %134 = vector.shape_cast %133 : vector<1x24x24xbf16> to vector<24x24xbf16>
    %135 = arith.truncf %132 : vector<64x24xf32> to vector<64x24xbf16>
    %cst_55 = arith.constant dense<0.000000e+00> : vector<64x24xf32>
    %136 = tpu.matmul %135, %134, %cst_55 {dimension_numbers = #tpu.dot_dimension_numbers<[1], [0], [0], [1], [0, 0, 1, 1], [], []>} : vector<64x24xbf16>, vector<24x24xbf16>, vector<64x24xf32> -> vector<64x24xf32>
    %c0_56 = arith.constant 0 : index
    %c6 = arith.constant 6 : index
    %c0_57 = arith.constant 0 : index
    %137 = vector.load %arg9[%c0_56, %c6, %c0_57] : memref<2x16x144xf32, #tpu.memory_space<vmem>>, vector<1x1x24xf32>
    %138 = vector.shape_cast %137 : vector<1x1x24xf32> to vector<1x24xf32>
    %139 = vector.broadcast %138 : vector<1x24xf32> to vector<64x24xf32>
    %140 = arith.addf %136, %139 : vector<64x24xf32>
    %c0_58 = arith.constant 0 : index
    %c72 = arith.constant 72 : index
    %c0_59 = arith.constant 0 : index
    %141 = vector.load %arg8[%c0_58, %c72, %c0_59] : memref<2x192x144xbf16, #tpu.memory_space<vmem>>, vector<1x24x72xbf16>
    %142 = vector.shape_cast %141 : vector<1x24x72xbf16> to vector<24x72xbf16>
    %143 = arith.truncf %140 : vector<64x24xf32> to vector<64x24xbf16>
    %cst_60 = arith.constant dense<0.000000e+00> : vector<64x72xf32>
    %144 = tpu.matmul %143, %142, %cst_60 {dimension_numbers = #tpu.dot_dimension_numbers<[1], [0], [0], [1], [0, 0, 1, 1], [], []>} : vector<64x24xbf16>, vector<24x72xbf16>, vector<64x72xf32> -> vector<64x72xf32>
    %145 = vector.extract_strided_slice %144 {offsets = [0, 0], sizes = [64, 24], strides = [1, 1]} : vector<64x72xf32> to vector<64x24xf32>
    %146 = vector.extract_strided_slice %144 {offsets = [0, 24], sizes = [64, 24], strides = [1, 1]} : vector<64x72xf32> to vector<64x24xf32>
    %147 = vector.extract_strided_slice %144 {offsets = [0, 48], sizes = [64, 24], strides = [1, 1]} : vector<64x72xf32> to vector<64x24xf32>
    %148 = arith.mulf %145, %145 : vector<64x24xf32>
    %cst_61 = arith.constant 1.000000e+00 : f32
    %149 = vector.broadcast %cst_61 : f32 to vector<1x64xf32>
    %cst_62 = arith.constant dense<0.000000e+00> : vector<1x24xf32>
    %150 = tpu.matmul %149, %148, %cst_62 {dimension_numbers = #tpu.dot_dimension_numbers<[1], [0], [0], [1], [0, 0, 1, 1], [], []>} : vector<1x64xf32>, vector<64x24xf32>, vector<1x24xf32> -> vector<1x24xf32>
    %cst_63 = arith.constant 1.000000e-24 : f32
    %151 = vector.broadcast %cst_63 : f32 to vector<1x24xf32>
    %152 = arith.maximumf %150, %151 : vector<1x24xf32>
    %153 = math.rsqrt %152 : vector<1x24xf32>
    %154 = vector.broadcast %153 : vector<1x24xf32> to vector<64x24xf32>
    %155 = arith.mulf %145, %154 : vector<64x24xf32>
    %c0_64 = arith.constant 0 : index
    %c15 = arith.constant 15 : index
    %c0_65 = arith.constant 0 : index
    %156 = vector.load %arg9[%c0_64, %c15, %c0_65] : memref<2x16x144xf32, #tpu.memory_space<vmem>>, vector<1x1x24xf32>
    %157 = vector.shape_cast %156 : vector<1x1x24xf32> to vector<1x24xf32>
    %158 = vector.broadcast %157 : vector<1x24xf32> to vector<64x24xf32>
    %159 = arith.mulf %155, %158 : vector<64x24xf32>
    %160 = arith.mulf %146, %146 : vector<64x24xf32>
    %cst_66 = arith.constant 1.000000e+00 : f32
    %161 = vector.broadcast %cst_66 : f32 to vector<1x64xf32>
    %cst_67 = arith.constant dense<0.000000e+00> : vector<1x24xf32>
    %162 = tpu.matmul %161, %160, %cst_67 {dimension_numbers = #tpu.dot_dimension_numbers<[1], [0], [0], [1], [0, 0, 1, 1], [], []>} : vector<1x64xf32>, vector<64x24xf32>, vector<1x24xf32> -> vector<1x24xf32>
    %cst_68 = arith.constant 1.000000e-24 : f32
    %163 = vector.broadcast %cst_68 : f32 to vector<1x24xf32>
    %164 = arith.maximumf %162, %163 : vector<1x24xf32>
    %165 = math.rsqrt %164 : vector<1x24xf32>
    %166 = vector.broadcast %165 : vector<1x24xf32> to vector<64x24xf32>
    %167 = arith.mulf %146, %166 : vector<64x24xf32>
    %168 = arith.truncf %159 : vector<64x24xf32> to vector<64x24xbf16>
    %169 = arith.truncf %167 : vector<64x24xf32> to vector<64x24xbf16>
    %cst_69 = arith.constant dense<0.000000e+00> : vector<24x24xf32>
    %170 = tpu.matmul %168, %169, %cst_69 {dimension_numbers = #tpu.dot_dimension_numbers<[0], [0], [1], [1], [0, 1, 1, 1], [], []>} : vector<64x24xbf16>, vector<64x24xbf16>, vector<24x24xf32> -> vector<24x24xf32>
    %c8 = arith.constant 8 : index
    %c0_70 = arith.constant 0 : index
    %171 = vector.load %arg7[%c8, %c0_70] : memref<288x24xf32, #tpu.memory_space<vmem>>, vector<24x24xf32>
    %172 = arith.addf %170, %171 : vector<24x24xf32>
    %cst_71 = arith.constant dense<0xFF800000> : vector<24xf32>
    %173 = vector.multi_reduction <maximumf>, %172, %cst_71 [1] : vector<24x24xf32> to vector<24xf32>
    %174 = vector.shape_cast %173 : vector<24xf32> to vector<24x1xf32>
    %175 = vector.broadcast %174 : vector<24x1xf32> to vector<24x24xf32>
    %176 = arith.subf %172, %175 : vector<24x24xf32>
    %177 = math.exp %176 : vector<24x24xf32>
    %cst_72 = arith.constant dense<0.000000e+00> : vector<24xf32>
    %178 = vector.multi_reduction <add>, %177, %cst_72 [1] : vector<24x24xf32> to vector<24xf32>
    %179 = vector.shape_cast %178 : vector<24xf32> to vector<24x1xf32>
    %180 = tpu.reciprocal %179 {approx = true} : vector<24x1xf32> -> vector<24x1xf32>
    %181 = vector.broadcast %180 : vector<24x1xf32> to vector<24x24xf32>
    %182 = arith.mulf %177, %181 : vector<24x24xf32>
    %183 = arith.truncf %147 : vector<64x24xf32> to vector<64x24xbf16>
    %184 = arith.truncf %182 : vector<24x24xf32> to vector<24x24xbf16>
    %cst_73 = arith.constant dense<0.000000e+00> : vector<64x24xf32>
    %185 = tpu.matmul %183, %184, %cst_73 {dimension_numbers = #tpu.dot_dimension_numbers<[1], [1], [0], [0], [0, 0, 1, 0], [], []>} : vector<64x24xbf16>, vector<24x24xbf16>, vector<64x24xf32> -> vector<64x24xf32>
    %c0_74 = arith.constant 0 : index
    %c96 = arith.constant 96 : index
    %c0_75 = arith.constant 0 : index
    %186 = vector.load %arg8[%c0_74, %c96, %c0_75] : memref<2x192x144xbf16, #tpu.memory_space<vmem>>, vector<1x24x24xbf16>
    %187 = vector.shape_cast %186 : vector<1x24x24xbf16> to vector<24x24xbf16>
    %188 = arith.truncf %185 : vector<64x24xf32> to vector<64x24xbf16>
    %cst_76 = arith.constant dense<0.000000e+00> : vector<64x24xf32>
    %189 = tpu.matmul %188, %187, %cst_76 {dimension_numbers = #tpu.dot_dimension_numbers<[1], [0], [0], [1], [0, 0, 1, 1], [], []>} : vector<64x24xbf16>, vector<24x24xbf16>, vector<64x24xf32> -> vector<64x24xf32>
    %190 = arith.addf %189, %140 : vector<64x24xf32>
    %191 = vector.broadcast %21 : vector<1x24xf32> to vector<64x24xf32>
    %192 = arith.mulf %191, %190 : vector<64x24xf32>
    %193 = arith.addf %1, %192 : vector<64x24xf32>
    %c0_77 = arith.constant 0 : index
    %c3 = arith.constant 3 : index
    %c0_78 = arith.constant 0 : index
    %194 = vector.load %arg9[%c0_77, %c3, %c0_78] : memref<2x16x144xf32, #tpu.memory_space<vmem>>, vector<1x1x24xf32>
    %195 = vector.shape_cast %194 : vector<1x1x24xf32> to vector<1x24xf32>
    %c0_79 = arith.constant 0 : index
    %c4 = arith.constant 4 : index
    %c0_80 = arith.constant 0 : index
    %196 = vector.load %arg9[%c0_79, %c4, %c0_80] : memref<2x16x144xf32, #tpu.memory_space<vmem>>, vector<1x1x24xf32>
    %197 = vector.shape_cast %196 : vector<1x1x24xf32> to vector<1x24xf32>
    %cst_81 = arith.constant dense<0.000000e+00> : vector<64xf32>
    %198 = vector.multi_reduction <add>, %193, %cst_81 [1] : vector<64x24xf32> to vector<64xf32>
    %199 = vector.shape_cast %198 : vector<64xf32> to vector<64x1xf32>
    %cst_82 = arith.constant 2.400000e+01 : f32
    %200 = vector.broadcast %cst_82 : f32 to vector<64x1xf32>
    %201 = arith.divf %199, %200 : vector<64x1xf32>
    %202 = vector.broadcast %201 : vector<64x1xf32> to vector<64x24xf32>
    %203 = arith.subf %193, %202 : vector<64x24xf32>
    %204 = arith.mulf %203, %203 : vector<64x24xf32>
    %cst_83 = arith.constant dense<0.000000e+00> : vector<64xf32>
    %205 = vector.multi_reduction <add>, %204, %cst_83 [1] : vector<64x24xf32> to vector<64xf32>
    %206 = vector.shape_cast %205 : vector<64xf32> to vector<64x1xf32>
    %cst_84 = arith.constant 2.400000e+01 : f32
    %207 = vector.broadcast %cst_84 : f32 to vector<64x1xf32>
    %208 = arith.divf %206, %207 : vector<64x1xf32>
    %cst_85 = arith.constant 9.99999974E-6 : f32
    %209 = vector.broadcast %cst_85 : f32 to vector<64x1xf32>
    %210 = arith.addf %208, %209 : vector<64x1xf32>
    %211 = math.rsqrt %210 : vector<64x1xf32>
    %212 = vector.broadcast %211 : vector<64x1xf32> to vector<64x24xf32>
    %213 = arith.mulf %203, %212 : vector<64x24xf32>
    %214 = vector.broadcast %195 : vector<1x24xf32> to vector<64x24xf32>
    %215 = arith.mulf %213, %214 : vector<64x24xf32>
    %216 = vector.broadcast %197 : vector<1x24xf32> to vector<64x24xf32>
    %217 = arith.addf %215, %216 : vector<64x24xf32>
    %cst_86 = arith.constant 1.000000e+00 : f32
    %218 = vector.broadcast %cst_86 : f32 to vector<1x24xf32>
    %219 = arith.addf %218, %23 : vector<1x24xf32>
    %220 = vector.broadcast %219 : vector<1x24xf32> to vector<64x24xf32>
    %221 = arith.mulf %217, %220 : vector<64x24xf32>
    %222 = vector.broadcast %22 : vector<1x24xf32> to vector<64x24xf32>
    %223 = arith.addf %221, %222 : vector<64x24xf32>
    %c0_87 = arith.constant 0 : index
    %c120 = arith.constant 120 : index
    %c0_88 = arith.constant 0 : index
    %224 = vector.load %arg8[%c0_87, %c120, %c0_88] : memref<2x192x144xbf16, #tpu.memory_space<vmem>>, vector<1x24x48xbf16>
    %225 = vector.shape_cast %224 : vector<1x24x48xbf16> to vector<24x48xbf16>
    %226 = arith.truncf %223 : vector<64x24xf32> to vector<64x24xbf16>
    %cst_89 = arith.constant dense<0.000000e+00> : vector<64x48xf32>
    %227 = tpu.matmul %226, %225, %cst_89 {dimension_numbers = #tpu.dot_dimension_numbers<[1], [0], [0], [1], [0, 0, 1, 1], [], []>} : vector<64x24xbf16>, vector<24x48xbf16>, vector<64x48xf32> -> vector<64x48xf32>
    %c0_90 = arith.constant 0 : index
    %c7 = arith.constant 7 : index
    %c0_91 = arith.constant 0 : index
    %228 = vector.load %arg9[%c0_90, %c7, %c0_91] : memref<2x16x144xf32, #tpu.memory_space<vmem>>, vector<1x1x48xf32>
    %229 = vector.shape_cast %228 : vector<1x1x48xf32> to vector<1x48xf32>
    %230 = vector.broadcast %229 : vector<1x48xf32> to vector<64x48xf32>
    %231 = arith.addf %227, %230 : vector<64x48xf32>
    %cst_92 = arith.constant 5.000000e-01 : f32
    %232 = vector.broadcast %cst_92 : f32 to vector<64x48xf32>
    %233 = arith.mulf %232, %231 : vector<64x48xf32>
    %cst_93 = arith.constant 4.471500e-02 : f32
    %234 = vector.broadcast %cst_93 : f32 to vector<64x48xf32>
    %235 = arith.mulf %234, %231 : vector<64x48xf32>
    %236 = arith.mulf %235, %231 : vector<64x48xf32>
    %237 = arith.mulf %236, %231 : vector<64x48xf32>
    %238 = arith.addf %231, %237 : vector<64x48xf32>
    %cst_94 = arith.constant 0.797884583 : f32
    %239 = vector.broadcast %cst_94 : f32 to vector<64x48xf32>
    %240 = arith.mulf %239, %238 : vector<64x48xf32>
    %241 = math.tanh %240 : vector<64x48xf32>
    %cst_95 = arith.constant 1.000000e+00 : f32
    %242 = vector.broadcast %cst_95 : f32 to vector<64x48xf32>
    %243 = arith.addf %242, %241 : vector<64x48xf32>
    %244 = arith.mulf %233, %243 : vector<64x48xf32>
    %c0_96 = arith.constant 0 : index
    %c144 = arith.constant 144 : index
    %c0_97 = arith.constant 0 : index
    %245 = vector.load %arg8[%c0_96, %c144, %c0_97] : memref<2x192x144xbf16, #tpu.memory_space<vmem>>, vector<1x48x24xbf16>
    %246 = vector.shape_cast %245 : vector<1x48x24xbf16> to vector<48x24xbf16>
    %247 = arith.truncf %244 : vector<64x48xf32> to vector<64x48xbf16>
    %cst_98 = arith.constant dense<0.000000e+00> : vector<64x24xf32>
    %248 = tpu.matmul %247, %246, %cst_98 {dimension_numbers = #tpu.dot_dimension_numbers<[1], [0], [0], [1], [0, 0, 1, 1], [], []>} : vector<64x48xbf16>, vector<48x24xbf16>, vector<64x24xf32> -> vector<64x24xf32>
    %c0_99 = arith.constant 0 : index
    %c8_100 = arith.constant 8 : index
    %c0_101 = arith.constant 0 : index
    %249 = vector.load %arg9[%c0_99, %c8_100, %c0_101] : memref<2x16x144xf32, #tpu.memory_space<vmem>>, vector<1x1x24xf32>
    %250 = vector.shape_cast %249 : vector<1x1x24xf32> to vector<1x24xf32>
    %251 = vector.broadcast %250 : vector<1x24xf32> to vector<64x24xf32>
    %252 = arith.addf %248, %251 : vector<64x24xf32>
    %253 = vector.broadcast %24 : vector<1x24xf32> to vector<64x24xf32>
    %254 = arith.mulf %253, %252 : vector<64x24xf32>
    %255 = arith.addf %193, %254 : vector<64x24xf32>
    %c1_102 = arith.constant 1 : index
    %c0_103 = arith.constant 0 : index
    %c0_104 = arith.constant 0 : index
    %256 = vector.load %arg8[%c1_102, %c0_103, %c0_104] : memref<2x192x144xbf16, #tpu.memory_space<vmem>>, vector<1x24x144xbf16>
    %257 = vector.shape_cast %256 : vector<1x24x144xbf16> to vector<24x144xbf16>
    %258 = arith.truncf %11 : vector<1x24xf32> to vector<1x24xbf16>
    %cst_105 = arith.constant dense<0.000000e+00> : vector<1x144xf32>
    %259 = tpu.matmul %258, %257, %cst_105 {dimension_numbers = #tpu.dot_dimension_numbers<[1], [0], [0], [1], [0, 0, 1, 1], [], []>} : vector<1x24xbf16>, vector<24x144xbf16>, vector<1x144xf32> -> vector<1x144xf32>
    %c1_106 = arith.constant 1 : index
    %c0_107 = arith.constant 0 : index
    %c0_108 = arith.constant 0 : index
    %260 = vector.load %arg9[%c1_106, %c0_107, %c0_108] : memref<2x16x144xf32, #tpu.memory_space<vmem>>, vector<1x1x144xf32>
    %261 = vector.shape_cast %260 : vector<1x1x144xf32> to vector<1x144xf32>
    %262 = arith.addf %259, %261 : vector<1x144xf32>
    %263 = vector.extract_strided_slice %262 {offsets = [0, 0], sizes = [1, 24], strides = [1, 1]} : vector<1x144xf32> to vector<1x24xf32>
    %264 = vector.extract_strided_slice %262 {offsets = [0, 24], sizes = [1, 24], strides = [1, 1]} : vector<1x144xf32> to vector<1x24xf32>
    %265 = vector.extract_strided_slice %262 {offsets = [0, 48], sizes = [1, 24], strides = [1, 1]} : vector<1x144xf32> to vector<1x24xf32>
    %266 = vector.extract_strided_slice %262 {offsets = [0, 72], sizes = [1, 24], strides = [1, 1]} : vector<1x144xf32> to vector<1x24xf32>
    %267 = vector.extract_strided_slice %262 {offsets = [0, 96], sizes = [1, 24], strides = [1, 1]} : vector<1x144xf32> to vector<1x24xf32>
    %268 = vector.extract_strided_slice %262 {offsets = [0, 120], sizes = [1, 24], strides = [1, 1]} : vector<1x144xf32> to vector<1x24xf32>
    %c1_109 = arith.constant 1 : index
    %c1_110 = arith.constant 1 : index
    %c0_111 = arith.constant 0 : index
    %269 = vector.load %arg9[%c1_109, %c1_110, %c0_111] : memref<2x16x144xf32, #tpu.memory_space<vmem>>, vector<1x1x24xf32>
    %270 = vector.shape_cast %269 : vector<1x1x24xf32> to vector<1x24xf32>
    %c1_112 = arith.constant 1 : index
    %c2_113 = arith.constant 2 : index
    %c0_114 = arith.constant 0 : index
    %271 = vector.load %arg9[%c1_112, %c2_113, %c0_114] : memref<2x16x144xf32, #tpu.memory_space<vmem>>, vector<1x1x24xf32>
    %272 = vector.shape_cast %271 : vector<1x1x24xf32> to vector<1x24xf32>
    %cst_115 = arith.constant dense<0.000000e+00> : vector<64xf32>
    %273 = vector.multi_reduction <add>, %255, %cst_115 [1] : vector<64x24xf32> to vector<64xf32>
    %274 = vector.shape_cast %273 : vector<64xf32> to vector<64x1xf32>
    %cst_116 = arith.constant 2.400000e+01 : f32
    %275 = vector.broadcast %cst_116 : f32 to vector<64x1xf32>
    %276 = arith.divf %274, %275 : vector<64x1xf32>
    %277 = vector.broadcast %276 : vector<64x1xf32> to vector<64x24xf32>
    %278 = arith.subf %255, %277 : vector<64x24xf32>
    %279 = arith.mulf %278, %278 : vector<64x24xf32>
    %cst_117 = arith.constant dense<0.000000e+00> : vector<64xf32>
    %280 = vector.multi_reduction <add>, %279, %cst_117 [1] : vector<64x24xf32> to vector<64xf32>
    %281 = vector.shape_cast %280 : vector<64xf32> to vector<64x1xf32>
    %cst_118 = arith.constant 2.400000e+01 : f32
    %282 = vector.broadcast %cst_118 : f32 to vector<64x1xf32>
    %283 = arith.divf %281, %282 : vector<64x1xf32>
    %cst_119 = arith.constant 9.99999974E-6 : f32
    %284 = vector.broadcast %cst_119 : f32 to vector<64x1xf32>
    %285 = arith.addf %283, %284 : vector<64x1xf32>
    %286 = math.rsqrt %285 : vector<64x1xf32>
    %287 = vector.broadcast %286 : vector<64x1xf32> to vector<64x24xf32>
    %288 = arith.mulf %278, %287 : vector<64x24xf32>
    %289 = vector.broadcast %270 : vector<1x24xf32> to vector<64x24xf32>
    %290 = arith.mulf %288, %289 : vector<64x24xf32>
    %291 = vector.broadcast %272 : vector<1x24xf32> to vector<64x24xf32>
    %292 = arith.addf %290, %291 : vector<64x24xf32>
    %cst_120 = arith.constant 1.000000e+00 : f32
    %293 = vector.broadcast %cst_120 : f32 to vector<1x24xf32>
    %294 = arith.addf %293, %264 : vector<1x24xf32>
    %295 = vector.broadcast %294 : vector<1x24xf32> to vector<64x24xf32>
    %296 = arith.mulf %292, %295 : vector<64x24xf32>
    %297 = vector.broadcast %263 : vector<1x24xf32> to vector<64x24xf32>
    %298 = arith.addf %296, %297 : vector<64x24xf32>
    %c1_121 = arith.constant 1 : index
    %c24_122 = arith.constant 24 : index
    %c0_123 = arith.constant 0 : index
    %299 = vector.load %arg8[%c1_121, %c24_122, %c0_123] : memref<2x192x144xbf16, #tpu.memory_space<vmem>>, vector<1x24x72xbf16>
    %300 = vector.shape_cast %299 : vector<1x24x72xbf16> to vector<24x72xbf16>
    %301 = arith.truncf %298 : vector<64x24xf32> to vector<64x24xbf16>
    %cst_124 = arith.constant dense<0.000000e+00> : vector<64x72xf32>
    %302 = tpu.matmul %301, %300, %cst_124 {dimension_numbers = #tpu.dot_dimension_numbers<[1], [0], [0], [1], [0, 0, 1, 1], [], []>} : vector<64x24xbf16>, vector<24x72xbf16>, vector<64x72xf32> -> vector<64x72xf32>
    %c1_125 = arith.constant 1 : index
    %c5_126 = arith.constant 5 : index
    %c0_127 = arith.constant 0 : index
    %303 = vector.load %arg9[%c1_125, %c5_126, %c0_127] : memref<2x16x144xf32, #tpu.memory_space<vmem>>, vector<1x1x72xf32>
    %304 = vector.shape_cast %303 : vector<1x1x72xf32> to vector<1x72xf32>
    %305 = vector.broadcast %304 : vector<1x72xf32> to vector<64x72xf32>
    %306 = arith.addf %302, %305 : vector<64x72xf32>
    %307 = vector.extract_strided_slice %306 {offsets = [0, 0], sizes = [64, 24], strides = [1, 1]} : vector<64x72xf32> to vector<64x24xf32>
    %cst_128 = arith.constant 0.408248305 : f32
    %308 = vector.broadcast %cst_128 : f32 to vector<64x24xf32>
    %309 = arith.mulf %307, %308 : vector<64x24xf32>
    %310 = vector.extract_strided_slice %306 {offsets = [0, 24], sizes = [64, 24], strides = [1, 1]} : vector<64x72xf32> to vector<64x24xf32>
    %311 = arith.truncf %310 : vector<64x24xf32> to vector<64x24xbf16>
    %312 = vector.extract_strided_slice %306 {offsets = [0, 48], sizes = [64, 24], strides = [1, 1]} : vector<64x72xf32> to vector<64x24xf32>
    %313 = arith.truncf %312 : vector<64x24xf32> to vector<64x24xbf16>
    %c1_129 = arith.constant 1 : index
    %c0_130 = arith.constant 0 : index
    %c0_131 = arith.constant 0 : index
    %314 = vector.load %arg4[%c1_129, %c0_130, %c0_131] : memref<2x256x64xbf16, #tpu.memory_space<vmem>>, vector<1x256x64xbf16>
    %315 = vector.shape_cast %314 : vector<1x256x64xbf16> to vector<256x64xbf16>
    %cst_132 = arith.constant dense<0.000000e+00> : vector<256x24xf32>
    %316 = tpu.matmul %315, %313, %cst_132 {dimension_numbers = #tpu.dot_dimension_numbers<[1], [0], [0], [1], [0, 0, 1, 1], [], []>} : vector<256x64xbf16>, vector<64x24xbf16>, vector<256x24xf32> -> vector<256x24xf32>
    %317 = vector.extract_strided_slice %316 {offsets = [0, 0], sizes = [64, 24], strides = [1, 1]} : vector<256x24xf32> to vector<64x24xf32>
    %c1_133 = arith.constant 1 : index
    %c9_134 = arith.constant 9 : index
    %c0_135 = arith.constant 0 : index
    %318 = vector.load %arg9[%c1_133, %c9_134, %c0_135] : memref<2x16x144xf32, #tpu.memory_space<vmem>>, vector<1x1x24xf32>
    %319 = vector.shape_cast %318 : vector<1x1x24xf32> to vector<1x24xf32>
    %320 = vector.broadcast %319 : vector<1x24xf32> to vector<64x24xf32>
    %321 = arith.mulf %317, %320 : vector<64x24xf32>
    %322 = vector.extract_strided_slice %316 {offsets = [64, 0], sizes = [64, 24], strides = [1, 1]} : vector<256x24xf32> to vector<64x24xf32>
    %c1_136 = arith.constant 1 : index
    %c10_137 = arith.constant 10 : index
    %c0_138 = arith.constant 0 : index
    %323 = vector.load %arg9[%c1_136, %c10_137, %c0_138] : memref<2x16x144xf32, #tpu.memory_space<vmem>>, vector<1x1x24xf32>
    %324 = vector.shape_cast %323 : vector<1x1x24xf32> to vector<1x24xf32>
    %325 = vector.broadcast %324 : vector<1x24xf32> to vector<64x24xf32>
    %326 = arith.mulf %322, %325 : vector<64x24xf32>
    %327 = arith.addf %321, %326 : vector<64x24xf32>
    %328 = vector.extract_strided_slice %316 {offsets = [128, 0], sizes = [64, 24], strides = [1, 1]} : vector<256x24xf32> to vector<64x24xf32>
    %c1_139 = arith.constant 1 : index
    %c11_140 = arith.constant 11 : index
    %c0_141 = arith.constant 0 : index
    %329 = vector.load %arg9[%c1_139, %c11_140, %c0_141] : memref<2x16x144xf32, #tpu.memory_space<vmem>>, vector<1x1x24xf32>
    %330 = vector.shape_cast %329 : vector<1x1x24xf32> to vector<1x24xf32>
    %331 = vector.broadcast %330 : vector<1x24xf32> to vector<64x24xf32>
    %332 = arith.mulf %328, %331 : vector<64x24xf32>
    %333 = arith.addf %327, %332 : vector<64x24xf32>
    %334 = vector.extract_strided_slice %316 {offsets = [192, 0], sizes = [64, 24], strides = [1, 1]} : vector<256x24xf32> to vector<64x24xf32>
    %c1_142 = arith.constant 1 : index
    %c12_143 = arith.constant 12 : index
    %c0_144 = arith.constant 0 : index
    %335 = vector.load %arg9[%c1_142, %c12_143, %c0_144] : memref<2x16x144xf32, #tpu.memory_space<vmem>>, vector<1x1x24xf32>
    %336 = vector.shape_cast %335 : vector<1x1x24xf32> to vector<1x24xf32>
    %337 = vector.broadcast %336 : vector<1x24xf32> to vector<64x24xf32>
    %338 = arith.mulf %334, %337 : vector<64x24xf32>
    %339 = arith.addf %333, %338 : vector<64x24xf32>
    %c1_145 = arith.constant 1 : index
    %c13_146 = arith.constant 13 : index
    %c0_147 = arith.constant 0 : index
    %340 = vector.load %arg9[%c1_145, %c13_146, %c0_147] : memref<2x16x144xf32, #tpu.memory_space<vmem>>, vector<1x1x24xf32>
    %341 = vector.shape_cast %340 : vector<1x1x24xf32> to vector<1x24xf32>
    %342 = vector.broadcast %341 : vector<1x24xf32> to vector<64x24xf32>
    %343 = arith.mulf %312, %342 : vector<64x24xf32>
    %344 = arith.addf %339, %343 : vector<64x24xf32>
    %c1_148 = arith.constant 1 : index
    %c14_149 = arith.constant 14 : index
    %c0_150 = arith.constant 0 : index
    %345 = vector.load %arg9[%c1_148, %c14_149, %c0_150] : memref<2x16x144xf32, #tpu.memory_space<vmem>>, vector<1x1x24xf32>
    %346 = vector.shape_cast %345 : vector<1x1x24xf32> to vector<1x24xf32>
    %347 = vector.broadcast %346 : vector<1x24xf32> to vector<64x24xf32>
    %348 = arith.addf %344, %347 : vector<64x24xf32>
    %c32_151 = arith.constant 32 : index
    %c0_152 = arith.constant 0 : index
    %349 = vector.load %arg7[%c32_151, %c0_152] : memref<288x24xf32, #tpu.memory_space<vmem>>, vector<256x24xf32>
    %350 = tpu.concatenate %309, %309, %309, %309 in 0 : vector<64x24xf32>, vector<64x24xf32>, vector<64x24xf32>, vector<64x24xf32> -> vector<256x24xf32>
    %351 = arith.mulf %350, %349 : vector<256x24xf32>
    %352 = arith.truncf %351 : vector<256x24xf32> to vector<256x24xbf16>
    %cst_153 = arith.constant dense<0.000000e+00> : vector<256x64xf32>
    %353 = tpu.matmul %352, %311, %cst_153 {dimension_numbers = #tpu.dot_dimension_numbers<[1], [1], [0], [0], [0, 0, 1, 0], [], []>} : vector<256x24xbf16>, vector<64x24xbf16>, vector<256x64xf32> -> vector<256x64xf32>
    %c0_154 = arith.constant 0 : index
    %c0_155 = arith.constant 0 : index
    %354 = vector.load %arg3[%c0_154, %c0_155] : memref<256x64xf32, #tpu.memory_space<vmem>>, vector<256x64xf32>
    %355 = arith.addf %353, %354 : vector<256x64xf32>
    %cst_156 = arith.constant dense<0xFF800000> : vector<256xf32>
    %356 = vector.multi_reduction <maximumf>, %355, %cst_156 [1] : vector<256x64xf32> to vector<256xf32>
    %357 = vector.shape_cast %356 : vector<256xf32> to vector<256x1xf32>
    %358 = vector.broadcast %357 : vector<256x1xf32> to vector<256x64xf32>
    %359 = arith.subf %355, %358 : vector<256x64xf32>
    %360 = math.exp %359 : vector<256x64xf32>
    %cst_157 = arith.constant dense<0.000000e+00> : vector<256xf32>
    %361 = vector.multi_reduction <add>, %360, %cst_157 [1] : vector<256x64xf32> to vector<256xf32>
    %362 = vector.shape_cast %361 : vector<256xf32> to vector<256x1xf32>
    %363 = tpu.reciprocal %362 {approx = true} : vector<256x1xf32> -> vector<256x1xf32>
    %364 = vector.broadcast %363 : vector<256x1xf32> to vector<256x64xf32>
    %365 = arith.mulf %360, %364 : vector<256x64xf32>
    %366 = arith.truncf %365 : vector<256x64xf32> to vector<256x64xbf16>
    %cst_158 = arith.constant dense<0.000000e+00> : vector<256x24xf32>
    %367 = tpu.matmul %366, %313, %cst_158 {dimension_numbers = #tpu.dot_dimension_numbers<[1], [0], [0], [1], [0, 0, 1, 1], [], []>} : vector<256x64xbf16>, vector<64x24xbf16>, vector<256x24xf32> -> vector<256x24xf32>
    %368 = arith.mulf %367, %349 : vector<256x24xf32>
    %369 = vector.extract_strided_slice %368 {offsets = [0, 0], sizes = [64, 24], strides = [1, 1]} : vector<256x24xf32> to vector<64x24xf32>
    %370 = arith.addf %348, %369 : vector<64x24xf32>
    %371 = vector.extract_strided_slice %368 {offsets = [64, 0], sizes = [64, 24], strides = [1, 1]} : vector<256x24xf32> to vector<64x24xf32>
    %372 = arith.addf %370, %371 : vector<64x24xf32>
    %373 = vector.extract_strided_slice %368 {offsets = [128, 0], sizes = [64, 24], strides = [1, 1]} : vector<256x24xf32> to vector<64x24xf32>
    %374 = arith.addf %372, %373 : vector<64x24xf32>
    %375 = vector.extract_strided_slice %368 {offsets = [192, 0], sizes = [64, 24], strides = [1, 1]} : vector<256x24xf32> to vector<64x24xf32>
    %376 = arith.addf %374, %375 : vector<64x24xf32>
    %c1_159 = arith.constant 1 : index
    %c48_160 = arith.constant 48 : index
    %c0_161 = arith.constant 0 : index
    %377 = vector.load %arg8[%c1_159, %c48_160, %c0_161] : memref<2x192x144xbf16, #tpu.memory_space<vmem>>, vector<1x24x24xbf16>
    %378 = vector.shape_cast %377 : vector<1x24x24xbf16> to vector<24x24xbf16>
    %379 = arith.truncf %376 : vector<64x24xf32> to vector<64x24xbf16>
    %cst_162 = arith.constant dense<0.000000e+00> : vector<64x24xf32>
    %380 = tpu.matmul %379, %378, %cst_162 {dimension_numbers = #tpu.dot_dimension_numbers<[1], [0], [0], [1], [0, 0, 1, 1], [], []>} : vector<64x24xbf16>, vector<24x24xbf16>, vector<64x24xf32> -> vector<64x24xf32>
    %c1_163 = arith.constant 1 : index
    %c6_164 = arith.constant 6 : index
    %c0_165 = arith.constant 0 : index
    %381 = vector.load %arg9[%c1_163, %c6_164, %c0_165] : memref<2x16x144xf32, #tpu.memory_space<vmem>>, vector<1x1x24xf32>
    %382 = vector.shape_cast %381 : vector<1x1x24xf32> to vector<1x24xf32>
    %383 = vector.broadcast %382 : vector<1x24xf32> to vector<64x24xf32>
    %384 = arith.addf %380, %383 : vector<64x24xf32>
    %c1_166 = arith.constant 1 : index
    %c72_167 = arith.constant 72 : index
    %c0_168 = arith.constant 0 : index
    %385 = vector.load %arg8[%c1_166, %c72_167, %c0_168] : memref<2x192x144xbf16, #tpu.memory_space<vmem>>, vector<1x24x72xbf16>
    %386 = vector.shape_cast %385 : vector<1x24x72xbf16> to vector<24x72xbf16>
    %387 = arith.truncf %384 : vector<64x24xf32> to vector<64x24xbf16>
    %cst_169 = arith.constant dense<0.000000e+00> : vector<64x72xf32>
    %388 = tpu.matmul %387, %386, %cst_169 {dimension_numbers = #tpu.dot_dimension_numbers<[1], [0], [0], [1], [0, 0, 1, 1], [], []>} : vector<64x24xbf16>, vector<24x72xbf16>, vector<64x72xf32> -> vector<64x72xf32>
    %389 = vector.extract_strided_slice %388 {offsets = [0, 0], sizes = [64, 24], strides = [1, 1]} : vector<64x72xf32> to vector<64x24xf32>
    %390 = vector.extract_strided_slice %388 {offsets = [0, 24], sizes = [64, 24], strides = [1, 1]} : vector<64x72xf32> to vector<64x24xf32>
    %391 = vector.extract_strided_slice %388 {offsets = [0, 48], sizes = [64, 24], strides = [1, 1]} : vector<64x72xf32> to vector<64x24xf32>
    %392 = arith.mulf %389, %389 : vector<64x24xf32>
    %cst_170 = arith.constant 1.000000e+00 : f32
    %393 = vector.broadcast %cst_170 : f32 to vector<1x64xf32>
    %cst_171 = arith.constant dense<0.000000e+00> : vector<1x24xf32>
    %394 = tpu.matmul %393, %392, %cst_171 {dimension_numbers = #tpu.dot_dimension_numbers<[1], [0], [0], [1], [0, 0, 1, 1], [], []>} : vector<1x64xf32>, vector<64x24xf32>, vector<1x24xf32> -> vector<1x24xf32>
    %cst_172 = arith.constant 1.000000e-24 : f32
    %395 = vector.broadcast %cst_172 : f32 to vector<1x24xf32>
    %396 = arith.maximumf %394, %395 : vector<1x24xf32>
    %397 = math.rsqrt %396 : vector<1x24xf32>
    %398 = vector.broadcast %397 : vector<1x24xf32> to vector<64x24xf32>
    %399 = arith.mulf %389, %398 : vector<64x24xf32>
    %c1_173 = arith.constant 1 : index
    %c15_174 = arith.constant 15 : index
    %c0_175 = arith.constant 0 : index
    %400 = vector.load %arg9[%c1_173, %c15_174, %c0_175] : memref<2x16x144xf32, #tpu.memory_space<vmem>>, vector<1x1x24xf32>
    %401 = vector.shape_cast %400 : vector<1x1x24xf32> to vector<1x24xf32>
    %402 = vector.broadcast %401 : vector<1x24xf32> to vector<64x24xf32>
    %403 = arith.mulf %399, %402 : vector<64x24xf32>
    %404 = arith.mulf %390, %390 : vector<64x24xf32>
    %cst_176 = arith.constant 1.000000e+00 : f32
    %405 = vector.broadcast %cst_176 : f32 to vector<1x64xf32>
    %cst_177 = arith.constant dense<0.000000e+00> : vector<1x24xf32>
    %406 = tpu.matmul %405, %404, %cst_177 {dimension_numbers = #tpu.dot_dimension_numbers<[1], [0], [0], [1], [0, 0, 1, 1], [], []>} : vector<1x64xf32>, vector<64x24xf32>, vector<1x24xf32> -> vector<1x24xf32>
    %cst_178 = arith.constant 1.000000e-24 : f32
    %407 = vector.broadcast %cst_178 : f32 to vector<1x24xf32>
    %408 = arith.maximumf %406, %407 : vector<1x24xf32>
    %409 = math.rsqrt %408 : vector<1x24xf32>
    %410 = vector.broadcast %409 : vector<1x24xf32> to vector<64x24xf32>
    %411 = arith.mulf %390, %410 : vector<64x24xf32>
    %412 = arith.truncf %403 : vector<64x24xf32> to vector<64x24xbf16>
    %413 = arith.truncf %411 : vector<64x24xf32> to vector<64x24xbf16>
    %cst_179 = arith.constant dense<0.000000e+00> : vector<24x24xf32>
    %414 = tpu.matmul %412, %413, %cst_179 {dimension_numbers = #tpu.dot_dimension_numbers<[0], [0], [1], [1], [0, 1, 1, 1], [], []>} : vector<64x24xbf16>, vector<64x24xbf16>, vector<24x24xf32> -> vector<24x24xf32>
    %c8_180 = arith.constant 8 : index
    %c0_181 = arith.constant 0 : index
    %415 = vector.load %arg7[%c8_180, %c0_181] : memref<288x24xf32, #tpu.memory_space<vmem>>, vector<24x24xf32>
    %416 = arith.addf %414, %415 : vector<24x24xf32>
    %cst_182 = arith.constant dense<0xFF800000> : vector<24xf32>
    %417 = vector.multi_reduction <maximumf>, %416, %cst_182 [1] : vector<24x24xf32> to vector<24xf32>
    %418 = vector.shape_cast %417 : vector<24xf32> to vector<24x1xf32>
    %419 = vector.broadcast %418 : vector<24x1xf32> to vector<24x24xf32>
    %420 = arith.subf %416, %419 : vector<24x24xf32>
    %421 = math.exp %420 : vector<24x24xf32>
    %cst_183 = arith.constant dense<0.000000e+00> : vector<24xf32>
    %422 = vector.multi_reduction <add>, %421, %cst_183 [1] : vector<24x24xf32> to vector<24xf32>
    %423 = vector.shape_cast %422 : vector<24xf32> to vector<24x1xf32>
    %424 = tpu.reciprocal %423 {approx = true} : vector<24x1xf32> -> vector<24x1xf32>
    %425 = vector.broadcast %424 : vector<24x1xf32> to vector<24x24xf32>
    %426 = arith.mulf %421, %425 : vector<24x24xf32>
    %427 = arith.truncf %391 : vector<64x24xf32> to vector<64x24xbf16>
    %428 = arith.truncf %426 : vector<24x24xf32> to vector<24x24xbf16>
    %cst_184 = arith.constant dense<0.000000e+00> : vector<64x24xf32>
    %429 = tpu.matmul %427, %428, %cst_184 {dimension_numbers = #tpu.dot_dimension_numbers<[1], [1], [0], [0], [0, 0, 1, 0], [], []>} : vector<64x24xbf16>, vector<24x24xbf16>, vector<64x24xf32> -> vector<64x24xf32>
    %c1_185 = arith.constant 1 : index
    %c96_186 = arith.constant 96 : index
    %c0_187 = arith.constant 0 : index
    %430 = vector.load %arg8[%c1_185, %c96_186, %c0_187] : memref<2x192x144xbf16, #tpu.memory_space<vmem>>, vector<1x24x24xbf16>
    %431 = vector.shape_cast %430 : vector<1x24x24xbf16> to vector<24x24xbf16>
    %432 = arith.truncf %429 : vector<64x24xf32> to vector<64x24xbf16>
    %cst_188 = arith.constant dense<0.000000e+00> : vector<64x24xf32>
    %433 = tpu.matmul %432, %431, %cst_188 {dimension_numbers = #tpu.dot_dimension_numbers<[1], [0], [0], [1], [0, 0, 1, 1], [], []>} : vector<64x24xbf16>, vector<24x24xbf16>, vector<64x24xf32> -> vector<64x24xf32>
    %434 = arith.addf %433, %384 : vector<64x24xf32>
    %435 = vector.broadcast %265 : vector<1x24xf32> to vector<64x24xf32>
    %436 = arith.mulf %435, %434 : vector<64x24xf32>
    %437 = arith.addf %255, %436 : vector<64x24xf32>
    %c1_189 = arith.constant 1 : index
    %c3_190 = arith.constant 3 : index
    %c0_191 = arith.constant 0 : index
    %438 = vector.load %arg9[%c1_189, %c3_190, %c0_191] : memref<2x16x144xf32, #tpu.memory_space<vmem>>, vector<1x1x24xf32>
    %439 = vector.shape_cast %438 : vector<1x1x24xf32> to vector<1x24xf32>
    %c1_192 = arith.constant 1 : index
    %c4_193 = arith.constant 4 : index
    %c0_194 = arith.constant 0 : index
    %440 = vector.load %arg9[%c1_192, %c4_193, %c0_194] : memref<2x16x144xf32, #tpu.memory_space<vmem>>, vector<1x1x24xf32>
    %441 = vector.shape_cast %440 : vector<1x1x24xf32> to vector<1x24xf32>
    %cst_195 = arith.constant dense<0.000000e+00> : vector<64xf32>
    %442 = vector.multi_reduction <add>, %437, %cst_195 [1] : vector<64x24xf32> to vector<64xf32>
    %443 = vector.shape_cast %442 : vector<64xf32> to vector<64x1xf32>
    %cst_196 = arith.constant 2.400000e+01 : f32
    %444 = vector.broadcast %cst_196 : f32 to vector<64x1xf32>
    %445 = arith.divf %443, %444 : vector<64x1xf32>
    %446 = vector.broadcast %445 : vector<64x1xf32> to vector<64x24xf32>
    %447 = arith.subf %437, %446 : vector<64x24xf32>
    %448 = arith.mulf %447, %447 : vector<64x24xf32>
    %cst_197 = arith.constant dense<0.000000e+00> : vector<64xf32>
    %449 = vector.multi_reduction <add>, %448, %cst_197 [1] : vector<64x24xf32> to vector<64xf32>
    %450 = vector.shape_cast %449 : vector<64xf32> to vector<64x1xf32>
    %cst_198 = arith.constant 2.400000e+01 : f32
    %451 = vector.broadcast %cst_198 : f32 to vector<64x1xf32>
    %452 = arith.divf %450, %451 : vector<64x1xf32>
    %cst_199 = arith.constant 9.99999974E-6 : f32
    %453 = vector.broadcast %cst_199 : f32 to vector<64x1xf32>
    %454 = arith.addf %452, %453 : vector<64x1xf32>
    %455 = math.rsqrt %454 : vector<64x1xf32>
    %456 = vector.broadcast %455 : vector<64x1xf32> to vector<64x24xf32>
    %457 = arith.mulf %447, %456 : vector<64x24xf32>
    %458 = vector.broadcast %439 : vector<1x24xf32> to vector<64x24xf32>
    %459 = arith.mulf %457, %458 : vector<64x24xf32>
    %460 = vector.broadcast %441 : vector<1x24xf32> to vector<64x24xf32>
    %461 = arith.addf %459, %460 : vector<64x24xf32>
    %cst_200 = arith.constant 1.000000e+00 : f32
    %462 = vector.broadcast %cst_200 : f32 to vector<1x24xf32>
    %463 = arith.addf %462, %267 : vector<1x24xf32>
    %464 = vector.broadcast %463 : vector<1x24xf32> to vector<64x24xf32>
    %465 = arith.mulf %461, %464 : vector<64x24xf32>
    %466 = vector.broadcast %266 : vector<1x24xf32> to vector<64x24xf32>
    %467 = arith.addf %465, %466 : vector<64x24xf32>
    %c1_201 = arith.constant 1 : index
    %c120_202 = arith.constant 120 : index
    %c0_203 = arith.constant 0 : index
    %468 = vector.load %arg8[%c1_201, %c120_202, %c0_203] : memref<2x192x144xbf16, #tpu.memory_space<vmem>>, vector<1x24x48xbf16>
    %469 = vector.shape_cast %468 : vector<1x24x48xbf16> to vector<24x48xbf16>
    %470 = arith.truncf %467 : vector<64x24xf32> to vector<64x24xbf16>
    %cst_204 = arith.constant dense<0.000000e+00> : vector<64x48xf32>
    %471 = tpu.matmul %470, %469, %cst_204 {dimension_numbers = #tpu.dot_dimension_numbers<[1], [0], [0], [1], [0, 0, 1, 1], [], []>} : vector<64x24xbf16>, vector<24x48xbf16>, vector<64x48xf32> -> vector<64x48xf32>
    %c1_205 = arith.constant 1 : index
    %c7_206 = arith.constant 7 : index
    %c0_207 = arith.constant 0 : index
    %472 = vector.load %arg9[%c1_205, %c7_206, %c0_207] : memref<2x16x144xf32, #tpu.memory_space<vmem>>, vector<1x1x48xf32>
    %473 = vector.shape_cast %472 : vector<1x1x48xf32> to vector<1x48xf32>
    %474 = vector.broadcast %473 : vector<1x48xf32> to vector<64x48xf32>
    %475 = arith.addf %471, %474 : vector<64x48xf32>
    %cst_208 = arith.constant 5.000000e-01 : f32
    %476 = vector.broadcast %cst_208 : f32 to vector<64x48xf32>
    %477 = arith.mulf %476, %475 : vector<64x48xf32>
    %cst_209 = arith.constant 4.471500e-02 : f32
    %478 = vector.broadcast %cst_209 : f32 to vector<64x48xf32>
    %479 = arith.mulf %478, %475 : vector<64x48xf32>
    %480 = arith.mulf %479, %475 : vector<64x48xf32>
    %481 = arith.mulf %480, %475 : vector<64x48xf32>
    %482 = arith.addf %475, %481 : vector<64x48xf32>
    %cst_210 = arith.constant 0.797884583 : f32
    %483 = vector.broadcast %cst_210 : f32 to vector<64x48xf32>
    %484 = arith.mulf %483, %482 : vector<64x48xf32>
    %485 = math.tanh %484 : vector<64x48xf32>
    %cst_211 = arith.constant 1.000000e+00 : f32
    %486 = vector.broadcast %cst_211 : f32 to vector<64x48xf32>
    %487 = arith.addf %486, %485 : vector<64x48xf32>
    %488 = arith.mulf %477, %487 : vector<64x48xf32>
    %c1_212 = arith.constant 1 : index
    %c144_213 = arith.constant 144 : index
    %c0_214 = arith.constant 0 : index
    %489 = vector.load %arg8[%c1_212, %c144_213, %c0_214] : memref<2x192x144xbf16, #tpu.memory_space<vmem>>, vector<1x48x24xbf16>
    %490 = vector.shape_cast %489 : vector<1x48x24xbf16> to vector<48x24xbf16>
    %491 = arith.truncf %488 : vector<64x48xf32> to vector<64x48xbf16>
    %cst_215 = arith.constant dense<0.000000e+00> : vector<64x24xf32>
    %492 = tpu.matmul %491, %490, %cst_215 {dimension_numbers = #tpu.dot_dimension_numbers<[1], [0], [0], [1], [0, 0, 1, 1], [], []>} : vector<64x48xbf16>, vector<48x24xbf16>, vector<64x24xf32> -> vector<64x24xf32>
    %c1_216 = arith.constant 1 : index
    %c8_217 = arith.constant 8 : index
    %c0_218 = arith.constant 0 : index
    %493 = vector.load %arg9[%c1_216, %c8_217, %c0_218] : memref<2x16x144xf32, #tpu.memory_space<vmem>>, vector<1x1x24xf32>
    %494 = vector.shape_cast %493 : vector<1x1x24xf32> to vector<1x24xf32>
    %495 = vector.broadcast %494 : vector<1x24xf32> to vector<64x24xf32>
    %496 = arith.addf %492, %495 : vector<64x24xf32>
    %497 = vector.broadcast %268 : vector<1x24xf32> to vector<64x24xf32>
    %498 = arith.mulf %497, %496 : vector<64x24xf32>
    %499 = arith.addf %437, %498 : vector<64x24xf32>
    %500 = arith.truncf %499 : vector<64x24xf32> to vector<64x24xbf16>
    %c0_219 = arith.constant 0 : index
    %c0_220 = arith.constant 0 : index
    %501 = vector.load %arg6[%c0_219, %c0_220] : memref<24x216xbf16, #tpu.memory_space<vmem>>, vector<24x216xbf16>
    %cst_221 = arith.constant dense<0.000000e+00> : vector<64x216xf32>
    %502 = tpu.matmul %500, %501, %cst_221 {dimension_numbers = #tpu.dot_dimension_numbers<[1], [0], [0], [1], [0, 0, 1, 1], [], []>} : vector<64x24xbf16>, vector<24x216xbf16>, vector<64x216xf32> -> vector<64x216xf32>
    %503 = vector.extract_strided_slice %502 {offsets = [0, 0], sizes = [64, 24], strides = [1, 1]} : vector<64x216xf32> to vector<64x24xf32>
    %504 = arith.truncf %503 : vector<64x24xf32> to vector<64x24xbf16>
    %505 = vector.extract_strided_slice %502 {offsets = [0, 24], sizes = [64, 24], strides = [1, 1]} : vector<64x216xf32> to vector<64x24xf32>
    %506 = arith.truncf %505 : vector<64x24xf32> to vector<64x24xbf16>
    %507 = vector.extract_strided_slice %502 {offsets = [0, 48], sizes = [64, 24], strides = [1, 1]} : vector<64x216xf32> to vector<64x24xf32>
    %508 = arith.truncf %507 : vector<64x24xf32> to vector<64x24xbf16>
    %509 = vector.extract_strided_slice %502 {offsets = [0, 72], sizes = [64, 24], strides = [1, 1]} : vector<64x216xf32> to vector<64x24xf32>
    %510 = arith.truncf %509 : vector<64x24xf32> to vector<64x24xbf16>
    %511 = vector.extract_strided_slice %502 {offsets = [0, 96], sizes = [64, 24], strides = [1, 1]} : vector<64x216xf32> to vector<64x24xf32>
    %512 = arith.truncf %511 : vector<64x24xf32> to vector<64x24xbf16>
    %513 = vector.extract_strided_slice %502 {offsets = [0, 120], sizes = [64, 24], strides = [1, 1]} : vector<64x216xf32> to vector<64x24xf32>
    %514 = arith.truncf %513 : vector<64x24xf32> to vector<64x24xbf16>
    %515 = vector.extract_strided_slice %502 {offsets = [0, 144], sizes = [64, 24], strides = [1, 1]} : vector<64x216xf32> to vector<64x24xf32>
    %516 = arith.truncf %515 : vector<64x24xf32> to vector<64x24xbf16>
    %517 = vector.extract_strided_slice %502 {offsets = [0, 168], sizes = [64, 24], strides = [1, 1]} : vector<64x216xf32> to vector<64x24xf32>
    %518 = arith.truncf %517 : vector<64x24xf32> to vector<64x24xbf16>
    %519 = vector.extract_strided_slice %502 {offsets = [0, 192], sizes = [64, 24], strides = [1, 1]} : vector<64x216xf32> to vector<64x24xf32>
    %520 = arith.truncf %519 : vector<64x24xf32> to vector<64x24xbf16>
    %521 = tpu.concatenate %504, %506, %508, %510, %512, %514, %516, %518, %520 in 0 : vector<64x24xbf16>, vector<64x24xbf16>, vector<64x24xbf16>, vector<64x24xbf16>, vector<64x24xbf16>, vector<64x24xbf16>, vector<64x24xbf16>, vector<64x24xbf16>, vector<64x24xbf16> -> vector<576x24xbf16>
    %c0_222 = arith.constant 0 : index
    %c0_223 = arith.constant 0 : index
    %522 = vector.load %arg5[%c0_222, %c0_223] : memref<64x576xbf16, #tpu.memory_space<vmem>>, vector<64x576xbf16>
    %cst_224 = arith.constant dense<0.000000e+00> : vector<64x24xf32>
    %523 = tpu.matmul %522, %521, %cst_224 {dimension_numbers = #tpu.dot_dimension_numbers<[1], [0], [0], [1], [0, 0, 1, 1], [], []>} : vector<64x576xbf16>, vector<576x24xbf16>, vector<64x24xf32> -> vector<64x24xf32>
    %524 = arith.addf %1, %523 : vector<64x24xf32>
    %c0_225 = arith.constant 0 : index
    %c0_226 = arith.constant 0 : index
    %525 = vector.load %arg7[%c0_225, %c0_226] : memref<288x24xf32, #tpu.memory_space<vmem>>, vector<1x24xf32>
    %526 = vector.broadcast %525 : vector<1x24xf32> to vector<64x24xf32>
    %527 = arith.addf %524, %526 : vector<64x24xf32>
    %c0_227 = arith.constant 0 : index
    %c0_228 = arith.constant 0 : index
    %c0_229 = arith.constant 0 : index
    %528 = vector.load %arg10[%c0_227, %c0_228, %c0_229] : memref<1x64x24xf32, #tpu.memory_space<vmem>>, vector<1x64x24xf32>
    %529 = vector.shape_cast %528 : vector<1x64x24xf32> to vector<64x24xf32>
    %530 = vector.shape_cast %527 : vector<64x24xf32> to vector<1x64x24xf32>
    tpu.vector_store %arg10[%c0_227, %c0_228, %c0_229], %530 {strides = array<i32>} : memref<1x64x24xf32, #tpu.memory_space<vmem>>, vector<1x64x24xf32>,
    return
  }
  func.func @transform_0(%arg0: i32) -> (i32, i32, i32) {
    %c0_i32 = arith.constant 0 : i32
    %c0_i32_0 = arith.constant 0 : i32
    %c0_i32_1 = arith.constant 0 : i32
    return %arg0, %c0_i32, %c0_i32_0 : i32, i32, i32
  }
  func.func @transform_1(%arg0: i32) -> (i32, i32, i32) {
    %c0_i32 = arith.constant 0 : i32
    %c0_i32_0 = arith.constant 0 : i32
    %c0_i32_1 = arith.constant 0 : i32
    return %arg0, %c0_i32, %c0_i32_0 : i32, i32, i32
  }
  func.func @transform_2(%arg0: i32) -> (i32, i32) {
    %c0_i32 = arith.constant 0 : i32
    %c0_i32_0 = arith.constant 0 : i32
    %c0_i32_1 = arith.constant 0 : i32
    return %c0_i32, %c0_i32_0 : i32, i32
  }
  func.func @transform_3(%arg0: i32) -> (i32, i32, i32) {
    %c0_i32 = arith.constant 0 : i32
    %c0_i32_0 = arith.constant 0 : i32
    %c0_i32_1 = arith.constant 0 : i32
    %c0_i32_2 = arith.constant 0 : i32
    return %c0_i32, %c0_i32_0, %c0_i32_1 : i32, i32, i32
  }
  func.func @transform_4(%arg0: i32) -> (i32, i32) {
    %c0_i32 = arith.constant 0 : i32
    %c0_i32_0 = arith.constant 0 : i32
    %c0_i32_1 = arith.constant 0 : i32
    return %c0_i32, %c0_i32_0 : i32, i32
  }
  func.func @transform_5(%arg0: i32) -> (i32, i32) {
    %c0_i32 = arith.constant 0 : i32
    %c0_i32_0 = arith.constant 0 : i32
    %c0_i32_1 = arith.constant 0 : i32
    return %c0_i32, %c0_i32_0 : i32, i32
  }
  func.func @transform_6(%arg0: i32) -> (i32, i32) {
    %c0_i32 = arith.constant 0 : i32
    %c0_i32_0 = arith.constant 0 : i32
    %c0_i32_1 = arith.constant 0 : i32
    return %c0_i32, %c0_i32_0 : i32, i32
  }
  func.func @transform_7(%arg0: i32) -> (i32, i32, i32) {
    %c0_i32 = arith.constant 0 : i32
    %c0_i32_0 = arith.constant 0 : i32
    %c0_i32_1 = arith.constant 0 : i32
    %c0_i32_2 = arith.constant 0 : i32
    return %c0_i32, %c0_i32_0, %c0_i32_1 : i32, i32, i32
  }
  func.func @transform_8(%arg0: i32) -> (i32, i32, i32) {
    %c0_i32 = arith.constant 0 : i32
    %c0_i32_0 = arith.constant 0 : i32
    %c0_i32_1 = arith.constant 0 : i32
    %c0_i32_2 = arith.constant 0 : i32
    return %c0_i32, %c0_i32_0, %c0_i32_1 : i32, i32, i32
  }
  func.func @transform_9(%arg0: i32) -> (i32, i32, i32) {
    %c0_i32 = arith.constant 0 : i32
    %c0_i32_0 = arith.constant 0 : i32
    %c0_i32_1 = arith.constant 0 : i32
    return %arg0, %c0_i32, %c0_i32_0 : i32, i32, i32
  }
}

</mosaic_0001>

<llo_original>
// kernel: rtblock_forward.1
$region0: #{rtblock_forward.1}
  #allocation0 [shape = 'u32[]', space=smem, size = 0x4, offset = 0x4, fixed_abs, tag = 'smem constant byte address 0x4 - core index']
  #allocation1 [shape = 'u32[144,128]{1,0:T(1,128)}', space=vmem, size = 0x12000, scoped, tag = 'internal scratch']
  %s0 = inlined_call_operand.vmem [shape: f32[2,64,24], index: 0, kind: input, shape index: {}]
  %s1 = inlined_call_operand.vmem [shape: f32[2,1,24], index: 1, kind: input, shape index: {}]
  %s2 = inlined_call_operand.vmem [shape: f32[256,64], index: 2, kind: input, shape index: {}]
  %s3 = inlined_call_operand.vmem [shape: bf16[2,256,64], index: 3, kind: input, shape index: {}]
  %s4 = inlined_call_operand.vmem [shape: bf16[64,576], index: 4, kind: input, shape index: {}]
  %s5 = inlined_call_operand.vmem [shape: bf16[24,216], index: 5, kind: input, shape index: {}]
  %s6 = inlined_call_operand.vmem [shape: f32[288,24], index: 6, kind: input, shape index: {}]
  %s7 = inlined_call_operand.vmem [shape: bf16[2,192,144], index: 7, kind: input, shape index: {}]
  %s8 = inlined_call_operand.vmem [shape: f32[2,16,144], index: 8, kind: input, shape index: {}]
  %s9 = inlined_call_operand.hbm [shape: f32[2,64,24], index: 9, kind: output, shape index: {}]
  %s10 = sld [smem:[#allocation0]]
  $region69: #{rtblock_forward.1} parent=0
    _
  %s12 = ssub.s32 1, %s10
  %s13 = scalar_select 0, %s12, %s10
  $region1: #{rtblock_forward.1} parent=0
    #allocation2 [shape = 'u8[65536]{0}', space=vmem, size = 0x10000, scoped, tag = 'output window, operand 0']
    #allocation3 [shape = 's32[2]{0}', space=sflag, size = 0x8, scoped, tag = 'scoped memory for rtblock_forward.1']
    %14 = vsyncpa [#allocation3], 0
    %s15 = scalar_lea.sflag [#allocation3], 1
    %16 = vsyncpa %s15, 0
    loop: start=0, step=1, limit=4
    $region2: #{rtblock_forward.1} parent=1 // loop_pre_header
      _
    $region3: #{rtblock_forward.1} parent=1 // loop_header
      %s18 = sphi 0, %s22
      %p19 = scmp.ge.s32.totalorder %s18, 4
      %s28 = sphi 0, %s30
      %s31 = sphi 0, %s28
      %s32 = sphi 0, %s31
      %s48 = sphi 0, %s32
      %s54 = sphi 0, %s56
      %s57 = sphi 0, %s54
      %s58 = sphi 0, %s57
      %s74 = sphi 0, %s58
      %s78 = sphi 0, %s78
      %s80 = sphi 0, %s78
      %s81 = sphi 0, %s80
      %s95 = sphi 0, %s81
      %s99 = sphi 0, %s99
      %s101 = sphi 0, %s99
      %s102 = sphi 0, %s101
      %s116 = sphi 0, %s102
      %s120 = sphi 0, %s120
      %s122 = sphi 0, %s120
      %s123 = sphi 0, %s122
      %s137 = sphi 0, %s123
      %s141 = sphi 0, %s141
      %s143 = sphi 0, %s141
      %s144 = sphi 0, %s143
      %s158 = sphi 0, %s144
      %s162 = sphi 0, %s162
      %s164 = sphi 0, %s162
      %s165 = sphi 0, %s164
      %s179 = sphi 0, %s165
      %s183 = sphi 0, %s183
      %s185 = sphi 0, %s183
      %s186 = sphi 0, %s185
      %s200 = sphi 0, %s186
      %s204 = sphi 0, %s204
      %s206 = sphi 0, %s204
      %s207 = sphi 0, %s206
      %s221 = sphi 0, %s207
      %s227 = sphi 0, %s229
      %s230 = sphi 0, %s227
      %s231 = sphi 0, %s230
      %s247 = sphi 0, %s231
    $region4: #{rtblock_forward.1} parent=1 // loop_header_branch
      %21 = sbr.rel (%p19) target = $region8
    $region5: #{rtblock_forward.1} parent=1 // loop_body
      %s23 = ssub.s32 %s18, 1
      %s24 = ssub.s32 %s18, 2
      %s25 = sadd.s32 %s18, 1
      %s26 = ssub.s32 %s18, %s25
      %p27 = scmp.eq.s32.totalorder %s26, 0
      %s29 = sadd.s32 %s28, 1
      %s30 = scalar_select %p27, %s28, %s29
      %p33 = pneg %p27
      %p34 = scmp.eq.s32.totalorder %s18, 1
      %p35 = por %p33, %p34
      %p36 = scmp.ne.s32.totalorder %s28, %s31
      %p37 = scmp.eq.s32.totalorder %s18, 0
      %p38 = por %p36, %p37
      %p39 = scmp.ne.s32.totalorder %s28, %s31
      %p40 = scmp.eq.s32.totalorder %s23, 1
      %p41 = por %p39, %p40
      %p42 = scmp.ne.s32.totalorder %s31, %s32
      %p43 = scmp.eq.s32.totalorder %s23, 0
      %p44 = por %p42, %p43
      %p45 = scmp.ne.s32.totalorder %s31, %s32
      %p46 = scmp.eq.s32.totalorder %s24, 1
      %p47 = por %p45, %p46
      %p49 = scmp.ne.s32.totalorder %s32, %s48
      %p50 = scmp.eq.s32.totalorder %s24, 0
      %p51 = por %p49, %p50
      %s52 = ssub.s32 %s18, %s25
      %p53 = scmp.eq.s32.totalorder %s52, 0
      %s55 = sadd.s32 %s54, 1
      %s56 = scalar_select %p53, %s54, %s55
      %p59 = pneg %p53
      %p60 = scmp.eq.s32.totalorder %s18, 1
      %p61 = por %p59, %p60
      %p62 = scmp.ne.s32.totalorder %s54, %s57
      %p63 = scmp.eq.s32.totalorder %s18, 0
      %p64 = por %p62, %p63
      %p65 = scmp.ne.s32.totalorder %s54, %s57
      %p66 = scmp.eq.s32.totalorder %s23, 1
      %p67 = por %p65, %p66
      %p68 = scmp.ne.s32.totalorder %s57, %s58
      %p69 = scmp.eq.s32.totalorder %s23, 0
      %p70 = por %p68, %p69
      %p71 = scmp.ne.s32.totalorder %s57, %s58
      %p72 = scmp.eq.s32.totalorder %s24, 1
      %p73 = por %p71, %p72
      %p75 = scmp.ne.s32.totalorder %s58, %s74
      %p76 = scmp.eq.s32.totalorder %s24, 0
      %p77 = por %p75, %p76
      %s79 = sadd.s32 %s78, 1
      %p82 = scmp.eq.s32.totalorder %s18, 1
      %p83 = scmp.ne.s32.totalorder %s78, %s80
      %p84 = scmp.eq.s32.totalorder %s18, 0
      %p85 = por %p83, %p84
      %p86 = scmp.ne.s32.totalorder %s78, %s80
      %p87 = scmp.eq.s32.totalorder %s23, 1
      %p88 = por %p86, %p87
      %p89 = scmp.ne.s32.totalorder %s80, %s81
      %p90 = scmp.eq.s32.totalorder %s23, 0
      %p91 = por %p89, %p90
      %p92 = scmp.ne.s32.totalorder %s80, %s81
      %p93 = scmp.eq.s32.totalorder %s24, 1
      %p94 = por %p92, %p93
      %p96 = scmp.ne.s32.totalorder %s81, %s95
      %p97 = scmp.eq.s32.totalorder %s24, 0
      %p98 = por %p96, %p97
      %s100 = sadd.s32 %s99, 1
      %p103 = scmp.eq.s32.totalorder %s18, 1
      %p104 = scmp.ne.s32.totalorder %s99, %s101
      %p105 = scmp.eq.s32.totalorder %s18, 0
      %p106 = por %p104, %p105
      %p107 = scmp.ne.s32.totalorder %s99, %s101
      %p108 = scmp.eq.s32.totalorder %s23, 1
      %p109 = por %p107, %p108
      %p110 = scmp.ne.s32.totalorder %s101, %s102
      %p111 = scmp.eq.s32.totalorder %s23, 0
      %p112 = por %p110, %p111
      %p113 = scmp.ne.s32.totalorder %s101, %s102
      %p114 = scmp.eq.s32.totalorder %s24, 1
      %p115 = por %p113, %p114
      %p117 = scmp.ne.s32.totalorder %s102, %s116
      %p118 = scmp.eq.s32.totalorder %s24, 0
      %p119 = por %p117, %p118
      %s121 = sadd.s32 %s120, 1
      %p124 = scmp.eq.s32.totalorder %s18, 1
      %p125 = scmp.ne.s32.totalorder %s120, %s122
      %p126 = scmp.eq.s32.totalorder %s18, 0
      %p127 = por %p125, %p126
      %p128 = scmp.ne.s32.totalorder %s120, %s122
      %p129 = scmp.eq.s32.totalorder %s23, 1
      %p130 = por %p128, %p129
      %p131 = scmp.ne.s32.totalorder %s122, %s123
      %p132 = scmp.eq.s32.totalorder %s23, 0
      %p133 = por %p131, %p132
      %p134 = scmp.ne.s32.totalorder %s122, %s123
      %p135 = scmp.eq.s32.totalorder %s24, 1
      %p136 = por %p134, %p135
      %p138 = scmp.ne.s32.totalorder %s123, %s137
      %p139 = scmp.eq.s32.totalorder %s24, 0
      %p140 = por %p138, %p139
      %s142 = sadd.s32 %s141, 1
      %p145 = scmp.eq.s32.totalorder %s18, 1
      %p146 = scmp.ne.s32.totalorder %s141, %s143
      %p147 = scmp.eq.s32.totalorder %s18, 0
      %p148 = por %p146, %p147
      %p149 = scmp.ne.s32.totalorder %s141, %s143
      %p150 = scmp.eq.s32.totalorder %s23, 1
      %p151 = por %p149, %p150
      %p152 = scmp.ne.s32.totalorder %s143, %s144
      %p153 = scmp.eq.s32.totalorder %s23, 0
      %p154 = por %p152, %p153
      %p155 = scmp.ne.s32.totalorder %s143, %s144
      %p156 = scmp.eq.s32.totalorder %s24, 1
      %p157 = por %p155, %p156
      %p159 = scmp.ne.s32.totalorder %s144, %s158
      %p160 = scmp.eq.s32.totalorder %s24, 0
      %p161 = por %p159, %p160
      %s163 = sadd.s32 %s162, 1
      %p166 = scmp.eq.s32.totalorder %s18, 1
      %p167 = scmp.ne.s32.totalorder %s162, %s164
      %p168 = scmp.eq.s32.totalorder %s18, 0
      %p169 = por %p167, %p168
      %p170 = scmp.ne.s32.totalorder %s162, %s164
      %p171 = scmp.eq.s32.totalorder %s23, 1
      %p172 = por %p170, %p171
      %p173 = scmp.ne.s32.totalorder %s164, %s165
      %p174 = scmp.eq.s32.totalorder %s23, 0
      %p175 = por %p173, %p174
      %p176 = scmp.ne.s32.totalorder %s164, %s165
      %p177 = scmp.eq.s32.totalorder %s24, 1
      %p178 = por %p176, %p177
      %p180 = scmp.ne.s32.totalorder %s165, %s179
      %p181 = scmp.eq.s32.totalorder %s24, 0
      %p182 = por %p180, %p181
      %s184 = sadd.s32 %s183, 1
      %p187 = scmp.eq.s32.totalorder %s18, 1
      %p188 = scmp.ne.s32.totalorder %s183, %s185
      %p189 = scmp.eq.s32.totalorder %s18, 0
      %p190 = por %p188, %p189
      %p191 = scmp.ne.s32.totalorder %s183, %s185
      %p192 = scmp.eq.s32.totalorder %s23, 1
      %p193 = por %p191, %p192
      %p194 = scmp.ne.s32.totalorder %s185, %s186
      %p195 = scmp.eq.s32.totalorder %s23, 0
      %p196 = por %p194, %p195
      %p197 = scmp.ne.s32.totalorder %s185, %s186
      %p198 = scmp.eq.s32.totalorder %s24, 1
      %p199 = por %p197, %p198
      %p201 = scmp.ne.s32.totalorder %s186, %s200
      %p202 = scmp.eq.s32.totalorder %s24, 0
      %p203 = por %p201, %p202
      %s205 = sadd.s32 %s204, 1
      %p208 = scmp.eq.s32.totalorder %s18, 1
      %p209 = scmp.ne.s32.totalorder %s204, %s206
      %p210 = scmp.eq.s32.totalorder %s18, 0
      %p211 = por %p209, %p210
      %p212 = scmp.ne.s32.totalorder %s204, %s206
      %p213 = scmp.eq.s32.totalorder %s23, 1
      %p214 = por %p212, %p213
      %p215 = scmp.ne.s32.totalorder %s206, %s207
      %p216 = scmp.eq.s32.totalorder %s23, 0
      %p217 = por %p215, %p216
      %p218 = scmp.ne.s32.totalorder %s206, %s207
      %p219 = scmp.eq.s32.totalorder %s24, 1
      %p220 = por %p218, %p219
      %p222 = scmp.ne.s32.totalorder %s207, %s221
      %p223 = scmp.eq.s32.totalorder %s24, 0
      %p224 = por %p222, %p223
      %s225 = ssub.s32 %s18, %s25
      %p226 = scmp.eq.s32.totalorder %s225, 0
      %s228 = sadd.s32 %s227, 1
      %s229 = scalar_select %p226, %s227, %s228
      %p232 = pneg %p226
      %p233 = scmp.eq.s32.totalorder %s18, 1
      %p234 = por %p232, %p233
      %p235 = scmp.ne.s32.totalorder %s227, %s230
      %p236 = scmp.eq.s32.totalorder %s18, 0
      %p237 = por %p235, %p236
      %p238 = scmp.ne.s32.totalorder %s227, %s230
      %p239 = scmp.eq.s32.totalorder %s23, 1
      %p240 = por %p238, %p239
      %p241 = scmp.ne.s32.totalorder %s230, %s231
      %p242 = scmp.eq.s32.totalorder %s23, 0
      %p243 = por %p241, %p242
      %p244 = scmp.ne.s32.totalorder %s230, %s231
      %p245 = scmp.eq.s32.totalorder %s24, 1
      %p246 = por %p244, %p245
      %p248 = scmp.ne.s32.totalorder %s231, %s247
      %p249 = scmp.eq.s32.totalorder %s24, 0
      %p250 = por %p248, %p249
      %p251 = scmp.le.s32.totalorder 1, %s18
      %p252 = scmp.lt.s32.totalorder %s18, 3
      %p253 = pnand %p251, %p252
      %p254 = pneg %p253
      // Predicated region
      $region9: #{rtblock_forward.1} parent=5 // pred_check
        _
      $region10: #{rtblock_forward.1} parent=5 // pred_check_branch
        %256 = sbr.rel (%p253) target = $region12
      $region11: #{rtblock_forward.1} parent=5 // pred_region
        %s257 = ssub.s32 %s18, 1
        // Predicated region
        $region13: #{rtblock_forward.1} parent=11 // pred_check
          %p258 = pneg %p91
        $region14: #{rtblock_forward.1} parent=11 // pred_check_branch
          %260 = sbr.rel (%p258) target = $region16
        $region15: #{rtblock_forward.1} parent=11 // pred_region
          _
        $region16: #{rtblock_forward.1} parent=11 // pred_fallthru
          _
        // Predicated region
        $region17: #{rtblock_forward.1} parent=11 // pred_check
          %p261 = pneg %p112
        $region18: #{rtblock_forward.1} parent=11 // pred_check_branch
          %263 = sbr.rel (%p261) target = $region20
        $region19: #{rtblock_forward.1} parent=11 // pred_region
          _
        $region20: #{rtblock_forward.1} parent=11 // pred_fallthru
          _
        // Predicated region
        $region21: #{rtblock_forward.1} parent=11 // pred_check
          %p264 = pneg %p133
        $region22: #{rtblock_forward.1} parent=11 // pred_check_branch
          %266 = sbr.rel (%p264) target = $region24
        $region23: #{rtblock_forward.1} parent=11 // pred_region
          _
        $region24: #{rtblock_forward.1} parent=11 // pred_fallthru
          _
        // Predicated region
        $region25: #{rtblock_forward.1} parent=11 // pred_check
          %p267 = pneg %p154
        $region26: #{rtblock_forward.1} parent=11 // pred_check_branch
          %269 = sbr.rel (%p267) target = $region28
        $region27: #{rtblock_forward.1} parent=11 // pred_region
          _
        $region28: #{rtblock_forward.1} parent=11 // pred_fallthru
          _
        // Predicated region
        $region29: #{rtblock_forward.1} parent=11 // pred_check
          %p270 = pneg %p175
        $region30: #{rtblock_forward.1} parent=11 // pred_check_branch
          %272 = sbr.rel (%p270) target = $region32
        $region31: #{rtblock_forward.1} parent=11 // pred_region
          _
        $region32: #{rtblock_forward.1} parent=11 // pred_fallthru
          _
        // Predicated region
        $region33: #{rtblock_forward.1} parent=11 // pred_check
          %p273 = pneg %p196
        $region34: #{rtblock_forward.1} parent=11 // pred_check_branch
          %275 = sbr.rel (%p273) target = $region36
        $region35: #{rtblock_forward.1} parent=11 // pred_region
          _
        $region36: #{rtblock_forward.1} parent=11 // pred_fallthru
          _
        // Predicated region
        $region37: #{rtblock_forward.1} parent=11 // pred_check
          %p276 = pneg %p217
        $region38: #{rtblock_forward.1} parent=11 // pred_check_branch
          %278 = sbr.rel (%p276) target = $region40
        $region39: #{rtblock_forward.1} parent=11 // pred_region
          _
        $region40: #{rtblock_forward.1} parent=11 // pred_fallthru
          _
      $region12: #{rtblock_forward.1} parent=5 // pred_fallthru
        _
      %p279 = scmp.lt.s32.totalorder %s18, 2
      // Predicated region
      $region41: #{rtblock_forward.1} parent=5 // pred_check
        %p280 = pneg %p279
      $region42: #{rtblock_forward.1} parent=5 // pred_check_branch
        %282 = sbr.rel (%p280) target = $region44
      $region43: #{rtblock_forward.1} parent=5 // pred_region
        // Predicated region
        $region45: #{rtblock_forward.1} parent=43 // pred_check
          %p283 = pneg %p38
        $region46: #{rtblock_forward.1} parent=43 // pred_check_branch
          %285 = sbr.rel (%p283) target = $region48
        $region47: #{rtblock_forward.1} parent=43 // pred_region
          %p286 = scmp.lt.s32.totalorder %s18, 1
          %s287 = scalar_select %p286, %s18, 1
          %s288 = smul.addr %s287, 8
          %s289 = smul.addr %s288, 8
          %s290 = scalar_lea.vmem %s0, %s289
        $region48: #{rtblock_forward.1} parent=43 // pred_fallthru
          _
        // Predicated region
        $region49: #{rtblock_forward.1} parent=43 // pred_check
          %p291 = pneg %p64
        $region50: #{rtblock_forward.1} parent=43 // pred_check_branch
          %293 = sbr.rel (%p291) target = $region52
        $region51: #{rtblock_forward.1} parent=43 // pred_region
          %p294 = scmp.lt.s32.totalorder %s18, 1
          %s295 = scalar_select %p294, %s18, 1
          %s296 = scalar_lea.vmem %s1, %s295
        $region52: #{rtblock_forward.1} parent=43 // pred_fallthru
          _
      $region44: #{rtblock_forward.1} parent=5 // pred_fallthru
        _
      %p297 = scmp.le.s32.totalorder 1, %s18
      %p298 = scmp.lt.s32.totalorder %s18, 3
      %p299 = pnand %p297, %p298
      %p300 = pneg %p299
      // Predicated region
      $region53: #{rtblock_forward.1} parent=5 // pred_check
        _
      $region54: #{rtblock_forward.1} parent=5 // pred_check_branch
        %302 = sbr.rel (%p299) target = $region56
      $region55: #{rtblock_forward.1} parent=5 // pred_region
        %s303 = ssub.s32 %s18, 1
        %p304 = scmp.lt.s32.totalorder %s23, 1
        %s305 = scalar_select %p304, %s23, 1
        %s306 = smul.addr %s305, 8
        %s307 = smul.addr %s306, 8
        %s308 = scalar_lea.vmem %s0, %s307
        %p309 = pneg %p44
        %p310 = pneg %p41
        %p311 = scmp.lt.s32.totalorder %s23, 1
        %s312 = scalar_select %p311, %s23, 1
        %s313 = scalar_lea.vmem %s1, %s312
        %p314 = pneg %p70
        %p315 = pneg %p67
        %p316 = pneg %p91
        %p317 = pneg %p88
        %p318 = pneg %p112
        %p319 = pneg %p109
        %p320 = pneg %p133
        %p321 = pneg %p130
        %p322 = pneg %p154
        %p323 = pneg %p151
        %p324 = pneg %p175
        %p325 = pneg %p172
        %p326 = pneg %p196
        %p327 = pneg %p193
        %p328 = pneg %p217
        %p329 = pneg %p214
        %p330 = pneg %p243
        %p331 = pneg %p240
        %s332 = sand.u32 %s230, 1
        %s333 = scalar_lea.sflag [#allocation3], %s332
        %s334 = sand.u32 %s230, 1
        %s335 = smul.addr %s334, 64
        %s336 = scalar_lea.vmem [#allocation2], %s335
        %p337 = scmp.lt.s32.totalorder %s23, 1
        %s338 = scalar_select %p337, %s23, 1
        %s339 = smul.addr %s338, 8
        %s340 = smul.addr %s339, 8
        %s341 = scalar_lea.vmem %s0, %s340
        %p342 = scmp.lt.s32.totalorder %s23, 1
        %s343 = scalar_select %p342, %s23, 1
        %s344 = scalar_lea.vmem %s1, %s343
        %v346 = vld [vmem:[%s341] sm:$0xff]
        %v347 = vld [vmem:[%s341 + $0x8] sm:$0xff]
        %v348 = vld [vmem:[%s341 + $0x10] sm:$0xff]
        %v349 = vld [vmem:[%s341 + $0x18] sm:$0xff]
        %v350 = vld [vmem:[%s341 + $0x20] sm:$0xff]
        %v351 = vld [vmem:[%s341 + $0x28] sm:$0xff]
        %v352 = vld [vmem:[%s341 + $0x30] sm:$0xff]
        %v353 = vld [vmem:[%s341 + $0x38] sm:$0xff]
        %v354 = vld [vmem:[%s344] sm:$0x1]
        %v355 = vsub.f32 0.0, %v354
        %v356 = vmul.f32 %v355, 1.442695
        %v357 = vpow.pop %v356
        %v358 = vadd.f32 %v357, 1.0
        %v359 = vrcp.pop %v358
        %v360 = vmul.f32 1.0, %v359
        %v361 = vmul.f32 %v354, %v360
        %v362 = vld [vmem:[%s7] sm:$0xff]
        %v363 = vld [vmem:[%s7 + $0x8] sm:$0xff]
        %v364 = vld [vmem:[%s7 + $0x10] sm:$0xff]
        %v365 = vpack.c.bf16 %v361, %v361
        %v366 = vld [vmem:[%s8] ss:$8 sm:$0x3]
        %v370 = vunpack.c.l.b16 %v362
        %v371 = vunpack.c.h.b16 %v362
        %v372 = vunpack.c.l.b16 %v363
        %v373 = vunpack.c.h.b16 %v363
        %v374 = vunpack.c.l.b16 %v364
        %v375 = vunpack.c.h.b16 %v364
        %v376 = vpack.c.b16 %v372, %v370
        %v377 = vpack.c.b16 %v373, %v371
        %v378 = vpack.c.b16 %v374, %v374
        %v379 = vpack.c.b16 %v375, %v375
        %v383 = vlaneseq
        %v384 = vshrl.u32 %v383, 7
        %v385 = vsub.s32 0, %v384
        %v386 = vrot.slane %v366, %v385
        %v387 = vlaneseq
        %v388 = vshrl.u32 %v387, 7
        %v389 = vsub.s32 1, %v388
        %v390 = vrot.slane %v366, %v389
        %vm393 = vcmask 195584
        %v395 = vsel %vm393, %v365, 0
        %vm397 = vcmask 1043456
        %v399 = vsel %vm397, %v378, 0
        %v402 = vsel %vm397, %v379, 0
        %404 = vmatprep.subr.bf16.mxu0 %v377
        %405 = vmatpush1.bf16.msra.mxu0 %v376
        %406 = vmatprep.subr.bf16.mxu0 %v402
        %407 = vmatpush1.bf16.msra.mxu0 %v399
        %408 = vmatprep.subr.bf16.mxu0 0
        %409 = vmatpush1.bf16.msra.mxu0 0
        %410 = vmatprep.subr.bf16.mxu0 0
        %411 = vmatpush1.bf16.msra.mxu0 0
        %412 = vmatprep.subr.bf16.mxu0 0
        %413 = vmatpush1.bf16.msra.mxu0 0
        %414 = vmatprep.subr.bf16.mxu0 0
        %415 = vmatpush1.bf16.msra.mxu0 0
        %416 = vmatprep.subr.bf16.mxu0 0
        %417 = vmatpush1.bf16.msra.mxu0 0
        %418 = vmatprep.subr.bf16.mxu0 0
        %419 = vmatpush1.bf16.msra.mxu0 0
        %420 = vmatprep.subr.bf16.mxu0 0
        %421 = vmatpush1.bf16.msra.mxu0 0
        %422 = vmatprep.subr.bf16.mxu0 0
        %423 = vmatpush1.bf16.msra.mxu0 0
        %424 = vmatprep.subr.bf16.mxu0 0
        %425 = vmatpush1.bf16.msra.mxu0 0
        %426 = vmatprep.subr.bf16.mxu0 0
        %427 = vmatpush1.bf16.msra.mxu0 0
        %428 = vmatprep.subr.bf16.mxu0 0
        %429 = vmatpush1.bf16.msra.mxu0 0
        %430 = vmatprep.subr.bf16.mxu0 0
        %431 = vmatpush1.bf16.msra.mxu0 0
        %432 = vmatprep.subr.bf16.mxu0 0
        %433 = vmatpush1.bf16.msra.mxu0 0
        %434 = vmatprep.subr.bf16.mxu0 0
        %435 = vmatpush1.bf16.msra.mxu0 0
        %436 = vmatprep.mubr.bf16.mxu0 0
        %437 = vmatmul.mubr.bf16.gmra.mrb[0].mxu0 %v395
        %v438 = vpop.f32.mrb[0].mxu0
        %v439 = vadd.f32 %v386, %v438
        %v440 = vpop.f32.mrb[0].mxu0
        %v441 = vadd.f32 %v390, %v440
        %v442 = vpop.f32.mrb[0].mxu0
        %v443 = vpop.f32.mrb[0].mxu0
        %444 = vdwg.mxu0
        %v445 = vld [vmem:[%s8 + $0x1] ss:$0 sm:$0xff]
        %v446 = vld [vmem:[%s8 + $0x2] ss:$0 sm:$0xff]
        %v447 = vsel %vm393, %v346, 0.0
        %448 = vadd.xlane.f32.xlu0 %v447
        %v449 = vpop.xlane.xlu0 %448
        %v450 = vsel %vm393, %v347, 0.0
        %451 = vadd.xlane.f32.xlu0 %v450
        %v452 = vpop.xlane.xlu0 %451
        %v453 = vsel %vm393, %v348, 0.0
        %454 = vadd.xlane.f32.xlu0 %v453
        %v455 = vpop.xlane.xlu0 %454
        %v456 = vsel %vm393, %v349, 0.0
        %457 = vadd.xlane.f32.xlu0 %v456
        %v458 = vpop.xlane.xlu0 %457
        %v459 = vsel %vm393, %v350, 0.0
        %460 = vadd.xlane.f32.xlu0 %v459
        %v461 = vpop.xlane.xlu0 %460
        %v462 = vsel %vm393, %v351, 0.0
        %463 = vadd.xlane.f32.xlu0 %v462
        %v464 = vpop.xlane.xlu0 %463
        %v465 = vsel %vm393, %v352, 0.0
        %466 = vadd.xlane.f32.xlu0 %v465
        %v467 = vpop.xlane.xlu0 %466
        %v468 = vsel %vm393, %v353, 0.0
        %469 = vadd.xlane.f32.xlu0 %v468
        %v470 = vpop.xlane.xlu0 %469
        %v471 = vrcp.pop 24.0
        %v472 = vmul.f32 %v449, %v471
        %v473 = vmul.f32 %v452, %v471
        %v474 = vmul.f32 %v455, %v471
        %v475 = vmul.f32 %v458, %v471
        %v476 = vmul.f32 %v461, %v471
        %v477 = vmul.f32 %v464, %v471
        %v478 = vmul.f32 %v467, %v471
        %v479 = vmul.f32 %v470, %v471
        %v480 = vsub.f32 %v346, %v472
        %v481 = vsub.f32 %v347, %v473
        %v482 = vsub.f32 %v348, %v474
        %v483 = vsub.f32 %v349, %v475
        %v484 = vsub.f32 %v350, %v476
        %v485 = vsub.f32 %v351, %v477
        %v486 = vsub.f32 %v352, %v478
        %v487 = vsub.f32 %v353, %v479
        %v488 = vmul.f32 %v480, %v480
        %v489 = vmul.f32 %v481, %v481
        %v490 = vmul.f32 %v482, %v482
        %v491 = vmul.f32 %v483, %v483
        %v492 = vmul.f32 %v484, %v484
        %v493 = vmul.f32 %v485, %v485
        %v494 = vmul.f32 %v486, %v486
        %v495 = vmul.f32 %v487, %v487
        %v496 = vsel %vm393, %v488, 0.0
        %497 = vadd.xlane.f32.xlu0 %v496
        %v498 = vpop.xlane.xlu0 %497
        %v499 = vsel %vm393, %v489, 0.0
        %500 = vadd.xlane.f32.xlu0 %v499
        %v501 = vpop.xlane.xlu0 %500
        %v502 = vsel %vm393, %v490, 0.0
        %503 = vadd.xlane.f32.xlu0 %v502
        %v504 = vpop.xlane.xlu0 %503
        %v505 = vsel %vm393, %v491, 0.0
        %506 = vadd.xlane.f32.xlu0 %v505
        %v507 = vpop.xlane.xlu0 %506
        %v508 = vsel %vm393, %v492, 0.0
        %509 = vadd.xlane.f32.xlu0 %v508
        %v510 = vpop.xlane.xlu0 %509
        %v511 = vsel %vm393, %v493, 0.0
        %512 = vadd.xlane.f32.xlu0 %v511
        %v513 = vpop.xlane.xlu0 %512
        %v514 = vsel %vm393, %v494, 0.0
        %515 = vadd.xlane.f32.xlu0 %v514
        %v516 = vpop.xlane.xlu0 %515
        %v517 = vsel %vm393, %v495, 0.0
        %518 = vadd.xlane.f32.xlu0 %v517
        %v519 = vpop.xlane.xlu0 %518
        %v520 = vmul.f32 %v498, %v471
        %v521 = vmul.f32 %v501, %v471
        %v522 = vmul.f32 %v504, %v471
        %v523 = vmul.f32 %v507, %v471
        %v524 = vmul.f32 %v510, %v471
        %v525 = vmul.f32 %v513, %v471
        %v526 = vmul.f32 %v516, %v471
        %v527 = vmul.f32 %v519, %v471
        %v528 = vadd.f32 %v520, 1e-05
        %v529 = vadd.f32 %v521, 1e-05
        %v530 = vadd.f32 %v522, 1e-05
        %v531 = vadd.f32 %v523, 1e-05
        %v532 = vadd.f32 %v524, 1e-05
        %v533 = vadd.f32 %v525, 1e-05
        %v534 = vadd.f32 %v526, 1e-05
        %v535 = vadd.f32 %v527, 1e-05
        %v536 = vrsqrt.pop %v528
        %v537 = vrsqrt.pop %v529
        %v538 = vrsqrt.pop %v530
        %v539 = vrsqrt.pop %v531
        %v540 = vrsqrt.pop %v532
        %v541 = vrsqrt.pop %v533
        %v542 = vrsqrt.pop %v534
        %v543 = vrsqrt.pop %v535
        %v544 = vmul.f32 %v480, %v536
        %v545 = vmul.f32 %v481, %v537
        %v546 = vmul.f32 %v482, %v538
        %v547 = vmul.f32 %v483, %v539
        %v548 = vmul.f32 %v484, %v540
        %v549 = vmul.f32 %v485, %v541
        %v550 = vmul.f32 %v486, %v542
        %v551 = vmul.f32 %v487, %v543
        %v552 = vmul.f32 %v544, %v445
        %v553 = vmul.f32 %v545, %v445
        %v554 = vmul.f32 %v546, %v445
        %v555 = vmul.f32 %v547, %v445
        %v556 = vmul.f32 %v548, %v445
        %v557 = vmul.f32 %v549, %v445
        %v558 = vmul.f32 %v550, %v445
        %v559 = vmul.f32 %v551, %v445
        %v560 = vadd.f32 %v552, %v446
        %v561 = vadd.f32 %v553, %v446
        %v562 = vadd.f32 %v554, %v446
        %v563 = vadd.f32 %v555, %v446
        %v564 = vadd.f32 %v556, %v446
        %v565 = vadd.f32 %v557, %v446
        %v566 = vadd.f32 %v558, %v446
        %v567 = vadd.f32 %v559, %v446
        %v568 = vadd.f32 %v439, 1.0
        %v569 = vlaneseq
        %v570 = vshrl.u32 %v569, 7
        %v571 = vsub.s32 0, %v570
        %v572 = vrot.slane %v568, %v571
        %574 = vrot.lane.b32.xlu0 %v572, 104
        %v575 = vpop.permute.xlu0 %574
        %v577 = vmul.f32 %v560, %v575
        %v578 = vmul.f32 %v561, %v575
        %v579 = vmul.f32 %v562, %v575
        %v580 = vmul.f32 %v563, %v575
        %v581 = vmul.f32 %v564, %v575
        %v582 = vmul.f32 %v565, %v575
        %v583 = vmul.f32 %v566, %v575
        %v584 = vmul.f32 %v567, %v575
        %v585 = vlaneseq
        %v586 = vshrl.u32 %v585, 7
        %v587 = vsub.s32 0, %v586
        %v588 = vrot.slane %v439, %v587
        %v589 = vadd.f32 %v577, %v588
        %v590 = vadd.f32 %v578, %v588
        %v591 = vadd.f32 %v579, %v588
        %v592 = vadd.f32 %v580, %v588
        %v593 = vadd.f32 %v581, %v588
        %v594 = vadd.f32 %v582, %v588
        %v595 = vadd.f32 %v583, %v588
        %v596 = vadd.f32 %v584, %v588
        %v597 = vld [vmem:[%s7 + $0x18] sm:$0xf]
        %v598 = vld [vmem:[%s7 + $0x20] sm:$0xf]
        %v599 = vld [vmem:[%s7 + $0x28] sm:$0xf]
        %v600 = vpack.c.bf16 %v590, %v589
        %v601 = vpack.c.bf16 %v592, %v591
        %v602 = vpack.c.bf16 %v594, %v593
        %v603 = vpack.c.bf16 %v596, %v595
        %v604 = vld [vmem:[%s8 + $0x5] ss:$0 sm:$0xff]
        %v608 = vunpack.c.l.b16 %v597
        %v609 = vunpack.c.l.b16 %v598
        %v610 = vunpack.c.l.b16 %v599
        %v611 = vpack.c.b16 %v609, %v608
        %v612 = vpack.c.b16 %v610, %v610
        %v615 = vsel %vm393, %v600, 0
        %v618 = vsel %vm393, %v601, 0
        %v621 = vsel %vm393, %v602, 0
        %v624 = vsel %vm393, %v603, 0
        %v627 = vsel %vm397, %v612, 0
        %629 = vmatprep.subr.bf16.mxu0 0
        %630 = vmatpush1.bf16.msra.mxu0 %v611
        %631 = vmatprep.subr.bf16.mxu0 0
        %632 = vmatpush1.bf16.msra.mxu0 %v627
        %633 = vmatprep.subr.bf16.mxu0 0
        %634 = vmatpush1.bf16.msra.mxu0 0
        %635 = vmatprep.subr.bf16.mxu0 0
        %636 = vmatpush1.bf16.msra.mxu0 0
        %637 = vmatprep.subr.bf16.mxu0 0
        %638 = vmatpush1.bf16.msra.mxu0 0
        %639 = vmatprep.subr.bf16.mxu0 0
        %640 = vmatpush1.bf16.msra.mxu0 0
        %641 = vmatprep.subr.bf16.mxu0 0
        %642 = vmatpush1.bf16.msra.mxu0 0
        %643 = vmatprep.subr.bf16.mxu0 0
        %644 = vmatpush1.bf16.msra.mxu0 0
        %645 = vmatprep.subr.bf16.mxu0 0
        %646 = vmatpush1.bf16.msra.mxu0 0
        %647 = vmatprep.subr.bf16.mxu0 0
        %648 = vmatpush1.bf16.msra.mxu0 0
        %649 = vmatprep.subr.bf16.mxu0 0
        %650 = vmatpush1.bf16.msra.mxu0 0
        %651 = vmatprep.subr.bf16.mxu0 0
        %652 = vmatpush1.bf16.msra.mxu0 0
        %653 = vmatprep.subr.bf16.mxu0 0
        %654 = vmatpush1.bf16.msra.mxu0 0
        %655 = vmatprep.subr.bf16.mxu0 0
        %656 = vmatpush1.bf16.msra.mxu0 0
        %657 = vmatprep.subr.bf16.mxu0 0
        %658 = vmatpush1.bf16.msra.mxu0 0
        %659 = vmatprep.subr.bf16.mxu0 0
        %660 = vmatpush1.bf16.msra.mxu0 0
        %661 = vmatprep.mubr.bf16.mxu0 0
        %662 = vmatmul.mubr.bf16.gmra.mrb[0].mxu0 %v615
        %v663 = vpop.f32.mrb[0].mxu0
        %v664 = vadd.f32 %v604, %v663
        %v665 = vpop.f32.mrb[0].mxu0
        %v666 = vpop.f32.mrb[0].mxu0
        %v667 = vadd.f32 %v604, %v666
        %v668 = vpop.f32.mrb[0].mxu0
        %669 = vmatprep.mubr.bf16.mxu0 0
        %670 = vmatmul.mubr.bf16.gmra.mrb[0].mxu0 %v618
        %v671 = vpop.f32.mrb[0].mxu0
        %v672 = vadd.f32 %v604, %v671
        %v673 = vpop.f32.mrb[0].mxu0
        %v674 = vpop.f32.mrb[0].mxu0
        %v675 = vadd.f32 %v604, %v674
        %v676 = vpop.f32.mrb[0].mxu0
        %677 = vmatprep.mubr.bf16.mxu0 0
        %678 = vmatmul.mubr.bf16.gmra.mrb[0].mxu0 %v621
        %v679 = vpop.f32.mrb[0].mxu0
        %v680 = vadd.f32 %v604, %v679
        %v681 = vpop.f32.mrb[0].mxu0
        %v682 = vpop.f32.mrb[0].mxu0
        %v683 = vadd.f32 %v604, %v682
        %v684 = vpop.f32.mrb[0].mxu0
        %685 = vmatprep.mubr.bf16.mxu0 0
        %686 = vmatmul.mubr.bf16.gmra.mrb[0].mxu0 %v624
        %v687 = vpop.f32.mrb[0].mxu0
        %v688 = vadd.f32 %v604, %v687
        %v689 = vpop.f32.mrb[0].mxu0
        %v690 = vpop.f32.mrb[0].mxu0
        %v691 = vadd.f32 %v604, %v690
        %v692 = vpop.f32.mrb[0].mxu0
        %693 = vdwg.mxu0
        %v694 = vmul.f32 %v664, 0.4082483
        %v695 = vmul.f32 %v667, 0.4082483
        %v696 = vmul.f32 %v672, 0.4082483
        %v697 = vmul.f32 %v675, 0.4082483
        %v698 = vmul.f32 %v680, 0.4082483
        %v699 = vmul.f32 %v683, 0.4082483
        %v700 = vmul.f32 %v688, 0.4082483
        %v701 = vmul.f32 %v691, 0.4082483
        %v702 = vpack.c.bf16 %v667, %v664
        %v703 = vpack.c.bf16 %v675, %v672
        %v704 = vpack.c.bf16 %v683, %v680
        %v705 = vpack.c.bf16 %v691, %v688
        %v706 = vld [vmem:[%s3] sm:$0xf]
        %v707 = vld [vmem:[%s3 + $0x4] sm:$0xf]
        %v708 = vld [vmem:[%s3 + $0x8] sm:$0xf]
        %v709 = vld [vmem:[%s3 + $0xc] sm:$0xf]
        %v710 = vld [vmem:[%s3 + $0x10] sm:$0xf]
        %v711 = vld [vmem:[%s3 + $0x14] sm:$0xf]
        %v712 = vld [vmem:[%s3 + $0x18] sm:$0xf]
        %v713 = vld [vmem:[%s3 + $0x1c] sm:$0xf]
        %v714 = vld [vmem:[%s3 + $0x20] sm:$0xf]
        %v715 = vld [vmem:[%s3 + $0x24] sm:$0xf]
        %v716 = vld [vmem:[%s3 + $0x28] sm:$0xf]
        %v717 = vld [vmem:[%s3 + $0x2c] sm:$0xf]
        %v718 = vld [vmem:[%s3 + $0x30] sm:$0xf]
        %v719 = vld [vmem:[%s3 + $0x34] sm:$0xf]
        %v720 = vld [vmem:[%s3 + $0x38] sm:$0xf]
        %v721 = vld [vmem:[%s3 + $0x3c] sm:$0xf]
        %v722 = vld [vmem:[%s3 + $0x40] sm:$0xf]
        %v723 = vld [vmem:[%s3 + $0x44] sm:$0xf]
        %v724 = vld [vmem:[%s3 + $0x48] sm:$0xf]
        %v725 = vld [vmem:[%s3 + $0x4c] sm:$0xf]
        %v726 = vld [vmem:[%s3 + $0x50] sm:$0xf]
        %v727 = vld [vmem:[%s3 + $0x54] sm:$0xf]
        %v728 = vld [vmem:[%s3 + $0x58] sm:$0xf]
        %v729 = vld [vmem:[%s3 + $0x5c] sm:$0xf]
        %v730 = vld [vmem:[%s3 + $0x60] sm:$0xf]
        %v731 = vld [vmem:[%s3 + $0x64] sm:$0xf]
        %v732 = vld [vmem:[%s3 + $0x68] sm:$0xf]
        %v733 = vld [vmem:[%s3 + $0x6c] sm:$0xf]
        %v734 = vld [vmem:[%s3 + $0x70] sm:$0xf]
        %v735 = vld [vmem:[%s3 + $0x74] sm:$0xf]
        %v736 = vld [vmem:[%s3 + $0x78] sm:$0xf]
        %v737 = vld [vmem:[%s3 + $0x7c] sm:$0xf]
        %v770 = vunpack.c.l.b16 %v706
        %v771 = vunpack.c.l.b16 %v707
        %v772 = vunpack.c.l.b16 %v708
        %v773 = vunpack.c.l.b16 %v709
        %v774 = vunpack.c.l.b16 %v710
        %v775 = vunpack.c.l.b16 %v711
        %v776 = vunpack.c.l.b16 %v712
        %v777 = vunpack.c.l.b16 %v713
        %v778 = vunpack.c.l.b16 %v714
        %v779 = vunpack.c.l.b16 %v715
        %v780 = vunpack.c.l.b16 %v716
        %v781 = vunpack.c.l.b16 %v717
        %v782 = vunpack.c.l.b16 %v718
        %v783 = vunpack.c.l.b16 %v719
        %v784 = vunpack.c.l.b16 %v720
        %v785 = vunpack.c.l.b16 %v721
        %v786 = vunpack.c.l.b16 %v722
        %v787 = vunpack.c.l.b16 %v723
        %v788 = vunpack.c.l.b16 %v724
        %v789 = vunpack.c.l.b16 %v725
        %v790 = vunpack.c.l.b16 %v726
        %v791 = vunpack.c.l.b16 %v727
        %v792 = vunpack.c.l.b16 %v728
        %v793 = vunpack.c.l.b16 %v729
        %v794 = vunpack.c.l.b16 %v730
        %v795 = vunpack.c.l.b16 %v731
        %v796 = vunpack.c.l.b16 %v732
        %v797 = vunpack.c.l.b16 %v733
        %v798 = vunpack.c.l.b16 %v734
        %v799 = vunpack.c.l.b16 %v735
        %v800 = vunpack.c.l.b16 %v736
        %v801 = vunpack.c.l.b16 %v737
        %v802 = vpack.c.b16 %v771, %v770
        %v803 = vpack.c.b16 %v773, %v772
        %v804 = vpack.c.b16 %v775, %v774
        %v805 = vpack.c.b16 %v777, %v776
        %v806 = vpack.c.b16 %v779, %v778
        %v807 = vpack.c.b16 %v781, %v780
        %v808 = vpack.c.b16 %v783, %v782
        %v809 = vpack.c.b16 %v785, %v784
        %v810 = vpack.c.b16 %v787, %v786
        %v811 = vpack.c.b16 %v789, %v788
        %v812 = vpack.c.b16 %v791, %v790
        %v813 = vpack.c.b16 %v793, %v792
        %v814 = vpack.c.b16 %v795, %v794
        %v815 = vpack.c.b16 %v797, %v796
        %v816 = vpack.c.b16 %v799, %v798
        %v817 = vpack.c.b16 %v801, %v800
        %822 = vrot.lane.b32.xlu0 %v702, 80
        %v823 = vpop.permute.xlu0 %822
        %824 = vrot.lane.b32.xlu0 %v703, 80
        %v825 = vpop.permute.xlu0 %824
        %826 = vrot.lane.b32.xlu0 %v704, 80
        %v827 = vpop.permute.xlu0 %826
        %828 = vrot.lane.b32.xlu0 %v705, 80
        %v829 = vpop.permute.xlu0 %828
        %vm834 = vcmask 523264
        %v836 = vsel %vm834, %v802, 0
        %v839 = vsel %vm834, %v803, 0
        %v842 = vsel %vm834, %v804, 0
        %v845 = vsel %vm834, %v805, 0
        %v848 = vsel %vm834, %v806, 0
        %v851 = vsel %vm834, %v807, 0
        %v854 = vsel %vm834, %v808, 0
        %v857 = vsel %vm834, %v809, 0
        %v860 = vsel %vm834, %v810, 0
        %v863 = vsel %vm834, %v811, 0
        %v866 = vsel %vm834, %v812, 0
        %v869 = vsel %vm834, %v813, 0
        %v872 = vsel %vm834, %v814, 0
        %v875 = vsel %vm834, %v815, 0
        %v878 = vsel %vm834, %v816, 0
        %v881 = vsel %vm834, %v817, 0
        %883 = vmatprep.subr.bf16.mxu0 0
        %884 = vmatpush1.bf16.msra.mxu0 %v823
        %885 = vmatprep.subr.bf16.mxu0 0
        %886 = vmatpush1.bf16.msra.mxu0 %v825
        %887 = vmatprep.subr.bf16.mxu0 0
        %888 = vmatpush1.bf16.msra.mxu0 %v827
        %889 = vmatprep.subr.bf16.mxu0 0
        %890 = vmatpush1.bf16.msra.mxu0 %v829
        %891 = vmatprep.subr.bf16.mxu0 0
        %892 = vmatpush1.bf16.msra.mxu0 0
        %893 = vmatprep.subr.bf16.mxu0 0
        %894 = vmatpush1.bf16.msra.mxu0 0
        %895 = vmatprep.subr.bf16.mxu0 0
        %896 = vmatpush1.bf16.msra.mxu0 0
        %897 = vmatprep.subr.bf16.mxu0 0
        %898 = vmatpush1.bf16.msra.mxu0 0
        %899 = vmatprep.subr.bf16.mxu0 0
        %900 = vmatpush1.bf16.msra.mxu0 0
        %901 = vmatprep.subr.bf16.mxu0 0
        %902 = vmatpush1.bf16.msra.mxu0 0
        %903 = vmatprep.subr.bf16.mxu0 0
        %904 = vmatpush1.bf16.msra.mxu0 0
        %905 = vmatprep.subr.bf16.mxu0 0
        %906 = vmatpush1.bf16.msra.mxu0 0
        %907 = vmatprep.subr.bf16.mxu0 0
        %908 = vmatpush1.bf16.msra.mxu0 0
        %909 = vmatprep.subr.bf16.mxu0 0
        %910 = vmatpush1.bf16.msra.mxu0 0
        %911 = vmatprep.subr.bf16.mxu0 0
        %912 = vmatpush1.bf16.msra.mxu0 0
        %913 = vmatprep.subr.bf16.mxu0 0
        %914 = vmatpush1.bf16.msra.mxu0 0
        %915 = vmatprep.mubr.bf16.mxu0 0
        %916 = vmatmul.mubr.bf16.gmra.mrb[0].mxu0 %v836
        %v917 = vpop.f32.mrb[0].mxu0
        %v918 = vadd.f32 0.0, %v917
        %v919 = vpop.f32.mrb[0].mxu0
        %v920 = vpop.f32.mrb[0].mxu0
        %v921 = vadd.f32 0.0, %v920
        %v922 = vpop.f32.mrb[0].mxu0
        %923 = vmatprep.mubr.bf16.mxu0 0
        %924 = vmatmul.mubr.bf16.gmra.mrb[0].mxu0 %v839
        %v925 = vpop.f32.mrb[0].mxu0
        %v926 = vadd.f32 0.0, %v925
        %v927 = vpop.f32.mrb[0].mxu0
        %v928 = vpop.f32.mrb[0].mxu0
        %v929 = vadd.f32 0.0, %v928
        %v930 = vpop.f32.mrb[0].mxu0
        %931 = vmatprep.mubr.bf16.mxu0 0
        %932 = vmatmul.mubr.bf16.gmra.mrb[0].mxu0 %v842
        %v933 = vpop.f32.mrb[0].mxu0
        %v934 = vadd.f32 0.0, %v933
        %v935 = vpop.f32.mrb[0].mxu0
        %v936 = vpop.f32.mrb[0].mxu0
        %v937 = vadd.f32 0.0, %v936
        %v938 = vpop.f32.mrb[0].mxu0
        %939 = vmatprep.mubr.bf16.mxu0 0
        %940 = vmatmul.mubr.bf16.gmra.mrb[0].mxu0 %v845
        %v941 = vpop.f32.mrb[0].mxu0
        %v942 = vadd.f32 0.0, %v941
        %v943 = vpop.f32.mrb[0].mxu0
        %v944 = vpop.f32.mrb[0].mxu0
        %v945 = vadd.f32 0.0, %v944
        %v946 = vpop.f32.mrb[0].mxu0
        %947 = vmatprep.mubr.bf16.mxu0 0
        %948 = vmatmul.mubr.bf16.gmra.mrb[0].mxu0 %v848
        %v949 = vpop.f32.mrb[0].mxu0
        %v950 = vadd.f32 0.0, %v949
        %v951 = vpop.f32.mrb[0].mxu0
        %v952 = vpop.f32.mrb[0].mxu0
        %v953 = vadd.f32 0.0, %v952
        %v954 = vpop.f32.mrb[0].mxu0
        %955 = vmatprep.mubr.bf16.mxu0 0
        %956 = vmatmul.mubr.bf16.gmra.mrb[0].mxu0 %v851
        %v957 = vpop.f32.mrb[0].mxu0
        %v958 = vadd.f32 0.0, %v957
        %v959 = vpop.f32.mrb[0].mxu0
        %v960 = vpop.f32.mrb[0].mxu0
        %v961 = vadd.f32 0.0, %v960
        %v962 = vpop.f32.mrb[0].mxu0
        %963 = vmatprep.mubr.bf16.mxu0 0
        %964 = vmatmul.mubr.bf16.gmra.mrb[0].mxu0 %v854
        %v965 = vpop.f32.mrb[0].mxu0
        %v966 = vadd.f32 0.0, %v965
        %v967 = vpop.f32.mrb[0].mxu0
        %v968 = vpop.f32.mrb[0].mxu0
        %v969 = vadd.f32 0.0, %v968
        %v970 = vpop.f32.mrb[0].mxu0
        %971 = vmatprep.mubr.bf16.mxu0 0
        %972 = vmatmul.mubr.bf16.gmra.mrb[0].mxu0 %v857
        %v973 = vpop.f32.mrb[0].mxu0
        %v974 = vadd.f32 0.0, %v973
        %v975 = vpop.f32.mrb[0].mxu0
        %v976 = vpop.f32.mrb[0].mxu0
        %v977 = vadd.f32 0.0, %v976
        %v978 = vpop.f32.mrb[0].mxu0
        %979 = vmatprep.mubr.bf16.mxu0 0
        %980 = vmatmul.mubr.bf16.gmra.mrb[0].mxu0 %v860
        %v981 = vpop.f32.mrb[0].mxu0
        %v982 = vadd.f32 0.0, %v981
        %v983 = vpop.f32.mrb[0].mxu0
        %v984 = vpop.f32.mrb[0].mxu0
        %v985 = vadd.f32 0.0, %v984
        %v986 = vpop.f32.mrb[0].mxu0
        %987 = vmatprep.mubr.bf16.mxu0 0
        %988 = vmatmul.mubr.bf16.gmra.mrb[0].mxu0 %v863
        %v989 = vpop.f32.mrb[0].mxu0
        %v990 = vadd.f32 0.0, %v989
        %v991 = vpop.f32.mrb[0].mxu0
        %v992 = vpop.f32.mrb[0].mxu0
        %v993 = vadd.f32 0.0, %v992
        %v994 = vpop.f32.mrb[0].mxu0
        %995 = vmatprep.mubr.bf16.mxu0 0
        %996 = vmatmul.mubr.bf16.gmra.mrb[0].mxu0 %v866
        %v997 = vpop.f32.mrb[0].mxu0
        %v998 = vadd.f32 0.0, %v997
        %v999 = vpop.f32.mrb[0].mxu0
        %v1000 = vpop.f32.mrb[0].mxu0
        %v1001 = vadd.f32 0.0, %v1000
        %v1002 = vpop.f32.mrb[0].mxu0
        %1003 = vmatprep.mubr.bf16.mxu0 0
        %1004 = vmatmul.mubr.bf16.gmra.mrb[0].mxu0 %v869
        %v1005 = vpop.f32.mrb[0].mxu0
        %v1006 = vadd.f32 0.0, %v1005
        %v1007 = vpop.f32.mrb[0].mxu0
        %v1008 = vpop.f32.mrb[0].mxu0
        %v1009 = vadd.f32 0.0, %v1008
        %v1010 = vpop.f32.mrb[0].mxu0
        %1011 = vmatprep.mubr.bf16.mxu0 0
        %1012 = vmatmul.mubr.bf16.gmra.mrb[0].mxu0 %v872
        %v1013 = vpop.f32.mrb[0].mxu0
        %v1014 = vadd.f32 0.0, %v1013
        %v1015 = vpop.f32.mrb[0].mxu0
        %v1016 = vpop.f32.mrb[0].mxu0
        %v1017 = vadd.f32 0.0, %v1016
        %v1018 = vpop.f32.mrb[0].mxu0
        %1019 = vmatprep.mubr.bf16.mxu0 0
        %1020 = vmatmul.mubr.bf16.gmra.mrb[0].mxu0 %v875
        %v1021 = vpop.f32.mrb[0].mxu0
        %v1022 = vadd.f32 0.0, %v1021
        %v1023 = vpop.f32.mrb[0].mxu0
        %v1024 = vpop.f32.mrb[0].mxu0
        %v1025 = vadd.f32 0.0, %v1024
        %v1026 = vpop.f32.mrb[0].mxu0
        %1027 = vmatprep.mubr.bf16.mxu0 0
        %1028 = vmatmul.mubr.bf16.gmra.mrb[0].mxu0 %v878
        %v1029 = vpop.f32.mrb[0].mxu0
        %v1030 = vadd.f32 0.0, %v1029
        %v1031 = vpop.f32.mrb[0].mxu0
        %v1032 = vpop.f32.mrb[0].mxu0
        %v1033 = vadd.f32 0.0, %v1032
        %v1034 = vpop.f32.mrb[0].mxu0
        %1035 = vmatprep.mubr.bf16.mxu0 0
        %1036 = vmatmul.mubr.bf16.gmra.mrb[0].mxu0 %v881
        %v1037 = vpop.f32.mrb[0].mxu0
        %v1038 = vadd.f32 0.0, %v1037
        %v1039 = vpop.f32.mrb[0].mxu0
        %v1040 = vpop.f32.mrb[0].mxu0
        %v1041 = vadd.f32 0.0, %v1040
        %v1042 = vpop.f32.mrb[0].mxu0
        %1043 = vdwg.mxu0
        %v1044 = vld [vmem:[%s8 + $0x11] ss:$0 sm:$0xff]
        %v1045 = vmul.f32 %v918, %v1044
        %v1046 = vmul.f32 %v921, %v1044
        %v1047 = vmul.f32 %v926, %v1044
        %v1048 = vmul.f32 %v929, %v1044
        %v1049 = vmul.f32 %v934, %v1044
        %v1050 = vmul.f32 %v937, %v1044
        %v1051 = vmul.f32 %v942, %v1044
        %v1052 = vmul.f32 %v945, %v1044
        %v1053 = vld [vmem:[%s8 + $0x12] ss:$0 sm:$0xff]
        %v1054 = vmul.f32 %v950, %v1053
        %v1055 = vmul.f32 %v953, %v1053
        %v1056 = vmul.f32 %v958, %v1053
        %v1057 = vmul.f32 %v961, %v1053
        %v1058 = vmul.f32 %v966, %v1053
        %v1059 = vmul.f32 %v969, %v1053
        %v1060 = vmul.f32 %v974, %v1053
        %v1061 = vmul.f32 %v977, %v1053
        %v1062 = vadd.f32 %v1045, %v1054
        %v1063 = vadd.f32 %v1046, %v1055
        %v1064 = vadd.f32 %v1047, %v1056
        %v1065 = vadd.f32 %v1048, %v1057
        %v1066 = vadd.f32 %v1049, %v1058
        %v1067 = vadd.f32 %v1050, %v1059
        %v1068 = vadd.f32 %v1051, %v1060
        %v1069 = vadd.f32 %v1052, %v1061
        %v1070 = vld [vmem:[%s8 + $0x13] ss:$0 sm:$0xff]
        %v1071 = vmul.f32 %v982, %v1070
        %v1072 = vmul.f32 %v985, %v1070
        %v1073 = vmul.f32 %v990, %v1070
        %v1074 = vmul.f32 %v993, %v1070
        %v1075 = vmul.f32 %v998, %v1070
        %v1076 = vmul.f32 %v1001, %v1070
        %v1077 = vmul.f32 %v1006, %v1070
        %v1078 = vmul.f32 %v1009, %v1070
        %v1079 = vadd.f32 %v1062, %v1071
        %v1080 = vadd.f32 %v1063, %v1072
        %v1081 = vadd.f32 %v1064, %v1073
        %v1082 = vadd.f32 %v1065, %v1074
        %v1083 = vadd.f32 %v1066, %v1075
        %v1084 = vadd.f32 %v1067, %v1076
        %v1085 = vadd.f32 %v1068, %v1077
        %v1086 = vadd.f32 %v1069, %v1078
        %v1087 = vld [vmem:[%s8 + $0x14] ss:$0 sm:$0xff]
        %v1088 = vmul.f32 %v1014, %v1087
        %v1089 = vmul.f32 %v1017, %v1087
        %v1090 = vmul.f32 %v1022, %v1087
        %v1091 = vmul.f32 %v1025, %v1087
        %v1092 = vmul.f32 %v1030, %v1087
        %v1093 = vmul.f32 %v1033, %v1087
        %v1094 = vmul.f32 %v1038, %v1087
        %v1095 = vmul.f32 %v1041, %v1087
        %v1096 = vadd.f32 %v1079, %v1088
        %v1097 = vadd.f32 %v1080, %v1089
        %v1098 = vadd.f32 %v1081, %v1090
        %v1099 = vadd.f32 %v1082, %v1091
        %v1100 = vadd.f32 %v1083, %v1092
        %v1101 = vadd.f32 %v1084, %v1093
        %v1102 = vadd.f32 %v1085, %v1094
        %v1103 = vadd.f32 %v1086, %v1095
        %v1104 = vld [vmem:[%s8 + $0x15] ss:$0 sm:$0xff]
        %1106 = vrot.lane.b32.xlu0 %v1104, 48
        %v1107 = vpop.permute.xlu0 %1106
        %v1109 = vmul.f32 %v664, %v1107
        %v1110 = vmul.f32 %v667, %v1107
        %v1111 = vmul.f32 %v672, %v1107
        %v1112 = vmul.f32 %v675, %v1107
        %v1113 = vmul.f32 %v680, %v1107
        %v1114 = vmul.f32 %v683, %v1107
        %v1115 = vmul.f32 %v688, %v1107
        %v1116 = vmul.f32 %v691, %v1107
        %1125 = vrot.lane.b32.xlu0 %v1109, 80
        %v1126 = vpop.permute.xlu0 %1125
        %1127 = vrot.lane.b32.xlu0 %v1110, 80
        %v1128 = vpop.permute.xlu0 %1127
        %1129 = vrot.lane.b32.xlu0 %v1111, 80
        %v1130 = vpop.permute.xlu0 %1129
        %1131 = vrot.lane.b32.xlu0 %v1112, 80
        %v1132 = vpop.permute.xlu0 %1131
        %1133 = vrot.lane.b32.xlu0 %v1113, 80
        %v1134 = vpop.permute.xlu0 %1133
        %1135 = vrot.lane.b32.xlu0 %v1114, 80
        %v1136 = vpop.permute.xlu0 %1135
        %1137 = vrot.lane.b32.xlu0 %v1115, 80
        %v1138 = vpop.permute.xlu0 %1137
        %1139 = vrot.lane.b32.xlu0 %v1116, 80
        %v1140 = vpop.permute.xlu0 %1139
        %v1149 = vadd.f32 %v1096, %v1126
        %v1150 = vadd.f32 %v1097, %v1128
        %v1151 = vadd.f32 %v1098, %v1130
        %v1152 = vadd.f32 %v1099, %v1132
        %v1153 = vadd.f32 %v1100, %v1134
        %v1154 = vadd.f32 %v1101, %v1136
        %v1155 = vadd.f32 %v1102, %v1138
        %v1156 = vadd.f32 %v1103, %v1140
        %v1157 = vld [vmem:[%s8 + $0x16] ss:$0 sm:$0xff]
        %v1158 = vadd.f32 %v1149, %v1157
        %v1159 = vadd.f32 %v1150, %v1157
        %v1160 = vadd.f32 %v1151, %v1157
        %v1161 = vadd.f32 %v1152, %v1157
        %v1162 = vadd.f32 %v1153, %v1157
        %v1163 = vadd.f32 %v1154, %v1157
        %v1164 = vadd.f32 %v1155, %v1157
        %v1165 = vadd.f32 %v1156, %v1157
        %v1166 = vld [vmem:[%s6 + $0x20] sm:$0xff]
        %v1167 = vld [vmem:[%s6 + $0x28] sm:$0xff]
        %v1168 = vld [vmem:[%s6 + $0x30] sm:$0xff]
        %v1169 = vld [vmem:[%s6 + $0x38] sm:$0xff]
        %v1170 = vld [vmem:[%s6 + $0x40] sm:$0xff]
        %v1171 = vld [vmem:[%s6 + $0x48] sm:$0xff]
        %v1172 = vld [vmem:[%s6 + $0x50] sm:$0xff]
        %v1173 = vld [vmem:[%s6 + $0x58] sm:$0xff]
        %v1174 = vld [vmem:[%s6 + $0x60] sm:$0xff]
        %v1175 = vld [vmem:[%s6 + $0x68] sm:$0xff]
        %v1176 = vld [vmem:[%s6 + $0x70] sm:$0xff]
        %v1177 = vld [vmem:[%s6 + $0x78] sm:$0xff]
        %v1178 = vld [vmem:[%s6 + $0x80] sm:$0xff]
        %v1179 = vld [vmem:[%s6 + $0x88] sm:$0xff]
        %v1180 = vld [vmem:[%s6 + $0x90] sm:$0xff]
        %v1181 = vld [vmem:[%s6 + $0x98] sm:$0xff]
        %v1182 = vld [vmem:[%s6 + $0xa0] sm:$0xff]
        %v1183 = vld [vmem:[%s6 + $0xa8] sm:$0xff]
        %v1184 = vld [vmem:[%s6 + $0xb0] sm:$0xff]
        %v1185 = vld [vmem:[%s6 + $0xb8] sm:$0xff]
        %v1186 = vld [vmem:[%s6 + $0xc0] sm:$0xff]
        %v1187 = vld [vmem:[%s6 + $0xc8] sm:$0xff]
        %v1188 = vld [vmem:[%s6 + $0xd0] sm:$0xff]
        %v1189 = vld [vmem:[%s6 + $0xd8] sm:$0xff]
        %v1190 = vld [vmem:[%s6 + $0xe0] sm:$0xff]
        %v1191 = vld [vmem:[%s6 + $0xe8] sm:$0xff]
        %v1192 = vld [vmem:[%s6 + $0xf0] sm:$0xff]
        %v1193 = vld [vmem:[%s6 + $0xf8] sm:$0xff]
        %v1194 = vld [vmem:[%s6 + $0x100] sm:$0xff]
        %v1195 = vld [vmem:[%s6 + $0x108] sm:$0xff]
        %v1196 = vld [vmem:[%s6 + $0x110] sm:$0xff]
        %v1197 = vld [vmem:[%s6 + $0x118] sm:$0xff]
        %v1198 = vmul.f32 %v694, %v1166
        %v1199 = vmul.f32 %v695, %v1167
        %v1200 = vmul.f32 %v696, %v1168
        %v1201 = vmul.f32 %v697, %v1169
        %v1202 = vmul.f32 %v698, %v1170
        %v1203 = vmul.f32 %v699, %v1171
        %v1204 = vmul.f32 %v700, %v1172
        %v1205 = vmul.f32 %v701, %v1173
        %v1206 = vmul.f32 %v694, %v1174
        %v1207 = vmul.f32 %v695, %v1175
        %v1208 = vmul.f32 %v696, %v1176
        %v1209 = vmul.f32 %v697, %v1177
        %v1210 = vmul.f32 %v698, %v1178
        %v1211 = vmul.f32 %v699, %v1179
        %v1212 = vmul.f32 %v700, %v1180
        %v1213 = vmul.f32 %v701, %v1181
        %v1214 = vmul.f32 %v694, %v1182
        %v1215 = vmul.f32 %v695, %v1183
        %v1216 = vmul.f32 %v696, %v1184
        %v1217 = vmul.f32 %v697, %v1185
        %v1218 = vmul.f32 %v698, %v1186
        %v1219 = vmul.f32 %v699, %v1187
        %v1220 = vmul.f32 %v700, %v1188
        %v1221 = vmul.f32 %v701, %v1189
        %v1222 = vmul.f32 %v694, %v1190
        %v1223 = vmul.f32 %v695, %v1191
        %v1224 = vmul.f32 %v696, %v1192
        %v1225 = vmul.f32 %v697, %v1193
        %v1226 = vmul.f32 %v698, %v1194
        %v1227 = vmul.f32 %v699, %v1195
        %v1228 = vmul.f32 %v700, %v1196
        %v1229 = vmul.f32 %v701, %v1197
        %v1230 = vpack.c.bf16 %v1199, %v1198
        %v1231 = vpack.c.bf16 %v1201, %v1200
        %v1232 = vpack.c.bf16 %v1203, %v1202
        %v1233 = vpack.c.bf16 %v1205, %v1204
        %v1234 = vpack.c.bf16 %v1207, %v1206
        %v1235 = vpack.c.bf16 %v1209, %v1208
        %v1236 = vpack.c.bf16 %v1211, %v1210
        %v1237 = vpack.c.bf16 %v1213, %v1212
        %v1238 = vpack.c.bf16 %v1215, %v1214
        %v1239 = vpack.c.bf16 %v1217, %v1216
        %v1240 = vpack.c.bf16 %v1219, %v1218
        %v1241 = vpack.c.bf16 %v1221, %v1220
        %v1242 = vpack.c.bf16 %v1223, %v1222
        %v1243 = vpack.c.bf16 %v1225, %v1224
        %v1244 = vpack.c.bf16 %v1227, %v1226
        %v1245 = vpack.c.bf16 %v1229, %v1228
        %v1246 = vld [vmem:[%s2] sm:$0xff]
        %v1247 = vld [vmem:[%s2 + $0x8] sm:$0xff]
        %v1248 = vld [vmem:[%s2 + $0x10] sm:$0xff]
        %v1249 = vld [vmem:[%s2 + $0x18] sm:$0xff]
        %v1250 = vld [vmem:[%s2 + $0x20] sm:$0xff]
        %v1251 = vld [vmem:[%s2 + $0x28] sm:$0xff]
        %v1252 = vld [vmem:[%s2 + $0x30] sm:$0xff]
        %v1253 = vld [vmem:[%s2 + $0x38] sm:$0xff]
        %v1254 = vld [vmem:[%s2 + $0x40] sm:$0xff]
        %v1255 = vld [vmem:[%s2 + $0x48] sm:$0xff]
        %v1256 = vld [vmem:[%s2 + $0x50] sm:$0xff]
        %v1257 = vld [vmem:[%s2 + $0x58] sm:$0xff]
        %v1258 = vld [vmem:[%s2 + $0x60] sm:$0xff]
        %v1259 = vld [vmem:[%s2 + $0x68] sm:$0xff]
        %v1260 = vld [vmem:[%s2 + $0x70] sm:$0xff]
        %v1261 = vld [vmem:[%s2 + $0x78] sm:$0xff]
        %v1262 = vld [vmem:[%s2 + $0x80] sm:$0xff]
        %v1263 = vld [vmem:[%s2 + $0x88] sm:$0xff]
        %v1264 = vld [vmem:[%s2 + $0x90] sm:$0xff]
        %v1265 = vld [vmem:[%s2 + $0x98] sm:$0xff]
        %v1266 = vld [vmem:[%s2 + $0xa0] sm:$0xff]
        %v1267 = vld [vmem:[%s2 + $0xa8] sm:$0xff]
        %v1268 = vld [vmem:[%s2 + $0xb0] sm:$0xff]
        %v1269 = vld [vmem:[%s2 + $0xb8] sm:$0xff]
        %v1270 = vld [vmem:[%s2 + $0xc0] sm:$0xff]
        %v1271 = vld [vmem:[%s2 + $0xc8] sm:$0xff]
        %v1272 = vld [vmem:[%s2 + $0xd0] sm:$0xff]
        %v1273 = vld [vmem:[%s2 + $0xd8] sm:$0xff]
        %v1274 = vld [vmem:[%s2 + $0xe0] sm:$0xff]
        %v1275 = vld [vmem:[%s2 + $0xe8] sm:$0xff]
        %v1276 = vld [vmem:[%s2 + $0xf0] sm:$0xff]
        %v1277 = vld [vmem:[%s2 + $0xf8] sm:$0xff]
        %1278 = vrot.lane.b32.xlu0 %v702, 104
        %v1279 = vpop.permute.xlu0 %1278
        %1280 = vrot.lane.b32.xlu0 %v703, 104
        %v1281 = vpop.permute.xlu0 %1280
        %1282 = vrot.lane.b32.xlu0 %v704, 104
        %v1283 = vpop.permute.xlu0 %1282
        %1284 = vrot.lane.b32.xlu0 %v705, 104
        %v1285 = vpop.permute.xlu0 %1284
        %v1287 = vsel %vm393, %v1230, 0
        %v1290 = vsel %vm393, %v1231, 0
        %v1293 = vsel %vm393, %v1232, 0
        %v1296 = vsel %vm393, %v1233, 0
        %v1299 = vsel %vm393, %v1234, 0
        %v1302 = vsel %vm393, %v1235, 0
        %v1305 = vsel %vm393, %v1236, 0
        %v1308 = vsel %vm393, %v1237, 0
        %v1311 = vsel %vm393, %v1238, 0
        %v1314 = vsel %vm393, %v1239, 0
        %v1317 = vsel %vm393, %v1240, 0
        %v1320 = vsel %vm393, %v1241, 0
        %v1323 = vsel %vm393, %v1242, 0
        %v1326 = vsel %vm393, %v1243, 0
        %v1329 = vsel %vm393, %v1244, 0
        %v1332 = vsel %vm393, %v1245, 0
        %v1335 = vsel %vm393, %v1279, 0
        %v1338 = vsel %vm393, %v1281, 0
        %v1341 = vsel %vm393, %v1283, 0
        %v1344 = vsel %vm393, %v1285, 0
        %1346 = vmatprep.subr.bf16.mxu0 0
        %1347 = vmatpush1.bf16.xpose.msra.mxu0 %v1335
        %1348 = vmatprep.subr.bf16.mxu0 0
        %1349 = vmatpush1.bf16.xpose.msra.mxu0 %v1338
        %1350 = vmatprep.subr.bf16.mxu0 0
        %1351 = vmatpush1.bf16.xpose.msra.mxu0 %v1341
        %1352 = vmatprep.subr.bf16.mxu0 0
        %1353 = vmatpush1.bf16.xpose.msra.mxu0 %v1344
        %1354 = vmatprep.subr.bf16.mxu0 0
        %1355 = vmatpush1.bf16.xpose.msra.mxu0 0
        %1356 = vmatprep.subr.bf16.mxu0 0
        %1357 = vmatpush1.bf16.xpose.msra.mxu0 0
        %1358 = vmatprep.subr.bf16.mxu0 0
        %1359 = vmatpush1.bf16.xpose.msra.mxu0 0
        %1360 = vmatprep.subr.bf16.mxu0 0
        %1361 = vmatpush1.bf16.xpose.msra.mxu0 0
        %1362 = vmatprep.subr.bf16.mxu0 0
        %1363 = vmatpush1.bf16.xpose.msra.mxu0 0
        %1364 = vmatprep.subr.bf16.mxu0 0
        %1365 = vmatpush1.bf16.xpose.msra.mxu0 0
        %1366 = vmatprep.subr.bf16.mxu0 0
        %1367 = vmatpush1.bf16.xpose.msra.mxu0 0
        %1368 = vmatprep.subr.bf16.mxu0 0
        %1369 = vmatpush1.bf16.xpose.msra.mxu0 0
        %1370 = vmatprep.subr.bf16.mxu0 0
        %1371 = vmatpush1.bf16.xpose.msra.mxu0 0
        %1372 = vmatprep.subr.bf16.mxu0 0
        %1373 = vmatpush1.bf16.xpose.msra.mxu0 0
        %1374 = vmatprep.subr.bf16.mxu0 0
        %1375 = vmatpush1.bf16.xpose.msra.mxu0 0
        %1376 = vmatprep.subr.bf16.mxu0 0
        %1377 = vmatpush1.bf16.xpose.msra.mxu0 0
        %1378 = vmatprep.mubr.bf16.mxu0 0
        %1379 = vmatmul.mubr.bf16.gmra.mrb[0].mxu0 %v1287
        %v1380 = vpop.f32.mrb[0].mxu0
        %v1381 = vadd.f32 %v1246, %v1380
        %v1382 = vpop.f32.mrb[0].mxu0
        %v1383 = vpop.f32.mrb[0].mxu0
        %v1384 = vadd.f32 %v1247, %v1383
        %v1385 = vpop.f32.mrb[0].mxu0
        %1386 = vmatprep.mubr.bf16.mxu0 0
        %1387 = vmatmul.mubr.bf16.gmra.mrb[0].mxu0 %v1290
        %v1388 = vpop.f32.mrb[0].mxu0
        %v1389 = vadd.f32 %v1248, %v1388
        %v1390 = vpop.f32.mrb[0].mxu0
        %v1391 = vpop.f32.mrb[0].mxu0
        %v1392 = vadd.f32 %v1249, %v1391
        %v1393 = vpop.f32.mrb[0].mxu0
        %1394 = vmatprep.mubr.bf16.mxu0 0
        %1395 = vmatmul.mubr.bf16.gmra.mrb[0].mxu0 %v1293
        %v1396 = vpop.f32.mrb[0].mxu0
        %v1397 = vadd.f32 %v1250, %v1396
        %v1398 = vpop.f32.mrb[0].mxu0
        %v1399 = vpop.f32.mrb[0].mxu0
        %v1400 = vadd.f32 %v1251, %v1399
        %v1401 = vpop.f32.mrb[0].mxu0
        %1402 = vmatprep.mubr.bf16.mxu0 0
        %1403 = vmatmul.mubr.bf16.gmra.mrb[0].mxu0 %v1296
        %v1404 = vpop.f32.mrb[0].mxu0
        %v1405 = vadd.f32 %v1252, %v1404
        %v1406 = vpop.f32.mrb[0].mxu0
        %v1407 = vpop.f32.mrb[0].mxu0
        %v1408 = vadd.f32 %v1253, %v1407
        %v1409 = vpop.f32.mrb[0].mxu0
        %1410 = vmatprep.mubr.bf16.mxu0 0
        %1411 = vmatmul.mubr.bf16.gmra.mrb[0].mxu0 %v1299
        %v1412 = vpop.f32.mrb[0].mxu0
        %v1413 = vadd.f32 %v1254, %v1412
        %v1414 = vpop.f32.mrb[0].mxu0
        %v1415 = vpop.f32.mrb[0].mxu0
        %v1416 = vadd.f32 %v1255, %v1415
        %v1417 = vpop.f32.mrb[0].mxu0
        %1418 = vmatprep.mubr.bf16.mxu0 0
        %1419 = vmatmul.mubr.bf16.gmra.mrb[0].mxu0 %v1302
        %v1420 = vpop.f32.mrb[0].mxu0
        %v1421 = vadd.f32 %v1256, %v1420
        %v1422 = vpop.f32.mrb[0].mxu0
        %v1423 = vpop.f32.mrb[0].mxu0
        %v1424 = vadd.f32 %v1257, %v1423
        %v1425 = vpop.f32.mrb[0].mxu0
        %1426 = vmatprep.mubr.bf16.mxu0 0
        %1427 = vmatmul.mubr.bf16.gmra.mrb[0].mxu0 %v1305
        %v1428 = vpop.f32.mrb[0].mxu0
        %v1429 = vadd.f32 %v1258, %v1428
        %v1430 = vpop.f32.mrb[0].mxu0
        %v1431 = vpop.f32.mrb[0].mxu0
        %v1432 = vadd.f32 %v1259, %v1431
        %v1433 = vpop.f32.mrb[0].mxu0
        %1434 = vmatprep.mubr.bf16.mxu0 0
        %1435 = vmatmul.mubr.bf16.gmra.mrb[0].mxu0 %v1308
        %v1436 = vpop.f32.mrb[0].mxu0
        %v1437 = vadd.f32 %v1260, %v1436
        %v1438 = vpop.f32.mrb[0].mxu0
        %v1439 = vpop.f32.mrb[0].mxu0
        %v1440 = vadd.f32 %v1261, %v1439
        %v1441 = vpop.f32.mrb[0].mxu0
        %1442 = vmatprep.mubr.bf16.mxu0 0
        %1443 = vmatmul.mubr.bf16.gmra.mrb[0].mxu0 %v1311
        %v1444 = vpop.f32.mrb[0].mxu0
        %v1445 = vadd.f32 %v1262, %v1444
        %v1446 = vpop.f32.mrb[0].mxu0
        %v1447 = vpop.f32.mrb[0].mxu0
        %v1448 = vadd.f32 %v1263, %v1447
        %v1449 = vpop.f32.mrb[0].mxu0
        %1450 = vmatprep.mubr.bf16.mxu0 0
        %1451 = vmatmul.mubr.bf16.gmra.mrb[0].mxu0 %v1314
        %v1452 = vpop.f32.mrb[0].mxu0
        %v1453 = vadd.f32 %v1264, %v1452
        %v1454 = vpop.f32.mrb[0].mxu0
        %v1455 = vpop.f32.mrb[0].mxu0
        %v1456 = vadd.f32 %v1265, %v1455
        %v1457 = vpop.f32.mrb[0].mxu0
        %1458 = vmatprep.mubr.bf16.mxu0 0
        %1459 = vmatmul.mubr.bf16.gmra.mrb[0].mxu0 %v1317
        %v1460 = vpop.f32.mrb[0].mxu0
        %v1461 = vadd.f32 %v1266, %v1460
        %v1462 = vpop.f32.mrb[0].mxu0
        %v1463 = vpop.f32.mrb[0].mxu0
        %v1464 = vadd.f32 %v1267, %v1463
        %v1465 = vpop.f32.mrb[0].mxu0
        %1466 = vmatprep.mubr.bf16.mxu0 0
        %1467 = vmatmul.mubr.bf16.gmra.mrb[0].mxu0 %v1320
        %v1468 = vpop.f32.mrb[0].mxu0
        %v1469 = vadd.f32 %v1268, %v1468
        %v1470 = vpop.f32.mrb[0].mxu0
        %v1471 = vpop.f32.mrb[0].mxu0
        %v1472 = vadd.f32 %v1269, %v1471
        %v1473 = vpop.f32.mrb[0].mxu0
        %1474 = vmatprep.mubr.bf16.mxu0 0
        %1475 = vmatmul.mubr.bf16.gmra.mrb[0].mxu0 %v1323
        %v1476 = vpop.f32.mrb[0].mxu0
        %v1477 = vadd.f32 %v1270, %v1476
        %v1478 = vpop.f32.mrb[0].mxu0
        %v1479 = vpop.f32.mrb[0].mxu0
        %v1480 = vadd.f32 %v1271, %v1479
        %v1481 = vpop.f32.mrb[0].mxu0
        %1482 = vmatprep.mubr.bf16.mxu0 0
        %1483 = vmatmul.mubr.bf16.gmra.mrb[0].mxu0 %v1326
        %v1484 = vpop.f32.mrb[0].mxu0
        %v1485 = vadd.f32 %v1272, %v1484
        %v1486 = vpop.f32.mrb[0].mxu0
        %v1487 = vpop.f32.mrb[0].mxu0
        %v1488 = vadd.f32 %v1273, %v1487
        %v1489 = vpop.f32.mrb[0].mxu0
        %1490 = vmatprep.mubr.bf16.mxu0 0
        %1491 = vmatmul.mubr.bf16.gmra.mrb[0].mxu0 %v1329
        %v1492 = vpop.f32.mrb[0].mxu0
        %v1493 = vadd.f32 %v1274, %v1492
        %v1494 = vpop.f32.mrb[0].mxu0
        %v1495 = vpop.f32.mrb[0].mxu0
        %v1496 = vadd.f32 %v1275, %v1495
        %v1497 = vpop.f32.mrb[0].mxu0
        %1498 = vmatprep.mubr.bf16.mxu0 0
        %1499 = vmatmul.mubr.bf16.gmra.mrb[0].mxu0 %v1332
        %v1500 = vpop.f32.mrb[0].mxu0
        %v1501 = vadd.f32 %v1276, %v1500
        %v1502 = vpop.f32.mrb[0].mxu0
        %v1503 = vpop.f32.mrb[0].mxu0
        %v1504 = vadd.f32 %v1277, %v1503
        %v1505 = vpop.f32.mrb[0].mxu0
        %1506 = vdwg.mxu0
        %v1507 = vsel %vm834, %v1381, -inf
        %1508 = vmax.xlane.f32.xlu0 %v1507
        %v1509 = vpop.xlane.xlu0 %1508
        %v1510 = vsel %vm834, %v1384, -inf
        %1511 = vmax.xlane.f32.xlu0 %v1510
        %v1512 = vpop.xlane.xlu0 %1511
        %v1513 = vsel %vm834, %v1389, -inf
        %1514 = vmax.xlane.f32.xlu0 %v1513
        %v1515 = vpop.xlane.xlu0 %1514
        %v1516 = vsel %vm834, %v1392, -inf
        %1517 = vmax.xlane.f32.xlu0 %v1516
        %v1518 = vpop.xlane.xlu0 %1517
        %v1519 = vsel %vm834, %v1397, -inf
        %1520 = vmax.xlane.f32.xlu0 %v1519
        %v1521 = vpop.xlane.xlu0 %1520
        %v1522 = vsel %vm834, %v1400, -inf
        %1523 = vmax.xlane.f32.xlu0 %v1522
        %v1524 = vpop.xlane.xlu0 %1523
        %v1525 = vsel %vm834, %v1405, -inf
        %1526 = vmax.xlane.f32.xlu0 %v1525
        %v1527 = vpop.xlane.xlu0 %1526
        %v1528 = vsel %vm834, %v1408, -inf
        %1529 = vmax.xlane.f32.xlu0 %v1528
        %v1530 = vpop.xlane.xlu0 %1529
        %v1531 = vsel %vm834, %v1413, -inf
        %1532 = vmax.xlane.f32.xlu0 %v1531
        %v1533 = vpop.xlane.xlu0 %1532
        %v1534 = vsel %vm834, %v1416, -inf
        %1535 = vmax.xlane.f32.xlu0 %v1534
        %v1536 = vpop.xlane.xlu0 %1535
        %v1537 = vsel %vm834, %v1421, -inf
        %1538 = vmax.xlane.f32.xlu0 %v1537
        %v1539 = vpop.xlane.xlu0 %1538
        %v1540 = vsel %vm834, %v1424, -inf
        %1541 = vmax.xlane.f32.xlu0 %v1540
        %v1542 = vpop.xlane.xlu0 %1541
        %v1543 = vsel %vm834, %v1429, -inf
        %1544 = vmax.xlane.f32.xlu0 %v1543
        %v1545 = vpop.xlane.xlu0 %1544
        %v1546 = vsel %vm834, %v1432, -inf
        %1547 = vmax.xlane.f32.xlu0 %v1546
        %v1548 = vpop.xlane.xlu0 %1547
        %v1549 = vsel %vm834, %v1437, -inf
        %1550 = vmax.xlane.f32.xlu0 %v1549
        %v1551 = vpop.xlane.xlu0 %1550
        %v1552 = vsel %vm834, %v1440, -inf
        %1553 = vmax.xlane.f32.xlu0 %v1552
        %v1554 = vpop.xlane.xlu0 %1553
        %v1555 = vsel %vm834, %v1445, -inf
        %1556 = vmax.xlane.f32.xlu0 %v1555
        %v1557 = vpop.xlane.xlu0 %1556
        %v1558 = vsel %vm834, %v1448, -inf
        %1559 = vmax.xlane.f32.xlu0 %v1558
        %v1560 = vpop.xlane.xlu0 %1559
        %v1561 = vsel %vm834, %v1453, -inf
        %1562 = vmax.xlane.f32.xlu0 %v1561
        %v1563 = vpop.xlane.xlu0 %1562
        %v1564 = vsel %vm834, %v1456, -inf
        %1565 = vmax.xlane.f32.xlu0 %v1564
        %v1566 = vpop.xlane.xlu0 %1565
        %v1567 = vsel %vm834, %v1461, -inf
        %1568 = vmax.xlane.f32.xlu0 %v1567
        %v1569 = vpop.xlane.xlu0 %1568
        %v1570 = vsel %vm834, %v1464, -inf
        %1571 = vmax.xlane.f32.xlu0 %v1570
        %v1572 = vpop.xlane.xlu0 %1571
        %v1573 = vsel %vm834, %v1469, -inf
        %1574 = vmax.xlane.f32.xlu0 %v1573
        %v1575 = vpop.xlane.xlu0 %1574
        %v1576 = vsel %vm834, %v1472, -inf
        %1577 = vmax.xlane.f32.xlu0 %v1576
        %v1578 = vpop.xlane.xlu0 %1577
        %v1579 = vsel %vm834, %v1477, -inf
        %1580 = vmax.xlane.f32.xlu0 %v1579
        %v1581 = vpop.xlane.xlu0 %1580
        %v1582 = vsel %vm834, %v1480, -inf
        %1583 = vmax.xlane.f32.xlu0 %v1582
        %v1584 = vpop.xlane.xlu0 %1583
        %v1585 = vsel %vm834, %v1485, -inf
        %1586 = vmax.xlane.f32.xlu0 %v1585
        %v1587 = vpop.xlane.xlu0 %1586
        %v1588 = vsel %vm834, %v1488, -inf
        %1589 = vmax.xlane.f32.xlu0 %v1588
        %v1590 = vpop.xlane.xlu0 %1589
        %v1591 = vsel %vm834, %v1493, -inf
        %1592 = vmax.xlane.f32.xlu0 %v1591
        %v1593 = vpop.xlane.xlu0 %1592
        %v1594 = vsel %vm834, %v1496, -inf
        %1595 = vmax.xlane.f32.xlu0 %v1594
        %v1596 = vpop.xlane.xlu0 %1595
        %v1597 = vsel %vm834, %v1501, -inf
        %1598 = vmax.xlane.f32.xlu0 %v1597
        %v1599 = vpop.xlane.xlu0 %1598
        %v1600 = vsel %vm834, %v1504, -inf
        %1601 = vmax.xlane.f32.xlu0 %v1600
        %v1602 = vpop.xlane.xlu0 %1601
        %v1603 = vsub.f32 %v1381, %v1509
        %v1604 = vsub.f32 %v1384, %v1512
        %v1605 = vsub.f32 %v1389, %v1515
        %v1606 = vsub.f32 %v1392, %v1518
        %v1607 = vsub.f32 %v1397, %v1521
        %v1608 = vsub.f32 %v1400, %v1524
        %v1609 = vsub.f32 %v1405, %v1527
        %v1610 = vsub.f32 %v1408, %v1530
        %v1611 = vsub.f32 %v1413, %v1533
        %v1612 = vsub.f32 %v1416, %v1536
        %v1613 = vsub.f32 %v1421, %v1539
        %v1614 = vsub.f32 %v1424, %v1542
        %v1615 = vsub.f32 %v1429, %v1545
        %v1616 = vsub.f32 %v1432, %v1548
        %v1617 = vsub.f32 %v1437, %v1551
        %v1618 = vsub.f32 %v1440, %v1554
        %v1619 = vsub.f32 %v1445, %v1557
        %v1620 = vsub.f32 %v1448, %v1560
        %v1621 = vsub.f32 %v1453, %v1563
        %v1622 = vsub.f32 %v1456, %v1566
        %v1623 = vsub.f32 %v1461, %v1569
        %v1624 = vsub.f32 %v1464, %v1572
        %v1625 = vsub.f32 %v1469, %v1575
        %v1626 = vsub.f32 %v1472, %v1578
        %v1627 = vsub.f32 %v1477, %v1581
        %v1628 = vsub.f32 %v1480, %v1584
        %v1629 = vsub.f32 %v1485, %v1587
        %v1630 = vsub.f32 %v1488, %v1590
        %v1631 = vsub.f32 %v1493, %v1593
        %v1632 = vsub.f32 %v1496, %v1596
        %v1633 = vsub.f32 %v1501, %v1599
        %v1634 = vsub.f32 %v1504, %v1602
        %v1635 = vmul.f32 %v1603, 1.442695
        %v1636 = vpow.pop %v1635
        %v1637 = vmul.f32 %v1604, 1.442695
        %v1638 = vpow.pop %v1637
        %v1639 = vmul.f32 %v1605, 1.442695
        %v1640 = vpow.pop %v1639
        %v1641 = vmul.f32 %v1606, 1.442695
        %v1642 = vpow.pop %v1641
        %v1643 = vmul.f32 %v1607, 1.442695
        %v1644 = vpow.pop %v1643
        %v1645 = vmul.f32 %v1608, 1.442695
        %v1646 = vpow.pop %v1645
        %v1647 = vmul.f32 %v1609, 1.442695
        %v1648 = vpow.pop %v1647
        %v1649 = vmul.f32 %v1610, 1.442695
        %v1650 = vpow.pop %v1649
        %v1651 = vmul.f32 %v1611, 1.442695
        %v1652 = vpow.pop %v1651
        %v1653 = vmul.f32 %v1612, 1.442695
        %v1654 = vpow.pop %v1653
        %v1655 = vmul.f32 %v1613, 1.442695
        %v1656 = vpow.pop %v1655
        %v1657 = vmul.f32 %v1614, 1.442695
        %v1658 = vpow.pop %v1657
        %v1659 = vmul.f32 %v1615, 1.442695
        %v1660 = vpow.pop %v1659
        %v1661 = vmul.f32 %v1616, 1.442695
        %v1662 = vpow.pop %v1661
        %v1663 = vmul.f32 %v1617, 1.442695
        %v1664 = vpow.pop %v1663
        %v1665 = vmul.f32 %v1618, 1.442695
        %v1666 = vpow.pop %v1665
        %v1667 = vmul.f32 %v1619, 1.442695
        %v1668 = vpow.pop %v1667
        %v1669 = vmul.f32 %v1620, 1.442695
        %v1670 = vpow.pop %v1669
        %v1671 = vmul.f32 %v1621, 1.442695
        %v1672 = vpow.pop %v1671
        %v1673 = vmul.f32 %v1622, 1.442695
        %v1674 = vpow.pop %v1673
        %v1675 = vmul.f32 %v1623, 1.442695
        %v1676 = vpow.pop %v1675
        %v1677 = vmul.f32 %v1624, 1.442695
        %v1678 = vpow.pop %v1677
        %v1679 = vmul.f32 %v1625, 1.442695
        %v1680 = vpow.pop %v1679
        %v1681 = vmul.f32 %v1626, 1.442695
        %v1682 = vpow.pop %v1681
        %v1683 = vmul.f32 %v1627, 1.442695
        %v1684 = vpow.pop %v1683
        %v1685 = vmul.f32 %v1628, 1.442695
        %v1686 = vpow.pop %v1685
        %v1687 = vmul.f32 %v1629, 1.442695
        %v1688 = vpow.pop %v1687
        %v1689 = vmul.f32 %v1630, 1.442695
        %v1690 = vpow.pop %v1689
        %v1691 = vmul.f32 %v1631, 1.442695
        %v1692 = vpow.pop %v1691
        %v1693 = vmul.f32 %v1632, 1.442695
        %v1694 = vpow.pop %v1693
        %v1695 = vmul.f32 %v1633, 1.442695
        %v1696 = vpow.pop %v1695
        %v1697 = vmul.f32 %v1634, 1.442695
        %v1698 = vpow.pop %v1697
        %v1699 = vsel %vm834, %v1636, 0.0
        %1700 = vadd.xlane.f32.xlu0 %v1699
        %v1701 = vpop.xlane.xlu0 %1700
        %v1702 = vsel %vm834, %v1638, 0.0
        %1703 = vadd.xlane.f32.xlu0 %v1702
        %v1704 = vpop.xlane.xlu0 %1703
        %v1705 = vsel %vm834, %v1640, 0.0
        %1706 = vadd.xlane.f32.xlu0 %v1705
        %v1707 = vpop.xlane.xlu0 %1706
        %v1708 = vsel %vm834, %v1642, 0.0
        %1709 = vadd.xlane.f32.xlu0 %v1708
        %v1710 = vpop.xlane.xlu0 %1709
        %v1711 = vsel %vm834, %v1644, 0.0
        %1712 = vadd.xlane.f32.xlu0 %v1711
        %v1713 = vpop.xlane.xlu0 %1712
        %v1714 = vsel %vm834, %v1646, 0.0
        %1715 = vadd.xlane.f32.xlu0 %v1714
        %v1716 = vpop.xlane.xlu0 %1715
        %v1717 = vsel %vm834, %v1648, 0.0
        %1718 = vadd.xlane.f32.xlu0 %v1717
        %v1719 = vpop.xlane.xlu0 %1718
        %v1720 = vsel %vm834, %v1650, 0.0
        %1721 = vadd.xlane.f32.xlu0 %v1720
        %v1722 = vpop.xlane.xlu0 %1721
        %v1723 = vsel %vm834, %v1652, 0.0
        %1724 = vadd.xlane.f32.xlu0 %v1723
        %v1725 = vpop.xlane.xlu0 %1724
        %v1726 = vsel %vm834, %v1654, 0.0
        %1727 = vadd.xlane.f32.xlu0 %v1726
        %v1728 = vpop.xlane.xlu0 %1727
        %v1729 = vsel %vm834, %v1656, 0.0
        %1730 = vadd.xlane.f32.xlu0 %v1729
        %v1731 = vpop.xlane.xlu0 %1730
        %v1732 = vsel %vm834, %v1658, 0.0
        %1733 = vadd.xlane.f32.xlu0 %v1732
        %v1734 = vpop.xlane.xlu0 %1733
        %v1735 = vsel %vm834, %v1660, 0.0
        %1736 = vadd.xlane.f32.xlu0 %v1735
        %v1737 = vpop.xlane.xlu0 %1736
        %v1738 = vsel %vm834, %v1662, 0.0
        %1739 = vadd.xlane.f32.xlu0 %v1738
        %v1740 = vpop.xlane.xlu0 %1739
        %v1741 = vsel %vm834, %v1664, 0.0
        %1742 = vadd.xlane.f32.xlu0 %v1741
        %v1743 = vpop.xlane.xlu0 %1742
        %v1744 = vsel %vm834, %v1666, 0.0
        %1745 = vadd.xlane.f32.xlu0 %v1744
        %v1746 = vpop.xlane.xlu0 %1745
        %v1747 = vsel %vm834, %v1668, 0.0
        %1748 = vadd.xlane.f32.xlu0 %v1747
        %v1749 = vpop.xlane.xlu0 %1748
        %v1750 = vsel %vm834, %v1670, 0.0
        %1751 = vadd.xlane.f32.xlu0 %v1750
        %v1752 = vpop.xlane.xlu0 %1751
        %v1753 = vsel %vm834, %v1672, 0.0
        %1754 = vadd.xlane.f32.xlu0 %v1753
        %v1755 = vpop.xlane.xlu0 %1754
        %v1756 = vsel %vm834, %v1674, 0.0
        %1757 = vadd.xlane.f32.xlu0 %v1756
        %v1758 = vpop.xlane.xlu0 %1757
        %v1759 = vsel %vm834, %v1676, 0.0
        %1760 = vadd.xlane.f32.xlu0 %v1759
        %v1761 = vpop.xlane.xlu0 %1760
        %v1762 = vsel %vm834, %v1678, 0.0
        %1763 = vadd.xlane.f32.xlu0 %v1762
        %v1764 = vpop.xlane.xlu0 %1763
        %v1765 = vsel %vm834, %v1680, 0.0
        %1766 = vadd.xlane.f32.xlu0 %v1765
        %v1767 = vpop.xlane.xlu0 %1766
        %v1768 = vsel %vm834, %v1682, 0.0
        %1769 = vadd.xlane.f32.xlu0 %v1768
        %v1770 = vpop.xlane.xlu0 %1769
        %v1771 = vsel %vm834, %v1684, 0.0
        %1772 = vadd.xlane.f32.xlu0 %v1771
        %v1773 = vpop.xlane.xlu0 %1772
        %v1774 = vsel %vm834, %v1686, 0.0
        %1775 = vadd.xlane.f32.xlu0 %v1774
        %v1776 = vpop.xlane.xlu0 %1775
        %v1777 = vsel %vm834, %v1688, 0.0
        %1778 = vadd.xlane.f32.xlu0 %v1777
        %v1779 = vpop.xlane.xlu0 %1778
        %v1780 = vsel %vm834, %v1690, 0.0
        %1781 = vadd.xlane.f32.xlu0 %v1780
        %v1782 = vpop.xlane.xlu0 %1781
        %v1783 = vsel %vm834, %v1692, 0.0
        %1784 = vadd.xlane.f32.xlu0 %v1783
        %v1785 = vpop.xlane.xlu0 %1784
        %v1786 = vsel %vm834, %v1694, 0.0
        %1787 = vadd.xlane.f32.xlu0 %v1786
        %v1788 = vpop.xlane.xlu0 %1787
        %v1789 = vsel %vm834, %v1696, 0.0
        %1790 = vadd.xlane.f32.xlu0 %v1789
        %v1791 = vpop.xlane.xlu0 %1790
        %v1792 = vsel %vm834, %v1698, 0.0
        %1793 = vadd.xlane.f32.xlu0 %v1792
        %v1794 = vpop.xlane.xlu0 %1793
        %v1795 = vrcp.pop %v1701
        %v1796 = vrcp.pop %v1704
        %v1797 = vrcp.pop %v1707
        %v1798 = vrcp.pop %v1710
        %v1799 = vrcp.pop %v1713
        %v1800 = vrcp.pop %v1716
        %v1801 = vrcp.pop %v1719
        %v1802 = vrcp.pop %v1722
        %v1803 = vrcp.pop %v1725
        %v1804 = vrcp.pop %v1728
        %v1805 = vrcp.pop %v1731
        %v1806 = vrcp.pop %v1734
        %v1807 = vrcp.pop %v1737
        %v1808 = vrcp.pop %v1740
        %v1809 = vrcp.pop %v1743
        %v1810 = vrcp.pop %v1746
        %v1811 = vrcp.pop %v1749
        %v1812 = vrcp.pop %v1752
        %v1813 = vrcp.pop %v1755
        %v1814 = vrcp.pop %v1758
        %v1815 = vrcp.pop %v1761
        %v1816 = vrcp.pop %v1764
        %v1817 = vrcp.pop %v1767
        %v1818 = vrcp.pop %v1770
        %v1819 = vrcp.pop %v1773
        %v1820 = vrcp.pop %v1776
        %v1821 = vrcp.pop %v1779
        %v1822 = vrcp.pop %v1782
        %v1823 = vrcp.pop %v1785
        %v1824 = vrcp.pop %v1788
        %v1825 = vrcp.pop %v1791
        %v1826 = vrcp.pop %v1794
        %v1827 = vmul.f32 %v1636, %v1795
        %v1828 = vmul.f32 %v1638, %v1796
        %v1829 = vmul.f32 %v1640, %v1797
        %v1830 = vmul.f32 %v1642, %v1798
        %v1831 = vmul.f32 %v1644, %v1799
        %v1832 = vmul.f32 %v1646, %v1800
        %v1833 = vmul.f32 %v1648, %v1801
        %v1834 = vmul.f32 %v1650, %v1802
        %v1835 = vmul.f32 %v1652, %v1803
        %v1836 = vmul.f32 %v1654, %v1804
        %v1837 = vmul.f32 %v1656, %v1805
        %v1838 = vmul.f32 %v1658, %v1806
        %v1839 = vmul.f32 %v1660, %v1807
        %v1840 = vmul.f32 %v1662, %v1808
        %v1841 = vmul.f32 %v1664, %v1809
        %v1842 = vmul.f32 %v1666, %v1810
        %v1843 = vmul.f32 %v1668, %v1811
        %v1844 = vmul.f32 %v1670, %v1812
        %v1845 = vmul.f32 %v1672, %v1813
        %v1846 = vmul.f32 %v1674, %v1814
        %v1847 = vmul.f32 %v1676, %v1815
        %v1848 = vmul.f32 %v1678, %v1816
        %v1849 = vmul.f32 %v1680, %v1817
        %v1850 = vmul.f32 %v1682, %v1818
        %v1851 = vmul.f32 %v1684, %v1819
        %v1852 = vmul.f32 %v1686, %v1820
        %v1853 = vmul.f32 %v1688, %v1821
        %v1854 = vmul.f32 %v1690, %v1822
        %v1855 = vmul.f32 %v1692, %v1823
        %v1856 = vmul.f32 %v1694, %v1824
        %v1857 = vmul.f32 %v1696, %v1825
        %v1858 = vmul.f32 %v1698, %v1826
        %v1859 = vpack.c.bf16 %v1828, %v1827
        %v1860 = vpack.c.bf16 %v1830, %v1829
        %v1861 = vpack.c.bf16 %v1832, %v1831
        %v1862 = vpack.c.bf16 %v1834, %v1833
        %v1863 = vpack.c.bf16 %v1836, %v1835
        %v1864 = vpack.c.bf16 %v1838, %v1837
        %v1865 = vpack.c.bf16 %v1840, %v1839
        %v1866 = vpack.c.bf16 %v1842, %v1841
        %v1867 = vpack.c.bf16 %v1844, %v1843
        %v1868 = vpack.c.bf16 %v1846, %v1845
        %v1869 = vpack.c.bf16 %v1848, %v1847
        %v1870 = vpack.c.bf16 %v1850, %v1849
        %v1871 = vpack.c.bf16 %v1852, %v1851
        %v1872 = vpack.c.bf16 %v1854, %v1853
        %v1873 = vpack.c.bf16 %v1856, %v1855
        %v1874 = vpack.c.bf16 %v1858, %v1857
        %v1876 = vsel %vm834, %v1859, 0
        %v1879 = vsel %vm834, %v1860, 0
        %v1882 = vsel %vm834, %v1861, 0
        %v1885 = vsel %vm834, %v1862, 0
        %v1888 = vsel %vm834, %v1863, 0
        %v1891 = vsel %vm834, %v1864, 0
        %v1894 = vsel %vm834, %v1865, 0
        %v1897 = vsel %vm834, %v1866, 0
        %v1900 = vsel %vm834, %v1867, 0
        %v1903 = vsel %vm834, %v1868, 0
        %v1906 = vsel %vm834, %v1869, 0
        %v1909 = vsel %vm834, %v1870, 0
        %v1912 = vsel %vm834, %v1871, 0
        %v1915 = vsel %vm834, %v1872, 0
        %v1918 = vsel %vm834, %v1873, 0
        %v1921 = vsel %vm834, %v1874, 0
        %1923 = vmatprep.subr.bf16.mxu0 0
        %1924 = vmatpush1.bf16.msra.mxu0 %v823
        %1925 = vmatprep.subr.bf16.mxu0 0
        %1926 = vmatpush1.bf16.msra.mxu0 %v825
        %1927 = vmatprep.subr.bf16.mxu0 0
        %1928 = vmatpush1.bf16.msra.mxu0 %v827
        %1929 = vmatprep.subr.bf16.mxu0 0
        %1930 = vmatpush1.bf16.msra.mxu0 %v829
        %1931 = vmatprep.subr.bf16.mxu0 0
        %1932 = vmatpush1.bf16.msra.mxu0 0
        %1933 = vmatprep.subr.bf16.mxu0 0
        %1934 = vmatpush1.bf16.msra.mxu0 0
        %1935 = vmatprep.subr.bf16.mxu0 0
        %1936 = vmatpush1.bf16.msra.mxu0 0
        %1937 = vmatprep.subr.bf16.mxu0 0
        %1938 = vmatpush1.bf16.msra.mxu0 0
        %1939 = vmatprep.subr.bf16.mxu0 0
        %1940 = vmatpush1.bf16.msra.mxu0 0
        %1941 = vmatprep.subr.bf16.mxu0 0
        %1942 = vmatpush1.bf16.msra.mxu0 0
        %1943 = vmatprep.subr.bf16.mxu0 0
        %1944 = vmatpush1.bf16.msra.mxu0 0
        %1945 = vmatprep.subr.bf16.mxu0 0
        %1946 = vmatpush1.bf16.msra.mxu0 0
        %1947 = vmatprep.subr.bf16.mxu0 0
        %1948 = vmatpush1.bf16.msra.mxu0 0
        %1949 = vmatprep.subr.bf16.mxu0 0
        %1950 = vmatpush1.bf16.msra.mxu0 0
        %1951 = vmatprep.subr.bf16.mxu0 0
        %1952 = vmatpush1.bf16.msra.mxu0 0
        %1953 = vmatprep.subr.bf16.mxu0 0
        %1954 = vmatpush1.bf16.msra.mxu0 0
        %1955 = vmatprep.mubr.bf16.mxu0 0
        %1956 = vmatmul.mubr.bf16.gmra.mrb[0].mxu0 %v1876
        %v1957 = vpop.f32.mrb[0].mxu0
        %v1958 = vadd.f32 0.0, %v1957
        %v1959 = vpop.f32.mrb[0].mxu0
        %v1960 = vpop.f32.mrb[0].mxu0
        %v1961 = vadd.f32 0.0, %v1960
        %v1962 = vpop.f32.mrb[0].mxu0
        %1963 = vmatprep.mubr.bf16.mxu0 0
        %1964 = vmatmul.mubr.bf16.gmra.mrb[0].mxu0 %v1879
        %v1965 = vpop.f32.mrb[0].mxu0
        %v1966 = vadd.f32 0.0, %v1965
        %v1967 = vpop.f32.mrb[0].mxu0
        %v1968 = vpop.f32.mrb[0].mxu0
        %v1969 = vadd.f32 0.0, %v1968
        %v1970 = vpop.f32.mrb[0].mxu0
        %1971 = vmatprep.mubr.bf16.mxu0 0
        %1972 = vmatmul.mubr.bf16.gmra.mrb[0].mxu0 %v1882
        %v1973 = vpop.f32.mrb[0].mxu0
        %v1974 = vadd.f32 0.0, %v1973
        %v1975 = vpop.f32.mrb[0].mxu0
        %v1976 = vpop.f32.mrb[0].mxu0
        %v1977 = vadd.f32 0.0, %v1976
        %v1978 = vpop.f32.mrb[0].mxu0
        %1979 = vmatprep.mubr.bf16.mxu0 0
        %1980 = vmatmul.mubr.bf16.gmra.mrb[0].mxu0 %v1885
        %v1981 = vpop.f32.mrb[0].mxu0
        %v1982 = vadd.f32 0.0, %v1981
        %v1983 = vpop.f32.mrb[0].mxu0
        %v1984 = vpop.f32.mrb[0].mxu0
        %v1985 = vadd.f32 0.0, %v1984
        %v1986 = vpop.f32.mrb[0].mxu0
        %1987 = vmatprep.mubr.bf16.mxu0 0
        %1988 = vmatmul.mubr.bf16.gmra.mrb[0].mxu0 %v1888
        %v1989 = vpop.f32.mrb[0].mxu0
        %v1990 = vadd.f32 0.0, %v1989
        %v1991 = vpop.f32.mrb[0].mxu0
        %v1992 = vpop.f32.mrb[0].mxu0
        %v1993 = vadd.f32 0.0, %v1992
        %v1994 = vpop.f32.mrb[0].mxu0
        %1995 = vmatprep.mubr.bf16.mxu0 0
        %1996 = vmatmul.mubr.bf16.gmra.mrb[0].mxu0 %v1891
        %v1997 = vpop.f32.mrb[0].mxu0
        %v1998 = vadd.f32 0.0, %v1997
        %v1999 = vpop.f32.mrb[0].mxu0
        %v2000 = vpop.f32.mrb[0].mxu0
        %v2001 = vadd.f32 0.0, %v2000
        %v2002 = vpop.f32.mrb[0].mxu0
        %2003 = vmatprep.mubr.bf16.mxu0 0
        %2004 = vmatmul.mubr.bf16.gmra.mrb[0].mxu0 %v1894
        %v2005 = vpop.f32.mrb[0].mxu0
        %v2006 = vadd.f32 0.0, %v2005
        %v2007 = vpop.f32.mrb[0].mxu0
        %v2008 = vpop.f32.mrb[0].mxu0
        %v2009 = vadd.f32 0.0, %v2008
        %v2010 = vpop.f32.mrb[0].mxu0
        %2011 = vmatprep.mubr.bf16.mxu0 0
        %2012 = vmatmul.mubr.bf16.gmra.mrb[0].mxu0 %v1897
        %v2013 = vpop.f32.mrb[0].mxu0
        %v2014 = vadd.f32 0.0, %v2013
        %v2015 = vpop.f32.mrb[0].mxu0
        %v2016 = vpop.f32.mrb[0].mxu0
        %v2017 = vadd.f32 0.0, %v2016
        %v2018 = vpop.f32.mrb[0].mxu0
        %2019 = vmatprep.mubr.bf16.mxu0 0
        %2020 = vmatmul.mubr.bf16.gmra.mrb[0].mxu0 %v1900
        %v2021 = vpop.f32.mrb[0].mxu0
        %v2022 = vadd.f32 0.0, %v2021
        %v2023 = vpop.f32.mrb[0].mxu0
        %v2024 = vpop.f32.mrb[0].mxu0
        %v2025 = vadd.f32 0.0, %v2024
        %v2026 = vpop.f32.mrb[0].mxu0
        %2027 = vmatprep.mubr.bf16.mxu0 0
        %2028 = vmatmul.mubr.bf16.gmra.mrb[0].mxu0 %v1903
        %v2029 = vpop.f32.mrb[0].mxu0
        %v2030 = vadd.f32 0.0, %v2029
        %v2031 = vpop.f32.mrb[0].mxu0
        %v2032 = vpop.f32.mrb[0].mxu0
        %v2033 = vadd.f32 0.0, %v2032
        %v2034 = vpop.f32.mrb[0].mxu0
        %2035 = vmatprep.mubr.bf16.mxu0 0
        %2036 = vmatmul.mubr.bf16.gmra.mrb[0].mxu0 %v1906
        %v2037 = vpop.f32.mrb[0].mxu0
        %v2038 = vadd.f32 0.0, %v2037
        %v2039 = vpop.f32.mrb[0].mxu0
        %v2040 = vpop.f32.mrb[0].mxu0
        %v2041 = vadd.f32 0.0, %v2040
        %v2042 = vpop.f32.mrb[0].mxu0
        %2043 = vmatprep.mubr.bf16.mxu0 0
        %2044 = vmatmul.mubr.bf16.gmra.mrb[0].mxu0 %v1909
        %v2045 = vpop.f32.mrb[0].mxu0
        %v2046 = vadd.f32 0.0, %v2045
        %v2047 = vpop.f32.mrb[0].mxu0
        %v2048 = vpop.f32.mrb[0].mxu0
        %v2049 = vadd.f32 0.0, %v2048
        %v2050 = vpop.f32.mrb[0].mxu0
        %2051 = vmatprep.mubr.bf16.mxu0 0
        %2052 = vmatmul.mubr.bf16.gmra.mrb[0].mxu0 %v1912
        %v2053 = vpop.f32.mrb[0].mxu0
        %v2054 = vadd.f32 0.0, %v2053
        %v2055 = vpop.f32.mrb[0].mxu0
        %v2056 = vpop.f32.mrb[0].mxu0
        %v2057 = vadd.f32 0.0, %v2056
        %v2058 = vpop.f32.mrb[0].mxu0
        %2059 = vmatprep.mubr.bf16.mxu0 0
        %2060 = vmatmul.mubr.bf16.gmra.mrb[0].mxu0 %v1915
        %v2061 = vpop.f32.mrb[0].mxu0
        %v2062 = vadd.f32 0.0, %v2061
        %v2063 = vpop.f32.mrb[0].mxu0
        %v2064 = vpop.f32.mrb[0].mxu0
        %v2065 = vadd.f32 0.0, %v2064
        %v2066 = vpop.f32.mrb[0].mxu0
        %2067 = vmatprep.mubr.bf16.mxu0 0
        %2068 = vmatmul.mubr.bf16.gmra.mrb[0].mxu0 %v1918
        %v2069 = vpop.f32.mrb[0].mxu0
        %v2070 = vadd.f32 0.0, %v2069
        %v2071 = vpop.f32.mrb[0].mxu0
        %v2072 = vpop.f32.mrb[0].mxu0
        %v2073 = vadd.f32 0.0, %v2072
        %v2074 = vpop.f32.mrb[0].mxu0
        %2075 = vmatprep.mubr.bf16.mxu0 0
        %2076 = vmatmul.mubr.bf16.gmra.mrb[0].mxu0 %v1921
        %v2077 = vpop.f32.mrb[0].mxu0
        %v2078 = vadd.f32 0.0, %v2077
        %v2079 = vpop.f32.mrb[0].mxu0
        %v2080 = vpop.f32.mrb[0].mxu0
        %v2081 = vadd.f32 0.0, %v2080
        %v2082 = vpop.f32.mrb[0].mxu0
        %2083 = vdwg.mxu0
        %v2084 = vmul.f32 %v1958, %v1166
        %v2085 = vmul.f32 %v1961, %v1167
        %v2086 = vmul.f32 %v1966, %v1168
        %v2087 = vmul.f32 %v1969, %v1169
        %v2088 = vmul.f32 %v1974, %v1170
        %v2089 = vmul.f32 %v1977, %v1171
        %v2090 = vmul.f32 %v1982, %v1172
        %v2091 = vmul.f32 %v1985, %v1173
        %v2092 = vmul.f32 %v1990, %v1174
        %v2093 = vmul.f32 %v1993, %v1175
        %v2094 = vmul.f32 %v1998, %v1176
        %v2095 = vmul.f32 %v2001, %v1177
        %v2096 = vmul.f32 %v2006, %v1178
        %v2097 = vmul.f32 %v2009, %v1179
        %v2098 = vmul.f32 %v2014, %v1180
        %v2099 = vmul.f32 %v2017, %v1181
        %v2100 = vmul.f32 %v2022, %v1182
        %v2101 = vmul.f32 %v2025, %v1183
        %v2102 = vmul.f32 %v2030, %v1184
        %v2103 = vmul.f32 %v2033, %v1185
        %v2104 = vmul.f32 %v2038, %v1186
        %v2105 = vmul.f32 %v2041, %v1187
        %v2106 = vmul.f32 %v2046, %v1188
        %v2107 = vmul.f32 %v2049, %v1189
        %v2108 = vmul.f32 %v2054, %v1190
        %v2109 = vmul.f32 %v2057, %v1191
        %v2110 = vmul.f32 %v2062, %v1192
        %v2111 = vmul.f32 %v2065, %v1193
        %v2112 = vmul.f32 %v2070, %v1194
        %v2113 = vmul.f32 %v2073, %v1195
        %v2114 = vmul.f32 %v2078, %v1196
        %v2115 = vmul.f32 %v2081, %v1197
        %v2116 = vadd.f32 %v1158, %v2084
        %v2117 = vadd.f32 %v1159, %v2085
        %v2118 = vadd.f32 %v1160, %v2086
        %v2119 = vadd.f32 %v1161, %v2087
        %v2120 = vadd.f32 %v1162, %v2088
        %v2121 = vadd.f32 %v1163, %v2089
        %v2122 = vadd.f32 %v1164, %v2090
        %v2123 = vadd.f32 %v1165, %v2091
        %v2124 = vadd.f32 %v2116, %v2092
        %v2125 = vadd.f32 %v2117, %v2093
        %v2126 = vadd.f32 %v2118, %v2094
        %v2127 = vadd.f32 %v2119, %v2095
        %v2128 = vadd.f32 %v2120, %v2096
        %v2129 = vadd.f32 %v2121, %v2097
        %v2130 = vadd.f32 %v2122, %v2098
        %v2131 = vadd.f32 %v2123, %v2099
        %v2132 = vadd.f32 %v2124, %v2100
        %v2133 = vadd.f32 %v2125, %v2101
        %v2134 = vadd.f32 %v2126, %v2102
        %v2135 = vadd.f32 %v2127, %v2103
        %v2136 = vadd.f32 %v2128, %v2104
        %v2137 = vadd.f32 %v2129, %v2105
        %v2138 = vadd.f32 %v2130, %v2106
        %v2139 = vadd.f32 %v2131, %v2107
        %v2140 = vadd.f32 %v2132, %v2108
        %v2141 = vadd.f32 %v2133, %v2109
        %v2142 = vadd.f32 %v2134, %v2110
        %v2143 = vadd.f32 %v2135, %v2111
        %v2144 = vadd.f32 %v2136, %v2112
        %v2145 = vadd.f32 %v2137, %v2113
        %v2146 = vadd.f32 %v2138, %v2114
        %v2147 = vadd.f32 %v2139, %v2115
        %v2148 = vld [vmem:[%s7 + $0x30] sm:$0xf]
        %v2149 = vld [vmem:[%s7 + $0x38] sm:$0xf]
        %v2150 = vld [vmem:[%s7 + $0x40] sm:$0xf]
        %v2151 = vpack.c.bf16 %v2141, %v2140
        %v2152 = vpack.c.bf16 %v2143, %v2142
        %v2153 = vpack.c.bf16 %v2145, %v2144
        %v2154 = vpack.c.bf16 %v2147, %v2146
        %v2155 = vld [vmem:[%s8 + $0x6] ss:$0 sm:$0xff]
        %v2159 = vunpack.c.l.b16 %v2148
        %v2160 = vunpack.c.l.b16 %v2149
        %v2161 = vunpack.c.l.b16 %v2150
        %v2162 = vpack.c.b16 %v2160, %v2159
        %v2163 = vpack.c.b16 %v2161, %v2161
        %v2166 = vsel %vm393, %v2151, 0
        %v2169 = vsel %vm393, %v2152, 0
        %v2172 = vsel %vm393, %v2153, 0
        %v2175 = vsel %vm393, %v2154, 0
        %v2178 = vsel %vm397, %v2163, 0
        %2180 = vmatprep.subr.bf16.mxu0 0
        %2181 = vmatpush1.bf16.msra.mxu0 %v2162
        %2182 = vmatprep.subr.bf16.mxu0 0
        %2183 = vmatpush1.bf16.msra.mxu0 %v2178
        %2184 = vmatprep.subr.bf16.mxu0 0
        %2185 = vmatpush1.bf16.msra.mxu0 0
        %2186 = vmatprep.subr.bf16.mxu0 0
        %2187 = vmatpush1.bf16.msra.mxu0 0
        %2188 = vmatprep.subr.bf16.mxu0 0
        %2189 = vmatpush1.bf16.msra.mxu0 0
        %2190 = vmatprep.subr.bf16.mxu0 0
        %2191 = vmatpush1.bf16.msra.mxu0 0
        %2192 = vmatprep.subr.bf16.mxu0 0
        %2193 = vmatpush1.bf16.msra.mxu0 0
        %2194 = vmatprep.subr.bf16.mxu0 0
        %2195 = vmatpush1.bf16.msra.mxu0 0
        %2196 = vmatprep.subr.bf16.mxu0 0
        %2197 = vmatpush1.bf16.msra.mxu0 0
        %2198 = vmatprep.subr.bf16.mxu0 0
        %2199 = vmatpush1.bf16.msra.mxu0 0
        %2200 = vmatprep.subr.bf16.mxu0 0
        %2201 = vmatpush1.bf16.msra.mxu0 0
        %2202 = vmatprep.subr.bf16.mxu0 0
        %2203 = vmatpush1.bf16.msra.mxu0 0
        %2204 = vmatprep.subr.bf16.mxu0 0
        %2205 = vmatpush1.bf16.msra.mxu0 0
        %2206 = vmatprep.subr.bf16.mxu0 0
        %2207 = vmatpush1.bf16.msra.mxu0 0
        %2208 = vmatprep.subr.bf16.mxu0 0
        %2209 = vmatpush1.bf16.msra.mxu0 0
        %2210 = vmatprep.subr.bf16.mxu0 0
        %2211 = vmatpush1.bf16.msra.mxu0 0
        %2212 = vmatprep.mubr.bf16.mxu0 0
        %2213 = vmatmul.mubr.bf16.gmra.mrb[0].mxu0 %v2166
        %v2214 = vpop.f32.mrb[0].mxu0
        %v2215 = vadd.f32 %v2155, %v2214
        %v2216 = vpop.f32.mrb[0].mxu0
        %v2217 = vpop.f32.mrb[0].mxu0
        %v2218 = vadd.f32 %v2155, %v2217
        %v2219 = vpop.f32.mrb[0].mxu0
        %2220 = vmatprep.mubr.bf16.mxu0 0
        %2221 = vmatmul.mubr.bf16.gmra.mrb[0].mxu0 %v2169
        %v2222 = vpop.f32.mrb[0].mxu0
        %v2223 = vadd.f32 %v2155, %v2222
        %v2224 = vpop.f32.mrb[0].mxu0
        %v2225 = vpop.f32.mrb[0].mxu0
        %v2226 = vadd.f32 %v2155, %v2225
        %v2227 = vpop.f32.mrb[0].mxu0
        %2228 = vmatprep.mubr.bf16.mxu0 0
        %2229 = vmatmul.mubr.bf16.gmra.mrb[0].mxu0 %v2172
        %v2230 = vpop.f32.mrb[0].mxu0
        %v2231 = vadd.f32 %v2155, %v2230
        %v2232 = vpop.f32.mrb[0].mxu0
        %v2233 = vpop.f32.mrb[0].mxu0
        %v2234 = vadd.f32 %v2155, %v2233
        %v2235 = vpop.f32.mrb[0].mxu0
        %2236 = vmatprep.mubr.bf16.mxu0 0
        %2237 = vmatmul.mubr.bf16.gmra.mrb[0].mxu0 %v2175
        %v2238 = vpop.f32.mrb[0].mxu0
        %v2239 = vadd.f32 %v2155, %v2238
        %v2240 = vpop.f32.mrb[0].mxu0
        %v2241 = vpop.f32.mrb[0].mxu0
        %v2242 = vadd.f32 %v2155, %v2241
        %v2243 = vpop.f32.mrb[0].mxu0
        %2244 = vdwg.mxu0
        %v2245 = vld [vmem:[%s7 + $0x48] sm:$0xf]
        %v2246 = vld [vmem:[%s7 + $0x50] sm:$0xf]
        %v2247 = vld [vmem:[%s7 + $0x58] sm:$0xf]
        %v2248 = vpack.c.bf16 %v2218, %v2215
        %v2249 = vpack.c.bf16 %v2226, %v2223
        %v2250 = vpack.c.bf16 %v2234, %v2231
        %v2251 = vpack.c.bf16 %v2242, %v2239
        %v2255 = vunpack.c.l.b16 %v2245
        %v2256 = vunpack.c.l.b16 %v2246
        %v2257 = vunpack.c.l.b16 %v2247
        %v2258 = vpack.c.b16 %v2256, %v2255
        %v2259 = vpack.c.b16 %v2257, %v2257
        %v2262 = vsel %vm393, %v2248, 0
        %v2265 = vsel %vm393, %v2249, 0
        %v2268 = vsel %vm393, %v2250, 0
        %v2271 = vsel %vm393, %v2251, 0
        %v2274 = vsel %vm397, %v2259, 0
        %2276 = vmatprep.subr.bf16.mxu0 0
        %2277 = vmatpush1.bf16.msra.mxu0 %v2258
        %2278 = vmatprep.subr.bf16.mxu0 0
        %2279 = vmatpush1.bf16.msra.mxu0 %v2274
        %2280 = vmatprep.subr.bf16.mxu0 0
        %2281 = vmatpush1.bf16.msra.mxu0 0
        %2282 = vmatprep.subr.bf16.mxu0 0
        %2283 = vmatpush1.bf16.msra.mxu0 0
        %2284 = vmatprep.subr.bf16.mxu0 0
        %2285 = vmatpush1.bf16.msra.mxu0 0
        %2286 = vmatprep.subr.bf16.mxu0 0
        %2287 = vmatpush1.bf16.msra.mxu0 0
        %2288 = vmatprep.subr.bf16.mxu0 0
        %2289 = vmatpush1.bf16.msra.mxu0 0
        %2290 = vmatprep.subr.bf16.mxu0 0
        %2291 = vmatpush1.bf16.msra.mxu0 0
        %2292 = vmatprep.subr.bf16.mxu0 0
        %2293 = vmatpush1.bf16.msra.mxu0 0
        %2294 = vmatprep.subr.bf16.mxu0 0
        %2295 = vmatpush1.bf16.msra.mxu0 0
        %2296 = vmatprep.subr.bf16.mxu0 0
        %2297 = vmatpush1.bf16.msra.mxu0 0
        %2298 = vmatprep.subr.bf16.mxu0 0
        %2299 = vmatpush1.bf16.msra.mxu0 0
        %2300 = vmatprep.subr.bf16.mxu0 0
        %2301 = vmatpush1.bf16.msra.mxu0 0
        %2302 = vmatprep.subr.bf16.mxu0 0
        %2303 = vmatpush1.bf16.msra.mxu0 0
        %2304 = vmatprep.subr.bf16.mxu0 0
        %2305 = vmatpush1.bf16.msra.mxu0 0
        %2306 = vmatprep.subr.bf16.mxu0 0
        %2307 = vmatpush1.bf16.msra.mxu0 0
        %2308 = vmatprep.mubr.bf16.mxu0 0
        %2309 = vmatmul.mubr.bf16.gmra.mrb[0].mxu0 %v2262
        %v2310 = vpop.f32.mrb[0].mxu0
        %v2311 = vadd.f32 0.0, %v2310
        %v2312 = vpop.f32.mrb[0].mxu0
        %v2313 = vpop.f32.mrb[0].mxu0
        %v2314 = vadd.f32 0.0, %v2313
        %v2315 = vpop.f32.mrb[0].mxu0
        %2316 = vmatprep.mubr.bf16.mxu0 0
        %2317 = vmatmul.mubr.bf16.gmra.mrb[0].mxu0 %v2265
        %v2318 = vpop.f32.mrb[0].mxu0
        %v2319 = vadd.f32 0.0, %v2318
        %v2320 = vpop.f32.mrb[0].mxu0
        %v2321 = vpop.f32.mrb[0].mxu0
        %v2322 = vadd.f32 0.0, %v2321
        %v2323 = vpop.f32.mrb[0].mxu0
        %2324 = vmatprep.mubr.bf16.mxu0 0
        %2325 = vmatmul.mubr.bf16.gmra.mrb[0].mxu0 %v2268
        %v2326 = vpop.f32.mrb[0].mxu0
        %v2327 = vadd.f32 0.0, %v2326
        %v2328 = vpop.f32.mrb[0].mxu0
        %v2329 = vpop.f32.mrb[0].mxu0
        %v2330 = vadd.f32 0.0, %v2329
        %v2331 = vpop.f32.mrb[0].mxu0
        %2332 = vmatprep.mubr.bf16.mxu0 0
        %2333 = vmatmul.mubr.bf16.gmra.mrb[0].mxu0 %v2271
        %v2334 = vpop.f32.mrb[0].mxu0
        %v2335 = vadd.f32 0.0, %v2334
        %v2336 = vpop.f32.mrb[0].mxu0
        %v2337 = vpop.f32.mrb[0].mxu0
        %v2338 = vadd.f32 0.0, %v2337
        %v2339 = vpop.f32.mrb[0].mxu0
        %2340 = vdwg.mxu0
        %v2341 = vmul.f32 %v2311, %v2311
        %v2342 = vmul.f32 %v2314, %v2314
        %v2343 = vmul.f32 %v2319, %v2319
        %v2344 = vmul.f32 %v2322, %v2322
        %v2345 = vmul.f32 %v2327, %v2327
        %v2346 = vmul.f32 %v2330, %v2330
        %v2347 = vmul.f32 %v2335, %v2335
        %v2348 = vmul.f32 %v2338, %v2338
        %v2350 = vsel %vm834, 1.0, 0
        %2352 = vmatprep.subr.mxu0 0.0
        %2353 = vmatpush1.msra.mxu0 %v2341
        %2354 = vmatprep.subr.mxu0 0.0
        %2355 = vmatpush1.msra.mxu0 %v2342
        %2356 = vmatprep.subr.mxu0 0.0
        %2357 = vmatpush1.msra.mxu0 %v2343
        %2358 = vmatprep.subr.mxu0 0.0
        %2359 = vmatpush1.msra.mxu0 %v2344
        %2360 = vmatprep.subr.mxu0 0.0
        %2361 = vmatpush1.msra.mxu0 %v2345
        %2362 = vmatprep.subr.mxu0 0.0
        %2363 = vmatpush1.msra.mxu0 %v2346
        %2364 = vmatprep.subr.mxu0 0.0
        %2365 = vmatpush1.msra.mxu0 %v2347
        %2366 = vmatprep.subr.mxu0 0.0
        %2367 = vmatpush1.msra.mxu0 %v2348
        %2368 = vmatprep.subr.mxu0 0.0
        %2369 = vmatpush1.msra.mxu0 0.0
        %2370 = vmatprep.subr.mxu0 0.0
        %2371 = vmatpush1.msra.mxu0 0.0
        %2372 = vmatprep.subr.mxu0 0.0
        %2373 = vmatpush1.msra.mxu0 0.0
        %2374 = vmatprep.subr.mxu0 0.0
        %2375 = vmatpush1.msra.mxu0 0.0
        %2376 = vmatprep.subr.mxu0 0.0
        %2377 = vmatpush1.msra.mxu0 0.0
        %2378 = vmatprep.subr.mxu0 0.0
        %2379 = vmatpush1.msra.mxu0 0.0
        %2380 = vmatprep.subr.mxu0 0.0
        %2381 = vmatpush1.msra.mxu0 0.0
        %2382 = vmatprep.subr.mxu0 0.0
        %2383 = vmatpush1.msra.mxu0 0.0
        %2384 = vmatprep.subr.mxu0 0.0
        %2385 = vmatpush1.msra.mxu0 0.0
        %2386 = vmatprep.subr.mxu0 0.0
        %2387 = vmatpush1.msra.mxu0 0.0
        %2388 = vmatprep.subr.mxu0 0.0
        %2389 = vmatpush1.msra.mxu0 0.0
        %2390 = vmatprep.subr.mxu0 0.0
        %2391 = vmatpush1.msra.mxu0 0.0
        %2392 = vmatprep.subr.mxu0 0.0
        %2393 = vmatpush1.msra.mxu0 0.0
        %2394 = vmatprep.subr.mxu0 0.0
        %2395 = vmatpush1.msra.mxu0 0.0
        %2396 = vmatprep.subr.mxu0 0.0
        %2397 = vmatpush1.msra.mxu0 0.0
        %2398 = vmatprep.subr.mxu0 0.0
        %2399 = vmatpush1.msra.mxu0 0.0
        %2400 = vmatprep.subr.mxu0 0.0
        %2401 = vmatpush1.msra.mxu0 0.0
        %2402 = vmatprep.subr.mxu0 0.0
        %2403 = vmatpush1.msra.mxu0 0.0
        %2404 = vmatprep.subr.mxu0 0.0
        %2405 = vmatpush1.msra.mxu0 0.0
        %2406 = vmatprep.subr.mxu0 0.0
        %2407 = vmatpush1.msra.mxu0 0.0
        %2408 = vmatprep.subr.mxu0 0.0
        %2409 = vmatpush1.msra.mxu0 0.0
        %2410 = vmatprep.subr.mxu0 0.0
        %2411 = vmatpush1.msra.mxu0 0.0
        %2412 = vmatprep.subr.mxu0 0.0
        %2413 = vmatpush1.msra.mxu0 0.0
        %2414 = vmatprep.subr.mxu0 0.0
        %2415 = vmatpush1.msra.mxu0 0.0
        %2416 = vmatprep.mubr.f32.mxu0 0.0
        %2417 = vmatmul.mubr.f32.gmra.mrb[0].mxu0 %v2350
        %v2418 = vpop.f32.mrb[0].mxu0
        %v2419 = vadd.f32 0.0, %v2418
        %v2420 = vpop.f32.mrb[0].mxu0
        %2421 = vdwg.mxu0
        %v2422 = vmax.f32 %v2419, 1e-24
        %v2423 = vrsqrt.pop %v2422
        %v2424 = vlaneseq
        %v2425 = vshrl.u32 %v2424, 7
        %v2426 = vsub.s32 0, %v2425
        %v2427 = vrot.slane %v2423, %v2426
        %v2428 = vmul.f32 %v2311, %v2427
        %v2429 = vmul.f32 %v2314, %v2427
        %v2430 = vmul.f32 %v2319, %v2427
        %v2431 = vmul.f32 %v2322, %v2427
        %v2432 = vmul.f32 %v2327, %v2427
        %v2433 = vmul.f32 %v2330, %v2427
        %v2434 = vmul.f32 %v2335, %v2427
        %v2435 = vmul.f32 %v2338, %v2427
        %v2436 = vld [vmem:[%s8 + $0x17] ss:$0 sm:$0xff]
        %v2437 = vmul.f32 %v2428, %v2436
        %v2438 = vmul.f32 %v2429, %v2436
        %v2439 = vmul.f32 %v2430, %v2436
        %v2440 = vmul.f32 %v2431, %v2436
        %v2441 = vmul.f32 %v2432, %v2436
        %v2442 = vmul.f32 %v2433, %v2436
        %v2443 = vmul.f32 %v2434, %v2436
        %v2444 = vmul.f32 %v2435, %v2436
        %2453 = vrot.lane.b32.xlu0 %v2341, 104
        %v2454 = vpop.permute.xlu0 %2453
        %2455 = vrot.lane.b32.xlu0 %v2342, 104
        %v2456 = vpop.permute.xlu0 %2455
        %2457 = vrot.lane.b32.xlu0 %v2343, 104
        %v2458 = vpop.permute.xlu0 %2457
        %2459 = vrot.lane.b32.xlu0 %v2344, 104
        %v2460 = vpop.permute.xlu0 %2459
        %2461 = vrot.lane.b32.xlu0 %v2345, 104
        %v2462 = vpop.permute.xlu0 %2461
        %2463 = vrot.lane.b32.xlu0 %v2346, 104
        %v2464 = vpop.permute.xlu0 %2463
        %2465 = vrot.lane.b32.xlu0 %v2347, 104
        %v2466 = vpop.permute.xlu0 %2465
        %2467 = vrot.lane.b32.xlu0 %v2348, 104
        %v2468 = vpop.permute.xlu0 %2467
        %2477 = vmatprep.subr.mxu0 0.0
        %2478 = vmatpush1.msra.mxu0 %v2454
        %2479 = vmatprep.subr.mxu0 0.0
        %2480 = vmatpush1.msra.mxu0 %v2456
        %2481 = vmatprep.subr.mxu0 0.0
        %2482 = vmatpush1.msra.mxu0 %v2458
        %2483 = vmatprep.subr.mxu0 0.0
        %2484 = vmatpush1.msra.mxu0 %v2460
        %2485 = vmatprep.subr.mxu0 0.0
        %2486 = vmatpush1.msra.mxu0 %v2462
        %2487 = vmatprep.subr.mxu0 0.0
        %2488 = vmatpush1.msra.mxu0 %v2464
        %2489 = vmatprep.subr.mxu0 0.0
        %2490 = vmatpush1.msra.mxu0 %v2466
        %2491 = vmatprep.subr.mxu0 0.0
        %2492 = vmatpush1.msra.mxu0 %v2468
        %2493 = vmatprep.subr.mxu0 0.0
        %2494 = vmatpush1.msra.mxu0 0.0
        %2495 = vmatprep.subr.mxu0 0.0
        %2496 = vmatpush1.msra.mxu0 0.0
        %2497 = vmatprep.subr.mxu0 0.0
        %2498 = vmatpush1.msra.mxu0 0.0
        %2499 = vmatprep.subr.mxu0 0.0
        %2500 = vmatpush1.msra.mxu0 0.0
        %2501 = vmatprep.subr.mxu0 0.0
        %2502 = vmatpush1.msra.mxu0 0.0
        %2503 = vmatprep.subr.mxu0 0.0
        %2504 = vmatpush1.msra.mxu0 0.0
        %2505 = vmatprep.subr.mxu0 0.0
        %2506 = vmatpush1.msra.mxu0 0.0
        %2507 = vmatprep.subr.mxu0 0.0
        %2508 = vmatpush1.msra.mxu0 0.0
        %2509 = vmatprep.subr.mxu0 0.0
        %2510 = vmatpush1.msra.mxu0 0.0
        %2511 = vmatprep.subr.mxu0 0.0
        %2512 = vmatpush1.msra.mxu0 0.0
        %2513 = vmatprep.subr.mxu0 0.0
        %2514 = vmatpush1.msra.mxu0 0.0
        %2515 = vmatprep.subr.mxu0 0.0
        %2516 = vmatpush1.msra.mxu0 0.0
        %2517 = vmatprep.subr.mxu0 0.0
        %2518 = vmatpush1.msra.mxu0 0.0
        %2519 = vmatprep.subr.mxu0 0.0
        %2520 = vmatpush1.msra.mxu0 0.0
        %2521 = vmatprep.subr.mxu0 0.0
        %2522 = vmatpush1.msra.mxu0 0.0
        %2523 = vmatprep.subr.mxu0 0.0
        %2524 = vmatpush1.msra.mxu0 0.0
        %2525 = vmatprep.subr.mxu0 0.0
        %2526 = vmatpush1.msra.mxu0 0.0
        %2527 = vmatprep.subr.mxu0 0.0
        %2528 = vmatpush1.msra.mxu0 0.0
        %2529 = vmatprep.subr.mxu0 0.0
        %2530 = vmatpush1.msra.mxu0 0.0
        %2531 = vmatprep.subr.mxu0 0.0
        %2532 = vmatpush1.msra.mxu0 0.0
        %2533 = vmatprep.subr.mxu0 0.0
        %2534 = vmatpush1.msra.mxu0 0.0
        %2535 = vmatprep.subr.mxu0 0.0
        %2536 = vmatpush1.msra.mxu0 0.0
        %2537 = vmatprep.subr.mxu0 0.0
        %2538 = vmatpush1.msra.mxu0 0.0
        %2539 = vmatprep.subr.mxu0 0.0
        %2540 = vmatpush1.msra.mxu0 0.0
        %2541 = vmatprep.mubr.f32.mxu0 0.0
        %2542 = vmatmul.mubr.f32.gmra.mrb[0].mxu0 %v2350
        %v2543 = vpop.f32.mrb[0].mxu0
        %v2544 = vadd.f32 0.0, %v2543
        %v2545 = vpop.f32.mrb[0].mxu0
        %2546 = vdwg.mxu0
        %v2547 = vmax.f32 %v2544, 1e-24
        %v2548 = vrsqrt.pop %v2547
        %v2549 = vlaneseq
        %v2550 = vshrl.u32 %v2549, 7
        %v2551 = vsub.s32 0, %v2550
        %v2552 = vrot.slane %v2548, %v2551
        %2554 = vrot.lane.b32.xlu0 %v2552, 24
        %v2555 = vpop.permute.xlu0 %2554
        %v2557 = vmul.f32 %v2311, %v2555
        %v2558 = vmul.f32 %v2314, %v2555
        %v2559 = vmul.f32 %v2319, %v2555
        %v2560 = vmul.f32 %v2322, %v2555
        %v2561 = vmul.f32 %v2327, %v2555
        %v2562 = vmul.f32 %v2330, %v2555
        %v2563 = vmul.f32 %v2335, %v2555
        %v2564 = vmul.f32 %v2338, %v2555
        %v2565 = vpack.c.bf16 %v2438, %v2437
        %v2566 = vpack.c.bf16 %v2440, %v2439
        %v2567 = vpack.c.bf16 %v2442, %v2441
        %v2568 = vpack.c.bf16 %v2444, %v2443
        %v2569 = vpack.c.bf16 %v2558, %v2557
        %v2570 = vpack.c.bf16 %v2560, %v2559
        %v2571 = vpack.c.bf16 %v2562, %v2561
        %v2572 = vpack.c.bf16 %v2564, %v2563
        %v2573 = vld [vmem:[%s6 + $0x8] sm:$0xff]
        %v2574 = vld [vmem:[%s6 + $0x10] sm:$0xff]
        %v2575 = vld [vmem:[%s6 + $0x18] sm:$0xff]
        %2576 = vxpose.xlu0.c.b16.start [1/8] %v2565, 128
        %2577 = vxpose.xlu0.c.b16.cont [2/8] %v2566, 128
        %2578 = vxpose.xlu0.c.b16.cont [3/8] %v2567, 128
        %2579 = vxpose.xlu0.c.b16.cont [4/8] %v2568, 128
        %2580 = vxpose.xlu0.c.b16.cont [5/8] 0, 128
        %2581 = vxpose.xlu0.c.b16.cont [6/8] 0, 128
        %2582 = vxpose.xlu0.c.b16.cont [7/8] 0, 128
        %2583 = vxpose.xlu0.c.b16.end [8/8] 0, 128
        %v2584 = vpop.trf.xlu0
        %v2585 = vpop.trf.xlu0
        %v2586 = vpop.trf.xlu0
        %v2587 = vpop.trf.xlu0
        %v2588 = vpop.trf.xlu0
        %v2589 = vpop.trf.xlu0
        %v2590 = vpop.trf.xlu0
        %v2591 = vpop.trf.xlu0
        %2596 = vrot.lane.b32.xlu0 %v2569, 104
        %v2597 = vpop.permute.xlu0 %2596
        %2598 = vrot.lane.b32.xlu0 %v2570, 104
        %v2599 = vpop.permute.xlu0 %2598
        %2600 = vrot.lane.b32.xlu0 %v2571, 104
        %v2601 = vpop.permute.xlu0 %2600
        %2602 = vrot.lane.b32.xlu0 %v2572, 104
        %v2603 = vpop.permute.xlu0 %2602
        %v2609 = vsel %vm834, %v2584, 0
        %v2612 = vsel %vm834, %v2585, 0
        %2614 = vmatprep.subr.bf16.mxu0 0
        %2615 = vmatpush1.bf16.msra.mxu0 %v2597
        %2616 = vmatprep.subr.bf16.mxu0 0
        %2617 = vmatpush1.bf16.msra.mxu0 %v2599
        %2618 = vmatprep.subr.bf16.mxu0 0
        %2619 = vmatpush1.bf16.msra.mxu0 %v2601
        %2620 = vmatprep.subr.bf16.mxu0 0
        %2621 = vmatpush1.bf16.msra.mxu0 %v2603
        %2622 = vmatprep.subr.bf16.mxu0 0
        %2623 = vmatpush1.bf16.msra.mxu0 0
        %2624 = vmatprep.subr.bf16.mxu0 0
        %2625 = vmatpush1.bf16.msra.mxu0 0
        %2626 = vmatprep.subr.bf16.mxu0 0
        %2627 = vmatpush1.bf16.msra.mxu0 0
        %2628 = vmatprep.subr.bf16.mxu0 0
        %2629 = vmatpush1.bf16.msra.mxu0 0
        %2630 = vmatprep.subr.bf16.mxu0 0
        %2631 = vmatpush1.bf16.msra.mxu0 0
        %2632 = vmatprep.subr.bf16.mxu0 0
        %2633 = vmatpush1.bf16.msra.mxu0 0
        %2634 = vmatprep.subr.bf16.mxu0 0
        %2635 = vmatpush1.bf16.msra.mxu0 0
        %2636 = vmatprep.subr.bf16.mxu0 0
        %2637 = vmatpush1.bf16.msra.mxu0 0
        %2638 = vmatprep.subr.bf16.mxu0 0
        %2639 = vmatpush1.bf16.msra.mxu0 0
        %2640 = vmatprep.subr.bf16.mxu0 0
        %2641 = vmatpush1.bf16.msra.mxu0 0
        %2642 = vmatprep.subr.bf16.mxu0 0
        %2643 = vmatpush1.bf16.msra.mxu0 0
        %2644 = vmatprep.subr.bf16.mxu0 0
        %2645 = vmatpush1.bf16.msra.mxu0 0
        %2646 = vmatprep.mubr.bf16.mxu0 0
        %2647 = vmatmul.mubr.bf16.gmra.mrb[0].mxu0 %v2609
        %v2648 = vpop.f32.mrb[0].mxu0
        %v2649 = vadd.f32 %v2573, %v2648
        %v2650 = vpop.f32.mrb[0].mxu0
        %v2651 = vpop.f32.mrb[0].mxu0
        %v2652 = vadd.f32 %v2574, %v2651
        %v2653 = vpop.f32.mrb[0].mxu0
        %2654 = vmatprep.mubr.bf16.mxu0 0
        %2655 = vmatmul.mubr.bf16.gmra.mrb[0].mxu0 %v2612
        %v2656 = vpop.f32.mrb[0].mxu0
        %v2657 = vadd.f32 %v2575, %v2656
        %v2658 = vpop.f32.mrb[0].mxu0
        %v2659 = vpop.f32.mrb[0].mxu0
        %v2660 = vpop.f32.mrb[0].mxu0
        %2661 = vdwg.mxu0
        %v2662 = vsel %vm393, %v2649, -inf
        %2663 = vmax.xlane.f32.xlu0 %v2662
        %v2664 = vpop.xlane.xlu0 %2663
        %v2665 = vsel %vm393, %v2652, -inf
        %2666 = vmax.xlane.f32.xlu0 %v2665
        %v2667 = vpop.xlane.xlu0 %2666
        %v2668 = vsel %vm393, %v2657, -inf
        %2669 = vmax.xlane.f32.xlu0 %v2668
        %v2670 = vpop.xlane.xlu0 %2669
        %v2671 = vsub.f32 %v2649, %v2664
        %v2672 = vsub.f32 %v2652, %v2667
        %v2673 = vsub.f32 %v2657, %v2670
        %v2674 = vmul.f32 %v2671, 1.442695
        %v2675 = vpow.pop %v2674
        %v2676 = vmul.f32 %v2672, 1.442695
        %v2677 = vpow.pop %v2676
        %v2678 = vmul.f32 %v2673, 1.442695
        %v2679 = vpow.pop %v2678
        %v2680 = vsel %vm393, %v2675, 0.0
        %2681 = vadd.xlane.f32.xlu0 %v2680
        %v2682 = vpop.xlane.xlu0 %2681
        %v2683 = vsel %vm393, %v2677, 0.0
        %2684 = vadd.xlane.f32.xlu0 %v2683
        %v2685 = vpop.xlane.xlu0 %2684
        %v2686 = vsel %vm393, %v2679, 0.0
        %2687 = vadd.xlane.f32.xlu0 %v2686
        %v2688 = vpop.xlane.xlu0 %2687
        %v2689 = vrcp.pop %v2682
        %v2690 = vrcp.pop %v2685
        %v2691 = vrcp.pop %v2688
        %v2692 = vmul.f32 %v2675, %v2689
        %v2693 = vmul.f32 %v2677, %v2690
        %v2694 = vmul.f32 %v2679, %v2691
        %v2695 = vpack.c.bf16 %v2314, %v2311
        %v2696 = vpack.c.bf16 %v2322, %v2319
        %v2697 = vpack.c.bf16 %v2330, %v2327
        %v2698 = vpack.c.bf16 %v2338, %v2335
        %v2699 = vpack.c.bf16 %v2693, %v2692
        %v2700 = vpack.c.bf16 %v2694, %v2694
        %2705 = vrot.lane.b32.xlu0 %v2695, 80
        %v2706 = vpop.permute.xlu0 %2705
        %2707 = vrot.lane.b32.xlu0 %v2696, 80
        %v2708 = vpop.permute.xlu0 %2707
        %2709 = vrot.lane.b32.xlu0 %v2697, 80
        %v2710 = vpop.permute.xlu0 %2709
        %2711 = vrot.lane.b32.xlu0 %v2698, 80
        %v2712 = vpop.permute.xlu0 %2711
        %v2714 = vsel %vm393, %v2706, 0
        %v2717 = vsel %vm393, %v2708, 0
        %v2720 = vsel %vm393, %v2710, 0
        %v2723 = vsel %vm393, %v2712, 0
        %v2726 = vsel %vm393, %v2699, 0
        %v2729 = vsel %vm393, %v2700, 0
        %2731 = vmatprep.subr.bf16.mxu0 0
        %2732 = vmatpush1.bf16.xpose.msra.mxu0 %v2726
        %2733 = vmatprep.subr.bf16.mxu0 0
        %2734 = vmatpush1.bf16.xpose.msra.mxu0 %v2729
        %2735 = vmatprep.subr.bf16.mxu0 0
        %2736 = vmatpush1.bf16.xpose.msra.mxu0 0
        %2737 = vmatprep.subr.bf16.mxu0 0
        %2738 = vmatpush1.bf16.xpose.msra.mxu0 0
        %2739 = vmatprep.subr.bf16.mxu0 0
        %2740 = vmatpush1.bf16.xpose.msra.mxu0 0
        %2741 = vmatprep.subr.bf16.mxu0 0
        %2742 = vmatpush1.bf16.xpose.msra.mxu0 0
        %2743 = vmatprep.subr.bf16.mxu0 0
        %2744 = vmatpush1.bf16.xpose.msra.mxu0 0
        %2745 = vmatprep.subr.bf16.mxu0 0
        %2746 = vmatpush1.bf16.xpose.msra.mxu0 0
        %2747 = vmatprep.subr.bf16.mxu0 0
        %2748 = vmatpush1.bf16.xpose.msra.mxu0 0
        %2749 = vmatprep.subr.bf16.mxu0 0
        %2750 = vmatpush1.bf16.xpose.msra.mxu0 0
        %2751 = vmatprep.subr.bf16.mxu0 0
        %2752 = vmatpush1.bf16.xpose.msra.mxu0 0
        %2753 = vmatprep.subr.bf16.mxu0 0
        %2754 = vmatpush1.bf16.xpose.msra.mxu0 0
        %2755 = vmatprep.subr.bf16.mxu0 0
        %2756 = vmatpush1.bf16.xpose.msra.mxu0 0
        %2757 = vmatprep.subr.bf16.mxu0 0
        %2758 = vmatpush1.bf16.xpose.msra.mxu0 0
        %2759 = vmatprep.subr.bf16.mxu0 0
        %2760 = vmatpush1.bf16.xpose.msra.mxu0 0
        %2761 = vmatprep.subr.bf16.mxu0 0
        %2762 = vmatpush1.bf16.xpose.msra.mxu0 0
        %2763 = vmatprep.mubr.bf16.mxu0 0
        %2764 = vmatmul.mubr.bf16.gmra.mrb[0].mxu0 %v2714
        %v2765 = vpop.f32.mrb[0].mxu0
        %v2766 = vadd.f32 0.0, %v2765
        %v2767 = vpop.f32.mrb[0].mxu0
        %v2768 = vpop.f32.mrb[0].mxu0
        %v2769 = vadd.f32 0.0, %v2768
        %v2770 = vpop.f32.mrb[0].mxu0
        %2771 = vmatprep.mubr.bf16.mxu0 0
        %2772 = vmatmul.mubr.bf16.gmra.mrb[0].mxu0 %v2717
        %v2773 = vpop.f32.mrb[0].mxu0
        %v2774 = vadd.f32 0.0, %v2773
        %v2775 = vpop.f32.mrb[0].mxu0
        %v2776 = vpop.f32.mrb[0].mxu0
        %v2777 = vadd.f32 0.0, %v2776
        %v2778 = vpop.f32.mrb[0].mxu0
        %2779 = vmatprep.mubr.bf16.mxu0 0
        %2780 = vmatmul.mubr.bf16.gmra.mrb[0].mxu0 %v2720
        %v2781 = vpop.f32.mrb[0].mxu0
        %v2782 = vadd.f32 0.0, %v2781
        %v2783 = vpop.f32.mrb[0].mxu0
        %v2784 = vpop.f32.mrb[0].mxu0
        %v2785 = vadd.f32 0.0, %v2784
        %v2786 = vpop.f32.mrb[0].mxu0
        %2787 = vmatprep.mubr.bf16.mxu0 0
        %2788 = vmatmul.mubr.bf16.gmra.mrb[0].mxu0 %v2723
        %v2789 = vpop.f32.mrb[0].mxu0
        %v2790 = vadd.f32 0.0, %v2789
        %v2791 = vpop.f32.mrb[0].mxu0
        %v2792 = vpop.f32.mrb[0].mxu0
        %v2793 = vadd.f32 0.0, %v2792
        %v2794 = vpop.f32.mrb[0].mxu0
        %2795 = vdwg.mxu0
        %v2796 = vld [vmem:[%s7 + $0x60] sm:$0xf]
        %v2797 = vld [vmem:[%s7 + $0x68] sm:$0xf]
        %v2798 = vld [vmem:[%s7 + $0x70] sm:$0xf]
        %v2799 = vpack.c.bf16 %v2769, %v2766
        %v2800 = vpack.c.bf16 %v2777, %v2774
        %v2801 = vpack.c.bf16 %v2785, %v2782
        %v2802 = vpack.c.bf16 %v2793, %v2790
        %v2806 = vunpack.c.l.b16 %v2796
        %v2807 = vunpack.c.l.b16 %v2797
        %v2808 = vunpack.c.l.b16 %v2798
        %v2809 = vpack.c.b16 %v2807, %v2806
        %v2810 = vpack.c.b16 %v2808, %v2808
        %v2813 = vsel %vm393, %v2799, 0
        %v2816 = vsel %vm393, %v2800, 0
        %v2819 = vsel %vm393, %v2801, 0
        %v2822 = vsel %vm393, %v2802, 0
        %v2825 = vsel %vm397, %v2810, 0
        %2827 = vmatprep.subr.bf16.mxu0 0
        %2828 = vmatpush1.bf16.msra.mxu0 %v2809
        %2829 = vmatprep.subr.bf16.mxu0 0
        %2830 = vmatpush1.bf16.msra.mxu0 %v2825
        %2831 = vmatprep.subr.bf16.mxu0 0
        %2832 = vmatpush1.bf16.msra.mxu0 0
        %2833 = vmatprep.subr.bf16.mxu0 0
        %2834 = vmatpush1.bf16.msra.mxu0 0
        %2835 = vmatprep.subr.bf16.mxu0 0
        %2836 = vmatpush1.bf16.msra.mxu0 0
        %2837 = vmatprep.subr.bf16.mxu0 0
        %2838 = vmatpush1.bf16.msra.mxu0 0
        %2839 = vmatprep.subr.bf16.mxu0 0
        %2840 = vmatpush1.bf16.msra.mxu0 0
        %2841 = vmatprep.subr.bf16.mxu0 0
        %2842 = vmatpush1.bf16.msra.mxu0 0
        %2843 = vmatprep.subr.bf16.mxu0 0
        %2844 = vmatpush1.bf16.msra.mxu0 0
        %2845 = vmatprep.subr.bf16.mxu0 0
        %2846 = vmatpush1.bf16.msra.mxu0 0
        %2847 = vmatprep.subr.bf16.mxu0 0
        %2848 = vmatpush1.bf16.msra.mxu0 0
        %2849 = vmatprep.subr.bf16.mxu0 0
        %2850 = vmatpush1.bf16.msra.mxu0 0
        %2851 = vmatprep.subr.bf16.mxu0 0
        %2852 = vmatpush1.bf16.msra.mxu0 0
        %2853 = vmatprep.subr.bf16.mxu0 0
        %2854 = vmatpush1.bf16.msra.mxu0 0
        %2855 = vmatprep.subr.bf16.mxu0 0
        %2856 = vmatpush1.bf16.msra.mxu0 0
        %2857 = vmatprep.subr.bf16.mxu0 0
        %2858 = vmatpush1.bf16.msra.mxu0 0
        %2859 = vmatprep.mubr.bf16.mxu0 0
        %2860 = vmatmul.mubr.bf16.gmra.mrb[0].mxu0 %v2813
        %v2861 = vpop.f32.mrb[0].mxu0
        %v2862 = vadd.f32 %v2215, %v2861
        %v2863 = vpop.f32.mrb[0].mxu0
        %v2864 = vpop.f32.mrb[0].mxu0
        %v2865 = vadd.f32 %v2218, %v2864
        %v2866 = vpop.f32.mrb[0].mxu0
        %2867 = vmatprep.mubr.bf16.mxu0 0
        %2868 = vmatmul.mubr.bf16.gmra.mrb[0].mxu0 %v2816
        %v2869 = vpop.f32.mrb[0].mxu0
        %v2870 = vadd.f32 %v2223, %v2869
        %v2871 = vpop.f32.mrb[0].mxu0
        %v2872 = vpop.f32.mrb[0].mxu0
        %v2873 = vadd.f32 %v2226, %v2872
        %v2874 = vpop.f32.mrb[0].mxu0
        %2875 = vmatprep.mubr.bf16.mxu0 0
        %2876 = vmatmul.mubr.bf16.gmra.mrb[0].mxu0 %v2819
        %v2877 = vpop.f32.mrb[0].mxu0
        %v2878 = vadd.f32 %v2231, %v2877
        %v2879 = vpop.f32.mrb[0].mxu0
        %v2880 = vpop.f32.mrb[0].mxu0
        %v2881 = vadd.f32 %v2234, %v2880
        %v2882 = vpop.f32.mrb[0].mxu0
        %2883 = vmatprep.mubr.bf16.mxu0 0
        %2884 = vmatmul.mubr.bf16.gmra.mrb[0].mxu0 %v2822
        %v2885 = vpop.f32.mrb[0].mxu0
        %v2886 = vadd.f32 %v2239, %v2885
        %v2887 = vpop.f32.mrb[0].mxu0
        %v2888 = vpop.f32.mrb[0].mxu0
        %v2889 = vadd.f32 %v2242, %v2888
        %v2890 = vpop.f32.mrb[0].mxu0
        %2891 = vdwg.mxu0
        %2900 = vrot.lane.b32.xlu0 %v2862, 48
        %v2901 = vpop.permute.xlu0 %2900
        %2902 = vrot.lane.b32.xlu0 %v2865, 48
        %v2903 = vpop.permute.xlu0 %2902
        %2904 = vrot.lane.b32.xlu0 %v2870, 48
        %v2905 = vpop.permute.xlu0 %2904
        %2906 = vrot.lane.b32.xlu0 %v2873, 48
        %v2907 = vpop.permute.xlu0 %2906
        %2908 = vrot.lane.b32.xlu0 %v2878, 48
        %v2909 = vpop.permute.xlu0 %2908
        %2910 = vrot.lane.b32.xlu0 %v2881, 48
        %v2911 = vpop.permute.xlu0 %2910
        %2912 = vrot.lane.b32.xlu0 %v2886, 48
        %v2913 = vpop.permute.xlu0 %2912
        %2914 = vrot.lane.b32.xlu0 %v2889, 48
        %v2915 = vpop.permute.xlu0 %2914
        %v2924 = vmul.f32 %v588, %v2901
        %v2925 = vmul.f32 %v588, %v2903
        %v2926 = vmul.f32 %v588, %v2905
        %v2927 = vmul.f32 %v588, %v2907
        %v2928 = vmul.f32 %v588, %v2909
        %v2929 = vmul.f32 %v588, %v2911
        %v2930 = vmul.f32 %v588, %v2913
        %v2931 = vmul.f32 %v588, %v2915
        %2940 = vrot.lane.b32.xlu0 %v2924, 80
        %v2941 = vpop.permute.xlu0 %2940
        %2942 = vrot.lane.b32.xlu0 %v2925, 80
        %v2943 = vpop.permute.xlu0 %2942
        %2944 = vrot.lane.b32.xlu0 %v2926, 80
        %v2945 = vpop.permute.xlu0 %2944
        %2946 = vrot.lane.b32.xlu0 %v2927, 80
        %v2947 = vpop.permute.xlu0 %2946
        %2948 = vrot.lane.b32.xlu0 %v2928, 80
        %v2949 = vpop.permute.xlu0 %2948
        %2950 = vrot.lane.b32.xlu0 %v2929, 80
        %v2951 = vpop.permute.xlu0 %2950
        %2952 = vrot.lane.b32.xlu0 %v2930, 80
        %v2953 = vpop.permute.xlu0 %2952
        %2954 = vrot.lane.b32.xlu0 %v2931, 80
        %v2955 = vpop.permute.xlu0 %2954
        %v2964 = vadd.f32 %v346, %v2941
        %v2965 = vadd.f32 %v347, %v2943
        %v2966 = vadd.f32 %v348, %v2945
        %v2967 = vadd.f32 %v349, %v2947
        %v2968 = vadd.f32 %v350, %v2949
        %v2969 = vadd.f32 %v351, %v2951
        %v2970 = vadd.f32 %v352, %v2953
        %v2971 = vadd.f32 %v353, %v2955
        %v2972 = vld [vmem:[%s8 + $0x3] ss:$0 sm:$0xff]
        %v2973 = vld [vmem:[%s8 + $0x4] ss:$0 sm:$0xff]
        %v2974 = vsel %vm393, %v2964, 0.0
        %2975 = vadd.xlane.f32.xlu0 %v2974
        %v2976 = vpop.xlane.xlu0 %2975
        %v2977 = vsel %vm393, %v2965, 0.0
        %2978 = vadd.xlane.f32.xlu0 %v2977
        %v2979 = vpop.xlane.xlu0 %2978
        %v2980 = vsel %vm393, %v2966, 0.0
        %2981 = vadd.xlane.f32.xlu0 %v2980
        %v2982 = vpop.xlane.xlu0 %2981
        %v2983 = vsel %vm393, %v2967, 0.0
        %2984 = vadd.xlane.f32.xlu0 %v2983
        %v2985 = vpop.xlane.xlu0 %2984
        %v2986 = vsel %vm393, %v2968, 0.0
        %2987 = vadd.xlane.f32.xlu0 %v2986
        %v2988 = vpop.xlane.xlu0 %2987
        %v2989 = vsel %vm393, %v2969, 0.0
        %2990 = vadd.xlane.f32.xlu0 %v2989
        %v2991 = vpop.xlane.xlu0 %2990
        %v2992 = vsel %vm393, %v2970, 0.0
        %2993 = vadd.xlane.f32.xlu0 %v2992
        %v2994 = vpop.xlane.xlu0 %2993
        %v2995 = vsel %vm393, %v2971, 0.0
        %2996 = vadd.xlane.f32.xlu0 %v2995
        %v2997 = vpop.xlane.xlu0 %2996
        %v2998 = vmul.f32 %v2976, %v471
        %v2999 = vmul.f32 %v2979, %v471
        %v3000 = vmul.f32 %v2982, %v471
        %v3001 = vmul.f32 %v2985, %v471
        %v3002 = vmul.f32 %v2988, %v471
        %v3003 = vmul.f32 %v2991, %v471
        %v3004 = vmul.f32 %v2994, %v471
        %v3005 = vmul.f32 %v2997, %v471
        %v3006 = vsub.f32 %v2964, %v2998
        %v3007 = vsub.f32 %v2965, %v2999
        %v3008 = vsub.f32 %v2966, %v3000
        %v3009 = vsub.f32 %v2967, %v3001
        %v3010 = vsub.f32 %v2968, %v3002
        %v3011 = vsub.f32 %v2969, %v3003
        %v3012 = vsub.f32 %v2970, %v3004
        %v3013 = vsub.f32 %v2971, %v3005
        %v3014 = vmul.f32 %v3006, %v3006
        %v3015 = vmul.f32 %v3007, %v3007
        %v3016 = vmul.f32 %v3008, %v3008
        %v3017 = vmul.f32 %v3009, %v3009
        %v3018 = vmul.f32 %v3010, %v3010
        %v3019 = vmul.f32 %v3011, %v3011
        %v3020 = vmul.f32 %v3012, %v3012
        %v3021 = vmul.f32 %v3013, %v3013
        %v3022 = vsel %vm393, %v3014, 0.0
        %3023 = vadd.xlane.f32.xlu0 %v3022
        %v3024 = vpop.xlane.xlu0 %3023
        %v3025 = vsel %vm393, %v3015, 0.0
        %3026 = vadd.xlane.f32.xlu0 %v3025
        %v3027 = vpop.xlane.xlu0 %3026
        %v3028 = vsel %vm393, %v3016, 0.0
        %3029 = vadd.xlane.f32.xlu0 %v3028
        %v3030 = vpop.xlane.xlu0 %3029
        %v3031 = vsel %vm393, %v3017, 0.0
        %3032 = vadd.xlane.f32.xlu0 %v3031
        %v3033 = vpop.xlane.xlu0 %3032
        %v3034 = vsel %vm393, %v3018, 0.0
        %3035 = vadd.xlane.f32.xlu0 %v3034
        %v3036 = vpop.xlane.xlu0 %3035
        %v3037 = vsel %vm393, %v3019, 0.0
        %3038 = vadd.xlane.f32.xlu0 %v3037
        %v3039 = vpop.xlane.xlu0 %3038
        %v3040 = vsel %vm393, %v3020, 0.0
        %3041 = vadd.xlane.f32.xlu0 %v3040
        %v3042 = vpop.xlane.xlu0 %3041
        %v3043 = vsel %vm393, %v3021, 0.0
        %3044 = vadd.xlane.f32.xlu0 %v3043
        %v3045 = vpop.xlane.xlu0 %3044
        %v3046 = vmul.f32 %v3024, %v471
        %v3047 = vmul.f32 %v3027, %v471
        %v3048 = vmul.f32 %v3030, %v471
        %v3049 = vmul.f32 %v3033, %v471
        %v3050 = vmul.f32 %v3036, %v471
        %v3051 = vmul.f32 %v3039, %v471
        %v3052 = vmul.f32 %v3042, %v471
        %v3053 = vmul.f32 %v3045, %v471
        %v3054 = vadd.f32 %v3046, 1e-05
        %v3055 = vadd.f32 %v3047, 1e-05
        %v3056 = vadd.f32 %v3048, 1e-05
        %v3057 = vadd.f32 %v3049, 1e-05
        %v3058 = vadd.f32 %v3050, 1e-05
        %v3059 = vadd.f32 %v3051, 1e-05
        %v3060 = vadd.f32 %v3052, 1e-05
        %v3061 = vadd.f32 %v3053, 1e-05
        %v3062 = vrsqrt.pop %v3054
        %v3063 = vrsqrt.pop %v3055
        %v3064 = vrsqrt.pop %v3056
        %v3065 = vrsqrt.pop %v3057
        %v3066 = vrsqrt.pop %v3058
        %v3067 = vrsqrt.pop %v3059
        %v3068 = vrsqrt.pop %v3060
        %v3069 = vrsqrt.pop %v3061
        %v3070 = vmul.f32 %v3006, %v3062
        %v3071 = vmul.f32 %v3007, %v3063
        %v3072 = vmul.f32 %v3008, %v3064
        %v3073 = vmul.f32 %v3009, %v3065
        %v3074 = vmul.f32 %v3010, %v3066
        %v3075 = vmul.f32 %v3011, %v3067
        %v3076 = vmul.f32 %v3012, %v3068
        %v3077 = vmul.f32 %v3013, %v3069
        %v3078 = vmul.f32 %v3070, %v2972
        %v3079 = vmul.f32 %v3071, %v2972
        %v3080 = vmul.f32 %v3072, %v2972
        %v3081 = vmul.f32 %v3073, %v2972
        %v3082 = vmul.f32 %v3074, %v2972
        %v3083 = vmul.f32 %v3075, %v2972
        %v3084 = vmul.f32 %v3076, %v2972
        %v3085 = vmul.f32 %v3077, %v2972
        %v3086 = vadd.f32 %v3078, %v2973
        %v3087 = vadd.f32 %v3079, %v2973
        %v3088 = vadd.f32 %v3080, %v2973
        %v3089 = vadd.f32 %v3081, %v2973
        %v3090 = vadd.f32 %v3082, %v2973
        %v3091 = vadd.f32 %v3083, %v2973
        %v3092 = vadd.f32 %v3084, %v2973
        %v3093 = vadd.f32 %v3085, %v2973
        %3094 = vrot.lane.b32.xlu0 %v572, 32
        %v3095 = vpop.permute.xlu0 %3094
        %v3097 = vmul.f32 %v3086, %v3095
        %v3098 = vmul.f32 %v3087, %v3095
        %v3099 = vmul.f32 %v3088, %v3095
        %v3100 = vmul.f32 %v3089, %v3095
        %v3101 = vmul.f32 %v3090, %v3095
        %v3102 = vmul.f32 %v3091, %v3095
        %v3103 = vmul.f32 %v3092, %v3095
        %v3104 = vmul.f32 %v3093, %v3095
        %3106 = vrot.lane.b32.xlu0 %v588, 56
        %v3107 = vpop.permute.xlu0 %3106
        %v3109 = vadd.f32 %v3097, %v3107
        %v3110 = vadd.f32 %v3098, %v3107
        %v3111 = vadd.f32 %v3099, %v3107
        %v3112 = vadd.f32 %v3100, %v3107
        %v3113 = vadd.f32 %v3101, %v3107
        %v3114 = vadd.f32 %v3102, %v3107
        %v3115 = vadd.f32 %v3103, %v3107
        %v3116 = vadd.f32 %v3104, %v3107
        %v3117 = vld [vmem:[%s7 + $0x78] sm:$0xf]
        %v3118 = vld [vmem:[%s7 + $0x80] sm:$0xf]
        %v3119 = vld [vmem:[%s7 + $0x88] sm:$0xf]
        %v3120 = vpack.c.bf16 %v3110, %v3109
        %v3121 = vpack.c.bf16 %v3112, %v3111
        %v3122 = vpack.c.bf16 %v3114, %v3113
        %v3123 = vpack.c.bf16 %v3116, %v3115
        %v3124 = vld [vmem:[%s8 + $0x7] ss:$0 sm:$0xff]
        %v3128 = vunpack.c.l.b16 %v3117
        %v3129 = vunpack.c.l.b16 %v3118
        %v3130 = vunpack.c.l.b16 %v3119
        %v3131 = vpack.c.b16 %v3129, %v3128
        %v3132 = vpack.c.b16 %v3130, %v3130
        %v3135 = vsel %vm393, %v3120, 0
        %v3138 = vsel %vm393, %v3121, 0
        %v3141 = vsel %vm393, %v3122, 0
        %v3144 = vsel %vm393, %v3123, 0
        %v3147 = vsel %vm397, %v3132, 0
        %3149 = vmatprep.subr.bf16.mxu0 0
        %3150 = vmatpush1.bf16.msra.mxu0 %v3131
        %3151 = vmatprep.subr.bf16.mxu0 0
        %3152 = vmatpush1.bf16.msra.mxu0 %v3147
        %3153 = vmatprep.subr.bf16.mxu0 0
        %3154 = vmatpush1.bf16.msra.mxu0 0
        %3155 = vmatprep.subr.bf16.mxu0 0
        %3156 = vmatpush1.bf16.msra.mxu0 0
        %3157 = vmatprep.subr.bf16.mxu0 0
        %3158 = vmatpush1.bf16.msra.mxu0 0
        %3159 = vmatprep.subr.bf16.mxu0 0
        %3160 = vmatpush1.bf16.msra.mxu0 0
        %3161 = vmatprep.subr.bf16.mxu0 0
        %3162 = vmatpush1.bf16.msra.mxu0 0
        %3163 = vmatprep.subr.bf16.mxu0 0
        %3164 = vmatpush1.bf16.msra.mxu0 0
        %3165 = vmatprep.subr.bf16.mxu0 0
        %3166 = vmatpush1.bf16.msra.mxu0 0
        %3167 = vmatprep.subr.bf16.mxu0 0
        %3168 = vmatpush1.bf16.msra.mxu0 0
        %3169 = vmatprep.subr.bf16.mxu0 0
        %3170 = vmatpush1.bf16.msra.mxu0 0
        %3171 = vmatprep.subr.bf16.mxu0 0
        %3172 = vmatpush1.bf16.msra.mxu0 0
        %3173 = vmatprep.subr.bf16.mxu0 0
        %3174 = vmatpush1.bf16.msra.mxu0 0
        %3175 = vmatprep.subr.bf16.mxu0 0
        %3176 = vmatpush1.bf16.msra.mxu0 0
        %3177 = vmatprep.subr.bf16.mxu0 0
        %3178 = vmatpush1.bf16.msra.mxu0 0
        %3179 = vmatprep.subr.bf16.mxu0 0
        %3180 = vmatpush1.bf16.msra.mxu0 0
        %3181 = vmatprep.mubr.bf16.mxu0 0
        %3182 = vmatmul.mubr.bf16.gmra.mrb[0].mxu0 %v3135
        %v3183 = vpop.f32.mrb[0].mxu0
        %v3184 = vadd.f32 %v3124, %v3183
        %v3185 = vpop.f32.mrb[0].mxu0
        %v3186 = vpop.f32.mrb[0].mxu0
        %v3187 = vadd.f32 %v3124, %v3186
        %v3188 = vpop.f32.mrb[0].mxu0
        %3189 = vmatprep.mubr.bf16.mxu0 0
        %3190 = vmatmul.mubr.bf16.gmra.mrb[0].mxu0 %v3138
        %v3191 = vpop.f32.mrb[0].mxu0
        %v3192 = vadd.f32 %v3124, %v3191
        %v3193 = vpop.f32.mrb[0].mxu0
        %v3194 = vpop.f32.mrb[0].mxu0
        %v3195 = vadd.f32 %v3124, %v3194
        %v3196 = vpop.f32.mrb[0].mxu0
        %3197 = vmatprep.mubr.bf16.mxu0 0
        %3198 = vmatmul.mubr.bf16.gmra.mrb[0].mxu0 %v3141
        %v3199 = vpop.f32.mrb[0].mxu0
        %v3200 = vadd.f32 %v3124, %v3199
        %v3201 = vpop.f32.mrb[0].mxu0
        %v3202 = vpop.f32.mrb[0].mxu0
        %v3203 = vadd.f32 %v3124, %v3202
        %v3204 = vpop.f32.mrb[0].mxu0
        %3205 = vmatprep.mubr.bf16.mxu0 0
        %3206 = vmatmul.mubr.bf16.gmra.mrb[0].mxu0 %v3144
        %v3207 = vpop.f32.mrb[0].mxu0
        %v3208 = vadd.f32 %v3124, %v3207
        %v3209 = vpop.f32.mrb[0].mxu0
        %v3210 = vpop.f32.mrb[0].mxu0
        %v3211 = vadd.f32 %v3124, %v3210
        %v3212 = vpop.f32.mrb[0].mxu0
        %3213 = vdwg.mxu0
        %v3214 = vmul.f32 %v3184, 0.5
        %v3215 = vmul.f32 %v3187, 0.5
        %v3216 = vmul.f32 %v3192, 0.5
        %v3217 = vmul.f32 %v3195, 0.5
        %v3218 = vmul.f32 %v3200, 0.5
        %v3219 = vmul.f32 %v3203, 0.5
        %v3220 = vmul.f32 %v3208, 0.5
        %v3221 = vmul.f32 %v3211, 0.5
        %v3222 = vmul.f32 %v3184, 0.044715
        %v3223 = vmul.f32 %v3187, 0.044715
        %v3224 = vmul.f32 %v3192, 0.044715
        %v3225 = vmul.f32 %v3195, 0.044715
        %v3226 = vmul.f32 %v3200, 0.044715
        %v3227 = vmul.f32 %v3203, 0.044715
        %v3228 = vmul.f32 %v3208, 0.044715
        %v3229 = vmul.f32 %v3211, 0.044715
        %v3230 = vmul.f32 %v3222, %v3184
        %v3231 = vmul.f32 %v3223, %v3187
        %v3232 = vmul.f32 %v3224, %v3192
        %v3233 = vmul.f32 %v3225, %v3195
        %v3234 = vmul.f32 %v3226, %v3200
        %v3235 = vmul.f32 %v3227, %v3203
        %v3236 = vmul.f32 %v3228, %v3208
        %v3237 = vmul.f32 %v3229, %v3211
        %v3238 = vmul.f32 %v3230, %v3184
        %v3239 = vmul.f32 %v3231, %v3187
        %v3240 = vmul.f32 %v3232, %v3192
        %v3241 = vmul.f32 %v3233, %v3195
        %v3242 = vmul.f32 %v3234, %v3200
        %v3243 = vmul.f32 %v3235, %v3203
        %v3244 = vmul.f32 %v3236, %v3208
        %v3245 = vmul.f32 %v3237, %v3211
        %v3246 = vadd.f32 %v3184, %v3238
        %v3247 = vadd.f32 %v3187, %v3239
        %v3248 = vadd.f32 %v3192, %v3240
        %v3249 = vadd.f32 %v3195, %v3241
        %v3250 = vadd.f32 %v3200, %v3242
        %v3251 = vadd.f32 %v3203, %v3243
        %v3252 = vadd.f32 %v3208, %v3244
        %v3253 = vadd.f32 %v3211, %v3245
        %v3254 = vmul.f32 %v3246, 0.7978846
        %v3255 = vmul.f32 %v3247, 0.7978846
        %v3256 = vmul.f32 %v3248, 0.7978846
        %v3257 = vmul.f32 %v3249, 0.7978846
        %v3258 = vmul.f32 %v3250, 0.7978846
        %v3259 = vmul.f32 %v3251, 0.7978846
        %v3260 = vmul.f32 %v3252, 0.7978846
        %v3261 = vmul.f32 %v3253, 0.7978846
        %v3262 = vtanh.pop %v3254
        %v3263 = vtanh.pop %v3255
        %v3264 = vtanh.pop %v3256
        %v3265 = vtanh.pop %v3257
        %v3266 = vtanh.pop %v3258
        %v3267 = vtanh.pop %v3259
        %v3268 = vtanh.pop %v3260
        %v3269 = vtanh.pop %v3261
        %v3270 = vadd.f32 %v3262, 1.0
        %v3271 = vadd.f32 %v3263, 1.0
        %v3272 = vadd.f32 %v3264, 1.0
        %v3273 = vadd.f32 %v3265, 1.0
        %v3274 = vadd.f32 %v3266, 1.0
        %v3275 = vadd.f32 %v3267, 1.0
        %v3276 = vadd.f32 %v3268, 1.0
        %v3277 = vadd.f32 %v3269, 1.0
        %v3278 = vmul.f32 %v3214, %v3270
        %v3279 = vmul.f32 %v3215, %v3271
        %v3280 = vmul.f32 %v3216, %v3272
        %v3281 = vmul.f32 %v3217, %v3273
        %v3282 = vmul.f32 %v3218, %v3274
        %v3283 = vmul.f32 %v3219, %v3275
        %v3284 = vmul.f32 %v3220, %v3276
        %v3285 = vmul.f32 %v3221, %v3277
        %v3286 = vld [vmem:[%s7 + $0x90] sm:$0xf]
        %v3287 = vld [vmem:[%s7 + $0x98] sm:$0xf]
        %v3288 = vld [vmem:[%s7 + $0xa0] sm:$0xf]
        %v3289 = vld [vmem:[%s7 + $0xa8] sm:$0xf]
        %v3290 = vld [vmem:[%s7 + $0xb0] sm:$0xf]
        %v3291 = vld [vmem:[%s7 + $0xb8] sm:$0xf]
        %v3292 = vpack.c.bf16 %v3279, %v3278
        %v3293 = vpack.c.bf16 %v3281, %v3280
        %v3294 = vpack.c.bf16 %v3283, %v3282
        %v3295 = vpack.c.bf16 %v3285, %v3284
        %v3296 = vld [vmem:[%s8 + $0x10] ss:$0 sm:$0xff]
        %v3303 = vunpack.c.l.b16 %v3286
        %v3304 = vunpack.c.l.b16 %v3287
        %v3305 = vunpack.c.l.b16 %v3288
        %v3306 = vunpack.c.l.b16 %v3289
        %v3307 = vunpack.c.l.b16 %v3290
        %v3308 = vunpack.c.l.b16 %v3291
        %v3309 = vpack.c.b16 %v3304, %v3303
        %v3310 = vpack.c.b16 %v3306, %v3305
        %v3311 = vpack.c.b16 %v3308, %v3307
        %vm3315 = vcmask 392192
        %v3317 = vsel %vm3315, %v3292, 0
        %v3320 = vsel %vm3315, %v3293, 0
        %v3323 = vsel %vm3315, %v3294, 0
        %v3326 = vsel %vm3315, %v3295, 0
        %3328 = vmatprep.subr.bf16.mxu0 0
        %3329 = vmatpush1.bf16.msra.mxu0 %v3309
        %3330 = vmatprep.subr.bf16.mxu0 0
        %3331 = vmatpush1.bf16.msra.mxu0 %v3310
        %3332 = vmatprep.subr.bf16.mxu0 0
        %3333 = vmatpush1.bf16.msra.mxu0 %v3311
        %3334 = vmatprep.subr.bf16.mxu0 0
        %3335 = vmatpush1.bf16.msra.mxu0 0
        %3336 = vmatprep.subr.bf16.mxu0 0
        %3337 = vmatpush1.bf16.msra.mxu0 0
        %3338 = vmatprep.subr.bf16.mxu0 0
        %3339 = vmatpush1.bf16.msra.mxu0 0
        %3340 = vmatprep.subr.bf16.mxu0 0
        %3341 = vmatpush1.bf16.msra.mxu0 0
        %3342 = vmatprep.subr.bf16.mxu0 0
        %3343 = vmatpush1.bf16.msra.mxu0 0
        %3344 = vmatprep.subr.bf16.mxu0 0
        %3345 = vmatpush1.bf16.msra.mxu0 0
        %3346 = vmatprep.subr.bf16.mxu0 0
        %3347 = vmatpush1.bf16.msra.mxu0 0
        %3348 = vmatprep.subr.bf16.mxu0 0
        %3349 = vmatpush1.bf16.msra.mxu0 0
        %3350 = vmatprep.subr.bf16.mxu0 0
        %3351 = vmatpush1.bf16.msra.mxu0 0
        %3352 = vmatprep.subr.bf16.mxu0 0
        %3353 = vmatpush1.bf16.msra.mxu0 0
        %3354 = vmatprep.subr.bf16.mxu0 0
        %3355 = vmatpush1.bf16.msra.mxu0 0
        %3356 = vmatprep.subr.bf16.mxu0 0
        %3357 = vmatpush1.bf16.msra.mxu0 0
        %3358 = vmatprep.subr.bf16.mxu0 0
        %3359 = vmatpush1.bf16.msra.mxu0 0
        %3360 = vmatprep.mubr.bf16.mxu0 0
        %3361 = vmatmul.mubr.bf16.gmra.mrb[0].mxu0 %v3317
        %v3362 = vpop.f32.mrb[0].mxu0
        %v3363 = vadd.f32 %v3296, %v3362
        %v3364 = vpop.f32.mrb[0].mxu0
        %v3365 = vpop.f32.mrb[0].mxu0
        %v3366 = vadd.f32 %v3296, %v3365
        %v3367 = vpop.f32.mrb[0].mxu0
        %3368 = vmatprep.mubr.bf16.mxu0 0
        %3369 = vmatmul.mubr.bf16.gmra.mrb[0].mxu0 %v3320
        %v3370 = vpop.f32.mrb[0].mxu0
        %v3371 = vadd.f32 %v3296, %v3370
        %v3372 = vpop.f32.mrb[0].mxu0
        %v3373 = vpop.f32.mrb[0].mxu0
        %v3374 = vadd.f32 %v3296, %v3373
        %v3375 = vpop.f32.mrb[0].mxu0
        %3376 = vmatprep.mubr.bf16.mxu0 0
        %3377 = vmatmul.mubr.bf16.gmra.mrb[0].mxu0 %v3323
        %v3378 = vpop.f32.mrb[0].mxu0
        %v3379 = vadd.f32 %v3296, %v3378
        %v3380 = vpop.f32.mrb[0].mxu0
        %v3381 = vpop.f32.mrb[0].mxu0
        %v3382 = vadd.f32 %v3296, %v3381
        %v3383 = vpop.f32.mrb[0].mxu0
        %3384 = vmatprep.mubr.bf16.mxu0 0
        %3385 = vmatmul.mubr.bf16.gmra.mrb[0].mxu0 %v3326
        %v3386 = vpop.f32.mrb[0].mxu0
        %v3387 = vadd.f32 %v3296, %v3386
        %v3388 = vpop.f32.mrb[0].mxu0
        %v3389 = vpop.f32.mrb[0].mxu0
        %v3390 = vadd.f32 %v3296, %v3389
        %v3391 = vpop.f32.mrb[0].mxu0
        %3392 = vdwg.mxu0
        %v3393 = vlaneseq
        %v3394 = vshrl.u32 %v3393, 7
        %v3395 = vsub.s32 0, %v3394
        %v3396 = vrot.slane %v441, %v3395
        %3405 = vrot.lane.b32.xlu0 %v3363, 120
        %v3406 = vpop.permute.xlu0 %3405
        %3407 = vrot.lane.b32.xlu0 %v3366, 120
        %v3408 = vpop.permute.xlu0 %3407
        %3409 = vrot.lane.b32.xlu0 %v3371, 120
        %v3410 = vpop.permute.xlu0 %3409
        %3411 = vrot.lane.b32.xlu0 %v3374, 120
        %v3412 = vpop.permute.xlu0 %3411
        %3413 = vrot.lane.b32.xlu0 %v3379, 120
        %v3414 = vpop.permute.xlu0 %3413
        %3415 = vrot.lane.b32.xlu0 %v3382, 120
        %v3416 = vpop.permute.xlu0 %3415
        %3417 = vrot.lane.b32.xlu0 %v3387, 120
        %v3418 = vpop.permute.xlu0 %3417
        %3419 = vrot.lane.b32.xlu0 %v3390, 120
        %v3420 = vpop.permute.xlu0 %3419
        %v3429 = vmul.f32 %v588, %v3406
        %v3430 = vmul.f32 %v3396, %v3406
        %v3431 = vmul.f32 %v588, %v3408
        %v3432 = vmul.f32 %v3396, %v3408
        %v3433 = vmul.f32 %v588, %v3410
        %v3434 = vmul.f32 %v3396, %v3410
        %v3435 = vmul.f32 %v588, %v3412
        %v3436 = vmul.f32 %v3396, %v3412
        %v3437 = vmul.f32 %v588, %v3414
        %v3438 = vmul.f32 %v3396, %v3414
        %v3439 = vmul.f32 %v588, %v3416
        %v3440 = vmul.f32 %v3396, %v3416
        %v3441 = vmul.f32 %v588, %v3418
        %v3442 = vmul.f32 %v3396, %v3418
        %v3443 = vmul.f32 %v588, %v3420
        %v3444 = vmul.f32 %v3396, %v3420
        %3461 = vrot.lane.b32.xlu0 %v3429, 8
        %v3462 = vpop.permute.xlu0 %3461
        %3463 = vrot.lane.b32.xlu0 %v3430, 8
        %v3464 = vpop.permute.xlu0 %3463
        %3465 = vrot.lane.b32.xlu0 %v3431, 8
        %v3466 = vpop.permute.xlu0 %3465
        %3467 = vrot.lane.b32.xlu0 %v3432, 8
        %v3468 = vpop.permute.xlu0 %3467
        %3469 = vrot.lane.b32.xlu0 %v3433, 8
        %v3470 = vpop.permute.xlu0 %3469
        %3471 = vrot.lane.b32.xlu0 %v3434, 8
        %v3472 = vpop.permute.xlu0 %3471
        %3473 = vrot.lane.b32.xlu0 %v3435, 8
        %v3474 = vpop.permute.xlu0 %3473
        %3475 = vrot.lane.b32.xlu0 %v3436, 8
        %v3476 = vpop.permute.xlu0 %3475
        %3477 = vrot.lane.b32.xlu0 %v3437, 8
        %v3478 = vpop.permute.xlu0 %3477
        %3479 = vrot.lane.b32.xlu0 %v3438, 8
        %v3480 = vpop.permute.xlu0 %3479
        %3481 = vrot.lane.b32.xlu0 %v3439, 8
        %v3482 = vpop.permute.xlu0 %3481
        %3483 = vrot.lane.b32.xlu0 %v3440, 8
        %v3484 = vpop.permute.xlu0 %3483
        %3485 = vrot.lane.b32.xlu0 %v3441, 8
        %v3486 = vpop.permute.xlu0 %3485
        %3487 = vrot.lane.b32.xlu0 %v3442, 8
        %v3488 = vpop.permute.xlu0 %3487
        %3489 = vrot.lane.b32.xlu0 %v3443, 8
        %v3490 = vpop.permute.xlu0 %3489
        %3491 = vrot.lane.b32.xlu0 %v3444, 8
        %v3492 = vpop.permute.xlu0 %3491
        %vm3493 = vcmask 64512
        %v3494 = vsel %vm3493, %v3462, %v3464
        %v3495 = vsel %vm3493, %v3466, %v3468
        %v3496 = vsel %vm3493, %v3470, %v3472
        %v3497 = vsel %vm3493, %v3474, %v3476
        %v3498 = vsel %vm3493, %v3478, %v3480
        %v3499 = vsel %vm3493, %v3482, %v3484
        %v3500 = vsel %vm3493, %v3486, %v3488
        %v3501 = vsel %vm3493, %v3490, %v3492
        %v3510 = vadd.f32 %v2964, %v3494
        %v3511 = vadd.f32 %v2965, %v3495
        %v3512 = vadd.f32 %v2966, %v3496
        %v3513 = vadd.f32 %v2967, %v3497
        %v3514 = vadd.f32 %v2968, %v3498
        %v3515 = vadd.f32 %v2969, %v3499
        %v3516 = vadd.f32 %v2970, %v3500
        %v3517 = vadd.f32 %v2971, %v3501
        %s3518 = scalar_lea.vmem %s7, 192
        %v3519 = vld [vmem:[%s3518] sm:$0xff]
        %v3520 = vld [vmem:[%s3518 + $0x8] sm:$0xff]
        %v3521 = vld [vmem:[%s3518 + $0x10] sm:$0xff]
        %s3522 = scalar_lea.vmem %s8, 32
        %v3523 = vld [vmem:[%s3522] ss:$8 sm:$0x3]
        %v3527 = vunpack.c.l.b16 %v3519
        %v3528 = vunpack.c.h.b16 %v3519
        %v3529 = vunpack.c.l.b16 %v3520
        %v3530 = vunpack.c.h.b16 %v3520
        %v3531 = vunpack.c.l.b16 %v3521
        %v3532 = vunpack.c.h.b16 %v3521
        %v3533 = vpack.c.b16 %v3529, %v3527
        %v3534 = vpack.c.b16 %v3530, %v3528
        %v3535 = vpack.c.b16 %v3531, %v3531
        %v3536 = vpack.c.b16 %v3532, %v3532
        %v3540 = vlaneseq
        %v3541 = vshrl.u32 %v3540, 7
        %v3542 = vsub.s32 0, %v3541
        %v3543 = vrot.slane %v3523, %v3542
        %v3544 = vlaneseq
        %v3545 = vshrl.u32 %v3544, 7
        %v3546 = vsub.s32 1, %v3545
        %v3547 = vrot.slane %v3523, %v3546
        %v3551 = vsel %vm397, %v3535, 0
        %v3554 = vsel %vm397, %v3536, 0
        %3556 = vmatprep.subr.bf16.mxu0 %v3534
        %3557 = vmatpush1.bf16.msra.mxu0 %v3533
        %3558 = vmatprep.subr.bf16.mxu0 %v3554
        %3559 = vmatpush1.bf16.msra.mxu0 %v3551
        %3560 = vmatprep.subr.bf16.mxu0 0
        %3561 = vmatpush1.bf16.msra.mxu0 0
        %3562 = vmatprep.subr.bf16.mxu0 0
        %3563 = vmatpush1.bf16.msra.mxu0 0
        %3564 = vmatprep.subr.bf16.mxu0 0
        %3565 = vmatpush1.bf16.msra.mxu0 0
        %3566 = vmatprep.subr.bf16.mxu0 0
        %3567 = vmatpush1.bf16.msra.mxu0 0
        %3568 = vmatprep.subr.bf16.mxu0 0
        %3569 = vmatpush1.bf16.msra.mxu0 0
        %3570 = vmatprep.subr.bf16.mxu0 0
        %3571 = vmatpush1.bf16.msra.mxu0 0
        %3572 = vmatprep.subr.bf16.mxu0 0
        %3573 = vmatpush1.bf16.msra.mxu0 0
        %3574 = vmatprep.subr.bf16.mxu0 0
        %3575 = vmatpush1.bf16.msra.mxu0 0
        %3576 = vmatprep.subr.bf16.mxu0 0
        %3577 = vmatpush1.bf16.msra.mxu0 0
        %3578 = vmatprep.subr.bf16.mxu0 0
        %3579 = vmatpush1.bf16.msra.mxu0 0
        %3580 = vmatprep.subr.bf16.mxu0 0
        %3581 = vmatpush1.bf16.msra.mxu0 0
        %3582 = vmatprep.subr.bf16.mxu0 0
        %3583 = vmatpush1.bf16.msra.mxu0 0
        %3584 = vmatprep.subr.bf16.mxu0 0
        %3585 = vmatpush1.bf16.msra.mxu0 0
        %3586 = vmatprep.subr.bf16.mxu0 0
        %3587 = vmatpush1.bf16.msra.mxu0 0
        %3588 = vmatprep.mubr.bf16.mxu0 0
        %3589 = vmatmul.mubr.bf16.gmra.mrb[0].mxu0 %v395
        %v3590 = vpop.f32.mrb[0].mxu0
        %v3591 = vadd.f32 %v3543, %v3590
        %v3592 = vpop.f32.mrb[0].mxu0
        %v3593 = vadd.f32 %v3547, %v3592
        %v3594 = vpop.f32.mrb[0].mxu0
        %v3595 = vpop.f32.mrb[0].mxu0
        %3596 = vdwg.mxu0
        %v3597 = vld [vmem:[%s3522 + $0x1] ss:$0 sm:$0xff]
        %v3598 = vld [vmem:[%s3522 + $0x2] ss:$0 sm:$0xff]
        %v3599 = vsel %vm393, %v3510, 0.0
        %3600 = vadd.xlane.f32.xlu0 %v3599
        %v3601 = vpop.xlane.xlu0 %3600
        %v3602 = vsel %vm393, %v3511, 0.0
        %3603 = vadd.xlane.f32.xlu0 %v3602
        %v3604 = vpop.xlane.xlu0 %3603
        %v3605 = vsel %vm393, %v3512, 0.0
        %3606 = vadd.xlane.f32.xlu0 %v3605
        %v3607 = vpop.xlane.xlu0 %3606
        %v3608 = vsel %vm393, %v3513, 0.0
        %3609 = vadd.xlane.f32.xlu0 %v3608
        %v3610 = vpop.xlane.xlu0 %3609
        %v3611 = vsel %vm393, %v3514, 0.0
        %3612 = vadd.xlane.f32.xlu0 %v3611
        %v3613 = vpop.xlane.xlu0 %3612
        %v3614 = vsel %vm393, %v3515, 0.0
        %3615 = vadd.xlane.f32.xlu0 %v3614
        %v3616 = vpop.xlane.xlu0 %3615
        %v3617 = vsel %vm393, %v3516, 0.0
        %3618 = vadd.xlane.f32.xlu0 %v3617
        %v3619 = vpop.xlane.xlu0 %3618
        %v3620 = vsel %vm393, %v3517, 0.0
        %3621 = vadd.xlane.f32.xlu0 %v3620
        %v3622 = vpop.xlane.xlu0 %3621
        %v3623 = vmul.f32 %v3601, %v471
        %v3624 = vmul.f32 %v3604, %v471
        %v3625 = vmul.f32 %v3607, %v471
        %v3626 = vmul.f32 %v3610, %v471
        %v3627 = vmul.f32 %v3613, %v471
        %v3628 = vmul.f32 %v3616, %v471
        %v3629 = vmul.f32 %v3619, %v471
        %v3630 = vmul.f32 %v3622, %v471
        %v3631 = vsub.f32 %v3510, %v3623
        %v3632 = vsub.f32 %v3511, %v3624
        %v3633 = vsub.f32 %v3512, %v3625
        %v3634 = vsub.f32 %v3513, %v3626
        %v3635 = vsub.f32 %v3514, %v3627
        %v3636 = vsub.f32 %v3515, %v3628
        %v3637 = vsub.f32 %v3516, %v3629
        %v3638 = vsub.f32 %v3517, %v3630
        %v3639 = vmul.f32 %v3631, %v3631
        %v3640 = vmul.f32 %v3632, %v3632
        %v3641 = vmul.f32 %v3633, %v3633
        %v3642 = vmul.f32 %v3634, %v3634
        %v3643 = vmul.f32 %v3635, %v3635
        %v3644 = vmul.f32 %v3636, %v3636
        %v3645 = vmul.f32 %v3637, %v3637
        %v3646 = vmul.f32 %v3638, %v3638
        %v3647 = vsel %vm393, %v3639, 0.0
        %3648 = vadd.xlane.f32.xlu0 %v3647
        %v3649 = vpop.xlane.xlu0 %3648
        %v3650 = vsel %vm393, %v3640, 0.0
        %3651 = vadd.xlane.f32.xlu0 %v3650
        %v3652 = vpop.xlane.xlu0 %3651
        %v3653 = vsel %vm393, %v3641, 0.0
        %3654 = vadd.xlane.f32.xlu0 %v3653
        %v3655 = vpop.xlane.xlu0 %3654
        %v3656 = vsel %vm393, %v3642, 0.0
        %3657 = vadd.xlane.f32.xlu0 %v3656
        %v3658 = vpop.xlane.xlu0 %3657
        %v3659 = vsel %vm393, %v3643, 0.0
        %3660 = vadd.xlane.f32.xlu0 %v3659
        %v3661 = vpop.xlane.xlu0 %3660
        %v3662 = vsel %vm393, %v3644, 0.0
        %3663 = vadd.xlane.f32.xlu0 %v3662
        %v3664 = vpop.xlane.xlu0 %3663
        %v3665 = vsel %vm393, %v3645, 0.0
        %3666 = vadd.xlane.f32.xlu0 %v3665
        %v3667 = vpop.xlane.xlu0 %3666
        %v3668 = vsel %vm393, %v3646, 0.0
        %3669 = vadd.xlane.f32.xlu0 %v3668
        %v3670 = vpop.xlane.xlu0 %3669
        %v3671 = vmul.f32 %v3649, %v471
        %v3672 = vmul.f32 %v3652, %v471
        %v3673 = vmul.f32 %v3655, %v471
        %v3674 = vmul.f32 %v3658, %v471
        %v3675 = vmul.f32 %v3661, %v471
        %v3676 = vmul.f32 %v3664, %v471
        %v3677 = vmul.f32 %v3667, %v471
        %v3678 = vmul.f32 %v3670, %v471
        %v3679 = vadd.f32 %v3671, 1e-05
        %v3680 = vadd.f32 %v3672, 1e-05
        %v3681 = vadd.f32 %v3673, 1e-05
        %v3682 = vadd.f32 %v3674, 1e-05
        %v3683 = vadd.f32 %v3675, 1e-05
        %v3684 = vadd.f32 %v3676, 1e-05
        %v3685 = vadd.f32 %v3677, 1e-05
        %v3686 = vadd.f32 %v3678, 1e-05
        %v3687 = vrsqrt.pop %v3679
        %v3688 = vrsqrt.pop %v3680
        %v3689 = vrsqrt.pop %v3681
        %v3690 = vrsqrt.pop %v3682
        %v3691 = vrsqrt.pop %v3683
        %v3692 = vrsqrt.pop %v3684
        %v3693 = vrsqrt.pop %v3685
        %v3694 = vrsqrt.pop %v3686
        %v3695 = vmul.f32 %v3631, %v3687
        %v3696 = vmul.f32 %v3632, %v3688
        %v3697 = vmul.f32 %v3633, %v3689
        %v3698 = vmul.f32 %v3634, %v3690
        %v3699 = vmul.f32 %v3635, %v3691
        %v3700 = vmul.f32 %v3636, %v3692
        %v3701 = vmul.f32 %v3637, %v3693
        %v3702 = vmul.f32 %v3638, %v3694
        %v3703 = vmul.f32 %v3695, %v3597
        %v3704 = vmul.f32 %v3696, %v3597
        %v3705 = vmul.f32 %v3697, %v3597
        %v3706 = vmul.f32 %v3698, %v3597
        %v3707 = vmul.f32 %v3699, %v3597
        %v3708 = vmul.f32 %v3700, %v3597
        %v3709 = vmul.f32 %v3701, %v3597
        %v3710 = vmul.f32 %v3702, %v3597
        %v3711 = vadd.f32 %v3703, %v3598
        %v3712 = vadd.f32 %v3704, %v3598
        %v3713 = vadd.f32 %v3705, %v3598
        %v3714 = vadd.f32 %v3706, %v3598
        %v3715 = vadd.f32 %v3707, %v3598
        %v3716 = vadd.f32 %v3708, %v3598
        %v3717 = vadd.f32 %v3709, %v3598
        %v3718 = vadd.f32 %v3710, %v3598
        %v3719 = vadd.f32 %v3591, 1.0
        %v3720 = vlaneseq
        %v3721 = vshrl.u32 %v3720, 7
        %v3722 = vsub.s32 0, %v3721
        %v3723 = vrot.slane %v3719, %v3722
        %3725 = vrot.lane.b32.xlu0 %v3723, 104
        %v3726 = vpop.permute.xlu0 %3725
        %v3728 = vmul.f32 %v3711, %v3726
        %v3729 = vmul.f32 %v3712, %v3726
        %v3730 = vmul.f32 %v3713, %v3726
        %v3731 = vmul.f32 %v3714, %v3726
        %v3732 = vmul.f32 %v3715, %v3726
        %v3733 = vmul.f32 %v3716, %v3726
        %v3734 = vmul.f32 %v3717, %v3726
        %v3735 = vmul.f32 %v3718, %v3726
        %v3736 = vlaneseq
        %v3737 = vshrl.u32 %v3736, 7
        %v3738 = vsub.s32 0, %v3737
        %v3739 = vrot.slane %v3591, %v3738
        %v3740 = vadd.f32 %v3728, %v3739
        %v3741 = vadd.f32 %v3729, %v3739
        %v3742 = vadd.f32 %v3730, %v3739
        %v3743 = vadd.f32 %v3731, %v3739
        %v3744 = vadd.f32 %v3732, %v3739
        %v3745 = vadd.f32 %v3733, %v3739
        %v3746 = vadd.f32 %v3734, %v3739
        %v3747 = vadd.f32 %v3735, %v3739
        %v3748 = vld [vmem:[%s3518 + $0x18] sm:$0xf]
        %v3749 = vld [vmem:[%s3518 + $0x20] sm:$0xf]
        %v3750 = vld [vmem:[%s3518 + $0x28] sm:$0xf]
        %v3751 = vpack.c.bf16 %v3741, %v3740
        %v3752 = vpack.c.bf16 %v3743, %v3742
        %v3753 = vpack.c.bf16 %v3745, %v3744
        %v3754 = vpack.c.bf16 %v3747, %v3746
        %v3755 = vld [vmem:[%s3522 + $0x5] ss:$0 sm:$0xff]
        %v3759 = vunpack.c.l.b16 %v3748
        %v3760 = vunpack.c.l.b16 %v3749
        %v3761 = vunpack.c.l.b16 %v3750
        %v3762 = vpack.c.b16 %v3760, %v3759
        %v3763 = vpack.c.b16 %v3761, %v3761
        %v3766 = vsel %vm393, %v3751, 0
        %v3769 = vsel %vm393, %v3752, 0
        %v3772 = vsel %vm393, %v3753, 0
        %v3775 = vsel %vm393, %v3754, 0
        %v3778 = vsel %vm397, %v3763, 0
        %3780 = vmatprep.subr.bf16.mxu0 0
        %3781 = vmatpush1.bf16.msra.mxu0 %v3762
        %3782 = vmatprep.subr.bf16.mxu0 0
        %3783 = vmatpush1.bf16.msra.mxu0 %v3778
        %3784 = vmatprep.subr.bf16.mxu0 0
        %3785 = vmatpush1.bf16.msra.mxu0 0
        %3786 = vmatprep.subr.bf16.mxu0 0
        %3787 = vmatpush1.bf16.msra.mxu0 0
        %3788 = vmatprep.subr.bf16.mxu0 0
        %3789 = vmatpush1.bf16.msra.mxu0 0
        %3790 = vmatprep.subr.bf16.mxu0 0
        %3791 = vmatpush1.bf16.msra.mxu0 0
        %3792 = vmatprep.subr.bf16.mxu0 0
        %3793 = vmatpush1.bf16.msra.mxu0 0
        %3794 = vmatprep.subr.bf16.mxu0 0
        %3795 = vmatpush1.bf16.msra.mxu0 0
        %3796 = vmatprep.subr.bf16.mxu0 0
        %3797 = vmatpush1.bf16.msra.mxu0 0
        %3798 = vmatprep.subr.bf16.mxu0 0
        %3799 = vmatpush1.bf16.msra.mxu0 0
        %3800 = vmatprep.subr.bf16.mxu0 0
        %3801 = vmatpush1.bf16.msra.mxu0 0
        %3802 = vmatprep.subr.bf16.mxu0 0
        %3803 = vmatpush1.bf16.msra.mxu0 0
        %3804 = vmatprep.subr.bf16.mxu0 0
        %3805 = vmatpush1.bf16.msra.mxu0 0
        %3806 = vmatprep.subr.bf16.mxu0 0
        %3807 = vmatpush1.bf16.msra.mxu0 0
        %3808 = vmatprep.subr.bf16.mxu0 0
        %3809 = vmatpush1.bf16.msra.mxu0 0
        %3810 = vmatprep.subr.bf16.mxu0 0
        %3811 = vmatpush1.bf16.msra.mxu0 0
        %3812 = vmatprep.mubr.bf16.mxu0 0
        %3813 = vmatmul.mubr.bf16.gmra.mrb[0].mxu0 %v3766
        %v3814 = vpop.f32.mrb[0].mxu0
        %v3815 = vadd.f32 %v3755, %v3814
        %v3816 = vpop.f32.mrb[0].mxu0
        %v3817 = vpop.f32.mrb[0].mxu0
        %v3818 = vadd.f32 %v3755, %v3817
        %v3819 = vpop.f32.mrb[0].mxu0
        %3820 = vmatprep.mubr.bf16.mxu0 0
        %3821 = vmatmul.mubr.bf16.gmra.mrb[0].mxu0 %v3769
        %v3822 = vpop.f32.mrb[0].mxu0
        %v3823 = vadd.f32 %v3755, %v3822
        %v3824 = vpop.f32.mrb[0].mxu0
        %v3825 = vpop.f32.mrb[0].mxu0
        %v3826 = vadd.f32 %v3755, %v3825
        %v3827 = vpop.f32.mrb[0].mxu0
        %3828 = vmatprep.mubr.bf16.mxu0 0
        %3829 = vmatmul.mubr.bf16.gmra.mrb[0].mxu0 %v3772
        %v3830 = vpop.f32.mrb[0].mxu0
        %v3831 = vadd.f32 %v3755, %v3830
        %v3832 = vpop.f32.mrb[0].mxu0
        %v3833 = vpop.f32.mrb[0].mxu0
        %v3834 = vadd.f32 %v3755, %v3833
        %v3835 = vpop.f32.mrb[0].mxu0
        %3836 = vmatprep.mubr.bf16.mxu0 0
        %3837 = vmatmul.mubr.bf16.gmra.mrb[0].mxu0 %v3775
        %v3838 = vpop.f32.mrb[0].mxu0
        %v3839 = vadd.f32 %v3755, %v3838
        %v3840 = vpop.f32.mrb[0].mxu0
        %v3841 = vpop.f32.mrb[0].mxu0
        %v3842 = vadd.f32 %v3755, %v3841
        %v3843 = vpop.f32.mrb[0].mxu0
        %3844 = vdwg.mxu0
        %v3845 = vmul.f32 %v3815, 0.4082483
        %v3846 = vmul.f32 %v3818, 0.4082483
        %v3847 = vmul.f32 %v3823, 0.4082483
        %v3848 = vmul.f32 %v3826, 0.4082483
        %v3849 = vmul.f32 %v3831, 0.4082483
        %v3850 = vmul.f32 %v3834, 0.4082483
        %v3851 = vmul.f32 %v3839, 0.4082483
        %v3852 = vmul.f32 %v3842, 0.4082483
        %v3853 = vpack.c.bf16 %v3818, %v3815
        %v3854 = vpack.c.bf16 %v3826, %v3823
        %v3855 = vpack.c.bf16 %v3834, %v3831
        %v3856 = vpack.c.bf16 %v3842, %v3839
        %s3857 = scalar_lea.vmem %s3, 128
        %v3858 = vld [vmem:[%s3857] sm:$0xf]
        %v3859 = vld [vmem:[%s3857 + $0x4] sm:$0xf]
        %v3860 = vld [vmem:[%s3857 + $0x8] sm:$0xf]
        %v3861 = vld [vmem:[%s3857 + $0xc] sm:$0xf]
        %v3862 = vld [vmem:[%s3857 + $0x10] sm:$0xf]
        %v3863 = vld [vmem:[%s3857 + $0x14] sm:$0xf]
        %v3864 = vld [vmem:[%s3857 + $0x18] sm:$0xf]
        %v3865 = vld [vmem:[%s3857 + $0x1c] sm:$0xf]
        %v3866 = vld [vmem:[%s3857 + $0x20] sm:$0xf]
        %v3867 = vld [vmem:[%s3857 + $0x24] sm:$0xf]
        %v3868 = vld [vmem:[%s3857 + $0x28] sm:$0xf]
        %v3869 = vld [vmem:[%s3857 + $0x2c] sm:$0xf]
        %v3870 = vld [vmem:[%s3857 + $0x30] sm:$0xf]
        %v3871 = vld [vmem:[%s3857 + $0x34] sm:$0xf]
        %v3872 = vld [vmem:[%s3857 + $0x38] sm:$0xf]
        %v3873 = vld [vmem:[%s3857 + $0x3c] sm:$0xf]
        %v3874 = vld [vmem:[%s3857 + $0x40] sm:$0xf]
        %v3875 = vld [vmem:[%s3857 + $0x44] sm:$0xf]
        %v3876 = vld [vmem:[%s3857 + $0x48] sm:$0xf]
        %v3877 = vld [vmem:[%s3857 + $0x4c] sm:$0xf]
        %v3878 = vld [vmem:[%s3857 + $0x50] sm:$0xf]
        %v3879 = vld [vmem:[%s3857 + $0x54] sm:$0xf]
        %v3880 = vld [vmem:[%s3857 + $0x58] sm:$0xf]
        %v3881 = vld [vmem:[%s3857 + $0x5c] sm:$0xf]
        %v3882 = vld [vmem:[%s3857 + $0x60] sm:$0xf]
        %v3883 = vld [vmem:[%s3857 + $0x64] sm:$0xf]
        %v3884 = vld [vmem:[%s3857 + $0x68] sm:$0xf]
        %v3885 = vld [vmem:[%s3857 + $0x6c] sm:$0xf]
        %v3886 = vld [vmem:[%s3857 + $0x70] sm:$0xf]
        %v3887 = vld [vmem:[%s3857 + $0x74] sm:$0xf]
        %v3888 = vld [vmem:[%s3857 + $0x78] sm:$0xf]
        %v3889 = vld [vmem:[%s3857 + $0x7c] sm:$0xf]
        %v3922 = vunpack.c.l.b16 %v3858
        %v3923 = vunpack.c.l.b16 %v3859
        %v3924 = vunpack.c.l.b16 %v3860
        %v3925 = vunpack.c.l.b16 %v3861
        %v3926 = vunpack.c.l.b16 %v3862
        %v3927 = vunpack.c.l.b16 %v3863
        %v3928 = vunpack.c.l.b16 %v3864
        %v3929 = vunpack.c.l.b16 %v3865
        %v3930 = vunpack.c.l.b16 %v3866
        %v3931 = vunpack.c.l.b16 %v3867
        %v3932 = vunpack.c.l.b16 %v3868
        %v3933 = vunpack.c.l.b16 %v3869
        %v3934 = vunpack.c.l.b16 %v3870
        %v3935 = vunpack.c.l.b16 %v3871
        %v3936 = vunpack.c.l.b16 %v3872
        %v3937 = vunpack.c.l.b16 %v3873
        %v3938 = vunpack.c.l.b16 %v3874
        %v3939 = vunpack.c.l.b16 %v3875
        %v3940 = vunpack.c.l.b16 %v3876
        %v3941 = vunpack.c.l.b16 %v3877
        %v3942 = vunpack.c.l.b16 %v3878
        %v3943 = vunpack.c.l.b16 %v3879
        %v3944 = vunpack.c.l.b16 %v3880
        %v3945 = vunpack.c.l.b16 %v3881
        %v3946 = vunpack.c.l.b16 %v3882
        %v3947 = vunpack.c.l.b16 %v3883
        %v3948 = vunpack.c.l.b16 %v3884
        %v3949 = vunpack.c.l.b16 %v3885
        %v3950 = vunpack.c.l.b16 %v3886
        %v3951 = vunpack.c.l.b16 %v3887
        %v3952 = vunpack.c.l.b16 %v3888
        %v3953 = vunpack.c.l.b16 %v3889
        %v3954 = vpack.c.b16 %v3923, %v3922
        %v3955 = vpack.c.b16 %v3925, %v3924
        %v3956 = vpack.c.b16 %v3927, %v3926
        %v3957 = vpack.c.b16 %v3929, %v3928
        %v3958 = vpack.c.b16 %v3931, %v3930
        %v3959 = vpack.c.b16 %v3933, %v3932
        %v3960 = vpack.c.b16 %v3935, %v3934
        %v3961 = vpack.c.b16 %v3937, %v3936
        %v3962 = vpack.c.b16 %v3939, %v3938
        %v3963 = vpack.c.b16 %v3941, %v3940
        %v3964 = vpack.c.b16 %v3943, %v3942
        %v3965 = vpack.c.b16 %v3945, %v3944
        %v3966 = vpack.c.b16 %v3947, %v3946
        %v3967 = vpack.c.b16 %v3949, %v3948
        %v3968 = vpack.c.b16 %v3951, %v3950
        %v3969 = vpack.c.b16 %v3953, %v3952
        %3974 = vrot.lane.b32.xlu0 %v3853, 80
        %v3975 = vpop.permute.xlu0 %3974
        %3976 = vrot.lane.b32.xlu0 %v3854, 80
        %v3977 = vpop.permute.xlu0 %3976
        %3978 = vrot.lane.b32.xlu0 %v3855, 80
        %v3979 = vpop.permute.xlu0 %3978
        %3980 = vrot.lane.b32.xlu0 %v3856, 80
        %v3981 = vpop.permute.xlu0 %3980
        %v3987 = vsel %vm834, %v3954, 0
        %v3990 = vsel %vm834, %v3955, 0
        %v3993 = vsel %vm834, %v3956, 0
        %v3996 = vsel %vm834, %v3957, 0
        %v3999 = vsel %vm834, %v3958, 0
        %v4002 = vsel %vm834, %v3959, 0
        %v4005 = vsel %vm834, %v3960, 0
        %v4008 = vsel %vm834, %v3961, 0
        %v4011 = vsel %vm834, %v3962, 0
        %v4014 = vsel %vm834, %v3963, 0
        %v4017 = vsel %vm834, %v3964, 0
        %v4020 = vsel %vm834, %v3965, 0
        %v4023 = vsel %vm834, %v3966, 0
        %v4026 = vsel %vm834, %v3967, 0
        %v4029 = vsel %vm834, %v3968, 0
        %v4032 = vsel %vm834, %v3969, 0
        %4034 = vmatprep.subr.bf16.mxu0 0
        %4035 = vmatpush1.bf16.msra.mxu0 %v3975
        %4036 = vmatprep.subr.bf16.mxu0 0
        %4037 = vmatpush1.bf16.msra.mxu0 %v3977
        %4038 = vmatprep.subr.bf16.mxu0 0
        %4039 = vmatpush1.bf16.msra.mxu0 %v3979
        %4040 = vmatprep.subr.bf16.mxu0 0
        %4041 = vmatpush1.bf16.msra.mxu0 %v3981
        %4042 = vmatprep.subr.bf16.mxu0 0
        %4043 = vmatpush1.bf16.msra.mxu0 0
        %4044 = vmatprep.subr.bf16.mxu0 0
        %4045 = vmatpush1.bf16.msra.mxu0 0
        %4046 = vmatprep.subr.bf16.mxu0 0
        %4047 = vmatpush1.bf16.msra.mxu0 0
        %4048 = vmatprep.subr.bf16.mxu0 0
        %4049 = vmatpush1.bf16.msra.mxu0 0
        %4050 = vmatprep.subr.bf16.mxu0 0
        %4051 = vmatpush1.bf16.msra.mxu0 0
        %4052 = vmatprep.subr.bf16.mxu0 0
        %4053 = vmatpush1.bf16.msra.mxu0 0
        %4054 = vmatprep.subr.bf16.mxu0 0
        %4055 = vmatpush1.bf16.msra.mxu0 0
        %4056 = vmatprep.subr.bf16.mxu0 0
        %4057 = vmatpush1.bf16.msra.mxu0 0
        %4058 = vmatprep.subr.bf16.mxu0 0
        %4059 = vmatpush1.bf16.msra.mxu0 0
        %4060 = vmatprep.subr.bf16.mxu0 0
        %4061 = vmatpush1.bf16.msra.mxu0 0
        %4062 = vmatprep.subr.bf16.mxu0 0
        %4063 = vmatpush1.bf16.msra.mxu0 0
        %4064 = vmatprep.subr.bf16.mxu0 0
        %4065 = vmatpush1.bf16.msra.mxu0 0
        %4066 = vmatprep.mubr.bf16.mxu0 0
        %4067 = vmatmul.mubr.bf16.gmra.mrb[0].mxu0 %v3987
        %v4068 = vpop.f32.mrb[0].mxu0
        %v4069 = vadd.f32 0.0, %v4068
        %v4070 = vpop.f32.mrb[0].mxu0
        %v4071 = vpop.f32.mrb[0].mxu0
        %v4072 = vadd.f32 0.0, %v4071
        %v4073 = vpop.f32.mrb[0].mxu0
        %4074 = vmatprep.mubr.bf16.mxu0 0
        %4075 = vmatmul.mubr.bf16.gmra.mrb[0].mxu0 %v3990
        %v4076 = vpop.f32.mrb[0].mxu0
        %v4077 = vadd.f32 0.0, %v4076
        %v4078 = vpop.f32.mrb[0].mxu0
        %v4079 = vpop.f32.mrb[0].mxu0
        %v4080 = vadd.f32 0.0, %v4079
        %v4081 = vpop.f32.mrb[0].mxu0
        %4082 = vmatprep.mubr.bf16.mxu0 0
        %4083 = vmatmul.mubr.bf16.gmra.mrb[0].mxu0 %v3993
        %v4084 = vpop.f32.mrb[0].mxu0
        %v4085 = vadd.f32 0.0, %v4084
        %v4086 = vpop.f32.mrb[0].mxu0
        %v4087 = vpop.f32.mrb[0].mxu0
        %v4088 = vadd.f32 0.0, %v4087
        %v4089 = vpop.f32.mrb[0].mxu0
        %4090 = vmatprep.mubr.bf16.mxu0 0
        %4091 = vmatmul.mubr.bf16.gmra.mrb[0].mxu0 %v3996
        %v4092 = vpop.f32.mrb[0].mxu0
        %v4093 = vadd.f32 0.0, %v4092
        %v4094 = vpop.f32.mrb[0].mxu0
        %v4095 = vpop.f32.mrb[0].mxu0
        %v4096 = vadd.f32 0.0, %v4095
        %v4097 = vpop.f32.mrb[0].mxu0
        %4098 = vmatprep.mubr.bf16.mxu0 0
        %4099 = vmatmul.mubr.bf16.gmra.mrb[0].mxu0 %v3999
        %v4100 = vpop.f32.mrb[0].mxu0
        %v4101 = vadd.f32 0.0, %v4100
        %v4102 = vpop.f32.mrb[0].mxu0
        %v4103 = vpop.f32.mrb[0].mxu0
        %v4104 = vadd.f32 0.0, %v4103
        %v4105 = vpop.f32.mrb[0].mxu0
        %4106 = vmatprep.mubr.bf16.mxu0 0
        %4107 = vmatmul.mubr.bf16.gmra.mrb[0].mxu0 %v4002
        %v4108 = vpop.f32.mrb[0].mxu0
        %v4109 = vadd.f32 0.0, %v4108
        %v4110 = vpop.f32.mrb[0].mxu0
        %v4111 = vpop.f32.mrb[0].mxu0
        %v4112 = vadd.f32 0.0, %v4111
        %v4113 = vpop.f32.mrb[0].mxu0
        %4114 = vmatprep.mubr.bf16.mxu0 0
        %4115 = vmatmul.mubr.bf16.gmra.mrb[0].mxu0 %v4005
        %v4116 = vpop.f32.mrb[0].mxu0
        %v4117 = vadd.f32 0.0, %v4116
        %v4118 = vpop.f32.mrb[0].mxu0
        %v4119 = vpop.f32.mrb[0].mxu0
        %v4120 = vadd.f32 0.0, %v4119
        %v4121 = vpop.f32.mrb[0].mxu0
        %4122 = vmatprep.mubr.bf16.mxu0 0
        %4123 = vmatmul.mubr.bf16.gmra.mrb[0].mxu0 %v4008
        %v4124 = vpop.f32.mrb[0].mxu0
        %v4125 = vadd.f32 0.0, %v4124
        %v4126 = vpop.f32.mrb[0].mxu0
        %v4127 = vpop.f32.mrb[0].mxu0
        %v4128 = vadd.f32 0.0, %v4127
        %v4129 = vpop.f32.mrb[0].mxu0
        %4130 = vmatprep.mubr.bf16.mxu0 0
        %4131 = vmatmul.mubr.bf16.gmra.mrb[0].mxu0 %v4011
        %v4132 = vpop.f32.mrb[0].mxu0
        %v4133 = vadd.f32 0.0, %v4132
        %v4134 = vpop.f32.mrb[0].mxu0
        %v4135 = vpop.f32.mrb[0].mxu0
        %v4136 = vadd.f32 0.0, %v4135
        %v4137 = vpop.f32.mrb[0].mxu0
        %4138 = vmatprep.mubr.bf16.mxu0 0
        %4139 = vmatmul.mubr.bf16.gmra.mrb[0].mxu0 %v4014
        %v4140 = vpop.f32.mrb[0].mxu0
        %v4141 = vadd.f32 0.0, %v4140
        %v4142 = vpop.f32.mrb[0].mxu0
        %v4143 = vpop.f32.mrb[0].mxu0
        %v4144 = vadd.f32 0.0, %v4143
        %v4145 = vpop.f32.mrb[0].mxu0
        %4146 = vmatprep.mubr.bf16.mxu0 0
        %4147 = vmatmul.mubr.bf16.gmra.mrb[0].mxu0 %v4017
        %v4148 = vpop.f32.mrb[0].mxu0
        %v4149 = vadd.f32 0.0, %v4148
        %v4150 = vpop.f32.mrb[0].mxu0
        %v4151 = vpop.f32.mrb[0].mxu0
        %v4152 = vadd.f32 0.0, %v4151
        %v4153 = vpop.f32.mrb[0].mxu0
        %4154 = vmatprep.mubr.bf16.mxu0 0
        %4155 = vmatmul.mubr.bf16.gmra.mrb[0].mxu0 %v4020
        %v4156 = vpop.f32.mrb[0].mxu0
        %v4157 = vadd.f32 0.0, %v4156
        %v4158 = vpop.f32.mrb[0].mxu0
        %v4159 = vpop.f32.mrb[0].mxu0
        %v4160 = vadd.f32 0.0, %v4159
        %v4161 = vpop.f32.mrb[0].mxu0
        %4162 = vmatprep.mubr.bf16.mxu0 0
        %4163 = vmatmul.mubr.bf16.gmra.mrb[0].mxu0 %v4023
        %v4164 = vpop.f32.mrb[0].mxu0
        %v4165 = vadd.f32 0.0, %v4164
        %v4166 = vpop.f32.mrb[0].mxu0
        %v4167 = vpop.f32.mrb[0].mxu0
        %v4168 = vadd.f32 0.0, %v4167
        %v4169 = vpop.f32.mrb[0].mxu0
        %4170 = vmatprep.mubr.bf16.mxu0 0
        %4171 = vmatmul.mubr.bf16.gmra.mrb[0].mxu0 %v4026
        %v4172 = vpop.f32.mrb[0].mxu0
        %v4173 = vadd.f32 0.0, %v4172
        %v4174 = vpop.f32.mrb[0].mxu0
        %v4175 = vpop.f32.mrb[0].mxu0
        %v4176 = vadd.f32 0.0, %v4175
        %v4177 = vpop.f32.mrb[0].mxu0
        %4178 = vmatprep.mubr.bf16.mxu0 0
        %4179 = vmatmul.mubr.bf16.gmra.mrb[0].mxu0 %v4029
        %v4180 = vpop.f32.mrb[0].mxu0
        %v4181 = vadd.f32 0.0, %v4180
        %v4182 = vpop.f32.mrb[0].mxu0
        %v4183 = vpop.f32.mrb[0].mxu0
        %v4184 = vadd.f32 0.0, %v4183
        %v4185 = vpop.f32.mrb[0].mxu0
        %4186 = vmatprep.mubr.bf16.mxu0 0
        %4187 = vmatmul.mubr.bf16.gmra.mrb[0].mxu0 %v4032
        %v4188 = vpop.f32.mrb[0].mxu0
        %v4189 = vadd.f32 0.0, %v4188
        %v4190 = vpop.f32.mrb[0].mxu0
        %v4191 = vpop.f32.mrb[0].mxu0
        %v4192 = vadd.f32 0.0, %v4191
        %v4193 = vpop.f32.mrb[0].mxu0
        %4194 = vdwg.mxu0
        %v4195 = vld [vmem:[%s3522 + $0x11] ss:$0 sm:$0xff]
        %v4196 = vmul.f32 %v4069, %v4195
        %v4197 = vmul.f32 %v4072, %v4195
        %v4198 = vmul.f32 %v4077, %v4195
        %v4199 = vmul.f32 %v4080, %v4195
        %v4200 = vmul.f32 %v4085, %v4195
        %v4201 = vmul.f32 %v4088, %v4195
        %v4202 = vmul.f32 %v4093, %v4195
        %v4203 = vmul.f32 %v4096, %v4195
        %v4204 = vld [vmem:[%s3522 + $0x12] ss:$0 sm:$0xff]
        %v4205 = vmul.f32 %v4101, %v4204
        %v4206 = vmul.f32 %v4104, %v4204
        %v4207 = vmul.f32 %v4109, %v4204
        %v4208 = vmul.f32 %v4112, %v4204
        %v4209 = vmul.f32 %v4117, %v4204
        %v4210 = vmul.f32 %v4120, %v4204
        %v4211 = vmul.f32 %v4125, %v4204
        %v4212 = vmul.f32 %v4128, %v4204
        %v4213 = vadd.f32 %v4196, %v4205
        %v4214 = vadd.f32 %v4197, %v4206
        %v4215 = vadd.f32 %v4198, %v4207
        %v4216 = vadd.f32 %v4199, %v4208
        %v4217 = vadd.f32 %v4200, %v4209
        %v4218 = vadd.f32 %v4201, %v4210
        %v4219 = vadd.f32 %v4202, %v4211
        %v4220 = vadd.f32 %v4203, %v4212
        %v4221 = vld [vmem:[%s3522 + $0x13] ss:$0 sm:$0xff]
        %v4222 = vmul.f32 %v4133, %v4221
        %v4223 = vmul.f32 %v4136, %v4221
        %v4224 = vmul.f32 %v4141, %v4221
        %v4225 = vmul.f32 %v4144, %v4221
        %v4226 = vmul.f32 %v4149, %v4221
        %v4227 = vmul.f32 %v4152, %v4221
        %v4228 = vmul.f32 %v4157, %v4221
        %v4229 = vmul.f32 %v4160, %v4221
        %v4230 = vadd.f32 %v4213, %v4222
        %v4231 = vadd.f32 %v4214, %v4223
        %v4232 = vadd.f32 %v4215, %v4224
        %v4233 = vadd.f32 %v4216, %v4225
        %v4234 = vadd.f32 %v4217, %v4226
        %v4235 = vadd.f32 %v4218, %v4227
        %v4236 = vadd.f32 %v4219, %v4228
        %v4237 = vadd.f32 %v4220, %v4229
        %v4238 = vld [vmem:[%s3522 + $0x14] ss:$0 sm:$0xff]
        %v4239 = vmul.f32 %v4165, %v4238
        %v4240 = vmul.f32 %v4168, %v4238
        %v4241 = vmul.f32 %v4173, %v4238
        %v4242 = vmul.f32 %v4176, %v4238
        %v4243 = vmul.f32 %v4181, %v4238
        %v4244 = vmul.f32 %v4184, %v4238
        %v4245 = vmul.f32 %v4189, %v4238
        %v4246 = vmul.f32 %v4192, %v4238
        %v4247 = vadd.f32 %v4230, %v4239
        %v4248 = vadd.f32 %v4231, %v4240
        %v4249 = vadd.f32 %v4232, %v4241
        %v4250 = vadd.f32 %v4233, %v4242
        %v4251 = vadd.f32 %v4234, %v4243
        %v4252 = vadd.f32 %v4235, %v4244
        %v4253 = vadd.f32 %v4236, %v4245
        %v4254 = vadd.f32 %v4237, %v4246
        %v4255 = vld [vmem:[%s3522 + $0x15] ss:$0 sm:$0xff]
        %4257 = vrot.lane.b32.xlu0 %v4255, 48
        %v4258 = vpop.permute.xlu0 %4257
        %v4260 = vmul.f32 %v3815, %v4258
        %v4261 = vmul.f32 %v3818, %v4258
        %v4262 = vmul.f32 %v3823, %v4258
        %v4263 = vmul.f32 %v3826, %v4258
        %v4264 = vmul.f32 %v3831, %v4258
        %v4265 = vmul.f32 %v3834, %v4258
        %v4266 = vmul.f32 %v3839, %v4258
        %v4267 = vmul.f32 %v3842, %v4258
        %4276 = vrot.lane.b32.xlu0 %v4260, 80
        %v4277 = vpop.permute.xlu0 %4276
        %4278 = vrot.lane.b32.xlu0 %v4261, 80
        %v4279 = vpop.permute.xlu0 %4278
        %4280 = vrot.lane.b32.xlu0 %v4262, 80
        %v4281 = vpop.permute.xlu0 %4280
        %4282 = vrot.lane.b32.xlu0 %v4263, 80
        %v4283 = vpop.permute.xlu0 %4282
        %4284 = vrot.lane.b32.xlu0 %v4264, 80
        %v4285 = vpop.permute.xlu0 %4284
        %4286 = vrot.lane.b32.xlu0 %v4265, 80
        %v4287 = vpop.permute.xlu0 %4286
        %4288 = vrot.lane.b32.xlu0 %v4266, 80
        %v4289 = vpop.permute.xlu0 %4288
        %4290 = vrot.lane.b32.xlu0 %v4267, 80
        %v4291 = vpop.permute.xlu0 %4290
        %v4300 = vadd.f32 %v4247, %v4277
        %v4301 = vadd.f32 %v4248, %v4279
        %v4302 = vadd.f32 %v4249, %v4281
        %v4303 = vadd.f32 %v4250, %v4283
        %v4304 = vadd.f32 %v4251, %v4285
        %v4305 = vadd.f32 %v4252, %v4287
        %v4306 = vadd.f32 %v4253, %v4289
        %v4307 = vadd.f32 %v4254, %v4291
        %v4308 = vld [vmem:[%s3522 + $0x16] ss:$0 sm:$0xff]
        %v4309 = vadd.f32 %v4300, %v4308
        %v4310 = vadd.f32 %v4301, %v4308
        %v4311 = vadd.f32 %v4302, %v4308
        %v4312 = vadd.f32 %v4303, %v4308
        %v4313 = vadd.f32 %v4304, %v4308
        %v4314 = vadd.f32 %v4305, %v4308
        %v4315 = vadd.f32 %v4306, %v4308
        %v4316 = vadd.f32 %v4307, %v4308
        %v4317 = vmul.f32 %v3845, %v1166
        %v4318 = vmul.f32 %v3846, %v1167
        %v4319 = vmul.f32 %v3847, %v1168
        %v4320 = vmul.f32 %v3848, %v1169
        %v4321 = vmul.f32 %v3849, %v1170
        %v4322 = vmul.f32 %v3850, %v1171
        %v4323 = vmul.f32 %v3851, %v1172
        %v4324 = vmul.f32 %v3852, %v1173
        %v4325 = vmul.f32 %v3845, %v1174
        %v4326 = vmul.f32 %v3846, %v1175
        %v4327 = vmul.f32 %v3847, %v1176
        %v4328 = vmul.f32 %v3848, %v1177
        %v4329 = vmul.f32 %v3849, %v1178
        %v4330 = vmul.f32 %v3850, %v1179
        %v4331 = vmul.f32 %v3851, %v1180
        %v4332 = vmul.f32 %v3852, %v1181
        %v4333 = vmul.f32 %v3845, %v1182
        %v4334 = vmul.f32 %v3846, %v1183
        %v4335 = vmul.f32 %v3847, %v1184
        %v4336 = vmul.f32 %v3848, %v1185
        %v4337 = vmul.f32 %v3849, %v1186
        %v4338 = vmul.f32 %v3850, %v1187
        %v4339 = vmul.f32 %v3851, %v1188
        %v4340 = vmul.f32 %v3852, %v1189
        %v4341 = vmul.f32 %v3845, %v1190
        %v4342 = vmul.f32 %v3846, %v1191
        %v4343 = vmul.f32 %v3847, %v1192
        %v4344 = vmul.f32 %v3848, %v1193
        %v4345 = vmul.f32 %v3849, %v1194
        %v4346 = vmul.f32 %v3850, %v1195
        %v4347 = vmul.f32 %v3851, %v1196
        %v4348 = vmul.f32 %v3852, %v1197
        %v4349 = vpack.c.bf16 %v4318, %v4317
        %v4350 = vpack.c.bf16 %v4320, %v4319
        %v4351 = vpack.c.bf16 %v4322, %v4321
        %v4352 = vpack.c.bf16 %v4324, %v4323
        %v4353 = vpack.c.bf16 %v4326, %v4325
        %v4354 = vpack.c.bf16 %v4328, %v4327
        %v4355 = vpack.c.bf16 %v4330, %v4329
        %v4356 = vpack.c.bf16 %v4332, %v4331
        %v4357 = vpack.c.bf16 %v4334, %v4333
        %v4358 = vpack.c.bf16 %v4336, %v4335
        %v4359 = vpack.c.bf16 %v4338, %v4337
        %v4360 = vpack.c.bf16 %v4340, %v4339
        %v4361 = vpack.c.bf16 %v4342, %v4341
        %v4362 = vpack.c.bf16 %v4344, %v4343
        %v4363 = vpack.c.bf16 %v4346, %v4345
        %v4364 = vpack.c.bf16 %v4348, %v4347
        %4365 = vrot.lane.b32.xlu0 %v3853, 104
        %v4366 = vpop.permute.xlu0 %4365
        %4367 = vrot.lane.b32.xlu0 %v3854, 104
        %v4368 = vpop.permute.xlu0 %4367
        %4369 = vrot.lane.b32.xlu0 %v3855, 104
        %v4370 = vpop.permute.xlu0 %4369
        %4371 = vrot.lane.b32.xlu0 %v3856, 104
        %v4372 = vpop.permute.xlu0 %4371
        %v4374 = vsel %vm393, %v4349, 0
        %v4377 = vsel %vm393, %v4350, 0
        %v4380 = vsel %vm393, %v4351, 0
        %v4383 = vsel %vm393, %v4352, 0
        %v4386 = vsel %vm393, %v4353, 0
        %v4389 = vsel %vm393, %v4354, 0
        %v4392 = vsel %vm393, %v4355, 0
        %v4395 = vsel %vm393, %v4356, 0
        %v4398 = vsel %vm393, %v4357, 0
        %v4401 = vsel %vm393, %v4358, 0
        %v4404 = vsel %vm393, %v4359, 0
        %v4407 = vsel %vm393, %v4360, 0
        %v4410 = vsel %vm393, %v4361, 0
        %v4413 = vsel %vm393, %v4362, 0
        %v4416 = vsel %vm393, %v4363, 0
        %v4419 = vsel %vm393, %v4364, 0
        %v4422 = vsel %vm393, %v4366, 0
        %v4425 = vsel %vm393, %v4368, 0
        %v4428 = vsel %vm393, %v4370, 0
        %v4431 = vsel %vm393, %v4372, 0
        %4433 = vmatprep.subr.bf16.mxu0 0
        %4434 = vmatpush1.bf16.xpose.msra.mxu0 %v4422
        %4435 = vmatprep.subr.bf16.mxu0 0
        %4436 = vmatpush1.bf16.xpose.msra.mxu0 %v4425
        %4437 = vmatprep.subr.bf16.mxu0 0
        %4438 = vmatpush1.bf16.xpose.msra.mxu0 %v4428
        %4439 = vmatprep.subr.bf16.mxu0 0
        %4440 = vmatpush1.bf16.xpose.msra.mxu0 %v4431
        %4441 = vmatprep.subr.bf16.mxu0 0
        %4442 = vmatpush1.bf16.xpose.msra.mxu0 0
        %4443 = vmatprep.subr.bf16.mxu0 0
        %4444 = vmatpush1.bf16.xpose.msra.mxu0 0
        %4445 = vmatprep.subr.bf16.mxu0 0
        %4446 = vmatpush1.bf16.xpose.msra.mxu0 0
        %4447 = vmatprep.subr.bf16.mxu0 0
        %4448 = vmatpush1.bf16.xpose.msra.mxu0 0
        %4449 = vmatprep.subr.bf16.mxu0 0
        %4450 = vmatpush1.bf16.xpose.msra.mxu0 0
        %4451 = vmatprep.subr.bf16.mxu0 0
        %4452 = vmatpush1.bf16.xpose.msra.mxu0 0
        %4453 = vmatprep.subr.bf16.mxu0 0
        %4454 = vmatpush1.bf16.xpose.msra.mxu0 0
        %4455 = vmatprep.subr.bf16.mxu0 0
        %4456 = vmatpush1.bf16.xpose.msra.mxu0 0
        %4457 = vmatprep.subr.bf16.mxu0 0
        %4458 = vmatpush1.bf16.xpose.msra.mxu0 0
        %4459 = vmatprep.subr.bf16.mxu0 0
        %4460 = vmatpush1.bf16.xpose.msra.mxu0 0
        %4461 = vmatprep.subr.bf16.mxu0 0
        %4462 = vmatpush1.bf16.xpose.msra.mxu0 0
        %4463 = vmatprep.subr.bf16.mxu0 0
        %4464 = vmatpush1.bf16.xpose.msra.mxu0 0
        %4465 = vmatprep.mubr.bf16.mxu0 0
        %4466 = vmatmul.mubr.bf16.gmra.mrb[0].mxu0 %v4374
        %v4467 = vpop.f32.mrb[0].mxu0
        %v4468 = vadd.f32 %v1246, %v4467
        %v4469 = vpop.f32.mrb[0].mxu0
        %v4470 = vpop.f32.mrb[0].mxu0
        %v4471 = vadd.f32 %v1247, %v4470
        %v4472 = vpop.f32.mrb[0].mxu0
        %4473 = vmatprep.mubr.bf16.mxu0 0
        %4474 = vmatmul.mubr.bf16.gmra.mrb[0].mxu0 %v4377
        %v4475 = vpop.f32.mrb[0].mxu0
        %v4476 = vadd.f32 %v1248, %v4475
        %v4477 = vpop.f32.mrb[0].mxu0
        %v4478 = vpop.f32.mrb[0].mxu0
        %v4479 = vadd.f32 %v1249, %v4478
        %v4480 = vpop.f32.mrb[0].mxu0
        %4481 = vmatprep.mubr.bf16.mxu0 0
        %4482 = vmatmul.mubr.bf16.gmra.mrb[0].mxu0 %v4380
        %v4483 = vpop.f32.mrb[0].mxu0
        %v4484 = vadd.f32 %v1250, %v4483
        %v4485 = vpop.f32.mrb[0].mxu0
        %v4486 = vpop.f32.mrb[0].mxu0
        %v4487 = vadd.f32 %v1251, %v4486
        %v4488 = vpop.f32.mrb[0].mxu0
        %4489 = vmatprep.mubr.bf16.mxu0 0
        %4490 = vmatmul.mubr.bf16.gmra.mrb[0].mxu0 %v4383
        %v4491 = vpop.f32.mrb[0].mxu0
        %v4492 = vadd.f32 %v1252, %v4491
        %v4493 = vpop.f32.mrb[0].mxu0
        %v4494 = vpop.f32.mrb[0].mxu0
        %v4495 = vadd.f32 %v1253, %v4494
        %v4496 = vpop.f32.mrb[0].mxu0
        %4497 = vmatprep.mubr.bf16.mxu0 0
        %4498 = vmatmul.mubr.bf16.gmra.mrb[0].mxu0 %v4386
        %v4499 = vpop.f32.mrb[0].mxu0
        %v4500 = vadd.f32 %v1254, %v4499
        %v4501 = vpop.f32.mrb[0].mxu0
        %v4502 = vpop.f32.mrb[0].mxu0
        %v4503 = vadd.f32 %v1255, %v4502
        %v4504 = vpop.f32.mrb[0].mxu0
        %4505 = vmatprep.mubr.bf16.mxu0 0
        %4506 = vmatmul.mubr.bf16.gmra.mrb[0].mxu0 %v4389
        %v4507 = vpop.f32.mrb[0].mxu0
        %v4508 = vadd.f32 %v1256, %v4507
        %v4509 = vpop.f32.mrb[0].mxu0
        %v4510 = vpop.f32.mrb[0].mxu0
        %v4511 = vadd.f32 %v1257, %v4510
        %v4512 = vpop.f32.mrb[0].mxu0
        %4513 = vmatprep.mubr.bf16.mxu0 0
        %4514 = vmatmul.mubr.bf16.gmra.mrb[0].mxu0 %v4392
        %v4515 = vpop.f32.mrb[0].mxu0
        %v4516 = vadd.f32 %v1258, %v4515
        %v4517 = vpop.f32.mrb[0].mxu0
        %v4518 = vpop.f32.mrb[0].mxu0
        %v4519 = vadd.f32 %v1259, %v4518
        %v4520 = vpop.f32.mrb[0].mxu0
        %4521 = vmatprep.mubr.bf16.mxu0 0
        %4522 = vmatmul.mubr.bf16.gmra.mrb[0].mxu0 %v4395
        %v4523 = vpop.f32.mrb[0].mxu0
        %v4524 = vadd.f32 %v1260, %v4523
        %v4525 = vpop.f32.mrb[0].mxu0
        %v4526 = vpop.f32.mrb[0].mxu0
        %v4527 = vadd.f32 %v1261, %v4526
        %v4528 = vpop.f32.mrb[0].mxu0
        %4529 = vmatprep.mubr.bf16.mxu0 0
        %4530 = vmatmul.mubr.bf16.gmra.mrb[0].mxu0 %v4398
        %v4531 = vpop.f32.mrb[0].mxu0
        %v4532 = vadd.f32 %v1262, %v4531
        %v4533 = vpop.f32.mrb[0].mxu0
        %v4534 = vpop.f32.mrb[0].mxu0
        %v4535 = vadd.f32 %v1263, %v4534
        %v4536 = vpop.f32.mrb[0].mxu0
        %4537 = vmatprep.mubr.bf16.mxu0 0
        %4538 = vmatmul.mubr.bf16.gmra.mrb[0].mxu0 %v4401
        %v4539 = vpop.f32.mrb[0].mxu0
        %v4540 = vadd.f32 %v1264, %v4539
        %v4541 = vpop.f32.mrb[0].mxu0
        %v4542 = vpop.f32.mrb[0].mxu0
        %v4543 = vadd.f32 %v1265, %v4542
        %v4544 = vpop.f32.mrb[0].mxu0
        %4545 = vmatprep.mubr.bf16.mxu0 0
        %4546 = vmatmul.mubr.bf16.gmra.mrb[0].mxu0 %v4404
        %v4547 = vpop.f32.mrb[0].mxu0
        %v4548 = vadd.f32 %v1266, %v4547
        %v4549 = vpop.f32.mrb[0].mxu0
        %v4550 = vpop.f32.mrb[0].mxu0
        %v4551 = vadd.f32 %v1267, %v4550
        %v4552 = vpop.f32.mrb[0].mxu0
        %4553 = vmatprep.mubr.bf16.mxu0 0
        %4554 = vmatmul.mubr.bf16.gmra.mrb[0].mxu0 %v4407
        %v4555 = vpop.f32.mrb[0].mxu0
        %v4556 = vadd.f32 %v1268, %v4555
        %v4557 = vpop.f32.mrb[0].mxu0
        %v4558 = vpop.f32.mrb[0].mxu0
        %v4559 = vadd.f32 %v1269, %v4558
        %v4560 = vpop.f32.mrb[0].mxu0
        %4561 = vmatprep.mubr.bf16.mxu0 0
        %4562 = vmatmul.mubr.bf16.gmra.mrb[0].mxu0 %v4410
        %v4563 = vpop.f32.mrb[0].mxu0
        %v4564 = vadd.f32 %v1270, %v4563
        %v4565 = vpop.f32.mrb[0].mxu0
        %v4566 = vpop.f32.mrb[0].mxu0
        %v4567 = vadd.f32 %v1271, %v4566
        %v4568 = vpop.f32.mrb[0].mxu0
        %4569 = vmatprep.mubr.bf16.mxu0 0
        %4570 = vmatmul.mubr.bf16.gmra.mrb[0].mxu0 %v4413
        %v4571 = vpop.f32.mrb[0].mxu0
        %v4572 = vadd.f32 %v1272, %v4571
        %v4573 = vpop.f32.mrb[0].mxu0
        %v4574 = vpop.f32.mrb[0].mxu0
        %v4575 = vadd.f32 %v1273, %v4574
        %v4576 = vpop.f32.mrb[0].mxu0
        %4577 = vmatprep.mubr.bf16.mxu0 0
        %4578 = vmatmul.mubr.bf16.gmra.mrb[0].mxu0 %v4416
        %v4579 = vpop.f32.mrb[0].mxu0
        %v4580 = vadd.f32 %v1274, %v4579
        %v4581 = vpop.f32.mrb[0].mxu0
        %v4582 = vpop.f32.mrb[0].mxu0
        %v4583 = vadd.f32 %v1275, %v4582
        %v4584 = vpop.f32.mrb[0].mxu0
        %4585 = vmatprep.mubr.bf16.mxu0 0
        %4586 = vmatmul.mubr.bf16.gmra.mrb[0].mxu0 %v4419
        %v4587 = vpop.f32.mrb[0].mxu0
        %v4588 = vadd.f32 %v1276, %v4587
        %v4589 = vpop.f32.mrb[0].mxu0
        %v4590 = vpop.f32.mrb[0].mxu0
        %v4591 = vadd.f32 %v1277, %v4590
        %v4592 = vpop.f32.mrb[0].mxu0
        %4593 = vdwg.mxu0
        %v4594 = vsel %vm834, %v4468, -inf
        %4595 = vmax.xlane.f32.xlu0 %v4594
        %v4596 = vpop.xlane.xlu0 %4595
        %v4597 = vsel %vm834, %v4471, -inf
        %4598 = vmax.xlane.f32.xlu0 %v4597
        %v4599 = vpop.xlane.xlu0 %4598
        %v4600 = vsel %vm834, %v4476, -inf
        %4601 = vmax.xlane.f32.xlu0 %v4600
        %v4602 = vpop.xlane.xlu0 %4601
        %v4603 = vsel %vm834, %v4479, -inf
        %4604 = vmax.xlane.f32.xlu0 %v4603
        %v4605 = vpop.xlane.xlu0 %4604
        %v4606 = vsel %vm834, %v4484, -inf
        %4607 = vmax.xlane.f32.xlu0 %v4606
        %v4608 = vpop.xlane.xlu0 %4607
        %v4609 = vsel %vm834, %v4487, -inf
        %4610 = vmax.xlane.f32.xlu0 %v4609
        %v4611 = vpop.xlane.xlu0 %4610
        %v4612 = vsel %vm834, %v4492, -inf
        %4613 = vmax.xlane.f32.xlu0 %v4612
        %v4614 = vpop.xlane.xlu0 %4613
        %v4615 = vsel %vm834, %v4495, -inf
        %4616 = vmax.xlane.f32.xlu0 %v4615
        %v4617 = vpop.xlane.xlu0 %4616
        %v4618 = vsel %vm834, %v4500, -inf
        %4619 = vmax.xlane.f32.xlu0 %v4618
        %v4620 = vpop.xlane.xlu0 %4619
        %v4621 = vsel %vm834, %v4503, -inf
        %4622 = vmax.xlane.f32.xlu0 %v4621
        %v4623 = vpop.xlane.xlu0 %4622
        %v4624 = vsel %vm834, %v4508, -inf
        %4625 = vmax.xlane.f32.xlu0 %v4624
        %v4626 = vpop.xlane.xlu0 %4625
        %v4627 = vsel %vm834, %v4511, -inf
        %4628 = vmax.xlane.f32.xlu0 %v4627
        %v4629 = vpop.xlane.xlu0 %4628
        %v4630 = vsel %vm834, %v4516, -inf
        %4631 = vmax.xlane.f32.xlu0 %v4630
        %v4632 = vpop.xlane.xlu0 %4631
        %v4633 = vsel %vm834, %v4519, -inf
        %4634 = vmax.xlane.f32.xlu0 %v4633
        %v4635 = vpop.xlane.xlu0 %4634
        %v4636 = vsel %vm834, %v4524, -inf
        %4637 = vmax.xlane.f32.xlu0 %v4636
        %v4638 = vpop.xlane.xlu0 %4637
        %v4639 = vsel %vm834, %v4527, -inf
        %4640 = vmax.xlane.f32.xlu0 %v4639
        %v4641 = vpop.xlane.xlu0 %4640
        %v4642 = vsel %vm834, %v4532, -inf
        %4643 = vmax.xlane.f32.xlu0 %v4642
        %v4644 = vpop.xlane.xlu0 %4643
        %v4645 = vsel %vm834, %v4535, -inf
        %4646 = vmax.xlane.f32.xlu0 %v4645
        %v4647 = vpop.xlane.xlu0 %4646
        %v4648 = vsel %vm834, %v4540, -inf
        %4649 = vmax.xlane.f32.xlu0 %v4648
        %v4650 = vpop.xlane.xlu0 %4649
        %v4651 = vsel %vm834, %v4543, -inf
        %4652 = vmax.xlane.f32.xlu0 %v4651
        %v4653 = vpop.xlane.xlu0 %4652
        %v4654 = vsel %vm834, %v4548, -inf
        %4655 = vmax.xlane.f32.xlu0 %v4654
        %v4656 = vpop.xlane.xlu0 %4655
        %v4657 = vsel %vm834, %v4551, -inf
        %4658 = vmax.xlane.f32.xlu0 %v4657
        %v4659 = vpop.xlane.xlu0 %4658
        %v4660 = vsel %vm834, %v4556, -inf
        %4661 = vmax.xlane.f32.xlu0 %v4660
        %v4662 = vpop.xlane.xlu0 %4661
        %v4663 = vsel %vm834, %v4559, -inf
        %4664 = vmax.xlane.f32.xlu0 %v4663
        %v4665 = vpop.xlane.xlu0 %4664
        %v4666 = vsel %vm834, %v4564, -inf
        %4667 = vmax.xlane.f32.xlu0 %v4666
        %v4668 = vpop.xlane.xlu0 %4667
        %v4669 = vsel %vm834, %v4567, -inf
        %4670 = vmax.xlane.f32.xlu0 %v4669
        %v4671 = vpop.xlane.xlu0 %4670
        %v4672 = vsel %vm834, %v4572, -inf
        %4673 = vmax.xlane.f32.xlu0 %v4672
        %v4674 = vpop.xlane.xlu0 %4673
        %v4675 = vsel %vm834, %v4575, -inf
        %4676 = vmax.xlane.f32.xlu0 %v4675
        %v4677 = vpop.xlane.xlu0 %4676
        %v4678 = vsel %vm834, %v4580, -inf
        %4679 = vmax.xlane.f32.xlu0 %v4678
        %v4680 = vpop.xlane.xlu0 %4679
        %v4681 = vsel %vm834, %v4583, -inf
        %4682 = vmax.xlane.f32.xlu0 %v4681
        %v4683 = vpop.xlane.xlu0 %4682
        %v4684 = vsel %vm834, %v4588, -inf
        %4685 = vmax.xlane.f32.xlu0 %v4684
        %v4686 = vpop.xlane.xlu0 %4685
        %v4687 = vsel %vm834, %v4591, -inf
        %4688 = vmax.xlane.f32.xlu0 %v4687
        %v4689 = vpop.xlane.xlu0 %4688
        %v4690 = vsub.f32 %v4468, %v4596
        %v4691 = vsub.f32 %v4471, %v4599
        %v4692 = vsub.f32 %v4476, %v4602
        %v4693 = vsub.f32 %v4479, %v4605
        %v4694 = vsub.f32 %v4484, %v4608
        %v4695 = vsub.f32 %v4487, %v4611
        %v4696 = vsub.f32 %v4492, %v4614
        %v4697 = vsub.f32 %v4495, %v4617
        %v4698 = vsub.f32 %v4500, %v4620
        %v4699 = vsub.f32 %v4503, %v4623
        %v4700 = vsub.f32 %v4508, %v4626
        %v4701 = vsub.f32 %v4511, %v4629
        %v4702 = vsub.f32 %v4516, %v4632
        %v4703 = vsub.f32 %v4519, %v4635
        %v4704 = vsub.f32 %v4524, %v4638
        %v4705 = vsub.f32 %v4527, %v4641
        %v4706 = vsub.f32 %v4532, %v4644
        %v4707 = vsub.f32 %v4535, %v4647
        %v4708 = vsub.f32 %v4540, %v4650
        %v4709 = vsub.f32 %v4543, %v4653
        %v4710 = vsub.f32 %v4548, %v4656
        %v4711 = vsub.f32 %v4551, %v4659
        %v4712 = vsub.f32 %v4556, %v4662
        %v4713 = vsub.f32 %v4559, %v4665
        %v4714 = vsub.f32 %v4564, %v4668
        %v4715 = vsub.f32 %v4567, %v4671
        %v4716 = vsub.f32 %v4572, %v4674
        %v4717 = vsub.f32 %v4575, %v4677
        %v4718 = vsub.f32 %v4580, %v4680
        %v4719 = vsub.f32 %v4583, %v4683
        %v4720 = vsub.f32 %v4588, %v4686
        %v4721 = vsub.f32 %v4591, %v4689
        %v4722 = vmul.f32 %v4690, 1.442695
        %v4723 = vpow.pop %v4722
        %v4724 = vmul.f32 %v4691, 1.442695
        %v4725 = vpow.pop %v4724
        %v4726 = vmul.f32 %v4692, 1.442695
        %v4727 = vpow.pop %v4726
        %v4728 = vmul.f32 %v4693, 1.442695
        %v4729 = vpow.pop %v4728
        %v4730 = vmul.f32 %v4694, 1.442695
        %v4731 = vpow.pop %v4730
        %v4732 = vmul.f32 %v4695, 1.442695
        %v4733 = vpow.pop %v4732
        %v4734 = vmul.f32 %v4696, 1.442695
        %v4735 = vpow.pop %v4734
        %v4736 = vmul.f32 %v4697, 1.442695
        %v4737 = vpow.pop %v4736
        %v4738 = vmul.f32 %v4698, 1.442695
        %v4739 = vpow.pop %v4738
        %v4740 = vmul.f32 %v4699, 1.442695
        %v4741 = vpow.pop %v4740
        %v4742 = vmul.f32 %v4700, 1.442695
        %v4743 = vpow.pop %v4742
        %v4744 = vmul.f32 %v4701, 1.442695
        %v4745 = vpow.pop %v4744
        %v4746 = vmul.f32 %v4702, 1.442695
        %v4747 = vpow.pop %v4746
        %v4748 = vmul.f32 %v4703, 1.442695
        %v4749 = vpow.pop %v4748
        %v4750 = vmul.f32 %v4704, 1.442695
        %v4751 = vpow.pop %v4750
        %v4752 = vmul.f32 %v4705, 1.442695
        %v4753 = vpow.pop %v4752
        %v4754 = vmul.f32 %v4706, 1.442695
        %v4755 = vpow.pop %v4754
        %v4756 = vmul.f32 %v4707, 1.442695
        %v4757 = vpow.pop %v4756
        %v4758 = vmul.f32 %v4708, 1.442695
        %v4759 = vpow.pop %v4758
        %v4760 = vmul.f32 %v4709, 1.442695
        %v4761 = vpow.pop %v4760
        %v4762 = vmul.f32 %v4710, 1.442695
        %v4763 = vpow.pop %v4762
        %v4764 = vmul.f32 %v4711, 1.442695
        %v4765 = vpow.pop %v4764
        %v4766 = vmul.f32 %v4712, 1.442695
        %v4767 = vpow.pop %v4766
        %v4768 = vmul.f32 %v4713, 1.442695
        %v4769 = vpow.pop %v4768
        %v4770 = vmul.f32 %v4714, 1.442695
        %v4771 = vpow.pop %v4770
        %v4772 = vmul.f32 %v4715, 1.442695
        %v4773 = vpow.pop %v4772
        %v4774 = vmul.f32 %v4716, 1.442695
        %v4775 = vpow.pop %v4774
        %v4776 = vmul.f32 %v4717, 1.442695
        %v4777 = vpow.pop %v4776
        %v4778 = vmul.f32 %v4718, 1.442695
        %v4779 = vpow.pop %v4778
        %v4780 = vmul.f32 %v4719, 1.442695
        %v4781 = vpow.pop %v4780
        %v4782 = vmul.f32 %v4720, 1.442695
        %v4783 = vpow.pop %v4782
        %v4784 = vmul.f32 %v4721, 1.442695
        %v4785 = vpow.pop %v4784
        %v4786 = vsel %vm834, %v4723, 0.0
        %4787 = vadd.xlane.f32.xlu0 %v4786
        %v4788 = vpop.xlane.xlu0 %4787
        %v4789 = vsel %vm834, %v4725, 0.0
        %4790 = vadd.xlane.f32.xlu0 %v4789
        %v4791 = vpop.xlane.xlu0 %4790
        %v4792 = vsel %vm834, %v4727, 0.0
        %4793 = vadd.xlane.f32.xlu0 %v4792
        %v4794 = vpop.xlane.xlu0 %4793
        %v4795 = vsel %vm834, %v4729, 0.0
        %4796 = vadd.xlane.f32.xlu0 %v4795
        %v4797 = vpop.xlane.xlu0 %4796
        %v4798 = vsel %vm834, %v4731, 0.0
        %4799 = vadd.xlane.f32.xlu0 %v4798
        %v4800 = vpop.xlane.xlu0 %4799
        %v4801 = vsel %vm834, %v4733, 0.0
        %4802 = vadd.xlane.f32.xlu0 %v4801
        %v4803 = vpop.xlane.xlu0 %4802
        %v4804 = vsel %vm834, %v4735, 0.0
        %4805 = vadd.xlane.f32.xlu0 %v4804
        %v4806 = vpop.xlane.xlu0 %4805
        %v4807 = vsel %vm834, %v4737, 0.0
        %4808 = vadd.xlane.f32.xlu0 %v4807
        %v4809 = vpop.xlane.xlu0 %4808
        %v4810 = vsel %vm834, %v4739, 0.0
        %4811 = vadd.xlane.f32.xlu0 %v4810
        %v4812 = vpop.xlane.xlu0 %4811
        %v4813 = vsel %vm834, %v4741, 0.0
        %4814 = vadd.xlane.f32.xlu0 %v4813
        %v4815 = vpop.xlane.xlu0 %4814
        %v4816 = vsel %vm834, %v4743, 0.0
        %4817 = vadd.xlane.f32.xlu0 %v4816
        %v4818 = vpop.xlane.xlu0 %4817
        %v4819 = vsel %vm834, %v4745, 0.0
        %4820 = vadd.xlane.f32.xlu0 %v4819
        %v4821 = vpop.xlane.xlu0 %4820
        %v4822 = vsel %vm834, %v4747, 0.0
        %4823 = vadd.xlane.f32.xlu0 %v4822
        %v4824 = vpop.xlane.xlu0 %4823
        %v4825 = vsel %vm834, %v4749, 0.0
        %4826 = vadd.xlane.f32.xlu0 %v4825
        %v4827 = vpop.xlane.xlu0 %4826
        %v4828 = vsel %vm834, %v4751, 0.0
        %4829 = vadd.xlane.f32.xlu0 %v4828
        %v4830 = vpop.xlane.xlu0 %4829
        %v4831 = vsel %vm834, %v4753, 0.0
        %4832 = vadd.xlane.f32.xlu0 %v4831
        %v4833 = vpop.xlane.xlu0 %4832
        %v4834 = vsel %vm834, %v4755, 0.0
        %4835 = vadd.xlane.f32.xlu0 %v4834
        %v4836 = vpop.xlane.xlu0 %4835
        %v4837 = vsel %vm834, %v4757, 0.0
        %4838 = vadd.xlane.f32.xlu0 %v4837
        %v4839 = vpop.xlane.xlu0 %4838
        %v4840 = vsel %vm834, %v4759, 0.0
        %4841 = vadd.xlane.f32.xlu0 %v4840
        %v4842 = vpop.xlane.xlu0 %4841
        %v4843 = vsel %vm834, %v4761, 0.0
        %4844 = vadd.xlane.f32.xlu0 %v4843
        %v4845 = vpop.xlane.xlu0 %4844
        %v4846 = vsel %vm834, %v4763, 0.0
        %4847 = vadd.xlane.f32.xlu0 %v4846
        %v4848 = vpop.xlane.xlu0 %4847
        %v4849 = vsel %vm834, %v4765, 0.0
        %4850 = vadd.xlane.f32.xlu0 %v4849
        %v4851 = vpop.xlane.xlu0 %4850
        %v4852 = vsel %vm834, %v4767, 0.0
        %4853 = vadd.xlane.f32.xlu0 %v4852
        %v4854 = vpop.xlane.xlu0 %4853
        %v4855 = vsel %vm834, %v4769, 0.0
        %4856 = vadd.xlane.f32.xlu0 %v4855
        %v4857 = vpop.xlane.xlu0 %4856
        %v4858 = vsel %vm834, %v4771, 0.0
        %4859 = vadd.xlane.f32.xlu0 %v4858
        %v4860 = vpop.xlane.xlu0 %4859
        %v4861 = vsel %vm834, %v4773, 0.0
        %4862 = vadd.xlane.f32.xlu0 %v4861
        %v4863 = vpop.xlane.xlu0 %4862
        %v4864 = vsel %vm834, %v4775, 0.0
        %4865 = vadd.xlane.f32.xlu0 %v4864
        %v4866 = vpop.xlane.xlu0 %4865
        %v4867 = vsel %vm834, %v4777, 0.0
        %4868 = vadd.xlane.f32.xlu0 %v4867
        %v4869 = vpop.xlane.xlu0 %4868
        %v4870 = vsel %vm834, %v4779, 0.0
        %4871 = vadd.xlane.f32.xlu0 %v4870
        %v4872 = vpop.xlane.xlu0 %4871
        %v4873 = vsel %vm834, %v4781, 0.0
        %4874 = vadd.xlane.f32.xlu0 %v4873
        %v4875 = vpop.xlane.xlu0 %4874
        %v4876 = vsel %vm834, %v4783, 0.0
        %4877 = vadd.xlane.f32.xlu0 %v4876
        %v4878 = vpop.xlane.xlu0 %4877
        %v4879 = vsel %vm834, %v4785, 0.0
        %4880 = vadd.xlane.f32.xlu0 %v4879
        %v4881 = vpop.xlane.xlu0 %4880
        %v4882 = vrcp.pop %v4788
        %v4883 = vrcp.pop %v4791
        %v4884 = vrcp.pop %v4794
        %v4885 = vrcp.pop %v4797
        %v4886 = vrcp.pop %v4800
        %v4887 = vrcp.pop %v4803
        %v4888 = vrcp.pop %v4806
        %v4889 = vrcp.pop %v4809
        %v4890 = vrcp.pop %v4812
        %v4891 = vrcp.pop %v4815
        %v4892 = vrcp.pop %v4818
        %v4893 = vrcp.pop %v4821
        %v4894 = vrcp.pop %v4824
        %v4895 = vrcp.pop %v4827
        %v4896 = vrcp.pop %v4830
        %v4897 = vrcp.pop %v4833
        %v4898 = vrcp.pop %v4836
        %v4899 = vrcp.pop %v4839
        %v4900 = vrcp.pop %v4842
        %v4901 = vrcp.pop %v4845
        %v4902 = vrcp.pop %v4848
        %v4903 = vrcp.pop %v4851
        %v4904 = vrcp.pop %v4854
        %v4905 = vrcp.pop %v4857
        %v4906 = vrcp.pop %v4860
        %v4907 = vrcp.pop %v4863
        %v4908 = vrcp.pop %v4866
        %v4909 = vrcp.pop %v4869
        %v4910 = vrcp.pop %v4872
        %v4911 = vrcp.pop %v4875
        %v4912 = vrcp.pop %v4878
        %v4913 = vrcp.pop %v4881
        %v4914 = vmul.f32 %v4723, %v4882
        %v4915 = vmul.f32 %v4725, %v4883
        %v4916 = vmul.f32 %v4727, %v4884
        %v4917 = vmul.f32 %v4729, %v4885
        %v4918 = vmul.f32 %v4731, %v4886
        %v4919 = vmul.f32 %v4733, %v4887
        %v4920 = vmul.f32 %v4735, %v4888
        %v4921 = vmul.f32 %v4737, %v4889
        %v4922 = vmul.f32 %v4739, %v4890
        %v4923 = vmul.f32 %v4741, %v4891
        %v4924 = vmul.f32 %v4743, %v4892
        %v4925 = vmul.f32 %v4745, %v4893
        %v4926 = vmul.f32 %v4747, %v4894
        %v4927 = vmul.f32 %v4749, %v4895
        %v4928 = vmul.f32 %v4751, %v4896
        %v4929 = vmul.f32 %v4753, %v4897
        %v4930 = vmul.f32 %v4755, %v4898
        %v4931 = vmul.f32 %v4757, %v4899
        %v4932 = vmul.f32 %v4759, %v4900
        %v4933 = vmul.f32 %v4761, %v4901
        %v4934 = vmul.f32 %v4763, %v4902
        %v4935 = vmul.f32 %v4765, %v4903
        %v4936 = vmul.f32 %v4767, %v4904
        %v4937 = vmul.f32 %v4769, %v4905
        %v4938 = vmul.f32 %v4771, %v4906
        %v4939 = vmul.f32 %v4773, %v4907
        %v4940 = vmul.f32 %v4775, %v4908
        %v4941 = vmul.f32 %v4777, %v4909
        %v4942 = vmul.f32 %v4779, %v4910
        %v4943 = vmul.f32 %v4781, %v4911
        %v4944 = vmul.f32 %v4783, %v4912
        %v4945 = vmul.f32 %v4785, %v4913
        %v4946 = vpack.c.bf16 %v4915, %v4914
        %v4947 = vpack.c.bf16 %v4917, %v4916
        %v4948 = vpack.c.bf16 %v4919, %v4918
        %v4949 = vpack.c.bf16 %v4921, %v4920
        %v4950 = vpack.c.bf16 %v4923, %v4922
        %v4951 = vpack.c.bf16 %v4925, %v4924
        %v4952 = vpack.c.bf16 %v4927, %v4926
        %v4953 = vpack.c.bf16 %v4929, %v4928
        %v4954 = vpack.c.bf16 %v4931, %v4930
        %v4955 = vpack.c.bf16 %v4933, %v4932
        %v4956 = vpack.c.bf16 %v4935, %v4934
        %v4957 = vpack.c.bf16 %v4937, %v4936
        %v4958 = vpack.c.bf16 %v4939, %v4938
        %v4959 = vpack.c.bf16 %v4941, %v4940
        %v4960 = vpack.c.bf16 %v4943, %v4942
        %v4961 = vpack.c.bf16 %v4945, %v4944
        %v4963 = vsel %vm834, %v4946, 0
        %v4966 = vsel %vm834, %v4947, 0
        %v4969 = vsel %vm834, %v4948, 0
        %v4972 = vsel %vm834, %v4949, 0
        %v4975 = vsel %vm834, %v4950, 0
        %v4978 = vsel %vm834, %v4951, 0
        %v4981 = vsel %vm834, %v4952, 0
        %v4984 = vsel %vm834, %v4953, 0
        %v4987 = vsel %vm834, %v4954, 0
        %v4990 = vsel %vm834, %v4955, 0
        %v4993 = vsel %vm834, %v4956, 0
        %v4996 = vsel %vm834, %v4957, 0
        %v4999 = vsel %vm834, %v4958, 0
        %v5002 = vsel %vm834, %v4959, 0
        %v5005 = vsel %vm834, %v4960, 0
        %v5008 = vsel %vm834, %v4961, 0
        %5010 = vmatprep.subr.bf16.mxu0 0
        %5011 = vmatpush1.bf16.msra.mxu0 %v3975
        %5012 = vmatprep.subr.bf16.mxu0 0
        %5013 = vmatpush1.bf16.msra.mxu0 %v3977
        %5014 = vmatprep.subr.bf16.mxu0 0
        %5015 = vmatpush1.bf16.msra.mxu0 %v3979
        %5016 = vmatprep.subr.bf16.mxu0 0
        %5017 = vmatpush1.bf16.msra.mxu0 %v3981
        %5018 = vmatprep.subr.bf16.mxu0 0
        %5019 = vmatpush1.bf16.msra.mxu0 0
        %5020 = vmatprep.subr.bf16.mxu0 0
        %5021 = vmatpush1.bf16.msra.mxu0 0
        %5022 = vmatprep.subr.bf16.mxu0 0
        %5023 = vmatpush1.bf16.msra.mxu0 0
        %5024 = vmatprep.subr.bf16.mxu0 0
        %5025 = vmatpush1.bf16.msra.mxu0 0
        %5026 = vmatprep.subr.bf16.mxu0 0
        %5027 = vmatpush1.bf16.msra.mxu0 0
        %5028 = vmatprep.subr.bf16.mxu0 0
        %5029 = vmatpush1.bf16.msra.mxu0 0
        %5030 = vmatprep.subr.bf16.mxu0 0
        %5031 = vmatpush1.bf16.msra.mxu0 0
        %5032 = vmatprep.subr.bf16.mxu0 0
        %5033 = vmatpush1.bf16.msra.mxu0 0
        %5034 = vmatprep.subr.bf16.mxu0 0
        %5035 = vmatpush1.bf16.msra.mxu0 0
        %5036 = vmatprep.subr.bf16.mxu0 0
        %5037 = vmatpush1.bf16.msra.mxu0 0
        %5038 = vmatprep.subr.bf16.mxu0 0
        %5039 = vmatpush1.bf16.msra.mxu0 0
        %5040 = vmatprep.subr.bf16.mxu0 0
        %5041 = vmatpush1.bf16.msra.mxu0 0
        %5042 = vmatprep.mubr.bf16.mxu0 0
        %5043 = vmatmul.mubr.bf16.gmra.mrb[0].mxu0 %v4963
        %v5044 = vpop.f32.mrb[0].mxu0
        %v5045 = vadd.f32 0.0, %v5044
        %v5046 = vpop.f32.mrb[0].mxu0
        %v5047 = vpop.f32.mrb[0].mxu0
        %v5048 = vadd.f32 0.0, %v5047
        %v5049 = vpop.f32.mrb[0].mxu0
        %5050 = vmatprep.mubr.bf16.mxu0 0
        %5051 = vmatmul.mubr.bf16.gmra.mrb[0].mxu0 %v4966
        %v5052 = vpop.f32.mrb[0].mxu0
        %v5053 = vadd.f32 0.0, %v5052
        %v5054 = vpop.f32.mrb[0].mxu0
        %v5055 = vpop.f32.mrb[0].mxu0
        %v5056 = vadd.f32 0.0, %v5055
        %v5057 = vpop.f32.mrb[0].mxu0
        %5058 = vmatprep.mubr.bf16.mxu0 0
        %5059 = vmatmul.mubr.bf16.gmra.mrb[0].mxu0 %v4969
        %v5060 = vpop.f32.mrb[0].mxu0
        %v5061 = vadd.f32 0.0, %v5060
        %v5062 = vpop.f32.mrb[0].mxu0
        %v5063 = vpop.f32.mrb[0].mxu0
        %v5064 = vadd.f32 0.0, %v5063
        %v5065 = vpop.f32.mrb[0].mxu0
        %5066 = vmatprep.mubr.bf16.mxu0 0
        %5067 = vmatmul.mubr.bf16.gmra.mrb[0].mxu0 %v4972
        %v5068 = vpop.f32.mrb[0].mxu0
        %v5069 = vadd.f32 0.0, %v5068
        %v5070 = vpop.f32.mrb[0].mxu0
        %v5071 = vpop.f32.mrb[0].mxu0
        %v5072 = vadd.f32 0.0, %v5071
        %v5073 = vpop.f32.mrb[0].mxu0
        %5074 = vmatprep.mubr.bf16.mxu0 0
        %5075 = vmatmul.mubr.bf16.gmra.mrb[0].mxu0 %v4975
        %v5076 = vpop.f32.mrb[0].mxu0
        %v5077 = vadd.f32 0.0, %v5076
        %v5078 = vpop.f32.mrb[0].mxu0
        %v5079 = vpop.f32.mrb[0].mxu0
        %v5080 = vadd.f32 0.0, %v5079
        %v5081 = vpop.f32.mrb[0].mxu0
        %5082 = vmatprep.mubr.bf16.mxu0 0
        %5083 = vmatmul.mubr.bf16.gmra.mrb[0].mxu0 %v4978
        %v5084 = vpop.f32.mrb[0].mxu0
        %v5085 = vadd.f32 0.0, %v5084
        %v5086 = vpop.f32.mrb[0].mxu0
        %v5087 = vpop.f32.mrb[0].mxu0
        %v5088 = vadd.f32 0.0, %v5087
        %v5089 = vpop.f32.mrb[0].mxu0
        %5090 = vmatprep.mubr.bf16.mxu0 0
        %5091 = vmatmul.mubr.bf16.gmra.mrb[0].mxu0 %v4981
        %v5092 = vpop.f32.mrb[0].mxu0
        %v5093 = vadd.f32 0.0, %v5092
        %v5094 = vpop.f32.mrb[0].mxu0
        %v5095 = vpop.f32.mrb[0].mxu0
        %v5096 = vadd.f32 0.0, %v5095
        %v5097 = vpop.f32.mrb[0].mxu0
        %5098 = vmatprep.mubr.bf16.mxu0 0
        %5099 = vmatmul.mubr.bf16.gmra.mrb[0].mxu0 %v4984
        %v5100 = vpop.f32.mrb[0].mxu0
        %v5101 = vadd.f32 0.0, %v5100
        %v5102 = vpop.f32.mrb[0].mxu0
        %v5103 = vpop.f32.mrb[0].mxu0
        %v5104 = vadd.f32 0.0, %v5103
        %v5105 = vpop.f32.mrb[0].mxu0
        %5106 = vmatprep.mubr.bf16.mxu0 0
        %5107 = vmatmul.mubr.bf16.gmra.mrb[0].mxu0 %v4987
        %v5108 = vpop.f32.mrb[0].mxu0
        %v5109 = vadd.f32 0.0, %v5108
        %v5110 = vpop.f32.mrb[0].mxu0
        %v5111 = vpop.f32.mrb[0].mxu0
        %v5112 = vadd.f32 0.0, %v5111
        %v5113 = vpop.f32.mrb[0].mxu0
        %5114 = vmatprep.mubr.bf16.mxu0 0
        %5115 = vmatmul.mubr.bf16.gmra.mrb[0].mxu0 %v4990
        %v5116 = vpop.f32.mrb[0].mxu0
        %v5117 = vadd.f32 0.0, %v5116
        %v5118 = vpop.f32.mrb[0].mxu0
        %v5119 = vpop.f32.mrb[0].mxu0
        %v5120 = vadd.f32 0.0, %v5119
        %v5121 = vpop.f32.mrb[0].mxu0
        %5122 = vmatprep.mubr.bf16.mxu0 0
        %5123 = vmatmul.mubr.bf16.gmra.mrb[0].mxu0 %v4993
        %v5124 = vpop.f32.mrb[0].mxu0
        %v5125 = vadd.f32 0.0, %v5124
        %v5126 = vpop.f32.mrb[0].mxu0
        %v5127 = vpop.f32.mrb[0].mxu0
        %v5128 = vadd.f32 0.0, %v5127
        %v5129 = vpop.f32.mrb[0].mxu0
        %5130 = vmatprep.mubr.bf16.mxu0 0
        %5131 = vmatmul.mubr.bf16.gmra.mrb[0].mxu0 %v4996
        %v5132 = vpop.f32.mrb[0].mxu0
        %v5133 = vadd.f32 0.0, %v5132
        %v5134 = vpop.f32.mrb[0].mxu0
        %v5135 = vpop.f32.mrb[0].mxu0
        %v5136 = vadd.f32 0.0, %v5135
        %v5137 = vpop.f32.mrb[0].mxu0
        %5138 = vmatprep.mubr.bf16.mxu0 0
        %5139 = vmatmul.mubr.bf16.gmra.mrb[0].mxu0 %v4999
        %v5140 = vpop.f32.mrb[0].mxu0
        %v5141 = vadd.f32 0.0, %v5140
        %v5142 = vpop.f32.mrb[0].mxu0
        %v5143 = vpop.f32.mrb[0].mxu0
        %v5144 = vadd.f32 0.0, %v5143
        %v5145 = vpop.f32.mrb[0].mxu0
        %5146 = vmatprep.mubr.bf16.mxu0 0
        %5147 = vmatmul.mubr.bf16.gmra.mrb[0].mxu0 %v5002
        %v5148 = vpop.f32.mrb[0].mxu0
        %v5149 = vadd.f32 0.0, %v5148
        %v5150 = vpop.f32.mrb[0].mxu0
        %v5151 = vpop.f32.mrb[0].mxu0
        %v5152 = vadd.f32 0.0, %v5151
        %v5153 = vpop.f32.mrb[0].mxu0
        %5154 = vmatprep.mubr.bf16.mxu0 0
        %5155 = vmatmul.mubr.bf16.gmra.mrb[0].mxu0 %v5005
        %v5156 = vpop.f32.mrb[0].mxu0
        %v5157 = vadd.f32 0.0, %v5156
        %v5158 = vpop.f32.mrb[0].mxu0
        %v5159 = vpop.f32.mrb[0].mxu0
        %v5160 = vadd.f32 0.0, %v5159
        %v5161 = vpop.f32.mrb[0].mxu0
        %5162 = vmatprep.mubr.bf16.mxu0 0
        %5163 = vmatmul.mubr.bf16.gmra.mrb[0].mxu0 %v5008
        %v5164 = vpop.f32.mrb[0].mxu0
        %v5165 = vadd.f32 0.0, %v5164
        %v5166 = vpop.f32.mrb[0].mxu0
        %v5167 = vpop.f32.mrb[0].mxu0
        %v5168 = vadd.f32 0.0, %v5167
        %v5169 = vpop.f32.mrb[0].mxu0
        %5170 = vdwg.mxu0
        %v5171 = vmul.f32 %v5045, %v1166
        %v5172 = vmul.f32 %v5048, %v1167
        %v5173 = vmul.f32 %v5053, %v1168
        %v5174 = vmul.f32 %v5056, %v1169
        %v5175 = vmul.f32 %v5061, %v1170
        %v5176 = vmul.f32 %v5064, %v1171
        %v5177 = vmul.f32 %v5069, %v1172
        %v5178 = vmul.f32 %v5072, %v1173
        %v5179 = vmul.f32 %v5077, %v1174
        %v5180 = vmul.f32 %v5080, %v1175
        %v5181 = vmul.f32 %v5085, %v1176
        %v5182 = vmul.f32 %v5088, %v1177
        %v5183 = vmul.f32 %v5093, %v1178
        %v5184 = vmul.f32 %v5096, %v1179
        %v5185 = vmul.f32 %v5101, %v1180
        %v5186 = vmul.f32 %v5104, %v1181
        %v5187 = vmul.f32 %v5109, %v1182
        %v5188 = vmul.f32 %v5112, %v1183
        %v5189 = vmul.f32 %v5117, %v1184
        %v5190 = vmul.f32 %v5120, %v1185
        %v5191 = vmul.f32 %v5125, %v1186
        %v5192 = vmul.f32 %v5128, %v1187
        %v5193 = vmul.f32 %v5133, %v1188
        %v5194 = vmul.f32 %v5136, %v1189
        %v5195 = vmul.f32 %v5141, %v1190
        %v5196 = vmul.f32 %v5144, %v1191
        %v5197 = vmul.f32 %v5149, %v1192
        %v5198 = vmul.f32 %v5152, %v1193
        %v5199 = vmul.f32 %v5157, %v1194
        %v5200 = vmul.f32 %v5160, %v1195
        %v5201 = vmul.f32 %v5165, %v1196
        %v5202 = vmul.f32 %v5168, %v1197
        %v5203 = vadd.f32 %v4309, %v5171
        %v5204 = vadd.f32 %v4310, %v5172
        %v5205 = vadd.f32 %v4311, %v5173
        %v5206 = vadd.f32 %v4312, %v5174
        %v5207 = vadd.f32 %v4313, %v5175
        %v5208 = vadd.f32 %v4314, %v5176
        %v5209 = vadd.f32 %v4315, %v5177
        %v5210 = vadd.f32 %v4316, %v5178
        %v5211 = vadd.f32 %v5203, %v5179
        %v5212 = vadd.f32 %v5204, %v5180
        %v5213 = vadd.f32 %v5205, %v5181
        %v5214 = vadd.f32 %v5206, %v5182
        %v5215 = vadd.f32 %v5207, %v5183
        %v5216 = vadd.f32 %v5208, %v5184
        %v5217 = vadd.f32 %v5209, %v5185
        %v5218 = vadd.f32 %v5210, %v5186
        %v5219 = vadd.f32 %v5211, %v5187
        %v5220 = vadd.f32 %v5212, %v5188
        %v5221 = vadd.f32 %v5213, %v5189
        %v5222 = vadd.f32 %v5214, %v5190
        %v5223 = vadd.f32 %v5215, %v5191
        %v5224 = vadd.f32 %v5216, %v5192
        %v5225 = vadd.f32 %v5217, %v5193
        %v5226 = vadd.f32 %v5218, %v5194
        %v5227 = vadd.f32 %v5219, %v5195
        %v5228 = vadd.f32 %v5220, %v5196
        %v5229 = vadd.f32 %v5221, %v5197
        %v5230 = vadd.f32 %v5222, %v5198
        %v5231 = vadd.f32 %v5223, %v5199
        %v5232 = vadd.f32 %v5224, %v5200
        %v5233 = vadd.f32 %v5225, %v5201
        %v5234 = vadd.f32 %v5226, %v5202
        %v5235 = vld [vmem:[%s3518 + $0x30] sm:$0xf]
        %v5236 = vld [vmem:[%s3518 + $0x38] sm:$0xf]
        %v5237 = vld [vmem:[%s3518 + $0x40] sm:$0xf]
        %v5238 = vpack.c.bf16 %v5228, %v5227
        %v5239 = vpack.c.bf16 %v5230, %v5229
        %v5240 = vpack.c.bf16 %v5232, %v5231
        %v5241 = vpack.c.bf16 %v5234, %v5233
        %v5242 = vld [vmem:[%s3522 + $0x6] ss:$0 sm:$0xff]
        %v5246 = vunpack.c.l.b16 %v5235
        %v5247 = vunpack.c.l.b16 %v5236
        %v5248 = vunpack.c.l.b16 %v5237
        %v5249 = vpack.c.b16 %v5247, %v5246
        %v5250 = vpack.c.b16 %v5248, %v5248
        %v5253 = vsel %vm393, %v5238, 0
        %v5256 = vsel %vm393, %v5239, 0
        %v5259 = vsel %vm393, %v5240, 0
        %v5262 = vsel %vm393, %v5241, 0
        %v5265 = vsel %vm397, %v5250, 0
        %5267 = vmatprep.subr.bf16.mxu0 0
        %5268 = vmatpush1.bf16.msra.mxu0 %v5249
        %5269 = vmatprep.subr.bf16.mxu0 0
        %5270 = vmatpush1.bf16.msra.mxu0 %v5265
        %5271 = vmatprep.subr.bf16.mxu0 0
        %5272 = vmatpush1.bf16.msra.mxu0 0
        %5273 = vmatprep.subr.bf16.mxu0 0
        %5274 = vmatpush1.bf16.msra.mxu0 0
        %5275 = vmatprep.subr.bf16.mxu0 0
        %5276 = vmatpush1.bf16.msra.mxu0 0
        %5277 = vmatprep.subr.bf16.mxu0 0
        %5278 = vmatpush1.bf16.msra.mxu0 0
        %5279 = vmatprep.subr.bf16.mxu0 0
        %5280 = vmatpush1.bf16.msra.mxu0 0
        %5281 = vmatprep.subr.bf16.mxu0 0
        %5282 = vmatpush1.bf16.msra.mxu0 0
        %5283 = vmatprep.subr.bf16.mxu0 0
        %5284 = vmatpush1.bf16.msra.mxu0 0
        %5285 = vmatprep.subr.bf16.mxu0 0
        %5286 = vmatpush1.bf16.msra.mxu0 0
        %5287 = vmatprep.subr.bf16.mxu0 0
        %5288 = vmatpush1.bf16.msra.mxu0 0
        %5289 = vmatprep.subr.bf16.mxu0 0
        %5290 = vmatpush1.bf16.msra.mxu0 0
        %5291 = vmatprep.subr.bf16.mxu0 0
        %5292 = vmatpush1.bf16.msra.mxu0 0
        %5293 = vmatprep.subr.bf16.mxu0 0
        %5294 = vmatpush1.bf16.msra.mxu0 0
        %5295 = vmatprep.subr.bf16.mxu0 0
        %5296 = vmatpush1.bf16.msra.mxu0 0
        %5297 = vmatprep.subr.bf16.mxu0 0
        %5298 = vmatpush1.bf16.msra.mxu0 0
        %5299 = vmatprep.mubr.bf16.mxu0 0
        %5300 = vmatmul.mubr.bf16.gmra.mrb[0].mxu0 %v5253
        %v5301 = vpop.f32.mrb[0].mxu0
        %v5302 = vadd.f32 %v5242, %v5301
        %v5303 = vpop.f32.mrb[0].mxu0
        %v5304 = vpop.f32.mrb[0].mxu0
        %v5305 = vadd.f32 %v5242, %v5304
        %v5306 = vpop.f32.mrb[0].mxu0
        %5307 = vmatprep.mubr.bf16.mxu0 0
        %5308 = vmatmul.mubr.bf16.gmra.mrb[0].mxu0 %v5256
        %v5309 = vpop.f32.mrb[0].mxu0
        %v5310 = vadd.f32 %v5242, %v5309
        %v5311 = vpop.f32.mrb[0].mxu0
        %v5312 = vpop.f32.mrb[0].mxu0
        %v5313 = vadd.f32 %v5242, %v5312
        %v5314 = vpop.f32.mrb[0].mxu0
        %5315 = vmatprep.mubr.bf16.mxu0 0
        %5316 = vmatmul.mubr.bf16.gmra.mrb[0].mxu0 %v5259
        %v5317 = vpop.f32.mrb[0].mxu0
        %v5318 = vadd.f32 %v5242, %v5317
        %v5319 = vpop.f32.mrb[0].mxu0
        %v5320 = vpop.f32.mrb[0].mxu0
        %v5321 = vadd.f32 %v5242, %v5320
        %v5322 = vpop.f32.mrb[0].mxu0
        %5323 = vmatprep.mubr.bf16.mxu0 0
        %5324 = vmatmul.mubr.bf16.gmra.mrb[0].mxu0 %v5262
        %v5325 = vpop.f32.mrb[0].mxu0
        %v5326 = vadd.f32 %v5242, %v5325
        %v5327 = vpop.f32.mrb[0].mxu0
        %v5328 = vpop.f32.mrb[0].mxu0
        %v5329 = vadd.f32 %v5242, %v5328
        %v5330 = vpop.f32.mrb[0].mxu0
        %5331 = vdwg.mxu0
        %v5332 = vld [vmem:[%s3518 + $0x48] sm:$0xf]
        %v5333 = vld [vmem:[%s3518 + $0x50] sm:$0xf]
        %v5334 = vld [vmem:[%s3518 + $0x58] sm:$0xf]
        %v5335 = vpack.c.bf16 %v5305, %v5302
        %v5336 = vpack.c.bf16 %v5313, %v5310
        %v5337 = vpack.c.bf16 %v5321, %v5318
        %v5338 = vpack.c.bf16 %v5329, %v5326
        %v5342 = vunpack.c.l.b16 %v5332
        %v5343 = vunpack.c.l.b16 %v5333
        %v5344 = vunpack.c.l.b16 %v5334
        %v5345 = vpack.c.b16 %v5343, %v5342
        %v5346 = vpack.c.b16 %v5344, %v5344
        %v5349 = vsel %vm393, %v5335, 0
        %v5352 = vsel %vm393, %v5336, 0
        %v5355 = vsel %vm393, %v5337, 0
        %v5358 = vsel %vm393, %v5338, 0
        %v5361 = vsel %vm397, %v5346, 0
        %5363 = vmatprep.subr.bf16.mxu0 0
        %5364 = vmatpush1.bf16.msra.mxu0 %v5345
        %5365 = vmatprep.subr.bf16.mxu0 0
        %5366 = vmatpush1.bf16.msra.mxu0 %v5361
        %5367 = vmatprep.subr.bf16.mxu0 0
        %5368 = vmatpush1.bf16.msra.mxu0 0
        %5369 = vmatprep.subr.bf16.mxu0 0
        %5370 = vmatpush1.bf16.msra.mxu0 0
        %5371 = vmatprep.subr.bf16.mxu0 0
        %5372 = vmatpush1.bf16.msra.mxu0 0
        %5373 = vmatprep.subr.bf16.mxu0 0
        %5374 = vmatpush1.bf16.msra.mxu0 0
        %5375 = vmatprep.subr.bf16.mxu0 0
        %5376 = vmatpush1.bf16.msra.mxu0 0
        %5377 = vmatprep.subr.bf16.mxu0 0
        %5378 = vmatpush1.bf16.msra.mxu0 0
        %5379 = vmatprep.subr.bf16.mxu0 0
        %5380 = vmatpush1.bf16.msra.mxu0 0
        %5381 = vmatprep.subr.bf16.mxu0 0
        %5382 = vmatpush1.bf16.msra.mxu0 0
        %5383 = vmatprep.subr.bf16.mxu0 0
        %5384 = vmatpush1.bf16.msra.mxu0 0
        %5385 = vmatprep.subr.bf16.mxu0 0
        %5386 = vmatpush1.bf16.msra.mxu0 0
        %5387 = vmatprep.subr.bf16.mxu0 0
        %5388 = vmatpush1.bf16.msra.mxu0 0
        %5389 = vmatprep.subr.bf16.mxu0 0
        %5390 = vmatpush1.bf16.msra.mxu0 0
        %5391 = vmatprep.subr.bf16.mxu0 0
        %5392 = vmatpush1.bf16.msra.mxu0 0
        %5393 = vmatprep.subr.bf16.mxu0 0
        %5394 = vmatpush1.bf16.msra.mxu0 0
        %5395 = vmatprep.mubr.bf16.mxu0 0
        %5396 = vmatmul.mubr.bf16.gmra.mrb[0].mxu0 %v5349
        %v5397 = vpop.f32.mrb[0].mxu0
        %v5398 = vadd.f32 0.0, %v5397
        %v5399 = vpop.f32.mrb[0].mxu0
        %v5400 = vpop.f32.mrb[0].mxu0
        %v5401 = vadd.f32 0.0, %v5400
        %v5402 = vpop.f32.mrb[0].mxu0
        %5403 = vmatprep.mubr.bf16.mxu0 0
        %5404 = vmatmul.mubr.bf16.gmra.mrb[0].mxu0 %v5352
        %v5405 = vpop.f32.mrb[0].mxu0
        %v5406 = vadd.f32 0.0, %v5405
        %v5407 = vpop.f32.mrb[0].mxu0
        %v5408 = vpop.f32.mrb[0].mxu0
        %v5409 = vadd.f32 0.0, %v5408
        %v5410 = vpop.f32.mrb[0].mxu0
        %5411 = vmatprep.mubr.bf16.mxu0 0
        %5412 = vmatmul.mubr.bf16.gmra.mrb[0].mxu0 %v5355
        %v5413 = vpop.f32.mrb[0].mxu0
        %v5414 = vadd.f32 0.0, %v5413
        %v5415 = vpop.f32.mrb[0].mxu0
        %v5416 = vpop.f32.mrb[0].mxu0
        %v5417 = vadd.f32 0.0, %v5416
        %v5418 = vpop.f32.mrb[0].mxu0
        %5419 = vmatprep.mubr.bf16.mxu0 0
        %5420 = vmatmul.mubr.bf16.gmra.mrb[0].mxu0 %v5358
        %v5421 = vpop.f32.mrb[0].mxu0
        %v5422 = vadd.f32 0.0, %v5421
        %v5423 = vpop.f32.mrb[0].mxu0
        %v5424 = vpop.f32.mrb[0].mxu0
        %v5425 = vadd.f32 0.0, %v5424
        %v5426 = vpop.f32.mrb[0].mxu0
        %5427 = vdwg.mxu0
        %v5428 = vmul.f32 %v5398, %v5398
        %v5429 = vmul.f32 %v5401, %v5401
        %v5430 = vmul.f32 %v5406, %v5406
        %v5431 = vmul.f32 %v5409, %v5409
        %v5432 = vmul.f32 %v5414, %v5414
        %v5433 = vmul.f32 %v5417, %v5417
        %v5434 = vmul.f32 %v5422, %v5422
        %v5435 = vmul.f32 %v5425, %v5425
        %5436 = vmatprep.subr.mxu0 0.0
        %5437 = vmatpush1.msra.mxu0 %v5428
        %5438 = vmatprep.subr.mxu0 0.0
        %5439 = vmatpush1.msra.mxu0 %v5429
        %5440 = vmatprep.subr.mxu0 0.0
        %5441 = vmatpush1.msra.mxu0 %v5430
        %5442 = vmatprep.subr.mxu0 0.0
        %5443 = vmatpush1.msra.mxu0 %v5431
        %5444 = vmatprep.subr.mxu0 0.0
        %5445 = vmatpush1.msra.mxu0 %v5432
        %5446 = vmatprep.subr.mxu0 0.0
        %5447 = vmatpush1.msra.mxu0 %v5433
        %5448 = vmatprep.subr.mxu0 0.0
        %5449 = vmatpush1.msra.mxu0 %v5434
        %5450 = vmatprep.subr.mxu0 0.0
        %5451 = vmatpush1.msra.mxu0 %v5435
        %5452 = vmatprep.subr.mxu0 0.0
        %5453 = vmatpush1.msra.mxu0 0.0
        %5454 = vmatprep.subr.mxu0 0.0
        %5455 = vmatpush1.msra.mxu0 0.0
        %5456 = vmatprep.subr.mxu0 0.0
        %5457 = vmatpush1.msra.mxu0 0.0
        %5458 = vmatprep.subr.mxu0 0.0
        %5459 = vmatpush1.msra.mxu0 0.0
        %5460 = vmatprep.subr.mxu0 0.0
        %5461 = vmatpush1.msra.mxu0 0.0
        %5462 = vmatprep.subr.mxu0 0.0
        %5463 = vmatpush1.msra.mxu0 0.0
        %5464 = vmatprep.subr.mxu0 0.0
        %5465 = vmatpush1.msra.mxu0 0.0
        %5466 = vmatprep.subr.mxu0 0.0
        %5467 = vmatpush1.msra.mxu0 0.0
        %5468 = vmatprep.subr.mxu0 0.0
        %5469 = vmatpush1.msra.mxu0 0.0
        %5470 = vmatprep.subr.mxu0 0.0
        %5471 = vmatpush1.msra.mxu0 0.0
        %5472 = vmatprep.subr.mxu0 0.0
        %5473 = vmatpush1.msra.mxu0 0.0
        %5474 = vmatprep.subr.mxu0 0.0
        %5475 = vmatpush1.msra.mxu0 0.0
        %5476 = vmatprep.subr.mxu0 0.0
        %5477 = vmatpush1.msra.mxu0 0.0
        %5478 = vmatprep.subr.mxu0 0.0
        %5479 = vmatpush1.msra.mxu0 0.0
        %5480 = vmatprep.subr.mxu0 0.0
        %5481 = vmatpush1.msra.mxu0 0.0
        %5482 = vmatprep.subr.mxu0 0.0
        %5483 = vmatpush1.msra.mxu0 0.0
        %5484 = vmatprep.subr.mxu0 0.0
        %5485 = vmatpush1.msra.mxu0 0.0
        %5486 = vmatprep.subr.mxu0 0.0
        %5487 = vmatpush1.msra.mxu0 0.0
        %5488 = vmatprep.subr.mxu0 0.0
        %5489 = vmatpush1.msra.mxu0 0.0
        %5490 = vmatprep.subr.mxu0 0.0
        %5491 = vmatpush1.msra.mxu0 0.0
        %5492 = vmatprep.subr.mxu0 0.0
        %5493 = vmatpush1.msra.mxu0 0.0
        %5494 = vmatprep.subr.mxu0 0.0
        %5495 = vmatpush1.msra.mxu0 0.0
        %5496 = vmatprep.subr.mxu0 0.0
        %5497 = vmatpush1.msra.mxu0 0.0
        %5498 = vmatprep.subr.mxu0 0.0
        %5499 = vmatpush1.msra.mxu0 0.0
        %5500 = vmatprep.mubr.f32.mxu0 0.0
        %5501 = vmatmul.mubr.f32.gmra.mrb[0].mxu0 %v2350
        %v5502 = vpop.f32.mrb[0].mxu0
        %v5503 = vadd.f32 0.0, %v5502
        %v5504 = vpop.f32.mrb[0].mxu0
        %5505 = vdwg.mxu0
        %v5506 = vmax.f32 %v5503, 1e-24
        %v5507 = vrsqrt.pop %v5506
        %v5508 = vlaneseq
        %v5509 = vshrl.u32 %v5508, 7
        %v5510 = vsub.s32 0, %v5509
        %v5511 = vrot.slane %v5507, %v5510
        %v5512 = vmul.f32 %v5398, %v5511
        %v5513 = vmul.f32 %v5401, %v5511
        %v5514 = vmul.f32 %v5406, %v5511
        %v5515 = vmul.f32 %v5409, %v5511
        %v5516 = vmul.f32 %v5414, %v5511
        %v5517 = vmul.f32 %v5417, %v5511
        %v5518 = vmul.f32 %v5422, %v5511
        %v5519 = vmul.f32 %v5425, %v5511
        %v5520 = vld [vmem:[%s3522 + $0x17] ss:$0 sm:$0xff]
        %v5521 = vmul.f32 %v5512, %v5520
        %v5522 = vmul.f32 %v5513, %v5520
        %v5523 = vmul.f32 %v5514, %v5520
        %v5524 = vmul.f32 %v5515, %v5520
        %v5525 = vmul.f32 %v5516, %v5520
        %v5526 = vmul.f32 %v5517, %v5520
        %v5527 = vmul.f32 %v5518, %v5520
        %v5528 = vmul.f32 %v5519, %v5520
        %5537 = vrot.lane.b32.xlu0 %v5428, 104
        %v5538 = vpop.permute.xlu0 %5537
        %5539 = vrot.lane.b32.xlu0 %v5429, 104
        %v5540 = vpop.permute.xlu0 %5539
        %5541 = vrot.lane.b32.xlu0 %v5430, 104
        %v5542 = vpop.permute.xlu0 %5541
        %5543 = vrot.lane.b32.xlu0 %v5431, 104
        %v5544 = vpop.permute.xlu0 %5543
        %5545 = vrot.lane.b32.xlu0 %v5432, 104
        %v5546 = vpop.permute.xlu0 %5545
        %5547 = vrot.lane.b32.xlu0 %v5433, 104
        %v5548 = vpop.permute.xlu0 %5547
        %5549 = vrot.lane.b32.xlu0 %v5434, 104
        %v5550 = vpop.permute.xlu0 %5549
        %5551 = vrot.lane.b32.xlu0 %v5435, 104
        %v5552 = vpop.permute.xlu0 %5551
        %5561 = vmatprep.subr.mxu0 0.0
        %5562 = vmatpush1.msra.mxu0 %v5538
        %5563 = vmatprep.subr.mxu0 0.0
        %5564 = vmatpush1.msra.mxu0 %v5540
        %5565 = vmatprep.subr.mxu0 0.0
        %5566 = vmatpush1.msra.mxu0 %v5542
        %5567 = vmatprep.subr.mxu0 0.0
        %5568 = vmatpush1.msra.mxu0 %v5544
        %5569 = vmatprep.subr.mxu0 0.0
        %5570 = vmatpush1.msra.mxu0 %v5546
        %5571 = vmatprep.subr.mxu0 0.0
        %5572 = vmatpush1.msra.mxu0 %v5548
        %5573 = vmatprep.subr.mxu0 0.0
        %5574 = vmatpush1.msra.mxu0 %v5550
        %5575 = vmatprep.subr.mxu0 0.0
        %5576 = vmatpush1.msra.mxu0 %v5552
        %5577 = vmatprep.subr.mxu0 0.0
        %5578 = vmatpush1.msra.mxu0 0.0
        %5579 = vmatprep.subr.mxu0 0.0
        %5580 = vmatpush1.msra.mxu0 0.0
        %5581 = vmatprep.subr.mxu0 0.0
        %5582 = vmatpush1.msra.mxu0 0.0
        %5583 = vmatprep.subr.mxu0 0.0
        %5584 = vmatpush1.msra.mxu0 0.0
        %5585 = vmatprep.subr.mxu0 0.0
        %5586 = vmatpush1.msra.mxu0 0.0
        %5587 = vmatprep.subr.mxu0 0.0
        %5588 = vmatpush1.msra.mxu0 0.0
        %5589 = vmatprep.subr.mxu0 0.0
        %5590 = vmatpush1.msra.mxu0 0.0
        %5591 = vmatprep.subr.mxu0 0.0
        %5592 = vmatpush1.msra.mxu0 0.0
        %5593 = vmatprep.subr.mxu0 0.0
        %5594 = vmatpush1.msra.mxu0 0.0
        %5595 = vmatprep.subr.mxu0 0.0
        %5596 = vmatpush1.msra.mxu0 0.0
        %5597 = vmatprep.subr.mxu0 0.0
        %5598 = vmatpush1.msra.mxu0 0.0
        %5599 = vmatprep.subr.mxu0 0.0
        %5600 = vmatpush1.msra.mxu0 0.0
        %5601 = vmatprep.subr.mxu0 0.0
        %5602 = vmatpush1.msra.mxu0 0.0
        %5603 = vmatprep.subr.mxu0 0.0
        %5604 = vmatpush1.msra.mxu0 0.0
        %5605 = vmatprep.subr.mxu0 0.0
        %5606 = vmatpush1.msra.mxu0 0.0
        %5607 = vmatprep.subr.mxu0 0.0
        %5608 = vmatpush1.msra.mxu0 0.0
        %5609 = vmatprep.subr.mxu0 0.0
        %5610 = vmatpush1.msra.mxu0 0.0
        %5611 = vmatprep.subr.mxu0 0.0
        %5612 = vmatpush1.msra.mxu0 0.0
        %5613 = vmatprep.subr.mxu0 0.0
        %5614 = vmatpush1.msra.mxu0 0.0
        %5615 = vmatprep.subr.mxu0 0.0
        %5616 = vmatpush1.msra.mxu0 0.0
        %5617 = vmatprep.subr.mxu0 0.0
        %5618 = vmatpush1.msra.mxu0 0.0
        %5619 = vmatprep.subr.mxu0 0.0
        %5620 = vmatpush1.msra.mxu0 0.0
        %5621 = vmatprep.subr.mxu0 0.0
        %5622 = vmatpush1.msra.mxu0 0.0
        %5623 = vmatprep.subr.mxu0 0.0
        %5624 = vmatpush1.msra.mxu0 0.0
        %5625 = vmatprep.mubr.f32.mxu0 0.0
        %5626 = vmatmul.mubr.f32.gmra.mrb[0].mxu0 %v2350
        %v5627 = vpop.f32.mrb[0].mxu0
        %v5628 = vadd.f32 0.0, %v5627
        %v5629 = vpop.f32.mrb[0].mxu0
        %5630 = vdwg.mxu0
        %v5631 = vmax.f32 %v5628, 1e-24
        %v5632 = vrsqrt.pop %v5631
        %v5633 = vlaneseq
        %v5634 = vshrl.u32 %v5633, 7
        %v5635 = vsub.s32 0, %v5634
        %v5636 = vrot.slane %v5632, %v5635
        %5638 = vrot.lane.b32.xlu0 %v5636, 24
        %v5639 = vpop.permute.xlu0 %5638
        %v5641 = vmul.f32 %v5398, %v5639
        %v5642 = vmul.f32 %v5401, %v5639
        %v5643 = vmul.f32 %v5406, %v5639
        %v5644 = vmul.f32 %v5409, %v5639
        %v5645 = vmul.f32 %v5414, %v5639
        %v5646 = vmul.f32 %v5417, %v5639
        %v5647 = vmul.f32 %v5422, %v5639
        %v5648 = vmul.f32 %v5425, %v5639
        %v5649 = vpack.c.bf16 %v5522, %v5521
        %v5650 = vpack.c.bf16 %v5524, %v5523
        %v5651 = vpack.c.bf16 %v5526, %v5525
        %v5652 = vpack.c.bf16 %v5528, %v5527
        %v5653 = vpack.c.bf16 %v5642, %v5641
        %v5654 = vpack.c.bf16 %v5644, %v5643
        %v5655 = vpack.c.bf16 %v5646, %v5645
        %v5656 = vpack.c.bf16 %v5648, %v5647
        %5657 = vxpose.xlu0.c.b16.start [1/8] %v5649, 128
        %5658 = vxpose.xlu0.c.b16.cont [2/8] %v5650, 128
        %5659 = vxpose.xlu0.c.b16.cont [3/8] %v5651, 128
        %5660 = vxpose.xlu0.c.b16.cont [4/8] %v5652, 128
        %5661 = vxpose.xlu0.c.b16.cont [5/8] 0, 128
        %5662 = vxpose.xlu0.c.b16.cont [6/8] 0, 128
        %5663 = vxpose.xlu0.c.b16.cont [7/8] 0, 128
        %5664 = vxpose.xlu0.c.b16.end [8/8] 0, 128
        %v5665 = vpop.trf.xlu0
        %v5666 = vpop.trf.xlu0
        %v5667 = vpop.trf.xlu0
        %v5668 = vpop.trf.xlu0
        %v5669 = vpop.trf.xlu0
        %v5670 = vpop.trf.xlu0
        %v5671 = vpop.trf.xlu0
        %v5672 = vpop.trf.xlu0
        %5677 = vrot.lane.b32.xlu0 %v5653, 104
        %v5678 = vpop.permute.xlu0 %5677
        %5679 = vrot.lane.b32.xlu0 %v5654, 104
        %v5680 = vpop.permute.xlu0 %5679
        %5681 = vrot.lane.b32.xlu0 %v5655, 104
        %v5682 = vpop.permute.xlu0 %5681
        %5683 = vrot.lane.b32.xlu0 %v5656, 104
        %v5684 = vpop.permute.xlu0 %5683
        %v5690 = vsel %vm834, %v5665, 0
        %v5693 = vsel %vm834, %v5666, 0
        %5695 = vmatprep.subr.bf16.mxu0 0
        %5696 = vmatpush1.bf16.msra.mxu0 %v5678
        %5697 = vmatprep.subr.bf16.mxu0 0
        %5698 = vmatpush1.bf16.msra.mxu0 %v5680
        %5699 = vmatprep.subr.bf16.mxu0 0
        %5700 = vmatpush1.bf16.msra.mxu0 %v5682
        %5701 = vmatprep.subr.bf16.mxu0 0
        %5702 = vmatpush1.bf16.msra.mxu0 %v5684
        %5703 = vmatprep.subr.bf16.mxu0 0
        %5704 = vmatpush1.bf16.msra.mxu0 0
        %5705 = vmatprep.subr.bf16.mxu0 0
        %5706 = vmatpush1.bf16.msra.mxu0 0
        %5707 = vmatprep.subr.bf16.mxu0 0
        %5708 = vmatpush1.bf16.msra.mxu0 0
        %5709 = vmatprep.subr.bf16.mxu0 0
        %5710 = vmatpush1.bf16.msra.mxu0 0
        %5711 = vmatprep.subr.bf16.mxu0 0
        %5712 = vmatpush1.bf16.msra.mxu0 0
        %5713 = vmatprep.subr.bf16.mxu0 0
        %5714 = vmatpush1.bf16.msra.mxu0 0
        %5715 = vmatprep.subr.bf16.mxu0 0
        %5716 = vmatpush1.bf16.msra.mxu0 0
        %5717 = vmatprep.subr.bf16.mxu0 0
        %5718 = vmatpush1.bf16.msra.mxu0 0
        %5719 = vmatprep.subr.bf16.mxu0 0
        %5720 = vmatpush1.bf16.msra.mxu0 0
        %5721 = vmatprep.subr.bf16.mxu0 0
        %5722 = vmatpush1.bf16.msra.mxu0 0
        %5723 = vmatprep.subr.bf16.mxu0 0
        %5724 = vmatpush1.bf16.msra.mxu0 0
        %5725 = vmatprep.subr.bf16.mxu0 0
        %5726 = vmatpush1.bf16.msra.mxu0 0
        %5727 = vmatprep.mubr.bf16.mxu0 0
        %5728 = vmatmul.mubr.bf16.gmra.mrb[0].mxu0 %v5690
        %v5729 = vpop.f32.mrb[0].mxu0
        %v5730 = vadd.f32 %v2573, %v5729
        %v5731 = vpop.f32.mrb[0].mxu0
        %v5732 = vpop.f32.mrb[0].mxu0
        %v5733 = vadd.f32 %v2574, %v5732
        %v5734 = vpop.f32.mrb[0].mxu0
        %5735 = vmatprep.mubr.bf16.mxu0 0
        %5736 = vmatmul.mubr.bf16.gmra.mrb[0].mxu0 %v5693
        %v5737 = vpop.f32.mrb[0].mxu0
        %v5738 = vadd.f32 %v2575, %v5737
        %v5739 = vpop.f32.mrb[0].mxu0
        %v5740 = vpop.f32.mrb[0].mxu0
        %v5741 = vpop.f32.mrb[0].mxu0
        %5742 = vdwg.mxu0
        %v5743 = vsel %vm393, %v5730, -inf
        %5744 = vmax.xlane.f32.xlu0 %v5743
        %v5745 = vpop.xlane.xlu0 %5744
        %v5746 = vsel %vm393, %v5733, -inf
        %5747 = vmax.xlane.f32.xlu0 %v5746
        %v5748 = vpop.xlane.xlu0 %5747
        %v5749 = vsel %vm393, %v5738, -inf
        %5750 = vmax.xlane.f32.xlu0 %v5749
        %v5751 = vpop.xlane.xlu0 %5750
        %v5752 = vsub.f32 %v5730, %v5745
        %v5753 = vsub.f32 %v5733, %v5748
        %v5754 = vsub.f32 %v5738, %v5751
        %v5755 = vmul.f32 %v5752, 1.442695
        %v5756 = vpow.pop %v5755
        %v5757 = vmul.f32 %v5753, 1.442695
        %v5758 = vpow.pop %v5757
        %v5759 = vmul.f32 %v5754, 1.442695
        %v5760 = vpow.pop %v5759
        %v5761 = vsel %vm393, %v5756, 0.0
        %5762 = vadd.xlane.f32.xlu0 %v5761
        %v5763 = vpop.xlane.xlu0 %5762
        %v5764 = vsel %vm393, %v5758, 0.0
        %5765 = vadd.xlane.f32.xlu0 %v5764
        %v5766 = vpop.xlane.xlu0 %5765
        %v5767 = vsel %vm393, %v5760, 0.0
        %5768 = vadd.xlane.f32.xlu0 %v5767
        %v5769 = vpop.xlane.xlu0 %5768
        %v5770 = vrcp.pop %v5763
        %v5771 = vrcp.pop %v5766
        %v5772 = vrcp.pop %v5769
        %v5773 = vmul.f32 %v5756, %v5770
        %v5774 = vmul.f32 %v5758, %v5771
        %v5775 = vmul.f32 %v5760, %v5772
        %v5776 = vpack.c.bf16 %v5401, %v5398
        %v5777 = vpack.c.bf16 %v5409, %v5406
        %v5778 = vpack.c.bf16 %v5417, %v5414
        %v5779 = vpack.c.bf16 %v5425, %v5422
        %v5780 = vpack.c.bf16 %v5774, %v5773
        %v5781 = vpack.c.bf16 %v5775, %v5775
        %5786 = vrot.lane.b32.xlu0 %v5776, 80
        %v5787 = vpop.permute.xlu0 %5786
        %5788 = vrot.lane.b32.xlu0 %v5777, 80
        %v5789 = vpop.permute.xlu0 %5788
        %5790 = vrot.lane.b32.xlu0 %v5778, 80
        %v5791 = vpop.permute.xlu0 %5790
        %5792 = vrot.lane.b32.xlu0 %v5779, 80
        %v5793 = vpop.permute.xlu0 %5792
        %v5795 = vsel %vm393, %v5787, 0
        %v5798 = vsel %vm393, %v5789, 0
        %v5801 = vsel %vm393, %v5791, 0
        %v5804 = vsel %vm393, %v5793, 0
        %v5807 = vsel %vm393, %v5780, 0
        %v5810 = vsel %vm393, %v5781, 0
        %5812 = vmatprep.subr.bf16.mxu0 0
        %5813 = vmatpush1.bf16.xpose.msra.mxu0 %v5807
        %5814 = vmatprep.subr.bf16.mxu0 0
        %5815 = vmatpush1.bf16.xpose.msra.mxu0 %v5810
        %5816 = vmatprep.subr.bf16.mxu0 0
        %5817 = vmatpush1.bf16.xpose.msra.mxu0 0
        %5818 = vmatprep.subr.bf16.mxu0 0
        %5819 = vmatpush1.bf16.xpose.msra.mxu0 0
        %5820 = vmatprep.subr.bf16.mxu0 0
        %5821 = vmatpush1.bf16.xpose.msra.mxu0 0
        %5822 = vmatprep.subr.bf16.mxu0 0
        %5823 = vmatpush1.bf16.xpose.msra.mxu0 0
        %5824 = vmatprep.subr.bf16.mxu0 0
        %5825 = vmatpush1.bf16.xpose.msra.mxu0 0
        %5826 = vmatprep.subr.bf16.mxu0 0
        %5827 = vmatpush1.bf16.xpose.msra.mxu0 0
        %5828 = vmatprep.subr.bf16.mxu0 0
        %5829 = vmatpush1.bf16.xpose.msra.mxu0 0
        %5830 = vmatprep.subr.bf16.mxu0 0
        %5831 = vmatpush1.bf16.xpose.msra.mxu0 0
        %5832 = vmatprep.subr.bf16.mxu0 0
        %5833 = vmatpush1.bf16.xpose.msra.mxu0 0
        %5834 = vmatprep.subr.bf16.mxu0 0
        %5835 = vmatpush1.bf16.xpose.msra.mxu0 0
        %5836 = vmatprep.subr.bf16.mxu0 0
        %5837 = vmatpush1.bf16.xpose.msra.mxu0 0
        %5838 = vmatprep.subr.bf16.mxu0 0
        %5839 = vmatpush1.bf16.xpose.msra.mxu0 0
        %5840 = vmatprep.subr.bf16.mxu0 0
        %5841 = vmatpush1.bf16.xpose.msra.mxu0 0
        %5842 = vmatprep.subr.bf16.mxu0 0
        %5843 = vmatpush1.bf16.xpose.msra.mxu0 0
        %5844 = vmatprep.mubr.bf16.mxu0 0
        %5845 = vmatmul.mubr.bf16.gmra.mrb[0].mxu0 %v5795
        %v5846 = vpop.f32.mrb[0].mxu0
        %v5847 = vadd.f32 0.0, %v5846
        %v5848 = vpop.f32.mrb[0].mxu0
        %v5849 = vpop.f32.mrb[0].mxu0
        %v5850 = vadd.f32 0.0, %v5849
        %v5851 = vpop.f32.mrb[0].mxu0
        %5852 = vmatprep.mubr.bf16.mxu0 0
        %5853 = vmatmul.mubr.bf16.gmra.mrb[0].mxu0 %v5798
        %v5854 = vpop.f32.mrb[0].mxu0
        %v5855 = vadd.f32 0.0, %v5854
        %v5856 = vpop.f32.mrb[0].mxu0
        %v5857 = vpop.f32.mrb[0].mxu0
        %v5858 = vadd.f32 0.0, %v5857
        %v5859 = vpop.f32.mrb[0].mxu0
        %5860 = vmatprep.mubr.bf16.mxu0 0
        %5861 = vmatmul.mubr.bf16.gmra.mrb[0].mxu0 %v5801
        %v5862 = vpop.f32.mrb[0].mxu0
        %v5863 = vadd.f32 0.0, %v5862
        %v5864 = vpop.f32.mrb[0].mxu0
        %v5865 = vpop.f32.mrb[0].mxu0
        %v5866 = vadd.f32 0.0, %v5865
        %v5867 = vpop.f32.mrb[0].mxu0
        %5868 = vmatprep.mubr.bf16.mxu0 0
        %5869 = vmatmul.mubr.bf16.gmra.mrb[0].mxu0 %v5804
        %v5870 = vpop.f32.mrb[0].mxu0
        %v5871 = vadd.f32 0.0, %v5870
        %v5872 = vpop.f32.mrb[0].mxu0
        %v5873 = vpop.f32.mrb[0].mxu0
        %v5874 = vadd.f32 0.0, %v5873
        %v5875 = vpop.f32.mrb[0].mxu0
        %5876 = vdwg.mxu0
        %v5877 = vld [vmem:[%s3518 + $0x60] sm:$0xf]
        %v5878 = vld [vmem:[%s3518 + $0x68] sm:$0xf]
        %v5879 = vld [vmem:[%s3518 + $0x70] sm:$0xf]
        %v5880 = vpack.c.bf16 %v5850, %v5847
        %v5881 = vpack.c.bf16 %v5858, %v5855
        %v5882 = vpack.c.bf16 %v5866, %v5863
        %v5883 = vpack.c.bf16 %v5874, %v5871
        %v5887 = vunpack.c.l.b16 %v5877
        %v5888 = vunpack.c.l.b16 %v5878
        %v5889 = vunpack.c.l.b16 %v5879
        %v5890 = vpack.c.b16 %v5888, %v5887
        %v5891 = vpack.c.b16 %v5889, %v5889
        %v5894 = vsel %vm393, %v5880, 0
        %v5897 = vsel %vm393, %v5881, 0
        %v5900 = vsel %vm393, %v5882, 0
        %v5903 = vsel %vm393, %v5883, 0
        %v5906 = vsel %vm397, %v5891, 0
        %5908 = vmatprep.subr.bf16.mxu0 0
        %5909 = vmatpush1.bf16.msra.mxu0 %v5890
        %5910 = vmatprep.subr.bf16.mxu0 0
        %5911 = vmatpush1.bf16.msra.mxu0 %v5906
        %5912 = vmatprep.subr.bf16.mxu0 0
        %5913 = vmatpush1.bf16.msra.mxu0 0
        %5914 = vmatprep.subr.bf16.mxu0 0
        %5915 = vmatpush1.bf16.msra.mxu0 0
        %5916 = vmatprep.subr.bf16.mxu0 0
        %5917 = vmatpush1.bf16.msra.mxu0 0
        %5918 = vmatprep.subr.bf16.mxu0 0
        %5919 = vmatpush1.bf16.msra.mxu0 0
        %5920 = vmatprep.subr.bf16.mxu0 0
        %5921 = vmatpush1.bf16.msra.mxu0 0
        %5922 = vmatprep.subr.bf16.mxu0 0
        %5923 = vmatpush1.bf16.msra.mxu0 0
        %5924 = vmatprep.subr.bf16.mxu0 0
        %5925 = vmatpush1.bf16.msra.mxu0 0
        %5926 = vmatprep.subr.bf16.mxu0 0
        %5927 = vmatpush1.bf16.msra.mxu0 0
        %5928 = vmatprep.subr.bf16.mxu0 0
        %5929 = vmatpush1.bf16.msra.mxu0 0
        %5930 = vmatprep.subr.bf16.mxu0 0
        %5931 = vmatpush1.bf16.msra.mxu0 0
        %5932 = vmatprep.subr.bf16.mxu0 0
        %5933 = vmatpush1.bf16.msra.mxu0 0
        %5934 = vmatprep.subr.bf16.mxu0 0
        %5935 = vmatpush1.bf16.msra.mxu0 0
        %5936 = vmatprep.subr.bf16.mxu0 0
        %5937 = vmatpush1.bf16.msra.mxu0 0
        %5938 = vmatprep.subr.bf16.mxu0 0
        %5939 = vmatpush1.bf16.msra.mxu0 0
        %5940 = vmatprep.mubr.bf16.mxu0 0
        %5941 = vmatmul.mubr.bf16.gmra.mrb[0].mxu0 %v5894
        %v5942 = vpop.f32.mrb[0].mxu0
        %v5943 = vadd.f32 %v5302, %v5942
        %v5944 = vpop.f32.mrb[0].mxu0
        %v5945 = vpop.f32.mrb[0].mxu0
        %v5946 = vadd.f32 %v5305, %v5945
        %v5947 = vpop.f32.mrb[0].mxu0
        %5948 = vmatprep.mubr.bf16.mxu0 0
        %5949 = vmatmul.mubr.bf16.gmra.mrb[0].mxu0 %v5897
        %v5950 = vpop.f32.mrb[0].mxu0
        %v5951 = vadd.f32 %v5310, %v5950
        %v5952 = vpop.f32.mrb[0].mxu0
        %v5953 = vpop.f32.mrb[0].mxu0
        %v5954 = vadd.f32 %v5313, %v5953
        %v5955 = vpop.f32.mrb[0].mxu0
        %5956 = vmatprep.mubr.bf16.mxu0 0
        %5957 = vmatmul.mubr.bf16.gmra.mrb[0].mxu0 %v5900
        %v5958 = vpop.f32.mrb[0].mxu0
        %v5959 = vadd.f32 %v5318, %v5958
        %v5960 = vpop.f32.mrb[0].mxu0
        %v5961 = vpop.f32.mrb[0].mxu0
        %v5962 = vadd.f32 %v5321, %v5961
        %v5963 = vpop.f32.mrb[0].mxu0
        %5964 = vmatprep.mubr.bf16.mxu0 0
        %5965 = vmatmul.mubr.bf16.gmra.mrb[0].mxu0 %v5903
        %v5966 = vpop.f32.mrb[0].mxu0
        %v5967 = vadd.f32 %v5326, %v5966
        %v5968 = vpop.f32.mrb[0].mxu0
        %v5969 = vpop.f32.mrb[0].mxu0
        %v5970 = vadd.f32 %v5329, %v5969
        %v5971 = vpop.f32.mrb[0].mxu0
        %5972 = vdwg.mxu0
        %5981 = vrot.lane.b32.xlu0 %v5943, 48
        %v5982 = vpop.permute.xlu0 %5981
        %5983 = vrot.lane.b32.xlu0 %v5946, 48
        %v5984 = vpop.permute.xlu0 %5983
        %5985 = vrot.lane.b32.xlu0 %v5951, 48
        %v5986 = vpop.permute.xlu0 %5985
        %5987 = vrot.lane.b32.xlu0 %v5954, 48
        %v5988 = vpop.permute.xlu0 %5987
        %5989 = vrot.lane.b32.xlu0 %v5959, 48
        %v5990 = vpop.permute.xlu0 %5989
        %5991 = vrot.lane.b32.xlu0 %v5962, 48
        %v5992 = vpop.permute.xlu0 %5991
        %5993 = vrot.lane.b32.xlu0 %v5967, 48
        %v5994 = vpop.permute.xlu0 %5993
        %5995 = vrot.lane.b32.xlu0 %v5970, 48
        %v5996 = vpop.permute.xlu0 %5995
        %v6005 = vmul.f32 %v3739, %v5982
        %v6006 = vmul.f32 %v3739, %v5984
        %v6007 = vmul.f32 %v3739, %v5986
        %v6008 = vmul.f32 %v3739, %v5988
        %v6009 = vmul.f32 %v3739, %v5990
        %v6010 = vmul.f32 %v3739, %v5992
        %v6011 = vmul.f32 %v3739, %v5994
        %v6012 = vmul.f32 %v3739, %v5996
        %6021 = vrot.lane.b32.xlu0 %v6005, 80
        %v6022 = vpop.permute.xlu0 %6021
        %6023 = vrot.lane.b32.xlu0 %v6006, 80
        %v6024 = vpop.permute.xlu0 %6023
        %6025 = vrot.lane.b32.xlu0 %v6007, 80
        %v6026 = vpop.permute.xlu0 %6025
        %6027 = vrot.lane.b32.xlu0 %v6008, 80
        %v6028 = vpop.permute.xlu0 %6027
        %6029 = vrot.lane.b32.xlu0 %v6009, 80
        %v6030 = vpop.permute.xlu0 %6029
        %6031 = vrot.lane.b32.xlu0 %v6010, 80
        %v6032 = vpop.permute.xlu0 %6031
        %6033 = vrot.lane.b32.xlu0 %v6011, 80
        %v6034 = vpop.permute.xlu0 %6033
        %6035 = vrot.lane.b32.xlu0 %v6012, 80
        %v6036 = vpop.permute.xlu0 %6035
        %v6045 = vadd.f32 %v3510, %v6022
        %v6046 = vadd.f32 %v3511, %v6024
        %v6047 = vadd.f32 %v3512, %v6026
        %v6048 = vadd.f32 %v3513, %v6028
        %v6049 = vadd.f32 %v3514, %v6030
        %v6050 = vadd.f32 %v3515, %v6032
        %v6051 = vadd.f32 %v3516, %v6034
        %v6052 = vadd.f32 %v3517, %v6036
        %v6053 = vld [vmem:[%s3522 + $0x3] ss:$0 sm:$0xff]
        %v6054 = vld [vmem:[%s3522 + $0x4] ss:$0 sm:$0xff]
        %v6055 = vsel %vm393, %v6045, 0.0
        %6056 = vadd.xlane.f32.xlu0 %v6055
        %v6057 = vpop.xlane.xlu0 %6056
        %v6058 = vsel %vm393, %v6046, 0.0
        %6059 = vadd.xlane.f32.xlu0 %v6058
        %v6060 = vpop.xlane.xlu0 %6059
        %v6061 = vsel %vm393, %v6047, 0.0
        %6062 = vadd.xlane.f32.xlu0 %v6061
        %v6063 = vpop.xlane.xlu0 %6062
        %v6064 = vsel %vm393, %v6048, 0.0
        %6065 = vadd.xlane.f32.xlu0 %v6064
        %v6066 = vpop.xlane.xlu0 %6065
        %v6067 = vsel %vm393, %v6049, 0.0
        %6068 = vadd.xlane.f32.xlu0 %v6067
        %v6069 = vpop.xlane.xlu0 %6068
        %v6070 = vsel %vm393, %v6050, 0.0
        %6071 = vadd.xlane.f32.xlu0 %v6070
        %v6072 = vpop.xlane.xlu0 %6071
        %v6073 = vsel %vm393, %v6051, 0.0
        %6074 = vadd.xlane.f32.xlu0 %v6073
        %v6075 = vpop.xlane.xlu0 %6074
        %v6076 = vsel %vm393, %v6052, 0.0
        %6077 = vadd.xlane.f32.xlu0 %v6076
        %v6078 = vpop.xlane.xlu0 %6077
        %v6079 = vmul.f32 %v6057, %v471
        %v6080 = vmul.f32 %v6060, %v471
        %v6081 = vmul.f32 %v6063, %v471
        %v6082 = vmul.f32 %v6066, %v471
        %v6083 = vmul.f32 %v6069, %v471
        %v6084 = vmul.f32 %v6072, %v471
        %v6085 = vmul.f32 %v6075, %v471
        %v6086 = vmul.f32 %v6078, %v471
        %v6087 = vsub.f32 %v6045, %v6079
        %v6088 = vsub.f32 %v6046, %v6080
        %v6089 = vsub.f32 %v6047, %v6081
        %v6090 = vsub.f32 %v6048, %v6082
        %v6091 = vsub.f32 %v6049, %v6083
        %v6092 = vsub.f32 %v6050, %v6084
        %v6093 = vsub.f32 %v6051, %v6085
        %v6094 = vsub.f32 %v6052, %v6086
        %v6095 = vmul.f32 %v6087, %v6087
        %v6096 = vmul.f32 %v6088, %v6088
        %v6097 = vmul.f32 %v6089, %v6089
        %v6098 = vmul.f32 %v6090, %v6090
        %v6099 = vmul.f32 %v6091, %v6091
        %v6100 = vmul.f32 %v6092, %v6092
        %v6101 = vmul.f32 %v6093, %v6093
        %v6102 = vmul.f32 %v6094, %v6094
        %v6103 = vsel %vm393, %v6095, 0.0
        %6104 = vadd.xlane.f32.xlu0 %v6103
        %v6105 = vpop.xlane.xlu0 %6104
        %v6106 = vsel %vm393, %v6096, 0.0
        %6107 = vadd.xlane.f32.xlu0 %v6106
        %v6108 = vpop.xlane.xlu0 %6107
        %v6109 = vsel %vm393, %v6097, 0.0
        %6110 = vadd.xlane.f32.xlu0 %v6109
        %v6111 = vpop.xlane.xlu0 %6110
        %v6112 = vsel %vm393, %v6098, 0.0
        %6113 = vadd.xlane.f32.xlu0 %v6112
        %v6114 = vpop.xlane.xlu0 %6113
        %v6115 = vsel %vm393, %v6099, 0.0
        %6116 = vadd.xlane.f32.xlu0 %v6115
        %v6117 = vpop.xlane.xlu0 %6116
        %v6118 = vsel %vm393, %v6100, 0.0
        %6119 = vadd.xlane.f32.xlu0 %v6118
        %v6120 = vpop.xlane.xlu0 %6119
        %v6121 = vsel %vm393, %v6101, 0.0
        %6122 = vadd.xlane.f32.xlu0 %v6121
        %v6123 = vpop.xlane.xlu0 %6122
        %v6124 = vsel %vm393, %v6102, 0.0
        %6125 = vadd.xlane.f32.xlu0 %v6124
        %v6126 = vpop.xlane.xlu0 %6125
        %v6127 = vmul.f32 %v6105, %v471
        %v6128 = vmul.f32 %v6108, %v471
        %v6129 = vmul.f32 %v6111, %v471
        %v6130 = vmul.f32 %v6114, %v471
        %v6131 = vmul.f32 %v6117, %v471
        %v6132 = vmul.f32 %v6120, %v471
        %v6133 = vmul.f32 %v6123, %v471
        %v6134 = vmul.f32 %v6126, %v471
        %v6135 = vadd.f32 %v6127, 1e-05
        %v6136 = vadd.f32 %v6128, 1e-05
        %v6137 = vadd.f32 %v6129, 1e-05
        %v6138 = vadd.f32 %v6130, 1e-05
        %v6139 = vadd.f32 %v6131, 1e-05
        %v6140 = vadd.f32 %v6132, 1e-05
        %v6141 = vadd.f32 %v6133, 1e-05
        %v6142 = vadd.f32 %v6134, 1e-05
        %v6143 = vrsqrt.pop %v6135
        %v6144 = vrsqrt.pop %v6136
        %v6145 = vrsqrt.pop %v6137
        %v6146 = vrsqrt.pop %v6138
        %v6147 = vrsqrt.pop %v6139
        %v6148 = vrsqrt.pop %v6140
        %v6149 = vrsqrt.pop %v6141
        %v6150 = vrsqrt.pop %v6142
        %v6151 = vmul.f32 %v6087, %v6143
        %v6152 = vmul.f32 %v6088, %v6144
        %v6153 = vmul.f32 %v6089, %v6145
        %v6154 = vmul.f32 %v6090, %v6146
        %v6155 = vmul.f32 %v6091, %v6147
        %v6156 = vmul.f32 %v6092, %v6148
        %v6157 = vmul.f32 %v6093, %v6149
        %v6158 = vmul.f32 %v6094, %v6150
        %v6159 = vmul.f32 %v6151, %v6053
        %v6160 = vmul.f32 %v6152, %v6053
        %v6161 = vmul.f32 %v6153, %v6053
        %v6162 = vmul.f32 %v6154, %v6053
        %v6163 = vmul.f32 %v6155, %v6053
        %v6164 = vmul.f32 %v6156, %v6053
        %v6165 = vmul.f32 %v6157, %v6053
        %v6166 = vmul.f32 %v6158, %v6053
        %v6167 = vadd.f32 %v6159, %v6054
        %v6168 = vadd.f32 %v6160, %v6054
        %v6169 = vadd.f32 %v6161, %v6054
        %v6170 = vadd.f32 %v6162, %v6054
        %v6171 = vadd.f32 %v6163, %v6054
        %v6172 = vadd.f32 %v6164, %v6054
        %v6173 = vadd.f32 %v6165, %v6054
        %v6174 = vadd.f32 %v6166, %v6054
        %6175 = vrot.lane.b32.xlu0 %v3723, 32
        %v6176 = vpop.permute.xlu0 %6175
        %v6178 = vmul.f32 %v6167, %v6176
        %v6179 = vmul.f32 %v6168, %v6176
        %v6180 = vmul.f32 %v6169, %v6176
        %v6181 = vmul.f32 %v6170, %v6176
        %v6182 = vmul.f32 %v6171, %v6176
        %v6183 = vmul.f32 %v6172, %v6176
        %v6184 = vmul.f32 %v6173, %v6176
        %v6185 = vmul.f32 %v6174, %v6176
        %6187 = vrot.lane.b32.xlu0 %v3739, 56
        %v6188 = vpop.permute.xlu0 %6187
        %v6190 = vadd.f32 %v6178, %v6188
        %v6191 = vadd.f32 %v6179, %v6188
        %v6192 = vadd.f32 %v6180, %v6188
        %v6193 = vadd.f32 %v6181, %v6188
        %v6194 = vadd.f32 %v6182, %v6188
        %v6195 = vadd.f32 %v6183, %v6188
        %v6196 = vadd.f32 %v6184, %v6188
        %v6197 = vadd.f32 %v6185, %v6188
        %v6198 = vld [vmem:[%s3518 + $0x78] sm:$0xf]
        %v6199 = vld [vmem:[%s3518 + $0x80] sm:$0xf]
        %v6200 = vld [vmem:[%s3518 + $0x88] sm:$0xf]
        %v6201 = vpack.c.bf16 %v6191, %v6190
        %v6202 = vpack.c.bf16 %v6193, %v6192
        %v6203 = vpack.c.bf16 %v6195, %v6194
        %v6204 = vpack.c.bf16 %v6197, %v6196
        %v6205 = vld [vmem:[%s3522 + $0x7] ss:$0 sm:$0xff]
        %v6209 = vunpack.c.l.b16 %v6198
        %v6210 = vunpack.c.l.b16 %v6199
        %v6211 = vunpack.c.l.b16 %v6200
        %v6212 = vpack.c.b16 %v6210, %v6209
        %v6213 = vpack.c.b16 %v6211, %v6211
        %v6216 = vsel %vm393, %v6201, 0
        %v6219 = vsel %vm393, %v6202, 0
        %v6222 = vsel %vm393, %v6203, 0
        %v6225 = vsel %vm393, %v6204, 0
        %v6228 = vsel %vm397, %v6213, 0
        %6230 = vmatprep.subr.bf16.mxu0 0
        %6231 = vmatpush1.bf16.msra.mxu0 %v6212
        %6232 = vmatprep.subr.bf16.mxu0 0
        %6233 = vmatpush1.bf16.msra.mxu0 %v6228
        %6234 = vmatprep.subr.bf16.mxu0 0
        %6235 = vmatpush1.bf16.msra.mxu0 0
        %6236 = vmatprep.subr.bf16.mxu0 0
        %6237 = vmatpush1.bf16.msra.mxu0 0
        %6238 = vmatprep.subr.bf16.mxu0 0
        %6239 = vmatpush1.bf16.msra.mxu0 0
        %6240 = vmatprep.subr.bf16.mxu0 0
        %6241 = vmatpush1.bf16.msra.mxu0 0
        %6242 = vmatprep.subr.bf16.mxu0 0
        %6243 = vmatpush1.bf16.msra.mxu0 0
        %6244 = vmatprep.subr.bf16.mxu0 0
        %6245 = vmatpush1.bf16.msra.mxu0 0
        %6246 = vmatprep.subr.bf16.mxu0 0
        %6247 = vmatpush1.bf16.msra.mxu0 0
        %6248 = vmatprep.subr.bf16.mxu0 0
        %6249 = vmatpush1.bf16.msra.mxu0 0
        %6250 = vmatprep.subr.bf16.mxu0 0
        %6251 = vmatpush1.bf16.msra.mxu0 0
        %6252 = vmatprep.subr.bf16.mxu0 0
        %6253 = vmatpush1.bf16.msra.mxu0 0
        %6254 = vmatprep.subr.bf16.mxu0 0
        %6255 = vmatpush1.bf16.msra.mxu0 0
        %6256 = vmatprep.subr.bf16.mxu0 0
        %6257 = vmatpush1.bf16.msra.mxu0 0
        %6258 = vmatprep.subr.bf16.mxu0 0
        %6259 = vmatpush1.bf16.msra.mxu0 0
        %6260 = vmatprep.subr.bf16.mxu0 0
        %6261 = vmatpush1.bf16.msra.mxu0 0
        %6262 = vmatprep.mubr.bf16.mxu0 0
        %6263 = vmatmul.mubr.bf16.gmra.mrb[0].mxu0 %v6216
        %v6264 = vpop.f32.mrb[0].mxu0
        %v6265 = vadd.f32 %v6205, %v6264
        %v6266 = vpop.f32.mrb[0].mxu0
        %v6267 = vpop.f32.mrb[0].mxu0
        %v6268 = vadd.f32 %v6205, %v6267
        %v6269 = vpop.f32.mrb[0].mxu0
        %6270 = vmatprep.mubr.bf16.mxu0 0
        %6271 = vmatmul.mubr.bf16.gmra.mrb[0].mxu0 %v6219
        %v6272 = vpop.f32.mrb[0].mxu0
        %v6273 = vadd.f32 %v6205, %v6272
        %v6274 = vpop.f32.mrb[0].mxu0
        %v6275 = vpop.f32.mrb[0].mxu0
        %v6276 = vadd.f32 %v6205, %v6275
        %v6277 = vpop.f32.mrb[0].mxu0
        %6278 = vmatprep.mubr.bf16.mxu0 0
        %6279 = vmatmul.mubr.bf16.gmra.mrb[0].mxu0 %v6222
        %v6280 = vpop.f32.mrb[0].mxu0
        %v6281 = vadd.f32 %v6205, %v6280
        %v6282 = vpop.f32.mrb[0].mxu0
        %v6283 = vpop.f32.mrb[0].mxu0
        %v6284 = vadd.f32 %v6205, %v6283
        %v6285 = vpop.f32.mrb[0].mxu0
        %6286 = vmatprep.mubr.bf16.mxu0 0
        %6287 = vmatmul.mubr.bf16.gmra.mrb[0].mxu0 %v6225
        %v6288 = vpop.f32.mrb[0].mxu0
        %v6289 = vadd.f32 %v6205, %v6288
        %v6290 = vpop.f32.mrb[0].mxu0
        %v6291 = vpop.f32.mrb[0].mxu0
        %v6292 = vadd.f32 %v6205, %v6291
        %v6293 = vpop.f32.mrb[0].mxu0
        %6294 = vdwg.mxu0
        %v6295 = vmul.f32 %v6265, 0.5
        %v6296 = vmul.f32 %v6268, 0.5
        %v6297 = vmul.f32 %v6273, 0.5
        %v6298 = vmul.f32 %v6276, 0.5
        %v6299 = vmul.f32 %v6281, 0.5
        %v6300 = vmul.f32 %v6284, 0.5
        %v6301 = vmul.f32 %v6289, 0.5
        %v6302 = vmul.f32 %v6292, 0.5
        %v6303 = vmul.f32 %v6265, 0.044715
        %v6304 = vmul.f32 %v6268, 0.044715
        %v6305 = vmul.f32 %v6273, 0.044715
        %v6306 = vmul.f32 %v6276, 0.044715
        %v6307 = vmul.f32 %v6281, 0.044715
        %v6308 = vmul.f32 %v6284, 0.044715
        %v6309 = vmul.f32 %v6289, 0.044715
        %v6310 = vmul.f32 %v6292, 0.044715
        %v6311 = vmul.f32 %v6303, %v6265
        %v6312 = vmul.f32 %v6304, %v6268
        %v6313 = vmul.f32 %v6305, %v6273
        %v6314 = vmul.f32 %v6306, %v6276
        %v6315 = vmul.f32 %v6307, %v6281
        %v6316 = vmul.f32 %v6308, %v6284
        %v6317 = vmul.f32 %v6309, %v6289
        %v6318 = vmul.f32 %v6310, %v6292
        %v6319 = vmul.f32 %v6311, %v6265
        %v6320 = vmul.f32 %v6312, %v6268
        %v6321 = vmul.f32 %v6313, %v6273
        %v6322 = vmul.f32 %v6314, %v6276
        %v6323 = vmul.f32 %v6315, %v6281
        %v6324 = vmul.f32 %v6316, %v6284
        %v6325 = vmul.f32 %v6317, %v6289
        %v6326 = vmul.f32 %v6318, %v6292
        %v6327 = vadd.f32 %v6265, %v6319
        %v6328 = vadd.f32 %v6268, %v6320
        %v6329 = vadd.f32 %v6273, %v6321
        %v6330 = vadd.f32 %v6276, %v6322
        %v6331 = vadd.f32 %v6281, %v6323
        %v6332 = vadd.f32 %v6284, %v6324
        %v6333 = vadd.f32 %v6289, %v6325
        %v6334 = vadd.f32 %v6292, %v6326
        %v6335 = vmul.f32 %v6327, 0.7978846
        %v6336 = vmul.f32 %v6328, 0.7978846
        %v6337 = vmul.f32 %v6329, 0.7978846
        %v6338 = vmul.f32 %v6330, 0.7978846
        %v6339 = vmul.f32 %v6331, 0.7978846
        %v6340 = vmul.f32 %v6332, 0.7978846
        %v6341 = vmul.f32 %v6333, 0.7978846
        %v6342 = vmul.f32 %v6334, 0.7978846
        %v6343 = vtanh.pop %v6335
        %v6344 = vtanh.pop %v6336
        %v6345 = vtanh.pop %v6337
        %v6346 = vtanh.pop %v6338
        %v6347 = vtanh.pop %v6339
        %v6348 = vtanh.pop %v6340
        %v6349 = vtanh.pop %v6341
        %v6350 = vtanh.pop %v6342
        %v6351 = vadd.f32 %v6343, 1.0
        %v6352 = vadd.f32 %v6344, 1.0
        %v6353 = vadd.f32 %v6345, 1.0
        %v6354 = vadd.f32 %v6346, 1.0
        %v6355 = vadd.f32 %v6347, 1.0
        %v6356 = vadd.f32 %v6348, 1.0
        %v6357 = vadd.f32 %v6349, 1.0
        %v6358 = vadd.f32 %v6350, 1.0
        %v6359 = vmul.f32 %v6295, %v6351
        %v6360 = vmul.f32 %v6296, %v6352
        %v6361 = vmul.f32 %v6297, %v6353
        %v6362 = vmul.f32 %v6298, %v6354
        %v6363 = vmul.f32 %v6299, %v6355
        %v6364 = vmul.f32 %v6300, %v6356
        %v6365 = vmul.f32 %v6301, %v6357
        %v6366 = vmul.f32 %v6302, %v6358
        %v6367 = vld [vmem:[%s3518 + $0x90] sm:$0xf]
        %v6368 = vld [vmem:[%s3518 + $0x98] sm:$0xf]
        %v6369 = vld [vmem:[%s3518 + $0xa0] sm:$0xf]
        %v6370 = vld [vmem:[%s3518 + $0xa8] sm:$0xf]
        %v6371 = vld [vmem:[%s3518 + $0xb0] sm:$0xf]
        %v6372 = vld [vmem:[%s3518 + $0xb8] sm:$0xf]
        %v6373 = vpack.c.bf16 %v6360, %v6359
        %v6374 = vpack.c.bf16 %v6362, %v6361
        %v6375 = vpack.c.bf16 %v6364, %v6363
        %v6376 = vpack.c.bf16 %v6366, %v6365
        %v6377 = vld [vmem:[%s3522 + $0x10] ss:$0 sm:$0xff]
        %v6384 = vunpack.c.l.b16 %v6367
        %v6385 = vunpack.c.l.b16 %v6368
        %v6386 = vunpack.c.l.b16 %v6369
        %v6387 = vunpack.c.l.b16 %v6370
        %v6388 = vunpack.c.l.b16 %v6371
        %v6389 = vunpack.c.l.b16 %v6372
        %v6390 = vpack.c.b16 %v6385, %v6384
        %v6391 = vpack.c.b16 %v6387, %v6386
        %v6392 = vpack.c.b16 %v6389, %v6388
        %v6397 = vsel %vm3315, %v6373, 0
        %v6400 = vsel %vm3315, %v6374, 0
        %v6403 = vsel %vm3315, %v6375, 0
        %v6406 = vsel %vm3315, %v6376, 0
        %6408 = vmatprep.subr.bf16.mxu0 0
        %6409 = vmatpush1.bf16.msra.mxu0 %v6390
        %6410 = vmatprep.subr.bf16.mxu0 0
        %6411 = vmatpush1.bf16.msra.mxu0 %v6391
        %6412 = vmatprep.subr.bf16.mxu0 0
        %6413 = vmatpush1.bf16.msra.mxu0 %v6392
        %6414 = vmatprep.subr.bf16.mxu0 0
        %6415 = vmatpush1.bf16.msra.mxu0 0
        %6416 = vmatprep.subr.bf16.mxu0 0
        %6417 = vmatpush1.bf16.msra.mxu0 0
        %6418 = vmatprep.subr.bf16.mxu0 0
        %6419 = vmatpush1.bf16.msra.mxu0 0
        %6420 = vmatprep.subr.bf16.mxu0 0
        %6421 = vmatpush1.bf16.msra.mxu0 0
        %6422 = vmatprep.subr.bf16.mxu0 0
        %6423 = vmatpush1.bf16.msra.mxu0 0
        %6424 = vmatprep.subr.bf16.mxu0 0
        %6425 = vmatpush1.bf16.msra.mxu0 0
        %6426 = vmatprep.subr.bf16.mxu0 0
        %6427 = vmatpush1.bf16.msra.mxu0 0
        %6428 = vmatprep.subr.bf16.mxu0 0
        %6429 = vmatpush1.bf16.msra.mxu0 0
        %6430 = vmatprep.subr.bf16.mxu0 0
        %6431 = vmatpush1.bf16.msra.mxu0 0
        %6432 = vmatprep.subr.bf16.mxu0 0
        %6433 = vmatpush1.bf16.msra.mxu0 0
        %6434 = vmatprep.subr.bf16.mxu0 0
        %6435 = vmatpush1.bf16.msra.mxu0 0
        %6436 = vmatprep.subr.bf16.mxu0 0
        %6437 = vmatpush1.bf16.msra.mxu0 0
        %6438 = vmatprep.subr.bf16.mxu0 0
        %6439 = vmatpush1.bf16.msra.mxu0 0
        %6440 = vmatprep.mubr.bf16.mxu0 0
        %6441 = vmatmul.mubr.bf16.gmra.mrb[0].mxu0 %v6397
        %v6442 = vpop.f32.mrb[0].mxu0
        %v6443 = vadd.f32 %v6377, %v6442
        %v6444 = vpop.f32.mrb[0].mxu0
        %v6445 = vpop.f32.mrb[0].mxu0
        %v6446 = vadd.f32 %v6377, %v6445
        %v6447 = vpop.f32.mrb[0].mxu0
        %6448 = vmatprep.mubr.bf16.mxu0 0
        %6449 = vmatmul.mubr.bf16.gmra.mrb[0].mxu0 %v6400
        %v6450 = vpop.f32.mrb[0].mxu0
        %v6451 = vadd.f32 %v6377, %v6450
        %v6452 = vpop.f32.mrb[0].mxu0
        %v6453 = vpop.f32.mrb[0].mxu0
        %v6454 = vadd.f32 %v6377, %v6453
        %v6455 = vpop.f32.mrb[0].mxu0
        %6456 = vmatprep.mubr.bf16.mxu0 0
        %6457 = vmatmul.mubr.bf16.gmra.mrb[0].mxu0 %v6403
        %v6458 = vpop.f32.mrb[0].mxu0
        %v6459 = vadd.f32 %v6377, %v6458
        %v6460 = vpop.f32.mrb[0].mxu0
        %v6461 = vpop.f32.mrb[0].mxu0
        %v6462 = vadd.f32 %v6377, %v6461
        %v6463 = vpop.f32.mrb[0].mxu0
        %6464 = vmatprep.mubr.bf16.mxu0 0
        %6465 = vmatmul.mubr.bf16.gmra.mrb[0].mxu0 %v6406
        %v6466 = vpop.f32.mrb[0].mxu0
        %v6467 = vadd.f32 %v6377, %v6466
        %v6468 = vpop.f32.mrb[0].mxu0
        %v6469 = vpop.f32.mrb[0].mxu0
        %v6470 = vadd.f32 %v6377, %v6469
        %v6471 = vpop.f32.mrb[0].mxu0
        %6472 = vdwg.mxu0
        %v6473 = vlaneseq
        %v6474 = vshrl.u32 %v6473, 7
        %v6475 = vsub.s32 0, %v6474
        %v6476 = vrot.slane %v3593, %v6475
        %6485 = vrot.lane.b32.xlu0 %v6443, 120
        %v6486 = vpop.permute.xlu0 %6485
        %6487 = vrot.lane.b32.xlu0 %v6446, 120
        %v6488 = vpop.permute.xlu0 %6487
        %6489 = vrot.lane.b32.xlu0 %v6451, 120
        %v6490 = vpop.permute.xlu0 %6489
        %6491 = vrot.lane.b32.xlu0 %v6454, 120
        %v6492 = vpop.permute.xlu0 %6491
        %6493 = vrot.lane.b32.xlu0 %v6459, 120
        %v6494 = vpop.permute.xlu0 %6493
        %6495 = vrot.lane.b32.xlu0 %v6462, 120
        %v6496 = vpop.permute.xlu0 %6495
        %6497 = vrot.lane.b32.xlu0 %v6467, 120
        %v6498 = vpop.permute.xlu0 %6497
        %6499 = vrot.lane.b32.xlu0 %v6470, 120
        %v6500 = vpop.permute.xlu0 %6499
        %v6509 = vmul.f32 %v3739, %v6486
        %v6510 = vmul.f32 %v6476, %v6486
        %v6511 = vmul.f32 %v3739, %v6488
        %v6512 = vmul.f32 %v6476, %v6488
        %v6513 = vmul.f32 %v3739, %v6490
        %v6514 = vmul.f32 %v6476, %v6490
        %v6515 = vmul.f32 %v3739, %v6492
        %v6516 = vmul.f32 %v6476, %v6492
        %v6517 = vmul.f32 %v3739, %v6494
        %v6518 = vmul.f32 %v6476, %v6494
        %v6519 = vmul.f32 %v3739, %v6496
        %v6520 = vmul.f32 %v6476, %v6496
        %v6521 = vmul.f32 %v3739, %v6498
        %v6522 = vmul.f32 %v6476, %v6498
        %v6523 = vmul.f32 %v3739, %v6500
        %v6524 = vmul.f32 %v6476, %v6500
        %6541 = vrot.lane.b32.xlu0 %v6509, 8
        %v6542 = vpop.permute.xlu0 %6541
        %6543 = vrot.lane.b32.xlu0 %v6510, 8
        %v6544 = vpop.permute.xlu0 %6543
        %6545 = vrot.lane.b32.xlu0 %v6511, 8
        %v6546 = vpop.permute.xlu0 %6545
        %6547 = vrot.lane.b32.xlu0 %v6512, 8
        %v6548 = vpop.permute.xlu0 %6547
        %6549 = vrot.lane.b32.xlu0 %v6513, 8
        %v6550 = vpop.permute.xlu0 %6549
        %6551 = vrot.lane.b32.xlu0 %v6514, 8
        %v6552 = vpop.permute.xlu0 %6551
        %6553 = vrot.lane.b32.xlu0 %v6515, 8
        %v6554 = vpop.permute.xlu0 %6553
        %6555 = vrot.lane.b32.xlu0 %v6516, 8
        %v6556 = vpop.permute.xlu0 %6555
        %6557 = vrot.lane.b32.xlu0 %v6517, 8
        %v6558 = vpop.permute.xlu0 %6557
        %6559 = vrot.lane.b32.xlu0 %v6518, 8
        %v6560 = vpop.permute.xlu0 %6559
        %6561 = vrot.lane.b32.xlu0 %v6519, 8
        %v6562 = vpop.permute.xlu0 %6561
        %6563 = vrot.lane.b32.xlu0 %v6520, 8
        %v6564 = vpop.permute.xlu0 %6563
        %6565 = vrot.lane.b32.xlu0 %v6521, 8
        %v6566 = vpop.permute.xlu0 %6565
        %6567 = vrot.lane.b32.xlu0 %v6522, 8
        %v6568 = vpop.permute.xlu0 %6567
        %6569 = vrot.lane.b32.xlu0 %v6523, 8
        %v6570 = vpop.permute.xlu0 %6569
        %6571 = vrot.lane.b32.xlu0 %v6524, 8
        %v6572 = vpop.permute.xlu0 %6571
        %v6573 = vsel %vm3493, %v6542, %v6544
        %v6574 = vsel %vm3493, %v6546, %v6548
        %v6575 = vsel %vm3493, %v6550, %v6552
        %v6576 = vsel %vm3493, %v6554, %v6556
        %v6577 = vsel %vm3493, %v6558, %v6560
        %v6578 = vsel %vm3493, %v6562, %v6564
        %v6579 = vsel %vm3493, %v6566, %v6568
        %v6580 = vsel %vm3493, %v6570, %v6572
        %v6589 = vadd.f32 %v6045, %v6573
        %v6590 = vadd.f32 %v6046, %v6574
        %v6591 = vadd.f32 %v6047, %v6575
        %v6592 = vadd.f32 %v6048, %v6576
        %v6593 = vadd.f32 %v6049, %v6577
        %v6594 = vadd.f32 %v6050, %v6578
        %v6595 = vadd.f32 %v6051, %v6579
        %v6596 = vadd.f32 %v6052, %v6580
        %v6597 = vpack.c.bf16 %v6590, %v6589
        %v6598 = vpack.c.bf16 %v6592, %v6591
        %v6599 = vpack.c.bf16 %v6594, %v6593
        %v6600 = vpack.c.bf16 %v6596, %v6595
        %v6601 = vld [vmem:[%s5] sm:$0xff]
        %v6602 = vld [vmem:[%s5 + $0x8] sm:$0xff]
        %v6603 = vld [vmem:[%s5 + $0x10] sm:$0xff]
        %v6607 = vunpack.c.l.b16 %v6601
        %v6608 = vunpack.c.h.b16 %v6601
        %v6609 = vunpack.c.l.b16 %v6602
        %v6610 = vunpack.c.h.b16 %v6602
        %v6611 = vunpack.c.l.b16 %v6603
        %v6612 = vunpack.c.h.b16 %v6603
        %v6613 = vpack.c.b16 %v6609, %v6607
        %v6614 = vpack.c.b16 %v6610, %v6608
        %v6615 = vpack.c.b16 %v6611, %v6611
        %v6616 = vpack.c.b16 %v6612, %v6612
        %v6620 = vsel %vm393, %v6597, 0
        %v6623 = vsel %vm393, %v6598, 0
        %v6626 = vsel %vm393, %v6599, 0
        %v6629 = vsel %vm393, %v6600, 0
        %v6632 = vsel %vm397, %v6615, 0
        %v6635 = vsel %vm397, %v6616, 0
        %6637 = vmatprep.subr.bf16.mxu0 %v6614
        %6638 = vmatpush1.bf16.msra.mxu0 %v6613
        %6639 = vmatprep.subr.bf16.mxu0 %v6635
        %6640 = vmatpush1.bf16.msra.mxu0 %v6632
        %6641 = vmatprep.subr.bf16.mxu0 0
        %6642 = vmatpush1.bf16.msra.mxu0 0
        %6643 = vmatprep.subr.bf16.mxu0 0
        %6644 = vmatpush1.bf16.msra.mxu0 0
        %6645 = vmatprep.subr.bf16.mxu0 0
        %6646 = vmatpush1.bf16.msra.mxu0 0
        %6647 = vmatprep.subr.bf16.mxu0 0
        %6648 = vmatpush1.bf16.msra.mxu0 0
        %6649 = vmatprep.subr.bf16.mxu0 0
        %6650 = vmatpush1.bf16.msra.mxu0 0
        %6651 = vmatprep.subr.bf16.mxu0 0
        %6652 = vmatpush1.bf16.msra.mxu0 0
        %6653 = vmatprep.subr.bf16.mxu0 0
        %6654 = vmatpush1.bf16.msra.mxu0 0
        %6655 = vmatprep.subr.bf16.mxu0 0
        %6656 = vmatpush1.bf16.msra.mxu0 0
        %6657 = vmatprep.subr.bf16.mxu0 0
        %6658 = vmatpush1.bf16.msra.mxu0 0
        %6659 = vmatprep.subr.bf16.mxu0 0
        %6660 = vmatpush1.bf16.msra.mxu0 0
        %6661 = vmatprep.subr.bf16.mxu0 0
        %6662 = vmatpush1.bf16.msra.mxu0 0
        %6663 = vmatprep.subr.bf16.mxu0 0
        %6664 = vmatpush1.bf16.msra.mxu0 0
        %6665 = vmatprep.subr.bf16.mxu0 0
        %6666 = vmatpush1.bf16.msra.mxu0 0
        %6667 = vmatprep.subr.bf16.mxu0 0
        %6668 = vmatpush1.bf16.msra.mxu0 0
        %6669 = vmatprep.mubr.bf16.mxu0 0
        %6670 = vmatmul.mubr.bf16.gmra.mrb[0].mxu0 %v6620
        %v6671 = vpop.f32.mrb[0].mxu0
        %v6672 = vadd.f32 0.0, %v6671
        %v6673 = vpop.f32.mrb[0].mxu0
        %v6674 = vadd.f32 0.0, %v6673
        %v6675 = vpop.f32.mrb[0].mxu0
        %v6676 = vadd.f32 0.0, %v6675
        %v6677 = vpop.f32.mrb[0].mxu0
        %v6678 = vadd.f32 0.0, %v6677
        %6679 = vmatprep.mubr.bf16.mxu0 0
        %6680 = vmatmul.mubr.bf16.gmra.mrb[0].mxu0 %v6623
        %v6681 = vpop.f32.mrb[0].mxu0
        %v6682 = vadd.f32 0.0, %v6681
        %v6683 = vpop.f32.mrb[0].mxu0
        %v6684 = vadd.f32 0.0, %v6683
        %v6685 = vpop.f32.mrb[0].mxu0
        %v6686 = vadd.f32 0.0, %v6685
        %v6687 = vpop.f32.mrb[0].mxu0
        %v6688 = vadd.f32 0.0, %v6687
        %6689 = vmatprep.mubr.bf16.mxu0 0
        %6690 = vmatmul.mubr.bf16.gmra.mrb[0].mxu0 %v6626
        %v6691 = vpop.f32.mrb[0].mxu0
        %v6692 = vadd.f32 0.0, %v6691
        %v6693 = vpop.f32.mrb[0].mxu0
        %v6694 = vadd.f32 0.0, %v6693
        %v6695 = vpop.f32.mrb[0].mxu0
        %v6696 = vadd.f32 0.0, %v6695
        %v6697 = vpop.f32.mrb[0].mxu0
        %v6698 = vadd.f32 0.0, %v6697
        %6699 = vmatprep.mubr.bf16.mxu0 0
        %6700 = vmatmul.mubr.bf16.gmra.mrb[0].mxu0 %v6629
        %v6701 = vpop.f32.mrb[0].mxu0
        %v6702 = vadd.f32 0.0, %v6701
        %v6703 = vpop.f32.mrb[0].mxu0
        %v6704 = vadd.f32 0.0, %v6703
        %v6705 = vpop.f32.mrb[0].mxu0
        %v6706 = vadd.f32 0.0, %v6705
        %v6707 = vpop.f32.mrb[0].mxu0
        %v6708 = vadd.f32 0.0, %v6707
        %6709 = vdwg.mxu0
        %v6710 = vpack.c.bf16 %v6676, %v6672
        %v6711 = vpack.c.bf16 %v6686, %v6682
        %v6712 = vpack.c.bf16 %v6696, %v6692
        %v6713 = vpack.c.bf16 %v6706, %v6702
        %v6714 = vpack.c.bf16 %v6678, %v6674
        %v6715 = vpack.c.bf16 %v6688, %v6684
        %v6716 = vpack.c.bf16 %v6698, %v6694
        %v6717 = vpack.c.bf16 %v6708, %v6704
        %6722 = vrot.lane.b32.xlu0 %v6710, 104
        %v6723 = vpop.permute.xlu0 %6722
        %6724 = vrot.lane.b32.xlu0 %v6711, 104
        %v6725 = vpop.permute.xlu0 %6724
        %6726 = vrot.lane.b32.xlu0 %v6712, 104
        %v6727 = vpop.permute.xlu0 %6726
        %6728 = vrot.lane.b32.xlu0 %v6713, 104
        %v6729 = vpop.permute.xlu0 %6728
        %6734 = vrot.lane.b32.xlu0 %v6710, 80
        %v6735 = vpop.permute.xlu0 %6734
        %6736 = vrot.lane.b32.xlu0 %v6711, 80
        %v6737 = vpop.permute.xlu0 %6736
        %6738 = vrot.lane.b32.xlu0 %v6712, 80
        %v6739 = vpop.permute.xlu0 %6738
        %6740 = vrot.lane.b32.xlu0 %v6713, 80
        %v6741 = vpop.permute.xlu0 %6740
        %6746 = vrot.lane.b32.xlu0 %v6710, 56
        %v6747 = vpop.permute.xlu0 %6746
        %6748 = vrot.lane.b32.xlu0 %v6711, 56
        %v6749 = vpop.permute.xlu0 %6748
        %6750 = vrot.lane.b32.xlu0 %v6712, 56
        %v6751 = vpop.permute.xlu0 %6750
        %6752 = vrot.lane.b32.xlu0 %v6713, 56
        %v6753 = vpop.permute.xlu0 %6752
        %6758 = vrot.lane.b32.xlu0 %v6710, 32
        %v6759 = vpop.permute.xlu0 %6758
        %6760 = vrot.lane.b32.xlu0 %v6711, 32
        %v6761 = vpop.permute.xlu0 %6760
        %6762 = vrot.lane.b32.xlu0 %v6712, 32
        %v6763 = vpop.permute.xlu0 %6762
        %6764 = vrot.lane.b32.xlu0 %v6713, 32
        %v6765 = vpop.permute.xlu0 %6764
        %6774 = vrot.lane.b32.xlu0 %v6710, 8
        %v6775 = vpop.permute.xlu0 %6774
        %6776 = vrot.lane.b32.xlu0 %v6714, 8
        %v6777 = vpop.permute.xlu0 %6776
        %6778 = vrot.lane.b32.xlu0 %v6711, 8
        %v6779 = vpop.permute.xlu0 %6778
        %6780 = vrot.lane.b32.xlu0 %v6715, 8
        %v6781 = vpop.permute.xlu0 %6780
        %6782 = vrot.lane.b32.xlu0 %v6712, 8
        %v6783 = vpop.permute.xlu0 %6782
        %6784 = vrot.lane.b32.xlu0 %v6716, 8
        %v6785 = vpop.permute.xlu0 %6784
        %6786 = vrot.lane.b32.xlu0 %v6713, 8
        %v6787 = vpop.permute.xlu0 %6786
        %6788 = vrot.lane.b32.xlu0 %v6717, 8
        %v6789 = vpop.permute.xlu0 %6788
        %vm6790 = vcmask 64512
        %v6791 = vsel %vm6790, %v6775, %v6777
        %v6792 = vsel %vm6790, %v6779, %v6781
        %v6793 = vsel %vm6790, %v6783, %v6785
        %v6794 = vsel %vm6790, %v6787, %v6789
        %6799 = vrot.lane.b32.xlu0 %v6714, 112
        %v6800 = vpop.permute.xlu0 %6799
        %6801 = vrot.lane.b32.xlu0 %v6715, 112
        %v6802 = vpop.permute.xlu0 %6801
        %6803 = vrot.lane.b32.xlu0 %v6716, 112
        %v6804 = vpop.permute.xlu0 %6803
        %6805 = vrot.lane.b32.xlu0 %v6717, 112
        %v6806 = vpop.permute.xlu0 %6805
        %6811 = vrot.lane.b32.xlu0 %v6714, 88
        %v6812 = vpop.permute.xlu0 %6811
        %6813 = vrot.lane.b32.xlu0 %v6715, 88
        %v6814 = vpop.permute.xlu0 %6813
        %6815 = vrot.lane.b32.xlu0 %v6716, 88
        %v6816 = vpop.permute.xlu0 %6815
        %6817 = vrot.lane.b32.xlu0 %v6717, 88
        %v6818 = vpop.permute.xlu0 %6817
        %6823 = vrot.lane.b32.xlu0 %v6714, 64
        %v6824 = vpop.permute.xlu0 %6823
        %6825 = vrot.lane.b32.xlu0 %v6715, 64
        %v6826 = vpop.permute.xlu0 %6825
        %6827 = vrot.lane.b32.xlu0 %v6716, 64
        %v6828 = vpop.permute.xlu0 %6827
        %6829 = vrot.lane.b32.xlu0 %v6717, 64
        %v6830 = vpop.permute.xlu0 %6829
        %v6835 = vld [vmem:[%s4] sm:$0xff]
        %v6836 = vld [vmem:[%s4 + $0x8] sm:$0xff]
        %v6837 = vld [vmem:[%s4 + $0x10] sm:$0xf]
        %v6838 = vld [vmem:[%s4 + $0x14] sm:$0xff]
        %v6839 = vld [vmem:[%s4 + $0x1c] sm:$0xff]
        %v6840 = vld [vmem:[%s4 + $0x24] sm:$0xf]
        %v6841 = vld [vmem:[%s4 + $0x28] sm:$0xff]
        %v6842 = vld [vmem:[%s4 + $0x30] sm:$0xff]
        %v6843 = vld [vmem:[%s4 + $0x38] sm:$0xf]
        %v6844 = vld [vmem:[%s4 + $0x3c] sm:$0xff]
        %v6845 = vld [vmem:[%s4 + $0x44] sm:$0xff]
        %v6846 = vld [vmem:[%s4 + $0x4c] sm:$0xf]
        %v6847 = vld [vmem:[%s4 + $0x50] sm:$0xff]
        %v6848 = vld [vmem:[%s4 + $0x58] sm:$0xff]
        %v6849 = vld [vmem:[%s4 + $0x60] sm:$0xf]
        %v6850 = vld [vmem:[%s4 + $0x64] sm:$0xff]
        %v6851 = vld [vmem:[%s4 + $0x6c] sm:$0xff]
        %v6852 = vld [vmem:[%s4 + $0x74] sm:$0xf]
        %v6853 = vld [vmem:[%s4 + $0x78] sm:$0xff]
        %v6854 = vld [vmem:[%s4 + $0x80] sm:$0xff]
        %v6855 = vld [vmem:[%s4 + $0x88] sm:$0xf]
        %v6856 = vld [vmem:[%s4 + $0x8c] sm:$0xff]
        %v6857 = vld [vmem:[%s4 + $0x94] sm:$0xff]
        %v6858 = vld [vmem:[%s4 + $0x9c] sm:$0xf]
        %v6883 = vunpack.c.l.b16 %v6835
        %v6884 = vunpack.c.h.b16 %v6835
        %v6885 = vunpack.c.l.b16 %v6836
        %v6886 = vunpack.c.h.b16 %v6836
        %v6887 = vunpack.c.l.b16 %v6837
        %v6888 = vunpack.c.l.b16 %v6838
        %v6889 = vunpack.c.h.b16 %v6838
        %v6890 = vunpack.c.l.b16 %v6839
        %v6891 = vunpack.c.h.b16 %v6839
        %v6892 = vunpack.c.l.b16 %v6840
        %v6893 = vunpack.c.l.b16 %v6841
        %v6894 = vunpack.c.h.b16 %v6841
        %v6895 = vunpack.c.l.b16 %v6842
        %v6896 = vunpack.c.h.b16 %v6842
        %v6897 = vunpack.c.l.b16 %v6843
        %v6898 = vunpack.c.l.b16 %v6844
        %v6899 = vunpack.c.h.b16 %v6844
        %v6900 = vunpack.c.l.b16 %v6845
        %v6901 = vunpack.c.h.b16 %v6845
        %v6902 = vunpack.c.l.b16 %v6846
        %v6903 = vunpack.c.l.b16 %v6847
        %v6904 = vunpack.c.h.b16 %v6847
        %v6905 = vunpack.c.l.b16 %v6848
        %v6906 = vunpack.c.h.b16 %v6848
        %v6907 = vunpack.c.l.b16 %v6849
        %v6908 = vunpack.c.l.b16 %v6850
        %v6909 = vunpack.c.h.b16 %v6850
        %v6910 = vunpack.c.l.b16 %v6851
        %v6911 = vunpack.c.h.b16 %v6851
        %v6912 = vunpack.c.l.b16 %v6852
        %v6913 = vunpack.c.l.b16 %v6853
        %v6914 = vunpack.c.h.b16 %v6853
        %v6915 = vunpack.c.l.b16 %v6854
        %v6916 = vunpack.c.h.b16 %v6854
        %v6917 = vunpack.c.l.b16 %v6855
        %v6918 = vunpack.c.l.b16 %v6856
        %v6919 = vunpack.c.h.b16 %v6856
        %v6920 = vunpack.c.l.b16 %v6857
        %v6921 = vunpack.c.h.b16 %v6857
        %v6922 = vunpack.c.l.b16 %v6858
        %v6923 = vpack.c.b16 %v6888, %v6883
        %v6924 = vpack.c.b16 %v6889, %v6884
        %v6925 = vpack.c.b16 %v6890, %v6885
        %v6926 = vpack.c.b16 %v6891, %v6886
        %v6927 = vpack.c.b16 %v6892, %v6887
        %v6928 = vpack.c.b16 %v6898, %v6893
        %v6929 = vpack.c.b16 %v6899, %v6894
        %v6930 = vpack.c.b16 %v6900, %v6895
        %v6931 = vpack.c.b16 %v6901, %v6896
        %v6932 = vpack.c.b16 %v6902, %v6897
        %v6933 = vpack.c.b16 %v6908, %v6903
        %v6934 = vpack.c.b16 %v6909, %v6904
        %v6935 = vpack.c.b16 %v6910, %v6905
        %v6936 = vpack.c.b16 %v6911, %v6906
        %v6937 = vpack.c.b16 %v6912, %v6907
        %v6938 = vpack.c.b16 %v6918, %v6913
        %v6939 = vpack.c.b16 %v6919, %v6914
        %v6940 = vpack.c.b16 %v6920, %v6915
        %v6941 = vpack.c.b16 %v6921, %v6916
        %v6942 = vpack.c.b16 %v6922, %v6917
        %v6960 = vsel %vm834, %v6927, 0
        %v6963 = vsel %vm834, %v6932, 0
        %v6966 = vsel %vm834, %v6937, 0
        %v6969 = vsel %vm834, %v6942, 0
        %6971 = vmatprep.subr.bf16.mxu0 0
        %6972 = vmatpush1.bf16.msra.mxu0 %v6710
        %6973 = vmatprep.subr.bf16.mxu0 0
        %6974 = vmatpush1.bf16.msra.mxu0 %v6711
        %6975 = vmatprep.subr.bf16.mxu0 0
        %6976 = vmatpush1.bf16.msra.mxu0 %v6712
        %6977 = vmatprep.subr.bf16.mxu0 0
        %6978 = vmatpush1.bf16.msra.mxu0 %v6713
        %6979 = vmatprep.subr.bf16.mxu0 0
        %6980 = vmatpush1.bf16.msra.mxu0 %v6723
        %6981 = vmatprep.subr.bf16.mxu0 0
        %6982 = vmatpush1.bf16.msra.mxu0 %v6725
        %6983 = vmatprep.subr.bf16.mxu0 0
        %6984 = vmatpush1.bf16.msra.mxu0 %v6727
        %6985 = vmatprep.subr.bf16.mxu0 0
        %6986 = vmatpush1.bf16.msra.mxu0 %v6729
        %6987 = vmatprep.subr.bf16.mxu0 0
        %6988 = vmatpush1.bf16.msra.mxu0 %v6735
        %6989 = vmatprep.subr.bf16.mxu0 0
        %6990 = vmatpush1.bf16.msra.mxu0 %v6737
        %6991 = vmatprep.subr.bf16.mxu0 0
        %6992 = vmatpush1.bf16.msra.mxu0 %v6739
        %6993 = vmatprep.subr.bf16.mxu0 0
        %6994 = vmatpush1.bf16.msra.mxu0 %v6741
        %6995 = vmatprep.subr.bf16.mxu0 0
        %6996 = vmatpush1.bf16.msra.mxu0 %v6747
        %6997 = vmatprep.subr.bf16.mxu0 0
        %6998 = vmatpush1.bf16.msra.mxu0 %v6749
        %6999 = vmatprep.subr.bf16.mxu0 0
        %7000 = vmatpush1.bf16.msra.mxu0 %v6751
        %7001 = vmatprep.subr.bf16.mxu0 0
        %7002 = vmatpush1.bf16.msra.mxu0 %v6753
        %7003 = vmatprep.mubr.bf16.mxu0 %v6924
        %7004 = vmatmul.mubr.bf16.gmra.mrb[0].mxu0 %v6923
        %v7005 = vpop.f32.mrb[0].mxu0
        %v7006 = vadd.f32 0.0, %v7005
        %v7007 = vpop.f32.mrb[0].mxu0
        %v7008 = vpop.f32.mrb[0].mxu0
        %v7009 = vadd.f32 0.0, %v7008
        %v7010 = vpop.f32.mrb[0].mxu0
        %7011 = vmatprep.mubr.bf16.mxu0 %v6929
        %7012 = vmatmul.mubr.bf16.gmra.mrb[0].mxu0 %v6928
        %v7013 = vpop.f32.mrb[0].mxu0
        %v7014 = vadd.f32 0.0, %v7013
        %v7015 = vpop.f32.mrb[0].mxu0
        %v7016 = vpop.f32.mrb[0].mxu0
        %v7017 = vadd.f32 0.0, %v7016
        %v7018 = vpop.f32.mrb[0].mxu0
        %7019 = vmatprep.mubr.bf16.mxu0 %v6934
        %7020 = vmatmul.mubr.bf16.gmra.mrb[0].mxu0 %v6933
        %v7021 = vpop.f32.mrb[0].mxu0
        %v7022 = vadd.f32 0.0, %v7021
        %v7023 = vpop.f32.mrb[0].mxu0
        %v7024 = vpop.f32.mrb[0].mxu0
        %v7025 = vadd.f32 0.0, %v7024
        %v7026 = vpop.f32.mrb[0].mxu0
        %7027 = vmatprep.mubr.bf16.mxu0 %v6939
        %7028 = vmatmul.mubr.bf16.gmra.mrb[0].mxu0 %v6938
        %v7029 = vpop.f32.mrb[0].mxu0
        %v7030 = vadd.f32 0.0, %v7029
        %v7031 = vpop.f32.mrb[0].mxu0
        %v7032 = vpop.f32.mrb[0].mxu0
        %v7033 = vadd.f32 0.0, %v7032
        %v7034 = vpop.f32.mrb[0].mxu0
        %7035 = vdwg.mxu0
        %7036 = vmatprep.subr.bf16.mxu0 0
        %7037 = vmatpush1.bf16.msra.mxu0 %v6759
        %7038 = vmatprep.subr.bf16.mxu0 0
        %7039 = vmatpush1.bf16.msra.mxu0 %v6761
        %7040 = vmatprep.subr.bf16.mxu0 0
        %7041 = vmatpush1.bf16.msra.mxu0 %v6763
        %7042 = vmatprep.subr.bf16.mxu0 0
        %7043 = vmatpush1.bf16.msra.mxu0 %v6765
        %7044 = vmatprep.subr.bf16.mxu0 0
        %7045 = vmatpush1.bf16.msra.mxu0 %v6791
        %7046 = vmatprep.subr.bf16.mxu0 0
        %7047 = vmatpush1.bf16.msra.mxu0 %v6792
        %7048 = vmatprep.subr.bf16.mxu0 0
        %7049 = vmatpush1.bf16.msra.mxu0 %v6793
        %7050 = vmatprep.subr.bf16.mxu0 0
        %7051 = vmatpush1.bf16.msra.mxu0 %v6794
        %7052 = vmatprep.subr.bf16.mxu0 0
        %7053 = vmatpush1.bf16.msra.mxu0 %v6800
        %7054 = vmatprep.subr.bf16.mxu0 0
        %7055 = vmatpush1.bf16.msra.mxu0 %v6802
        %7056 = vmatprep.subr.bf16.mxu0 0
        %7057 = vmatpush1.bf16.msra.mxu0 %v6804
        %7058 = vmatprep.subr.bf16.mxu0 0
        %7059 = vmatpush1.bf16.msra.mxu0 %v6806
        %7060 = vmatprep.subr.bf16.mxu0 0
        %7061 = vmatpush1.bf16.msra.mxu0 %v6812
        %7062 = vmatprep.subr.bf16.mxu0 0
        %7063 = vmatpush1.bf16.msra.mxu0 %v6814
        %7064 = vmatprep.subr.bf16.mxu0 0
        %7065 = vmatpush1.bf16.msra.mxu0 %v6816
        %7066 = vmatprep.subr.bf16.mxu0 0
        %7067 = vmatpush1.bf16.msra.mxu0 %v6818
        %7068 = vmatprep.mubr.bf16.mxu0 %v6926
        %7069 = vmatmul.mubr.bf16.gmra.mrb[0].mxu0 %v6925
        %v7070 = vpop.f32.mrb[0].mxu0
        %v7071 = vadd.f32 %v7006, %v7070
        %v7072 = vpop.f32.mrb[0].mxu0
        %v7073 = vpop.f32.mrb[0].mxu0
        %v7074 = vadd.f32 %v7009, %v7073
        %v7075 = vpop.f32.mrb[0].mxu0
        %7076 = vmatprep.mubr.bf16.mxu0 %v6931
        %7077 = vmatmul.mubr.bf16.gmra.mrb[0].mxu0 %v6930
        %v7078 = vpop.f32.mrb[0].mxu0
        %v7079 = vadd.f32 %v7014, %v7078
        %v7080 = vpop.f32.mrb[0].mxu0
        %v7081 = vpop.f32.mrb[0].mxu0
        %v7082 = vadd.f32 %v7017, %v7081
        %v7083 = vpop.f32.mrb[0].mxu0
        %7084 = vmatprep.mubr.bf16.mxu0 %v6936
        %7085 = vmatmul.mubr.bf16.gmra.mrb[0].mxu0 %v6935
        %v7086 = vpop.f32.mrb[0].mxu0
        %v7087 = vadd.f32 %v7022, %v7086
        %v7088 = vpop.f32.mrb[0].mxu0
        %v7089 = vpop.f32.mrb[0].mxu0
        %v7090 = vadd.f32 %v7025, %v7089
        %v7091 = vpop.f32.mrb[0].mxu0
        %7092 = vmatprep.mubr.bf16.mxu0 %v6941
        %7093 = vmatmul.mubr.bf16.gmra.mrb[0].mxu0 %v6940
        %v7094 = vpop.f32.mrb[0].mxu0
        %v7095 = vadd.f32 %v7030, %v7094
        %v7096 = vpop.f32.mrb[0].mxu0
        %v7097 = vpop.f32.mrb[0].mxu0
        %v7098 = vadd.f32 %v7033, %v7097
        %v7099 = vpop.f32.mrb[0].mxu0
        %7100 = vdwg.mxu0
        %7101 = vmatprep.subr.bf16.mxu0 0
        %7102 = vmatpush1.bf16.msra.mxu0 %v6824
        %7103 = vmatprep.subr.bf16.mxu0 0
        %7104 = vmatpush1.bf16.msra.mxu0 %v6826
        %7105 = vmatprep.subr.bf16.mxu0 0
        %7106 = vmatpush1.bf16.msra.mxu0 %v6828
        %7107 = vmatprep.subr.bf16.mxu0 0
        %7108 = vmatpush1.bf16.msra.mxu0 %v6830
        %7109 = vmatprep.subr.bf16.mxu0 0
        %7110 = vmatpush1.bf16.msra.mxu0 0
        %7111 = vmatprep.subr.bf16.mxu0 0
        %7112 = vmatpush1.bf16.msra.mxu0 0
        %7113 = vmatprep.subr.bf16.mxu0 0
        %7114 = vmatpush1.bf16.msra.mxu0 0
        %7115 = vmatprep.subr.bf16.mxu0 0
        %7116 = vmatpush1.bf16.msra.mxu0 0
        %7117 = vmatprep.subr.bf16.mxu0 0
        %7118 = vmatpush1.bf16.msra.mxu0 0
        %7119 = vmatprep.subr.bf16.mxu0 0
        %7120 = vmatpush1.bf16.msra.mxu0 0
        %7121 = vmatprep.subr.bf16.mxu0 0
        %7122 = vmatpush1.bf16.msra.mxu0 0
        %7123 = vmatprep.subr.bf16.mxu0 0
        %7124 = vmatpush1.bf16.msra.mxu0 0
        %7125 = vmatprep.subr.bf16.mxu0 0
        %7126 = vmatpush1.bf16.msra.mxu0 0
        %7127 = vmatprep.subr.bf16.mxu0 0
        %7128 = vmatpush1.bf16.msra.mxu0 0
        %7129 = vmatprep.subr.bf16.mxu0 0
        %7130 = vmatpush1.bf16.msra.mxu0 0
        %7131 = vmatprep.subr.bf16.mxu0 0
        %7132 = vmatpush1.bf16.msra.mxu0 0
        %7133 = vmatprep.mubr.bf16.mxu0 0
        %7134 = vmatmul.mubr.bf16.gmra.mrb[0].mxu0 %v6960
        %v7135 = vpop.f32.mrb[0].mxu0
        %v7136 = vadd.f32 %v7071, %v7135
        %v7137 = vpop.f32.mrb[0].mxu0
        %v7138 = vpop.f32.mrb[0].mxu0
        %v7139 = vadd.f32 %v7074, %v7138
        %v7140 = vpop.f32.mrb[0].mxu0
        %7141 = vmatprep.mubr.bf16.mxu0 0
        %7142 = vmatmul.mubr.bf16.gmra.mrb[0].mxu0 %v6963
        %v7143 = vpop.f32.mrb[0].mxu0
        %v7144 = vadd.f32 %v7079, %v7143
        %v7145 = vpop.f32.mrb[0].mxu0
        %v7146 = vpop.f32.mrb[0].mxu0
        %v7147 = vadd.f32 %v7082, %v7146
        %v7148 = vpop.f32.mrb[0].mxu0
        %7149 = vmatprep.mubr.bf16.mxu0 0
        %7150 = vmatmul.mubr.bf16.gmra.mrb[0].mxu0 %v6966
        %v7151 = vpop.f32.mrb[0].mxu0
        %v7152 = vadd.f32 %v7087, %v7151
        %v7153 = vpop.f32.mrb[0].mxu0
        %v7154 = vpop.f32.mrb[0].mxu0
        %v7155 = vadd.f32 %v7090, %v7154
        %v7156 = vpop.f32.mrb[0].mxu0
        %7157 = vmatprep.mubr.bf16.mxu0 0
        %7158 = vmatmul.mubr.bf16.gmra.mrb[0].mxu0 %v6969
        %v7159 = vpop.f32.mrb[0].mxu0
        %v7160 = vadd.f32 %v7095, %v7159
        %v7161 = vpop.f32.mrb[0].mxu0
        %v7162 = vpop.f32.mrb[0].mxu0
        %v7163 = vadd.f32 %v7098, %v7162
        %v7164 = vpop.f32.mrb[0].mxu0
        %7165 = vdwg.mxu0
        %v7166 = vadd.f32 %v346, %v7136
        %v7167 = vadd.f32 %v347, %v7139
        %v7168 = vadd.f32 %v348, %v7144
        %v7169 = vadd.f32 %v349, %v7147
        %v7170 = vadd.f32 %v350, %v7152
        %v7171 = vadd.f32 %v351, %v7155
        %v7172 = vadd.f32 %v352, %v7160
        %v7173 = vadd.f32 %v353, %v7163
        %v7174 = vld [vmem:[%s6] sm:$0x1]
        %v7175 = vlaneseq
        %v7176 = vshrl.u32 %v7175, 7
        %v7177 = vsub.s32 0, %v7176
        %v7178 = vrot.slane %v7174, %v7177
        %v7179 = vadd.f32 %v7166, %v7178
        %v7180 = vadd.f32 %v7167, %v7178
        %v7181 = vadd.f32 %v7168, %v7178
        %v7182 = vadd.f32 %v7169, %v7178
        %v7183 = vadd.f32 %v7170, %v7178
        %v7184 = vadd.f32 %v7171, %v7178
        %v7185 = vadd.f32 %v7172, %v7178
        %v7186 = vadd.f32 %v7173, %v7178
        %7187 = vst.msk [vmem:[%s336] sm:$0xff] %vm393, %v7179
        %7188 = vst.msk [vmem:[%s336 + $0x8] sm:$0xff] %vm393, %v7180
        %7189 = vst.msk [vmem:[%s336 + $0x10] sm:$0xff] %vm393, %v7181
        %7190 = vst.msk [vmem:[%s336 + $0x18] sm:$0xff] %vm393, %v7182
        %7191 = vst.msk [vmem:[%s336 + $0x20] sm:$0xff] %vm393, %v7183
        %7192 = vst.msk [vmem:[%s336 + $0x28] sm:$0xff] %vm393, %v7184
        %7193 = vst.msk [vmem:[%s336 + $0x30] sm:$0xff] %vm393, %v7185
        %7194 = vst.msk [vmem:[%s336 + $0x38] sm:$0xff] %vm393, %v7186
        %s7195 = sand.u32 %s230, 1
        %s7196 = scalar_lea.sflag [#allocation3], %s7195
        %s7197 = sand.u32 %s230, 1
        %s7198 = smul.addr %s7197, 64
        %s7199 = scalar_lea.vmem [#allocation2], %s7198
        // Predicated region
        $region57: #{rtblock_forward.1} parent=55 // pred_check
          %p7200 = pneg %p240
        $region58: #{rtblock_forward.1} parent=55 // pred_check_branch
          %7202 = sbr.rel (%p7200) target = $region60
        $region59: #{rtblock_forward.1} parent=55 // pred_region
          %s7204 = ssub.s32 1024, 1024
          %7205 = vsyncadd %s7196, %s7204
          %s7206 = smul.addr %s23, 8
          %s7207 = smul.addr %s7206, 128
          %s7208 = scalar_lea.hbm %s9, %s7207
          %s7209 = sshll.u32 %s7199, 4
          %s7210 = int_to_ptr.vmem [resolvable:$true] %s7209
          %7215 = dma.vmem_to_hbm [thread:$0]  %s7210, 1024, %s7208, %s7196, 128, 128, 8
        $region60: #{rtblock_forward.1} parent=55 // pred_fallthru
          _
      $region56: #{rtblock_forward.1} parent=5 // pred_fallthru
        _
      %p7216 = scmp.le.s32.totalorder 2, %s18
      // Predicated region
      $region61: #{rtblock_forward.1} parent=5 // pred_check
        %p7217 = pneg %p7216
      $region62: #{rtblock_forward.1} parent=5 // pred_check_branch
        %7219 = sbr.rel (%p7217) target = $region64
      $region63: #{rtblock_forward.1} parent=5 // pred_region
        %s7220 = ssub.s32 %s18, 2
        // Predicated region
        $region65: #{rtblock_forward.1} parent=63 // pred_check
          %p7221 = pneg %p246
        $region66: #{rtblock_forward.1} parent=63 // pred_check_branch
          %7223 = sbr.rel (%p7221) target = $region68
        $region67: #{rtblock_forward.1} parent=63 // pred_region
          %s7224 = sand.u32 %s231, 1
          %s7225 = scalar_lea.sflag [#allocation3], %s7224
          %s7226 = sand.u32 %s231, 1
          %s7227 = smul.addr %s7226, 64
          %s7228 = scalar_lea.vmem [#allocation2], %s7227
          %7229 = dma.done %s7225, 1024
        $region68: #{rtblock_forward.1} parent=63 // pred_fallthru
          _
      $region64: #{rtblock_forward.1} parent=5 // pred_fallthru
        _
    $region6: #{rtblock_forward.1} parent=1 // loop_footer
      %s22 = sadd.s32 1, %s18
    $region7: #{rtblock_forward.1} parent=1 // loop_footer_branch
      %17 = sbr.rel target = $region3
    $region8: #{rtblock_forward.1} parent=1 // loop_exit
      _
    %7230 = vsyncpa [#allocation3], 1
    %s7231 = scalar_lea.sflag [#allocation3], 1
    %7232 = vsyncpa %s7231, 1

</llo_original>
